<compile_context>
chip_gen: v5e
topology: v5e:2x2
jax: 0.10.0
libtpu: 0.0.40
codegen_flags: <defaults>
</compile_context>

<pallas_src>
import math
import functools

import jax
import jax.numpy as jnp
from jax.experimental import pallas as pl
from jax.experimental.pallas import tpu as pltpu

NEG_INF = -1e30          # finite "masked" value (avoids NaN for fully-masked rows)
LN_EPS = 1e-5

_COMPILER_PARAMS = pltpu.CompilerParams(
    dimension_semantics=("parallel", "arbitrary"),
    vmem_limit_bytes=32 * 1024 * 1024,
)


# ----------------------------------------------------------------------------
# In-kernel helpers (traced inside the kernels)
# ----------------------------------------------------------------------------

def _layernorm(y, g, b, eps):
    mu = jnp.mean(y, axis=-1, keepdims=True)
    var = jnp.mean(jnp.square(y - mu), axis=-1, keepdims=True)
    return (y - mu) * jax.lax.rsqrt(var + eps) * g + b


def _mha(xq, xkv, mask, wqkv_ref, bqkv_ref, wo_ref, bo_ref, nhead):
    """Multi-head attention with per-head weight slabs.

    xq: (Tq, E) f32, xkv: (Tk, E) f32, mask: (Tq, Tk) or (1, Tk) additive f32.
    wqkv_ref: (3, H, E, dh) bf16, bqkv_ref: (3, H, 1, dh) f32,
    wo_ref: (H, dh, E) bf16, bo_ref: (1, E) f32.  Returns (Tq, E) f32.
    """
    Tq, E = xq.shape
    dh = wqkv_ref.shape[-1]
    scale = 1.0 / math.sqrt(dh)
    xq_b = xq.astype(jnp.bfloat16)
    xkv_b = xkv.astype(jnp.bfloat16)
    acc = jnp.zeros((Tq, E), jnp.float32)
    for h in range(nhead):                                  # static unrolled
        qh = jnp.dot(xq_b, wqkv_ref[0, h],
                     preferred_element_type=jnp.float32) + bqkv_ref[0, h]
        kh = jnp.dot(xkv_b, wqkv_ref[1, h],
                     preferred_element_type=jnp.float32) + bqkv_ref[1, h]
        vh = jnp.dot(xkv_b, wqkv_ref[2, h],
                     preferred_element_type=jnp.float32) + bqkv_ref[2, h]
        s = jnp.dot(qh, kh.T, preferred_element_type=jnp.float32) * scale + mask
        s = s - jnp.max(s, axis=-1, keepdims=True)
        p = jnp.exp(s)
        p = p * pl.reciprocal(jnp.sum(p, axis=-1, keepdims=True), approx=True)
        ah = jnp.dot(p, vh, preferred_element_type=jnp.float32)       # (Tq, dh)
        # per-head output projection, accumulated -> no concatenate over heads
        acc = acc + jnp.dot(ah.astype(jnp.bfloat16), wo_ref[h],
                            preferred_element_type=jnp.float32)
    return acc + bo_ref[...]


def _ffn(x, w1_ref, b1_ref, w2_ref, b2_ref):
    h = jnp.dot(x.astype(jnp.bfloat16), w1_ref[...],
                preferred_element_type=jnp.float32) + b1_ref[...]
    h = jnp.maximum(h, 0.0)                                  # ReLU
    return jnp.dot(h.astype(jnp.bfloat16), w2_ref[...],
                   preferred_element_type=jnp.float32) + b2_ref[...]


# ----------------------------------------------------------------------------
# Fused whole-stack kernels (grid = (batch, layer))
# ----------------------------------------------------------------------------

def _encoder_kernel(x0_ref, amask_ref, kpad_ref,
                    wqkv_ref, bqkv_ref, wo_ref, bo_ref, g1_ref, b1_ref,
                    w1_ref, bf1_ref, w2_ref, bf2_ref, g2_ref, b2_ref,
                    gn_ref, bn_ref, mem_ref, *, nhead, eps):
    l = pl.program_id(1)

    @pl.when(l == 0)
    def _():                                                 # load embeddings
        mem_ref[...] = x0_ref[...]

    x = mem_ref[...]                                         # (S, E) carried state
    mask = amask_ref[...] + kpad_ref[0]                      # (S, S) additive

    a = _mha(x, x, mask, wqkv_ref, bqkv_ref, wo_ref, bo_ref, nhead)
    x = _layernorm(x + a, g1_ref[...], b1_ref[...], eps)     # post-LN
    f = _ffn(x, w1_ref, bf1_ref, w2_ref, bf2_ref)
    x = _layernorm(x + f, g2_ref[...], b2_ref[...], eps)
    mem_ref[...] = x

    @pl.when(l == pl.num_programs(1) - 1)
    def _():                                                 # final encoder norm
        mem_ref[...] = _layernorm(mem_ref[...], gn_ref[...], bn_ref[...], eps)


def _decoder_kernel(y0_ref, mem_ref, tmask_ref, tkpad_ref, mkpad_ref,
                    wqkv_s, bqkv_s, wo_s, bo_s, g1, b1,
                    wqkv_c, bqkv_c, wo_c, bo_c, g2, b2,
                    w1, bf1, w2, bf2, g3, b3,
                    gn, bn, gw, gb,
                    out_ref, y_scr, *, nhead, eps):
    l = pl.program_id(1)

    @pl.when(l == 0)
    def _():                                                 # load tgt embeddings
        y_scr[...] = y0_ref[...]

    y = y_scr[...]                                           # (T, E) carried state
    mem = mem_ref[...]                                       # (S, E)
    smask = tmask_ref[...] + tkpad_ref[0]                    # (T, T)
    cmask = mkpad_ref[0]                                     # (1, S) -> broadcast

    a = _mha(y, y, smask, wqkv_s, bqkv_s, wo_s, bo_s, nhead)     # self-attn
    y = _layernorm(y + a, g1[...], b1[...], eps)
    a = _mha(y, mem, cmask, wqkv_c, bqkv_c, wo_c, bo_c, nhead)   # cross-attn
    y = _layernorm(y + a, g2[...], b2[...], eps)
    f = _ffn(y, w1, bf1, w2, bf2)                                # FFN
    y = _layernorm(y + f, g3[...], b3[...], eps)
    y_scr[...] = y

    @pl.when(l == pl.num_programs(1) - 1)
    def _():                                                 # final norm + generator
        yo = _layernorm(y_scr[...], gn[...], bn[...], eps)
        out_ref[...] = jnp.dot(yo.astype(jnp.bfloat16), gw[...],
                               preferred_element_type=jnp.float32) + gb[...]


# ----------------------------------------------------------------------------
# pallas_call wrappers
# ----------------------------------------------------------------------------

def _wspec(shape):
    """Per-layer stacked weight: (L, *shape) array, layer dim squeezed in kernel."""
    nd = len(shape)
    return pl.BlockSpec((None,) + tuple(shape), lambda n, l, _nd=nd: (l,) + (0,) * _nd)


def _const(shape):
    nd = len(shape)
    return pl.BlockSpec(tuple(shape), lambda n, l, _nd=nd: (0,) * _nd)


def encoder_stack(src_e, src_am, src_kp, enc, N, S, E, H):
    L = enc["wqkv"].shape[0]
    F = enc["w1"].shape[2]
    dh = E // H
    in_specs = [
        pl.BlockSpec((S, E), lambda n, l: (n, 0)),           # embedded src
        _const((S, S)),                                      # attn mask
        pl.BlockSpec((1, 1, S), lambda n, l: (n, 0, 0)),     # key padding (additive)
        _wspec((3, H, E, dh)), _wspec((3, H, 1, dh)),        # qkv proj
        _wspec((H, dh, E)), _wspec((1, E)),                  # out proj
        _wspec((1, E)), _wspec((1, E)),                      # ln1
        _wspec((E, F)), _wspec((1, F)),                      # ffn w1
        _wspec((F, E)), _wspec((1, E)),                      # ffn w2
        _wspec((1, E)), _wspec((1, E)),                      # ln2
        _const((1, E)), _const((1, E)),                      # final encoder norm
    ]
    return pl.pallas_call(
        functools.partial(_encoder_kernel, nhead=H, eps=LN_EPS),
        grid=(N, L),
        in_specs=in_specs,
        out_specs=pl.BlockSpec((S, E), lambda n, l: (n, 0)),
        out_shape=jax.ShapeDtypeStruct((N * S, E), jnp.float32),
        compiler_params=_COMPILER_PARAMS,
    )(src_e, src_am, src_kp,
      enc["wqkv"], enc["bqkv"], enc["wo"], enc["bo"], enc["g1"], enc["b1"],
      enc["w1"], enc["bf1"], enc["w2"], enc["bf2"], enc["g2"], enc["b2"],
      enc["gn"], enc["bn"])


def decoder_stack(tgt_e, memory, tgt_am, tgt_kp, mem_kp, dec, gen_w, gen_b,
                  N, T, S, E, H):
    L = dec["wqkv_s"].shape[0]
    F = dec["w1"].shape[2]
    dh = E // H
    Vp = gen_w.shape[1]
    in_specs = [
        pl.BlockSpec((T, E), lambda n, l: (n, 0)),           # embedded tgt
        pl.BlockSpec((S, E), lambda n, l: (n, 0)),           # encoder memory
        _const((T, T)),                                      # tgt attn mask
        pl.BlockSpec((1, 1, T), lambda n, l: (n, 0, 0)),     # tgt key padding
        pl.BlockSpec((1, 1, S), lambda n, l: (n, 0, 0)),     # memory key padding
        # self-attention
        _wspec((3, H, E, dh)), _wspec((3, H, 1, dh)), _wspec((H, dh, E)), _wspec((1, E)),
        _wspec((1, E)), _wspec((1, E)),
        # cross-attention
        _wspec((3, H, E, dh)), _wspec((3, H, 1, dh)), _wspec((H, dh, E)), _wspec((1, E)),
        _wspec((1, E)), _wspec((1, E)),
        # FFN
        _wspec((E, F)), _wspec((1, F)), _wspec((F, E)), _wspec((1, E)),
        _wspec((1, E)), _wspec((1, E)),
        # final decoder norm + generator (layer independent)
        _const((1, E)), _const((1, E)),
        _const((E, Vp)), _const((1, Vp)),
    ]
    return pl.pallas_call(
        functools.partial(_decoder_kernel, nhead=H, eps=LN_EPS),
        grid=(N, L),
        in_specs=in_specs,
        out_specs=pl.BlockSpec((T, Vp), lambda n, l: (n, 0)),
        out_shape=jax.ShapeDtypeStruct((N * T, Vp), jnp.float32),
        scratch_shapes=[pltpu.VMEM((T, E), jnp.float32)],    # carried decoder state
        compiler_params=_COMPILER_PARAMS,
    )(tgt_e, memory, tgt_am, tgt_kp, mem_kp,
      dec["wqkv_s"], dec["bqkv_s"], dec["wo_s"], dec["bo_s"], dec["g1"], dec["b1"],
      dec["wqkv_c"], dec["bqkv_c"], dec["wo_c"], dec["bo_c"], dec["g2"], dec["b2"],
      dec["w1"], dec["bf1"], dec["w2"], dec["bf2"], dec["g3"], dec["b3"],
      dec["gn"], dec["bn"], gen_w, gen_b)


# ----------------------------------------------------------------------------
# Model glue (parameters, masks, embeddings)
# ----------------------------------------------------------------------------

def make_pos_embedding(emb_size, maxlen):
    den = jnp.exp(-jnp.arange(0, emb_size, 2, dtype=jnp.float32)
                  * math.log(10000.0) / emb_size)
    pos = jnp.arange(0, maxlen, dtype=jnp.float32)[:, None]
    pe = jnp.zeros((maxlen, emb_size), jnp.float32)
    pe = pe.at[:, 0::2].set(jnp.sin(pos * den))
    pe = pe.at[:, 1::2].set(jnp.cos(pos * den))
    return pe                                                # (maxlen, E)


def init_params(key, cfg):
    E, F = cfg["emb"], cfg["ffn"]
    H = cfg["nhead"]
    dh = E // H
    V, Vp = cfg["tgt_vocab"], cfg["tgt_vocab_pad"]
    Le, Ld = cfg["num_encoder_layers"], cfg["num_decoder_layers"]
    keys = iter(jax.random.split(key, 512))

    def W(shape, dtype=jnp.bfloat16):
        return (0.02 * jax.random.normal(next(keys), shape)).astype(dtype)

    zeros = lambda s: jnp.zeros(s, jnp.float32)
    ones = lambda s: jnp.ones(s, jnp.float32)

    def attn(L):
        return dict(wqkv=W((L, 3, H, E, dh)), bqkv=zeros((L, 3, H, 1, dh)),
                    wo=W((L, H, dh, E)), bo=zeros((L, 1, E)))

    sa_e = attn(Le)
    enc = dict(
        wqkv=sa_e["wqkv"], bqkv=sa_e["bqkv"], wo=sa_e["wo"], bo=sa_e["bo"],
        g1=ones((Le, 1, E)), b1=zeros((Le, 1, E)),
        w1=W((Le, E, F)), bf1=zeros((Le, 1, F)),
        w2=W((Le, F, E)), bf2=zeros((Le, 1, E)),
        g2=ones((Le, 1, E)), b2=zeros((Le, 1, E)),
        gn=ones((1, E)), bn=zeros((1, E)))

    sa_d, ca_d = attn(Ld), attn(Ld)
    dec = dict(
        wqkv_s=sa_d["wqkv"], bqkv_s=sa_d["bqkv"], wo_s=sa_d["wo"], bo_s=sa_d["bo"],
        g1=ones((Ld, 1, E)), b1=zeros((Ld, 1, E)),
        wqkv_c=ca_d["wqkv"], bqkv_c=ca_d["bqkv"], wo_c=ca_d["wo"], bo_c=ca_d["bo"],
        g2=ones((Ld, 1, E)), b2=zeros((Ld, 1, E)),
        w1=W((Ld, E, F)), bf1=zeros((Ld, 1, F)),
        w2=W((Ld, F, E)), bf2=zeros((Ld, 1, E)),
        g3=ones((Ld, 1, E)), b3=zeros((Ld, 1, E)),
        gn=ones((1, E)), bn=zeros((1, E)))

    gen_w = jnp.zeros((E, Vp), jnp.float32).at[:, :V].set(
        0.02 * jax.random.normal(next(keys), (E, V))).astype(jnp.bfloat16)

    return dict(
        src_tok=W((cfg["src_vocab"], E), jnp.float32),
        tgt_tok=W((cfg["tgt_vocab"], E), jnp.float32),
        pos=make_pos_embedding(E, cfg["maxlen"]),
        enc=enc, dec=dec,
        gen_w=gen_w, gen_b=zeros((1, Vp)))


def seq2seq_forward(params, src, trg, src_mask, tgt_mask,
                    src_padding_mask, tgt_padding_mask, memory_key_padding_mask,
                    cfg):
    E, H, V = cfg["emb"], cfg["nhead"], cfg["tgt_vocab"]
    S, N = src.shape
    T, _ = trg.shape
    scale = math.sqrt(E)
    pos = params["pos"]

    # Token-embedding gather + sqrt(E) scale + positional encoding, fused by XLA
    # into the gather epilogue.  Dropout layers are identity (eval mode).
    src_e = jnp.take(params["src_tok"], src.T.reshape(-1), axis=0)
    src_e = (src_e.reshape(N, S, E) * scale + pos[None, :S]).reshape(N * S, E)
    tgt_e = jnp.take(params["tgt_tok"], trg.T.reshape(-1), axis=0)
    tgt_e = (tgt_e.reshape(N, T, E) * scale + pos[None, :T]).reshape(N * T, E)

    # Finite additive masks (no (N, Tq, Tk) materialization).
    src_am = jnp.maximum(src_mask.astype(jnp.float32), NEG_INF)        # (S, S)
    tgt_am = jnp.maximum(tgt_mask.astype(jnp.float32), NEG_INF)        # (T, T)
    to_add = lambda m: jnp.where(m, NEG_INF, 0.0).astype(jnp.float32)[:, None, :]
    src_kp = to_add(src_padding_mask)                                  # (N, 1, S)
    tgt_kp = to_add(tgt_padding_mask)                                  # (N, 1, T)
    mem_kp = to_add(memory_key_padding_mask)                           # (N, 1, S)

    memory = encoder_stack(src_e, src_am, src_kp, params["enc"], N, S, E, H)
    logits_pad = decoder_stack(tgt_e, memory, tgt_am, tgt_kp, mem_kp,
                               params["dec"], params["gen_w"], params["gen_b"],
                               N, T, S, E, H)                          # (N*T, Vpad)
    logits = logits_pad[:, :V].reshape(N, T, V)
    return jnp.transpose(logits, (1, 0, 2))                            # (T, N, V)


# ----------------------------------------------------------------------------
# Main
# ----------------------------------------------------------------------------

if __name__ == "__main__":
    cfg = dict(num_encoder_layers=2, num_decoder_layers=2,
               emb=32, nhead=4, ffn=64,
               src_vocab=50, tgt_vocab=60, tgt_vocab_pad=128, maxlen=64)
    S, T, N = 8, 8, 2                                   # src len, tgt len, batch

    root = jax.random.PRNGKey(0)
    kp, ks, kt = jax.random.split(root, 3)
    params = init_params(kp, cfg)

    src = jax.random.randint(ks, (S, N), 0, cfg["src_vocab"], dtype=jnp.int32)
    trg = jax.random.randint(kt, (T, N), 0, cfg["tgt_vocab"], dtype=jnp.int32)

    src_mask = jnp.zeros((S, S), jnp.float32)
    causal = jnp.arange(T)[None, :] > jnp.arange(T)[:, None]
    tgt_mask = jnp.where(causal, -jnp.inf, 0.0).astype(jnp.float32)

    # padding masks: True == ignore (pad at the tail of batch element 1)
    src_padding_mask = jnp.array(
        [[False] * S, [False] * (S - 2) + [True] * 2], dtype=bool)
    tgt_padding_mask = jnp.array(
        [[False] * T, [False] * (T - 1) + [True]], dtype=bool)
    memory_key_padding_mask = src_padding_mask

    fwd = jax.jit(functools.partial(seq2seq_forward, cfg=cfg))
    logits = fwd(params, src, trg, src_mask, tgt_mask,
                 src_padding_mask, tgt_padding_mask, memory_key_padding_mask)
    logits = jax.block_until_ready(logits)

    assert logits.shape == (T, N, cfg["tgt_vocab"]), logits.shape
    assert bool(jnp.all(jnp.isfinite(logits)))
    print("KERNEL_OK")
</pallas_src>

<mosaic_0001>
module attributes {stable_mosaic.version = 11 : i64} {
  func.func @_encoder_kernel(%arg0: i32, %arg1: i32, %arg2: memref<8x32xf32, #tpu.memory_space<vmem>>, %arg3: memref<8x8xf32, #tpu.memory_space<vmem>>, %arg4: memref<1x1x8xf32, #tpu.memory_space<vmem>>, %arg5: memref<1x3x4x32x8xbf16, #tpu.memory_space<vmem>>, %arg6: memref<1x3x4x1x8xf32, #tpu.memory_space<vmem>>, %arg7: memref<1x4x8x32xbf16, #tpu.memory_space<vmem>>, %arg8: memref<1x1x32xf32, #tpu.memory_space<vmem>>, %arg9: memref<1x1x32xf32, #tpu.memory_space<vmem>>, %arg10: memref<1x1x32xf32, #tpu.memory_space<vmem>>, %arg11: memref<1x32x64xbf16, #tpu.memory_space<vmem>>, %arg12: memref<1x1x64xf32, #tpu.memory_space<vmem>>, %arg13: memref<1x64x32xbf16, #tpu.memory_space<vmem>>, %arg14: memref<1x1x32xf32, #tpu.memory_space<vmem>>, %arg15: memref<1x1x32xf32, #tpu.memory_space<vmem>>, %arg16: memref<1x1x32xf32, #tpu.memory_space<vmem>>, %arg17: memref<1x32xf32, #tpu.memory_space<vmem>>, %arg18: memref<1x32xf32, #tpu.memory_space<vmem>>, %arg19: memref<8x32xf32, #tpu.memory_space<vmem>>) attributes {dimension_semantics = [#tpu.dimension_semantics<parallel>, #tpu.dimension_semantics<arbitrary>], iteration_bounds = array<i64: 2, 2>, scalar_prefetch = 0 : i64, scratch_operands = 0 : i64, tpu.core_type = #tpu.core_type<tc>, window_params = [{transform_indices = @transform_0, window_bounds = array<i64: 8, 32>}, {pipeline_mode = #tpu.pipeline_mode<synchronous>, transform_indices = @transform_1, window_bounds = array<i64: 8, 8>}, {transform_indices = @transform_2, window_bounds = array<i64: 1, 1, 8>}, {transform_indices = @transform_3, window_bounds = array<i64: 1, 3, 4, 32, 8>}, {transform_indices = @transform_4, window_bounds = array<i64: 1, 3, 4, 1, 8>}, {transform_indices = @transform_5, window_bounds = array<i64: 1, 4, 8, 32>}, {transform_indices = @transform_6, window_bounds = array<i64: 1, 1, 32>}, {transform_indices = @transform_7, window_bounds = array<i64: 1, 1, 32>}, {transform_indices = @transform_8, window_bounds = array<i64: 1, 1, 32>}, {transform_indices = @transform_9, window_bounds = array<i64: 1, 32, 64>}, {transform_indices = @transform_10, window_bounds = array<i64: 1, 1, 64>}, {transform_indices = @transform_11, window_bounds = array<i64: 1, 64, 32>}, {transform_indices = @transform_12, window_bounds = array<i64: 1, 1, 32>}, {transform_indices = @transform_13, window_bounds = array<i64: 1, 1, 32>}, {transform_indices = @transform_14, window_bounds = array<i64: 1, 1, 32>}, {pipeline_mode = #tpu.pipeline_mode<synchronous>, transform_indices = @transform_15, window_bounds = array<i64: 1, 32>}, {pipeline_mode = #tpu.pipeline_mode<synchronous>, transform_indices = @transform_16, window_bounds = array<i64: 1, 32>}, {transform_indices = @transform_17, window_bounds = array<i64: 8, 32>}]} {
    %c0_i32 = arith.constant 0 : i32
    %0 = arith.cmpi eq, %arg1, %c0_i32 : i32
    %1 = arith.extui %0 : i1 to i32
    %c0_i32_0 = arith.constant 0 : i32
    %2 = arith.cmpi ne, %1, %c0_i32_0 : i32
    scf.if %2 {
      %c0_219 = arith.constant 0 : index
      %c0_220 = arith.constant 0 : index
      %260 = vector.load %arg2[%c0_219, %c0_220] : memref<8x32xf32, #tpu.memory_space<vmem>>, vector<8x32xf32>
      %c0_221 = arith.constant 0 : index
      %c0_222 = arith.constant 0 : index
      %261 = vector.load %arg19[%c0_221, %c0_222] : memref<8x32xf32, #tpu.memory_space<vmem>>, vector<8x32xf32>
      tpu.vector_store %arg19[%c0_221, %c0_222], %260 {strides = array<i32>} : memref<8x32xf32, #tpu.memory_space<vmem>>, vector<8x32xf32>,
    } else {
    }
    %c0 = arith.constant 0 : index
    %c0_1 = arith.constant 0 : index
    %3 = vector.load %arg19[%c0, %c0_1] : memref<8x32xf32, #tpu.memory_space<vmem>>, vector<8x32xf32>
    %c0_2 = arith.constant 0 : index
    %c0_3 = arith.constant 0 : index
    %4 = vector.load %arg3[%c0_2, %c0_3] : memref<8x8xf32, #tpu.memory_space<vmem>>, vector<8x8xf32>
    %c0_4 = arith.constant 0 : index
    %c0_5 = arith.constant 0 : index
    %c0_6 = arith.constant 0 : index
    %5 = vector.load %arg4[%c0_4, %c0_5, %c0_6] : memref<1x1x8xf32, #tpu.memory_space<vmem>>, vector<1x1x8xf32>
    %6 = vector.shape_cast %5 : vector<1x1x8xf32> to vector<1x8xf32>
    %7 = vector.broadcast %6 : vector<1x8xf32> to vector<8x8xf32>
    %8 = arith.addf %4, %7 : vector<8x8xf32>
    %9 = arith.truncf %3 : vector<8x32xf32> to vector<8x32xbf16>
    %10 = arith.truncf %3 : vector<8x32xf32> to vector<8x32xbf16>
    %cst = arith.constant 0.000000e+00 : f32
    %11 = vector.broadcast %cst : f32 to vector<8x32xf32>
    %c0_7 = arith.constant 0 : index
    %c0_8 = arith.constant 0 : index
    %c0_9 = arith.constant 0 : index
    %c0_10 = arith.constant 0 : index
    %c0_11 = arith.constant 0 : index
    %12 = vector.load %arg5[%c0_7, %c0_8, %c0_9, %c0_10, %c0_11] : memref<1x3x4x32x8xbf16, #tpu.memory_space<vmem>>, vector<1x1x1x32x8xbf16>
    %13 = vector.shape_cast %12 : vector<1x1x1x32x8xbf16> to vector<32x8xbf16>
    %cst_12 = arith.constant dense<0.000000e+00> : vector<8x8xf32>
    %14 = tpu.matmul %9, %13, %cst_12 {dimension_numbers = #tpu.dot_dimension_numbers<[1], [0], [0], [1], [0, 0, 1, 1], [], []>} : vector<8x32xbf16>, vector<32x8xbf16>, vector<8x8xf32> -> vector<8x8xf32>
    %c0_13 = arith.constant 0 : index
    %c0_14 = arith.constant 0 : index
    %c0_15 = arith.constant 0 : index
    %c0_16 = arith.constant 0 : index
    %c0_17 = arith.constant 0 : index
    %15 = vector.load %arg6[%c0_13, %c0_14, %c0_15, %c0_16, %c0_17] : memref<1x3x4x1x8xf32, #tpu.memory_space<vmem>>, vector<1x1x1x1x8xf32>
    %16 = vector.shape_cast %15 : vector<1x1x1x1x8xf32> to vector<1x8xf32>
    %17 = vector.broadcast %16 : vector<1x8xf32> to vector<8x8xf32>
    %18 = arith.addf %14, %17 : vector<8x8xf32>
    %c0_18 = arith.constant 0 : index
    %c1 = arith.constant 1 : index
    %c0_19 = arith.constant 0 : index
    %c0_20 = arith.constant 0 : index
    %c0_21 = arith.constant 0 : index
    %19 = vector.load %arg5[%c0_18, %c1, %c0_19, %c0_20, %c0_21] : memref<1x3x4x32x8xbf16, #tpu.memory_space<vmem>>, vector<1x1x1x32x8xbf16>
    %20 = vector.shape_cast %19 : vector<1x1x1x32x8xbf16> to vector<32x8xbf16>
    %cst_22 = arith.constant dense<0.000000e+00> : vector<8x8xf32>
    %21 = tpu.matmul %10, %20, %cst_22 {dimension_numbers = #tpu.dot_dimension_numbers<[1], [0], [0], [1], [0, 0, 1, 1], [], []>} : vector<8x32xbf16>, vector<32x8xbf16>, vector<8x8xf32> -> vector<8x8xf32>
    %c0_23 = arith.constant 0 : index
    %c1_24 = arith.constant 1 : index
    %c0_25 = arith.constant 0 : index
    %c0_26 = arith.constant 0 : index
    %c0_27 = arith.constant 0 : index
    %22 = vector.load %arg6[%c0_23, %c1_24, %c0_25, %c0_26, %c0_27] : memref<1x3x4x1x8xf32, #tpu.memory_space<vmem>>, vector<1x1x1x1x8xf32>
    %23 = vector.shape_cast %22 : vector<1x1x1x1x8xf32> to vector<1x8xf32>
    %24 = vector.broadcast %23 : vector<1x8xf32> to vector<8x8xf32>
    %25 = arith.addf %21, %24 : vector<8x8xf32>
    %c0_28 = arith.constant 0 : index
    %c2 = arith.constant 2 : index
    %c0_29 = arith.constant 0 : index
    %c0_30 = arith.constant 0 : index
    %c0_31 = arith.constant 0 : index
    %26 = vector.load %arg5[%c0_28, %c2, %c0_29, %c0_30, %c0_31] : memref<1x3x4x32x8xbf16, #tpu.memory_space<vmem>>, vector<1x1x1x32x8xbf16>
    %27 = vector.shape_cast %26 : vector<1x1x1x32x8xbf16> to vector<32x8xbf16>
    %cst_32 = arith.constant dense<0.000000e+00> : vector<8x8xf32>
    %28 = tpu.matmul %10, %27, %cst_32 {dimension_numbers = #tpu.dot_dimension_numbers<[1], [0], [0], [1], [0, 0, 1, 1], [], []>} : vector<8x32xbf16>, vector<32x8xbf16>, vector<8x8xf32> -> vector<8x8xf32>
    %c0_33 = arith.constant 0 : index
    %c2_34 = arith.constant 2 : index
    %c0_35 = arith.constant 0 : index
    %c0_36 = arith.constant 0 : index
    %c0_37 = arith.constant 0 : index
    %29 = vector.load %arg6[%c0_33, %c2_34, %c0_35, %c0_36, %c0_37] : memref<1x3x4x1x8xf32, #tpu.memory_space<vmem>>, vector<1x1x1x1x8xf32>
    %30 = vector.shape_cast %29 : vector<1x1x1x1x8xf32> to vector<1x8xf32>
    %31 = vector.broadcast %30 : vector<1x8xf32> to vector<8x8xf32>
    %32 = arith.addf %28, %31 : vector<8x8xf32>
    %33 = tpu.transpose %25, [1, 0] : vector<8x8xf32> -> vector<8x8xf32>
    %cst_38 = arith.constant dense<0.000000e+00> : vector<8x8xf32>
    %34 = tpu.matmul %18, %33, %cst_38 {dimension_numbers = #tpu.dot_dimension_numbers<[1], [0], [0], [1], [0, 0, 1, 1], [], []>} : vector<8x8xf32>, vector<8x8xf32>, vector<8x8xf32> -> vector<8x8xf32>
    %cst_39 = arith.constant 0.353553385 : f32
    %35 = vector.broadcast %cst_39 : f32 to vector<8x8xf32>
    %36 = arith.mulf %34, %35 : vector<8x8xf32>
    %37 = arith.addf %36, %8 : vector<8x8xf32>
    %cst_40 = arith.constant dense<0xFF800000> : vector<8xf32>
    %38 = vector.multi_reduction <maximumf>, %37, %cst_40 [1] : vector<8x8xf32> to vector<8xf32>
    %39 = vector.shape_cast %38 : vector<8xf32> to vector<8x1xf32>
    %40 = vector.broadcast %39 : vector<8x1xf32> to vector<8x8xf32>
    %41 = arith.subf %37, %40 : vector<8x8xf32>
    %42 = math.exp %41 : vector<8x8xf32>
    %cst_41 = arith.constant dense<0.000000e+00> : vector<8xf32>
    %43 = vector.multi_reduction <add>, %42, %cst_41 [1] : vector<8x8xf32> to vector<8xf32>
    %44 = vector.shape_cast %43 : vector<8xf32> to vector<8x1xf32>
    %45 = tpu.reciprocal %44 {approx = true} : vector<8x1xf32> -> vector<8x1xf32>
    %46 = vector.broadcast %45 : vector<8x1xf32> to vector<8x8xf32>
    %47 = arith.mulf %42, %46 : vector<8x8xf32>
    %cst_42 = arith.constant dense<0.000000e+00> : vector<8x8xf32>
    %48 = tpu.matmul %47, %32, %cst_42 {dimension_numbers = #tpu.dot_dimension_numbers<[1], [0], [0], [1], [0, 0, 1, 1], [], []>} : vector<8x8xf32>, vector<8x8xf32>, vector<8x8xf32> -> vector<8x8xf32>
    %49 = arith.truncf %48 : vector<8x8xf32> to vector<8x8xbf16>
    %c0_43 = arith.constant 0 : index
    %c0_44 = arith.constant 0 : index
    %c0_45 = arith.constant 0 : index
    %c0_46 = arith.constant 0 : index
    %50 = vector.load %arg7[%c0_43, %c0_44, %c0_45, %c0_46] : memref<1x4x8x32xbf16, #tpu.memory_space<vmem>>, vector<1x1x8x32xbf16>
    %51 = vector.shape_cast %50 : vector<1x1x8x32xbf16> to vector<8x32xbf16>
    %cst_47 = arith.constant dense<0.000000e+00> : vector<8x32xf32>
    %52 = tpu.matmul %49, %51, %cst_47 {dimension_numbers = #tpu.dot_dimension_numbers<[1], [0], [0], [1], [0, 0, 1, 1], [], []>} : vector<8x8xbf16>, vector<8x32xbf16>, vector<8x32xf32> -> vector<8x32xf32>
    %53 = arith.addf %11, %52 : vector<8x32xf32>
    %c0_48 = arith.constant 0 : index
    %c0_49 = arith.constant 0 : index
    %c1_50 = arith.constant 1 : index
    %c0_51 = arith.constant 0 : index
    %c0_52 = arith.constant 0 : index
    %54 = vector.load %arg5[%c0_48, %c0_49, %c1_50, %c0_51, %c0_52] : memref<1x3x4x32x8xbf16, #tpu.memory_space<vmem>>, vector<1x1x1x32x8xbf16>
    %55 = vector.shape_cast %54 : vector<1x1x1x32x8xbf16> to vector<32x8xbf16>
    %cst_53 = arith.constant dense<0.000000e+00> : vector<8x8xf32>
    %56 = tpu.matmul %9, %55, %cst_53 {dimension_numbers = #tpu.dot_dimension_numbers<[1], [0], [0], [1], [0, 0, 1, 1], [], []>} : vector<8x32xbf16>, vector<32x8xbf16>, vector<8x8xf32> -> vector<8x8xf32>
    %c0_54 = arith.constant 0 : index
    %c0_55 = arith.constant 0 : index
    %c1_56 = arith.constant 1 : index
    %c0_57 = arith.constant 0 : index
    %c0_58 = arith.constant 0 : index
    %57 = vector.load %arg6[%c0_54, %c0_55, %c1_56, %c0_57, %c0_58] : memref<1x3x4x1x8xf32, #tpu.memory_space<vmem>>, vector<1x1x1x1x8xf32>
    %58 = vector.shape_cast %57 : vector<1x1x1x1x8xf32> to vector<1x8xf32>
    %59 = vector.broadcast %58 : vector<1x8xf32> to vector<8x8xf32>
    %60 = arith.addf %56, %59 : vector<8x8xf32>
    %c0_59 = arith.constant 0 : index
    %c1_60 = arith.constant 1 : index
    %c1_61 = arith.constant 1 : index
    %c0_62 = arith.constant 0 : index
    %c0_63 = arith.constant 0 : index
    %61 = vector.load %arg5[%c0_59, %c1_60, %c1_61, %c0_62, %c0_63] : memref<1x3x4x32x8xbf16, #tpu.memory_space<vmem>>, vector<1x1x1x32x8xbf16>
    %62 = vector.shape_cast %61 : vector<1x1x1x32x8xbf16> to vector<32x8xbf16>
    %cst_64 = arith.constant dense<0.000000e+00> : vector<8x8xf32>
    %63 = tpu.matmul %10, %62, %cst_64 {dimension_numbers = #tpu.dot_dimension_numbers<[1], [0], [0], [1], [0, 0, 1, 1], [], []>} : vector<8x32xbf16>, vector<32x8xbf16>, vector<8x8xf32> -> vector<8x8xf32>
    %c0_65 = arith.constant 0 : index
    %c1_66 = arith.constant 1 : index
    %c1_67 = arith.constant 1 : index
    %c0_68 = arith.constant 0 : index
    %c0_69 = arith.constant 0 : index
    %64 = vector.load %arg6[%c0_65, %c1_66, %c1_67, %c0_68, %c0_69] : memref<1x3x4x1x8xf32, #tpu.memory_space<vmem>>, vector<1x1x1x1x8xf32>
    %65 = vector.shape_cast %64 : vector<1x1x1x1x8xf32> to vector<1x8xf32>
    %66 = vector.broadcast %65 : vector<1x8xf32> to vector<8x8xf32>
    %67 = arith.addf %63, %66 : vector<8x8xf32>
    %c0_70 = arith.constant 0 : index
    %c2_71 = arith.constant 2 : index
    %c1_72 = arith.constant 1 : index
    %c0_73 = arith.constant 0 : index
    %c0_74 = arith.constant 0 : index
    %68 = vector.load %arg5[%c0_70, %c2_71, %c1_72, %c0_73, %c0_74] : memref<1x3x4x32x8xbf16, #tpu.memory_space<vmem>>, vector<1x1x1x32x8xbf16>
    %69 = vector.shape_cast %68 : vector<1x1x1x32x8xbf16> to vector<32x8xbf16>
    %cst_75 = arith.constant dense<0.000000e+00> : vector<8x8xf32>
    %70 = tpu.matmul %10, %69, %cst_75 {dimension_numbers = #tpu.dot_dimension_numbers<[1], [0], [0], [1], [0, 0, 1, 1], [], []>} : vector<8x32xbf16>, vector<32x8xbf16>, vector<8x8xf32> -> vector<8x8xf32>
    %c0_76 = arith.constant 0 : index
    %c2_77 = arith.constant 2 : index
    %c1_78 = arith.constant 1 : index
    %c0_79 = arith.constant 0 : index
    %c0_80 = arith.constant 0 : index
    %71 = vector.load %arg6[%c0_76, %c2_77, %c1_78, %c0_79, %c0_80] : memref<1x3x4x1x8xf32, #tpu.memory_space<vmem>>, vector<1x1x1x1x8xf32>
    %72 = vector.shape_cast %71 : vector<1x1x1x1x8xf32> to vector<1x8xf32>
    %73 = vector.broadcast %72 : vector<1x8xf32> to vector<8x8xf32>
    %74 = arith.addf %70, %73 : vector<8x8xf32>
    %75 = tpu.transpose %67, [1, 0] : vector<8x8xf32> -> vector<8x8xf32>
    %cst_81 = arith.constant dense<0.000000e+00> : vector<8x8xf32>
    %76 = tpu.matmul %60, %75, %cst_81 {dimension_numbers = #tpu.dot_dimension_numbers<[1], [0], [0], [1], [0, 0, 1, 1], [], []>} : vector<8x8xf32>, vector<8x8xf32>, vector<8x8xf32> -> vector<8x8xf32>
    %cst_82 = arith.constant 0.353553385 : f32
    %77 = vector.broadcast %cst_82 : f32 to vector<8x8xf32>
    %78 = arith.mulf %76, %77 : vector<8x8xf32>
    %79 = arith.addf %78, %8 : vector<8x8xf32>
    %cst_83 = arith.constant dense<0xFF800000> : vector<8xf32>
    %80 = vector.multi_reduction <maximumf>, %79, %cst_83 [1] : vector<8x8xf32> to vector<8xf32>
    %81 = vector.shape_cast %80 : vector<8xf32> to vector<8x1xf32>
    %82 = vector.broadcast %81 : vector<8x1xf32> to vector<8x8xf32>
    %83 = arith.subf %79, %82 : vector<8x8xf32>
    %84 = math.exp %83 : vector<8x8xf32>
    %cst_84 = arith.constant dense<0.000000e+00> : vector<8xf32>
    %85 = vector.multi_reduction <add>, %84, %cst_84 [1] : vector<8x8xf32> to vector<8xf32>
    %86 = vector.shape_cast %85 : vector<8xf32> to vector<8x1xf32>
    %87 = tpu.reciprocal %86 {approx = true} : vector<8x1xf32> -> vector<8x1xf32>
    %88 = vector.broadcast %87 : vector<8x1xf32> to vector<8x8xf32>
    %89 = arith.mulf %84, %88 : vector<8x8xf32>
    %cst_85 = arith.constant dense<0.000000e+00> : vector<8x8xf32>
    %90 = tpu.matmul %89, %74, %cst_85 {dimension_numbers = #tpu.dot_dimension_numbers<[1], [0], [0], [1], [0, 0, 1, 1], [], []>} : vector<8x8xf32>, vector<8x8xf32>, vector<8x8xf32> -> vector<8x8xf32>
    %91 = arith.truncf %90 : vector<8x8xf32> to vector<8x8xbf16>
    %c0_86 = arith.constant 0 : index
    %c1_87 = arith.constant 1 : index
    %c0_88 = arith.constant 0 : index
    %c0_89 = arith.constant 0 : index
    %92 = vector.load %arg7[%c0_86, %c1_87, %c0_88, %c0_89] : memref<1x4x8x32xbf16, #tpu.memory_space<vmem>>, vector<1x1x8x32xbf16>
    %93 = vector.shape_cast %92 : vector<1x1x8x32xbf16> to vector<8x32xbf16>
    %cst_90 = arith.constant dense<0.000000e+00> : vector<8x32xf32>
    %94 = tpu.matmul %91, %93, %cst_90 {dimension_numbers = #tpu.dot_dimension_numbers<[1], [0], [0], [1], [0, 0, 1, 1], [], []>} : vector<8x8xbf16>, vector<8x32xbf16>, vector<8x32xf32> -> vector<8x32xf32>
    %95 = arith.addf %53, %94 : vector<8x32xf32>
    %c0_91 = arith.constant 0 : index
    %c0_92 = arith.constant 0 : index
    %c2_93 = arith.constant 2 : index
    %c0_94 = arith.constant 0 : index
    %c0_95 = arith.constant 0 : index
    %96 = vector.load %arg5[%c0_91, %c0_92, %c2_93, %c0_94, %c0_95] : memref<1x3x4x32x8xbf16, #tpu.memory_space<vmem>>, vector<1x1x1x32x8xbf16>
    %97 = vector.shape_cast %96 : vector<1x1x1x32x8xbf16> to vector<32x8xbf16>
    %cst_96 = arith.constant dense<0.000000e+00> : vector<8x8xf32>
    %98 = tpu.matmul %9, %97, %cst_96 {dimension_numbers = #tpu.dot_dimension_numbers<[1], [0], [0], [1], [0, 0, 1, 1], [], []>} : vector<8x32xbf16>, vector<32x8xbf16>, vector<8x8xf32> -> vector<8x8xf32>
    %c0_97 = arith.constant 0 : index
    %c0_98 = arith.constant 0 : index
    %c2_99 = arith.constant 2 : index
    %c0_100 = arith.constant 0 : index
    %c0_101 = arith.constant 0 : index
    %99 = vector.load %arg6[%c0_97, %c0_98, %c2_99, %c0_100, %c0_101] : memref<1x3x4x1x8xf32, #tpu.memory_space<vmem>>, vector<1x1x1x1x8xf32>
    %100 = vector.shape_cast %99 : vector<1x1x1x1x8xf32> to vector<1x8xf32>
    %101 = vector.broadcast %100 : vector<1x8xf32> to vector<8x8xf32>
    %102 = arith.addf %98, %101 : vector<8x8xf32>
    %c0_102 = arith.constant 0 : index
    %c1_103 = arith.constant 1 : index
    %c2_104 = arith.constant 2 : index
    %c0_105 = arith.constant 0 : index
    %c0_106 = arith.constant 0 : index
    %103 = vector.load %arg5[%c0_102, %c1_103, %c2_104, %c0_105, %c0_106] : memref<1x3x4x32x8xbf16, #tpu.memory_space<vmem>>, vector<1x1x1x32x8xbf16>
    %104 = vector.shape_cast %103 : vector<1x1x1x32x8xbf16> to vector<32x8xbf16>
    %cst_107 = arith.constant dense<0.000000e+00> : vector<8x8xf32>
    %105 = tpu.matmul %10, %104, %cst_107 {dimension_numbers = #tpu.dot_dimension_numbers<[1], [0], [0], [1], [0, 0, 1, 1], [], []>} : vector<8x32xbf16>, vector<32x8xbf16>, vector<8x8xf32> -> vector<8x8xf32>
    %c0_108 = arith.constant 0 : index
    %c1_109 = arith.constant 1 : index
    %c2_110 = arith.constant 2 : index
    %c0_111 = arith.constant 0 : index
    %c0_112 = arith.constant 0 : index
    %106 = vector.load %arg6[%c0_108, %c1_109, %c2_110, %c0_111, %c0_112] : memref<1x3x4x1x8xf32, #tpu.memory_space<vmem>>, vector<1x1x1x1x8xf32>
    %107 = vector.shape_cast %106 : vector<1x1x1x1x8xf32> to vector<1x8xf32>
    %108 = vector.broadcast %107 : vector<1x8xf32> to vector<8x8xf32>
    %109 = arith.addf %105, %108 : vector<8x8xf32>
    %c0_113 = arith.constant 0 : index
    %c2_114 = arith.constant 2 : index
    %c2_115 = arith.constant 2 : index
    %c0_116 = arith.constant 0 : index
    %c0_117 = arith.constant 0 : index
    %110 = vector.load %arg5[%c0_113, %c2_114, %c2_115, %c0_116, %c0_117] : memref<1x3x4x32x8xbf16, #tpu.memory_space<vmem>>, vector<1x1x1x32x8xbf16>
    %111 = vector.shape_cast %110 : vector<1x1x1x32x8xbf16> to vector<32x8xbf16>
    %cst_118 = arith.constant dense<0.000000e+00> : vector<8x8xf32>
    %112 = tpu.matmul %10, %111, %cst_118 {dimension_numbers = #tpu.dot_dimension_numbers<[1], [0], [0], [1], [0, 0, 1, 1], [], []>} : vector<8x32xbf16>, vector<32x8xbf16>, vector<8x8xf32> -> vector<8x8xf32>
    %c0_119 = arith.constant 0 : index
    %c2_120 = arith.constant 2 : index
    %c2_121 = arith.constant 2 : index
    %c0_122 = arith.constant 0 : index
    %c0_123 = arith.constant 0 : index
    %113 = vector.load %arg6[%c0_119, %c2_120, %c2_121, %c0_122, %c0_123] : memref<1x3x4x1x8xf32, #tpu.memory_space<vmem>>, vector<1x1x1x1x8xf32>
    %114 = vector.shape_cast %113 : vector<1x1x1x1x8xf32> to vector<1x8xf32>
    %115 = vector.broadcast %114 : vector<1x8xf32> to vector<8x8xf32>
    %116 = arith.addf %112, %115 : vector<8x8xf32>
    %117 = tpu.transpose %109, [1, 0] : vector<8x8xf32> -> vector<8x8xf32>
    %cst_124 = arith.constant dense<0.000000e+00> : vector<8x8xf32>
    %118 = tpu.matmul %102, %117, %cst_124 {dimension_numbers = #tpu.dot_dimension_numbers<[1], [0], [0], [1], [0, 0, 1, 1], [], []>} : vector<8x8xf32>, vector<8x8xf32>, vector<8x8xf32> -> vector<8x8xf32>
    %cst_125 = arith.constant 0.353553385 : f32
    %119 = vector.broadcast %cst_125 : f32 to vector<8x8xf32>
    %120 = arith.mulf %118, %119 : vector<8x8xf32>
    %121 = arith.addf %120, %8 : vector<8x8xf32>
    %cst_126 = arith.constant dense<0xFF800000> : vector<8xf32>
    %122 = vector.multi_reduction <maximumf>, %121, %cst_126 [1] : vector<8x8xf32> to vector<8xf32>
    %123 = vector.shape_cast %122 : vector<8xf32> to vector<8x1xf32>
    %124 = vector.broadcast %123 : vector<8x1xf32> to vector<8x8xf32>
    %125 = arith.subf %121, %124 : vector<8x8xf32>
    %126 = math.exp %125 : vector<8x8xf32>
    %cst_127 = arith.constant dense<0.000000e+00> : vector<8xf32>
    %127 = vector.multi_reduction <add>, %126, %cst_127 [1] : vector<8x8xf32> to vector<8xf32>
    %128 = vector.shape_cast %127 : vector<8xf32> to vector<8x1xf32>
    %129 = tpu.reciprocal %128 {approx = true} : vector<8x1xf32> -> vector<8x1xf32>
    %130 = vector.broadcast %129 : vector<8x1xf32> to vector<8x8xf32>
    %131 = arith.mulf %126, %130 : vector<8x8xf32>
    %cst_128 = arith.constant dense<0.000000e+00> : vector<8x8xf32>
    %132 = tpu.matmul %131, %116, %cst_128 {dimension_numbers = #tpu.dot_dimension_numbers<[1], [0], [0], [1], [0, 0, 1, 1], [], []>} : vector<8x8xf32>, vector<8x8xf32>, vector<8x8xf32> -> vector<8x8xf32>
    %133 = arith.truncf %132 : vector<8x8xf32> to vector<8x8xbf16>
    %c0_129 = arith.constant 0 : index
    %c2_130 = arith.constant 2 : index
    %c0_131 = arith.constant 0 : index
    %c0_132 = arith.constant 0 : index
    %134 = vector.load %arg7[%c0_129, %c2_130, %c0_131, %c0_132] : memref<1x4x8x32xbf16, #tpu.memory_space<vmem>>, vector<1x1x8x32xbf16>
    %135 = vector.shape_cast %134 : vector<1x1x8x32xbf16> to vector<8x32xbf16>
    %cst_133 = arith.constant dense<0.000000e+00> : vector<8x32xf32>
    %136 = tpu.matmul %133, %135, %cst_133 {dimension_numbers = #tpu.dot_dimension_numbers<[1], [0], [0], [1], [0, 0, 1, 1], [], []>} : vector<8x8xbf16>, vector<8x32xbf16>, vector<8x32xf32> -> vector<8x32xf32>
    %137 = arith.addf %95, %136 : vector<8x32xf32>
    %c0_134 = arith.constant 0 : index
    %c0_135 = arith.constant 0 : index
    %c3 = arith.constant 3 : index
    %c0_136 = arith.constant 0 : index
    %c0_137 = arith.constant 0 : index
    %138 = vector.load %arg5[%c0_134, %c0_135, %c3, %c0_136, %c0_137] : memref<1x3x4x32x8xbf16, #tpu.memory_space<vmem>>, vector<1x1x1x32x8xbf16>
    %139 = vector.shape_cast %138 : vector<1x1x1x32x8xbf16> to vector<32x8xbf16>
    %cst_138 = arith.constant dense<0.000000e+00> : vector<8x8xf32>
    %140 = tpu.matmul %9, %139, %cst_138 {dimension_numbers = #tpu.dot_dimension_numbers<[1], [0], [0], [1], [0, 0, 1, 1], [], []>} : vector<8x32xbf16>, vector<32x8xbf16>, vector<8x8xf32> -> vector<8x8xf32>
    %c0_139 = arith.constant 0 : index
    %c0_140 = arith.constant 0 : index
    %c3_141 = arith.constant 3 : index
    %c0_142 = arith.constant 0 : index
    %c0_143 = arith.constant 0 : index
    %141 = vector.load %arg6[%c0_139, %c0_140, %c3_141, %c0_142, %c0_143] : memref<1x3x4x1x8xf32, #tpu.memory_space<vmem>>, vector<1x1x1x1x8xf32>
    %142 = vector.shape_cast %141 : vector<1x1x1x1x8xf32> to vector<1x8xf32>
    %143 = vector.broadcast %142 : vector<1x8xf32> to vector<8x8xf32>
    %144 = arith.addf %140, %143 : vector<8x8xf32>
    %c0_144 = arith.constant 0 : index
    %c1_145 = arith.constant 1 : index
    %c3_146 = arith.constant 3 : index
    %c0_147 = arith.constant 0 : index
    %c0_148 = arith.constant 0 : index
    %145 = vector.load %arg5[%c0_144, %c1_145, %c3_146, %c0_147, %c0_148] : memref<1x3x4x32x8xbf16, #tpu.memory_space<vmem>>, vector<1x1x1x32x8xbf16>
    %146 = vector.shape_cast %145 : vector<1x1x1x32x8xbf16> to vector<32x8xbf16>
    %cst_149 = arith.constant dense<0.000000e+00> : vector<8x8xf32>
    %147 = tpu.matmul %10, %146, %cst_149 {dimension_numbers = #tpu.dot_dimension_numbers<[1], [0], [0], [1], [0, 0, 1, 1], [], []>} : vector<8x32xbf16>, vector<32x8xbf16>, vector<8x8xf32> -> vector<8x8xf32>
    %c0_150 = arith.constant 0 : index
    %c1_151 = arith.constant 1 : index
    %c3_152 = arith.constant 3 : index
    %c0_153 = arith.constant 0 : index
    %c0_154 = arith.constant 0 : index
    %148 = vector.load %arg6[%c0_150, %c1_151, %c3_152, %c0_153, %c0_154] : memref<1x3x4x1x8xf32, #tpu.memory_space<vmem>>, vector<1x1x1x1x8xf32>
    %149 = vector.shape_cast %148 : vector<1x1x1x1x8xf32> to vector<1x8xf32>
    %150 = vector.broadcast %149 : vector<1x8xf32> to vector<8x8xf32>
    %151 = arith.addf %147, %150 : vector<8x8xf32>
    %c0_155 = arith.constant 0 : index
    %c2_156 = arith.constant 2 : index
    %c3_157 = arith.constant 3 : index
    %c0_158 = arith.constant 0 : index
    %c0_159 = arith.constant 0 : index
    %152 = vector.load %arg5[%c0_155, %c2_156, %c3_157, %c0_158, %c0_159] : memref<1x3x4x32x8xbf16, #tpu.memory_space<vmem>>, vector<1x1x1x32x8xbf16>
    %153 = vector.shape_cast %152 : vector<1x1x1x32x8xbf16> to vector<32x8xbf16>
    %cst_160 = arith.constant dense<0.000000e+00> : vector<8x8xf32>
    %154 = tpu.matmul %10, %153, %cst_160 {dimension_numbers = #tpu.dot_dimension_numbers<[1], [0], [0], [1], [0, 0, 1, 1], [], []>} : vector<8x32xbf16>, vector<32x8xbf16>, vector<8x8xf32> -> vector<8x8xf32>
    %c0_161 = arith.constant 0 : index
    %c2_162 = arith.constant 2 : index
    %c3_163 = arith.constant 3 : index
    %c0_164 = arith.constant 0 : index
    %c0_165 = arith.constant 0 : index
    %155 = vector.load %arg6[%c0_161, %c2_162, %c3_163, %c0_164, %c0_165] : memref<1x3x4x1x8xf32, #tpu.memory_space<vmem>>, vector<1x1x1x1x8xf32>
    %156 = vector.shape_cast %155 : vector<1x1x1x1x8xf32> to vector<1x8xf32>
    %157 = vector.broadcast %156 : vector<1x8xf32> to vector<8x8xf32>
    %158 = arith.addf %154, %157 : vector<8x8xf32>
    %159 = tpu.transpose %151, [1, 0] : vector<8x8xf32> -> vector<8x8xf32>
    %cst_166 = arith.constant dense<0.000000e+00> : vector<8x8xf32>
    %160 = tpu.matmul %144, %159, %cst_166 {dimension_numbers = #tpu.dot_dimension_numbers<[1], [0], [0], [1], [0, 0, 1, 1], [], []>} : vector<8x8xf32>, vector<8x8xf32>, vector<8x8xf32> -> vector<8x8xf32>
    %cst_167 = arith.constant 0.353553385 : f32
    %161 = vector.broadcast %cst_167 : f32 to vector<8x8xf32>
    %162 = arith.mulf %160, %161 : vector<8x8xf32>
    %163 = arith.addf %162, %8 : vector<8x8xf32>
    %cst_168 = arith.constant dense<0xFF800000> : vector<8xf32>
    %164 = vector.multi_reduction <maximumf>, %163, %cst_168 [1] : vector<8x8xf32> to vector<8xf32>
    %165 = vector.shape_cast %164 : vector<8xf32> to vector<8x1xf32>
    %166 = vector.broadcast %165 : vector<8x1xf32> to vector<8x8xf32>
    %167 = arith.subf %163, %166 : vector<8x8xf32>
    %168 = math.exp %167 : vector<8x8xf32>
    %cst_169 = arith.constant dense<0.000000e+00> : vector<8xf32>
    %169 = vector.multi_reduction <add>, %168, %cst_169 [1] : vector<8x8xf32> to vector<8xf32>
    %170 = vector.shape_cast %169 : vector<8xf32> to vector<8x1xf32>
    %171 = tpu.reciprocal %170 {approx = true} : vector<8x1xf32> -> vector<8x1xf32>
    %172 = vector.broadcast %171 : vector<8x1xf32> to vector<8x8xf32>
    %173 = arith.mulf %168, %172 : vector<8x8xf32>
    %cst_170 = arith.constant dense<0.000000e+00> : vector<8x8xf32>
    %174 = tpu.matmul %173, %158, %cst_170 {dimension_numbers = #tpu.dot_dimension_numbers<[1], [0], [0], [1], [0, 0, 1, 1], [], []>} : vector<8x8xf32>, vector<8x8xf32>, vector<8x8xf32> -> vector<8x8xf32>
    %175 = arith.truncf %174 : vector<8x8xf32> to vector<8x8xbf16>
    %c0_171 = arith.constant 0 : index
    %c3_172 = arith.constant 3 : index
    %c0_173 = arith.constant 0 : index
    %c0_174 = arith.constant 0 : index
    %176 = vector.load %arg7[%c0_171, %c3_172, %c0_173, %c0_174] : memref<1x4x8x32xbf16, #tpu.memory_space<vmem>>, vector<1x1x8x32xbf16>
    %177 = vector.shape_cast %176 : vector<1x1x8x32xbf16> to vector<8x32xbf16>
    %cst_175 = arith.constant dense<0.000000e+00> : vector<8x32xf32>
    %178 = tpu.matmul %175, %177, %cst_175 {dimension_numbers = #tpu.dot_dimension_numbers<[1], [0], [0], [1], [0, 0, 1, 1], [], []>} : vector<8x8xbf16>, vector<8x32xbf16>, vector<8x32xf32> -> vector<8x32xf32>
    %179 = arith.addf %137, %178 : vector<8x32xf32>
    %c0_176 = arith.constant 0 : index
    %c0_177 = arith.constant 0 : index
    %c0_178 = arith.constant 0 : index
    %180 = vector.load %arg8[%c0_176, %c0_177, %c0_178] : memref<1x1x32xf32, #tpu.memory_space<vmem>>, vector<1x1x32xf32>
    %181 = vector.shape_cast %180 : vector<1x1x32xf32> to vector<1x32xf32>
    %182 = vector.broadcast %181 : vector<1x32xf32> to vector<8x32xf32>
    %183 = arith.addf %179, %182 : vector<8x32xf32>
    %184 = arith.addf %3, %183 : vector<8x32xf32>
    %c0_179 = arith.constant 0 : index
    %c0_180 = arith.constant 0 : index
    %c0_181 = arith.constant 0 : index
    %185 = vector.load %arg9[%c0_179, %c0_180, %c0_181] : memref<1x1x32xf32, #tpu.memory_space<vmem>>, vector<1x1x32xf32>
    %186 = vector.shape_cast %185 : vector<1x1x32xf32> to vector<1x32xf32>
    %c0_182 = arith.constant 0 : index
    %c0_183 = arith.constant 0 : index
    %c0_184 = arith.constant 0 : index
    %187 = vector.load %arg10[%c0_182, %c0_183, %c0_184] : memref<1x1x32xf32, #tpu.memory_space<vmem>>, vector<1x1x32xf32>
    %188 = vector.shape_cast %187 : vector<1x1x32xf32> to vector<1x32xf32>
    %cst_185 = arith.constant dense<0.000000e+00> : vector<8xf32>
    %189 = vector.multi_reduction <add>, %184, %cst_185 [1] : vector<8x32xf32> to vector<8xf32>
    %190 = vector.shape_cast %189 : vector<8xf32> to vector<8x1xf32>
    %cst_186 = arith.constant 3.200000e+01 : f32
    %191 = vector.broadcast %cst_186 : f32 to vector<8x1xf32>
    %192 = arith.divf %190, %191 : vector<8x1xf32>
    %193 = vector.broadcast %192 : vector<8x1xf32> to vector<8x32xf32>
    %194 = arith.subf %184, %193 : vector<8x32xf32>
    %195 = arith.mulf %194, %194 : vector<8x32xf32>
    %cst_187 = arith.constant dense<0.000000e+00> : vector<8xf32>
    %196 = vector.multi_reduction <add>, %195, %cst_187 [1] : vector<8x32xf32> to vector<8xf32>
    %197 = vector.shape_cast %196 : vector<8xf32> to vector<8x1xf32>
    %cst_188 = arith.constant 3.200000e+01 : f32
    %198 = vector.broadcast %cst_188 : f32 to vector<8x1xf32>
    %199 = arith.divf %197, %198 : vector<8x1xf32>
    %200 = vector.broadcast %192 : vector<8x1xf32> to vector<8x32xf32>
    %201 = arith.subf %184, %200 : vector<8x32xf32>
    %cst_189 = arith.constant 9.99999974E-6 : f32
    %202 = vector.broadcast %cst_189 : f32 to vector<8x1xf32>
    %203 = arith.addf %199, %202 : vector<8x1xf32>
    %204 = math.rsqrt %203 : vector<8x1xf32>
    %205 = vector.broadcast %204 : vector<8x1xf32> to vector<8x32xf32>
    %206 = arith.mulf %201, %205 : vector<8x32xf32>
    %207 = vector.broadcast %186 : vector<1x32xf32> to vector<8x32xf32>
    %208 = arith.mulf %206, %207 : vector<8x32xf32>
    %209 = vector.broadcast %188 : vector<1x32xf32> to vector<8x32xf32>
    %210 = arith.addf %208, %209 : vector<8x32xf32>
    %211 = arith.truncf %210 : vector<8x32xf32> to vector<8x32xbf16>
    %c0_190 = arith.constant 0 : index
    %c0_191 = arith.constant 0 : index
    %c0_192 = arith.constant 0 : index
    %212 = vector.load %arg11[%c0_190, %c0_191, %c0_192] : memref<1x32x64xbf16, #tpu.memory_space<vmem>>, vector<1x32x64xbf16>
    %213 = vector.shape_cast %212 : vector<1x32x64xbf16> to vector<32x64xbf16>
    %cst_193 = arith.constant dense<0.000000e+00> : vector<8x64xf32>
    %214 = tpu.matmul %211, %213, %cst_193 {dimension_numbers = #tpu.dot_dimension_numbers<[1], [0], [0], [1], [0, 0, 1, 1], [], []>} : vector<8x32xbf16>, vector<32x64xbf16>, vector<8x64xf32> -> vector<8x64xf32>
    %c0_194 = arith.constant 0 : index
    %c0_195 = arith.constant 0 : index
    %c0_196 = arith.constant 0 : index
    %215 = vector.load %arg12[%c0_194, %c0_195, %c0_196] : memref<1x1x64xf32, #tpu.memory_space<vmem>>, vector<1x1x64xf32>
    %216 = vector.shape_cast %215 : vector<1x1x64xf32> to vector<1x64xf32>
    %217 = vector.broadcast %216 : vector<1x64xf32> to vector<8x64xf32>
    %218 = arith.addf %214, %217 : vector<8x64xf32>
    %cst_197 = arith.constant 0.000000e+00 : f32
    %219 = vector.broadcast %cst_197 : f32 to vector<8x64xf32>
    %220 = arith.maximumf %218, %219 : vector<8x64xf32>
    %221 = arith.truncf %220 : vector<8x64xf32> to vector<8x64xbf16>
    %c0_198 = arith.constant 0 : index
    %c0_199 = arith.constant 0 : index
    %c0_200 = arith.constant 0 : index
    %222 = vector.load %arg13[%c0_198, %c0_199, %c0_200] : memref<1x64x32xbf16, #tpu.memory_space<vmem>>, vector<1x64x32xbf16>
    %223 = vector.shape_cast %222 : vector<1x64x32xbf16> to vector<64x32xbf16>
    %cst_201 = arith.constant dense<0.000000e+00> : vector<8x32xf32>
    %224 = tpu.matmul %221, %223, %cst_201 {dimension_numbers = #tpu.dot_dimension_numbers<[1], [0], [0], [1], [0, 0, 1, 1], [], []>} : vector<8x64xbf16>, vector<64x32xbf16>, vector<8x32xf32> -> vector<8x32xf32>
    %c0_202 = arith.constant 0 : index
    %c0_203 = arith.constant 0 : index
    %c0_204 = arith.constant 0 : index
    %225 = vector.load %arg14[%c0_202, %c0_203, %c0_204] : memref<1x1x32xf32, #tpu.memory_space<vmem>>, vector<1x1x32xf32>
    %226 = vector.shape_cast %225 : vector<1x1x32xf32> to vector<1x32xf32>
    %227 = vector.broadcast %226 : vector<1x32xf32> to vector<8x32xf32>
    %228 = arith.addf %224, %227 : vector<8x32xf32>
    %229 = arith.addf %210, %228 : vector<8x32xf32>
    %c0_205 = arith.constant 0 : index
    %c0_206 = arith.constant 0 : index
    %c0_207 = arith.constant 0 : index
    %230 = vector.load %arg15[%c0_205, %c0_206, %c0_207] : memref<1x1x32xf32, #tpu.memory_space<vmem>>, vector<1x1x32xf32>
    %231 = vector.shape_cast %230 : vector<1x1x32xf32> to vector<1x32xf32>
    %c0_208 = arith.constant 0 : index
    %c0_209 = arith.constant 0 : index
    %c0_210 = arith.constant 0 : index
    %232 = vector.load %arg16[%c0_208, %c0_209, %c0_210] : memref<1x1x32xf32, #tpu.memory_space<vmem>>, vector<1x1x32xf32>
    %233 = vector.shape_cast %232 : vector<1x1x32xf32> to vector<1x32xf32>
    %cst_211 = arith.constant dense<0.000000e+00> : vector<8xf32>
    %234 = vector.multi_reduction <add>, %229, %cst_211 [1] : vector<8x32xf32> to vector<8xf32>
    %235 = vector.shape_cast %234 : vector<8xf32> to vector<8x1xf32>
    %cst_212 = arith.constant 3.200000e+01 : f32
    %236 = vector.broadcast %cst_212 : f32 to vector<8x1xf32>
    %237 = arith.divf %235, %236 : vector<8x1xf32>
    %238 = vector.broadcast %237 : vector<8x1xf32> to vector<8x32xf32>
    %239 = arith.subf %229, %238 : vector<8x32xf32>
    %240 = arith.mulf %239, %239 : vector<8x32xf32>
    %cst_213 = arith.constant dense<0.000000e+00> : vector<8xf32>
    %241 = vector.multi_reduction <add>, %240, %cst_213 [1] : vector<8x32xf32> to vector<8xf32>
    %242 = vector.shape_cast %241 : vector<8xf32> to vector<8x1xf32>
    %cst_214 = arith.constant 3.200000e+01 : f32
    %243 = vector.broadcast %cst_214 : f32 to vector<8x1xf32>
    %244 = arith.divf %242, %243 : vector<8x1xf32>
    %245 = vector.broadcast %237 : vector<8x1xf32> to vector<8x32xf32>
    %246 = arith.subf %229, %245 : vector<8x32xf32>
    %cst_215 = arith.constant 9.99999974E-6 : f32
    %247 = vector.broadcast %cst_215 : f32 to vector<8x1xf32>
    %248 = arith.addf %244, %247 : vector<8x1xf32>
    %249 = math.rsqrt %248 : vector<8x1xf32>
    %250 = vector.broadcast %249 : vector<8x1xf32> to vector<8x32xf32>
    %251 = arith.mulf %246, %250 : vector<8x32xf32>
    %252 = vector.broadcast %231 : vector<1x32xf32> to vector<8x32xf32>
    %253 = arith.mulf %251, %252 : vector<8x32xf32>
    %254 = vector.broadcast %233 : vector<1x32xf32> to vector<8x32xf32>
    %255 = arith.addf %253, %254 : vector<8x32xf32>
    %c0_216 = arith.constant 0 : index
    %c0_217 = arith.constant 0 : index
    %256 = vector.load %arg19[%c0_216, %c0_217] : memref<8x32xf32, #tpu.memory_space<vmem>>, vector<8x32xf32>
    tpu.vector_store %arg19[%c0_216, %c0_217], %255 {strides = array<i32>} : memref<8x32xf32, #tpu.memory_space<vmem>>, vector<8x32xf32>,
    %c1_i32 = arith.constant 1 : i32
    %257 = arith.cmpi eq, %arg1, %c1_i32 : i32
    %258 = arith.extui %257 : i1 to i32
    %c0_i32_218 = arith.constant 0 : i32
    %259 = arith.cmpi ne, %258, %c0_i32_218 : i32
    scf.if %259 {
      %c0_219 = arith.constant 0 : index
      %c0_220 = arith.constant 0 : index
      %260 = vector.load %arg19[%c0_219, %c0_220] : memref<8x32xf32, #tpu.memory_space<vmem>>, vector<8x32xf32>
      %c0_221 = arith.constant 0 : index
      %c0_222 = arith.constant 0 : index
      %261 = vector.load %arg17[%c0_221, %c0_222] : memref<1x32xf32, #tpu.memory_space<vmem>>, vector<1x32xf32>
      %c0_223 = arith.constant 0 : index
      %c0_224 = arith.constant 0 : index
      %262 = vector.load %arg18[%c0_223, %c0_224] : memref<1x32xf32, #tpu.memory_space<vmem>>, vector<1x32xf32>
      %cst_225 = arith.constant dense<0.000000e+00> : vector<8xf32>
      %263 = vector.multi_reduction <add>, %260, %cst_225 [1] : vector<8x32xf32> to vector<8xf32>
      %264 = vector.shape_cast %263 : vector<8xf32> to vector<8x1xf32>
      %cst_226 = arith.constant 3.200000e+01 : f32
      %265 = vector.broadcast %cst_226 : f32 to vector<8x1xf32>
      %266 = arith.divf %264, %265 : vector<8x1xf32>
      %267 = vector.broadcast %266 : vector<8x1xf32> to vector<8x32xf32>
      %268 = arith.subf %260, %267 : vector<8x32xf32>
      %269 = arith.mulf %268, %268 : vector<8x32xf32>
      %cst_227 = arith.constant dense<0.000000e+00> : vector<8xf32>
      %270 = vector.multi_reduction <add>, %269, %cst_227 [1] : vector<8x32xf32> to vector<8xf32>
      %271 = vector.shape_cast %270 : vector<8xf32> to vector<8x1xf32>
      %cst_228 = arith.constant 3.200000e+01 : f32
      %272 = vector.broadcast %cst_228 : f32 to vector<8x1xf32>
      %273 = arith.divf %271, %272 : vector<8x1xf32>
      %274 = vector.broadcast %266 : vector<8x1xf32> to vector<8x32xf32>
      %275 = arith.subf %260, %274 : vector<8x32xf32>
      %cst_229 = arith.constant 9.99999974E-6 : f32
      %276 = vector.broadcast %cst_229 : f32 to vector<8x1xf32>
      %277 = arith.addf %273, %276 : vector<8x1xf32>
      %278 = math.rsqrt %277 : vector<8x1xf32>
      %279 = vector.broadcast %278 : vector<8x1xf32> to vector<8x32xf32>
      %280 = arith.mulf %275, %279 : vector<8x32xf32>
      %281 = vector.broadcast %261 : vector<1x32xf32> to vector<8x32xf32>
      %282 = arith.mulf %280, %281 : vector<8x32xf32>
      %283 = vector.broadcast %262 : vector<1x32xf32> to vector<8x32xf32>
      %284 = arith.addf %282, %283 : vector<8x32xf32>
      %c0_230 = arith.constant 0 : index
      %c0_231 = arith.constant 0 : index
      %285 = vector.load %arg19[%c0_230, %c0_231] : memref<8x32xf32, #tpu.memory_space<vmem>>, vector<8x32xf32>
      tpu.vector_store %arg19[%c0_230, %c0_231], %284 {strides = array<i32>} : memref<8x32xf32, #tpu.memory_space<vmem>>, vector<8x32xf32>,
    } else {
    }
    return
  }
  func.func @transform_0(%arg0: i32, %arg1: i32) -> (i32, i32) {
    %c0_i32 = arith.constant 0 : i32
    %c0_i32_0 = arith.constant 0 : i32
    return %arg0, %c0_i32 : i32, i32
  }
  func.func @transform_1(%arg0: i32, %arg1: i32) -> (i32, i32) {
    %c0_i32 = arith.constant 0 : i32
    %c0_i32_0 = arith.constant 0 : i32
    %c0_i32_1 = arith.constant 0 : i32
    return %c0_i32, %c0_i32_0 : i32, i32
  }
  func.func @transform_2(%arg0: i32, %arg1: i32) -> (i32, i32, i32) {
    %c0_i32 = arith.constant 0 : i32
    %c0_i32_0 = arith.constant 0 : i32
    %c0_i32_1 = arith.constant 0 : i32
    return %arg0, %c0_i32, %c0_i32_0 : i32, i32, i32
  }
  func.func @transform_3(%arg0: i32, %arg1: i32) -> (i32, i32, i32, i32, i32) {
    %c0_i32 = arith.constant 0 : i32
    %c0_i32_0 = arith.constant 0 : i32
    %c0_i32_1 = arith.constant 0 : i32
    %c0_i32_2 = arith.constant 0 : i32
    %c0_i32_3 = arith.constant 0 : i32
    return %arg1, %c0_i32, %c0_i32_0, %c0_i32_1, %c0_i32_2 : i32, i32, i32, i32, i32
  }
  func.func @transform_4(%arg0: i32, %arg1: i32) -> (i32, i32, i32, i32, i32) {
    %c0_i32 = arith.constant 0 : i32
    %c0_i32_0 = arith.constant 0 : i32
    %c0_i32_1 = arith.constant 0 : i32
    %c0_i32_2 = arith.constant 0 : i32
    %c0_i32_3 = arith.constant 0 : i32
    return %arg1, %c0_i32, %c0_i32_0, %c0_i32_1, %c0_i32_2 : i32, i32, i32, i32, i32
  }
  func.func @transform_5(%arg0: i32, %arg1: i32) -> (i32, i32, i32, i32) {
    %c0_i32 = arith.constant 0 : i32
    %c0_i32_0 = arith.constant 0 : i32
    %c0_i32_1 = arith.constant 0 : i32
    %c0_i32_2 = arith.constant 0 : i32
    return %arg1, %c0_i32, %c0_i32_0, %c0_i32_1 : i32, i32, i32, i32
  }
  func.func @transform_6(%arg0: i32, %arg1: i32) -> (i32, i32, i32) {
    %c0_i32 = arith.constant 0 : i32
    %c0_i32_0 = arith.constant 0 : i32
    %c0_i32_1 = arith.constant 0 : i32
    return %arg1, %c0_i32, %c0_i32_0 : i32, i32, i32
  }
  func.func @transform_7(%arg0: i32, %arg1: i32) -> (i32, i32, i32) {
    %c0_i32 = arith.constant 0 : i32
    %c0_i32_0 = arith.constant 0 : i32
    %c0_i32_1 = arith.constant 0 : i32
    return %arg1, %c0_i32, %c0_i32_0 : i32, i32, i32
  }
  func.func @transform_8(%arg0: i32, %arg1: i32) -> (i32, i32, i32) {
    %c0_i32 = arith.constant 0 : i32
    %c0_i32_0 = arith.constant 0 : i32
    %c0_i32_1 = arith.constant 0 : i32
    return %arg1, %c0_i32, %c0_i32_0 : i32, i32, i32
  }
  func.func @transform_9(%arg0: i32, %arg1: i32) -> (i32, i32, i32) {
    %c0_i32 = arith.constant 0 : i32
    %c0_i32_0 = arith.constant 0 : i32
    %c0_i32_1 = arith.constant 0 : i32
    return %arg1, %c0_i32, %c0_i32_0 : i32, i32, i32
  }
  func.func @transform_10(%arg0: i32, %arg1: i32) -> (i32, i32, i32) {
    %c0_i32 = arith.constant 0 : i32
    %c0_i32_0 = arith.constant 0 : i32
    %c0_i32_1 = arith.constant 0 : i32
    return %arg1, %c0_i32, %c0_i32_0 : i32, i32, i32
  }
  func.func @transform_11(%arg0: i32, %arg1: i32) -> (i32, i32, i32) {
    %c0_i32 = arith.constant 0 : i32
    %c0_i32_0 = arith.constant 0 : i32
    %c0_i32_1 = arith.constant 0 : i32
    return %arg1, %c0_i32, %c0_i32_0 : i32, i32, i32
  }
  func.func @transform_12(%arg0: i32, %arg1: i32) -> (i32, i32, i32) {
    %c0_i32 = arith.constant 0 : i32
    %c0_i32_0 = arith.constant 0 : i32
    %c0_i32_1 = arith.constant 0 : i32
    return %arg1, %c0_i32, %c0_i32_0 : i32, i32, i32
  }
  func.func @transform_13(%arg0: i32, %arg1: i32) -> (i32, i32, i32) {
    %c0_i32 = arith.constant 0 : i32
    %c0_i32_0 = arith.constant 0 : i32
    %c0_i32_1 = arith.constant 0 : i32
    return %arg1, %c0_i32, %c0_i32_0 : i32, i32, i32
  }
  func.func @transform_14(%arg0: i32, %arg1: i32) -> (i32, i32, i32) {
    %c0_i32 = arith.constant 0 : i32
    %c0_i32_0 = arith.constant 0 : i32
    %c0_i32_1 = arith.constant 0 : i32
    return %arg1, %c0_i32, %c0_i32_0 : i32, i32, i32
  }
  func.func @transform_15(%arg0: i32, %arg1: i32) -> (i32, i32) {
    %c0_i32 = arith.constant 0 : i32
    %c0_i32_0 = arith.constant 0 : i32
    %c0_i32_1 = arith.constant 0 : i32
    return %c0_i32, %c0_i32_0 : i32, i32
  }
  func.func @transform_16(%arg0: i32, %arg1: i32) -> (i32, i32) {
    %c0_i32 = arith.constant 0 : i32
    %c0_i32_0 = arith.constant 0 : i32
    %c0_i32_1 = arith.constant 0 : i32
    return %c0_i32, %c0_i32_0 : i32, i32
  }
  func.func @transform_17(%arg0: i32, %arg1: i32) -> (i32, i32) {
    %c0_i32 = arith.constant 0 : i32
    %c0_i32_0 = arith.constant 0 : i32
    return %arg0, %c0_i32 : i32, i32
  }
}

module attributes {stable_mosaic.version = 11 : i64} {
  func.func @_decoder_kernel(%arg0: i32, %arg1: i32, %arg2: memref<8x32xf32, #tpu.memory_space<vmem>>, %arg3: memref<8x32xf32, #tpu.memory_space<vmem>>, %arg4: memref<8x8xf32, #tpu.memory_space<vmem>>, %arg5: memref<1x1x8xf32, #tpu.memory_space<vmem>>, %arg6: memref<1x1x8xf32, #tpu.memory_space<vmem>>, %arg7: memref<1x3x4x32x8xbf16, #tpu.memory_space<vmem>>, %arg8: memref<1x3x4x1x8xf32, #tpu.memory_space<vmem>>, %arg9: memref<1x4x8x32xbf16, #tpu.memory_space<vmem>>, %arg10: memref<1x1x32xf32, #tpu.memory_space<vmem>>, %arg11: memref<1x1x32xf32, #tpu.memory_space<vmem>>, %arg12: memref<1x1x32xf32, #tpu.memory_space<vmem>>, %arg13: memref<1x3x4x32x8xbf16, #tpu.memory_space<vmem>>, %arg14: memref<1x3x4x1x8xf32, #tpu.memory_space<vmem>>, %arg15: memref<1x4x8x32xbf16, #tpu.memory_space<vmem>>, %arg16: memref<1x1x32xf32, #tpu.memory_space<vmem>>, %arg17: memref<1x1x32xf32, #tpu.memory_space<vmem>>, %arg18: memref<1x1x32xf32, #tpu.memory_space<vmem>>, %arg19: memref<1x32x64xbf16, #tpu.memory_space<vmem>>, %arg20: memref<1x1x64xf32, #tpu.memory_space<vmem>>, %arg21: memref<1x64x32xbf16, #tpu.memory_space<vmem>>, %arg22: memref<1x1x32xf32, #tpu.memory_space<vmem>>, %arg23: memref<1x1x32xf32, #tpu.memory_space<vmem>>, %arg24: memref<1x1x32xf32, #tpu.memory_space<vmem>>, %arg25: memref<1x32xf32, #tpu.memory_space<vmem>>, %arg26: memref<1x32xf32, #tpu.memory_space<vmem>>, %arg27: memref<32x128xbf16, #tpu.memory_space<vmem>>, %arg28: memref<1x128xf32, #tpu.memory_space<vmem>>, %arg29: memref<8x128xf32, #tpu.memory_space<vmem>>, %arg30: memref<8x32xf32, #tpu.memory_space<vmem>>) attributes {dimension_semantics = [#tpu.dimension_semantics<parallel>, #tpu.dimension_semantics<arbitrary>], iteration_bounds = array<i64: 2, 2>, scalar_prefetch = 0 : i64, scratch_operands = 1 : i64, tpu.core_type = #tpu.core_type<tc>, window_params = [{transform_indices = @transform_0, window_bounds = array<i64: 8, 32>}, {transform_indices = @transform_1, window_bounds = array<i64: 8, 32>}, {pipeline_mode = #tpu.pipeline_mode<synchronous>, transform_indices = @transform_2, window_bounds = array<i64: 8, 8>}, {transform_indices = @transform_3, window_bounds = array<i64: 1, 1, 8>}, {transform_indices = @transform_4, window_bounds = array<i64: 1, 1, 8>}, {transform_indices = @transform_5, window_bounds = array<i64: 1, 3, 4, 32, 8>}, {transform_indices = @transform_6, window_bounds = array<i64: 1, 3, 4, 1, 8>}, {transform_indices = @transform_7, window_bounds = array<i64: 1, 4, 8, 32>}, {transform_indices = @transform_8, window_bounds = array<i64: 1, 1, 32>}, {transform_indices = @transform_9, window_bounds = array<i64: 1, 1, 32>}, {transform_indices = @transform_10, window_bounds = array<i64: 1, 1, 32>}, {transform_indices = @transform_11, window_bounds = array<i64: 1, 3, 4, 32, 8>}, {transform_indices = @transform_12, window_bounds = array<i64: 1, 3, 4, 1, 8>}, {transform_indices = @transform_13, window_bounds = array<i64: 1, 4, 8, 32>}, {transform_indices = @transform_14, window_bounds = array<i64: 1, 1, 32>}, {transform_indices = @transform_15, window_bounds = array<i64: 1, 1, 32>}, {transform_indices = @transform_16, window_bounds = array<i64: 1, 1, 32>}, {transform_indices = @transform_17, window_bounds = array<i64: 1, 32, 64>}, {transform_indices = @transform_18, window_bounds = array<i64: 1, 1, 64>}, {transform_indices = @transform_19, window_bounds = array<i64: 1, 64, 32>}, {transform_indices = @transform_20, window_bounds = array<i64: 1, 1, 32>}, {transform_indices = @transform_21, window_bounds = array<i64: 1, 1, 32>}, {transform_indices = @transform_22, window_bounds = array<i64: 1, 1, 32>}, {pipeline_mode = #tpu.pipeline_mode<synchronous>, transform_indices = @transform_23, window_bounds = array<i64: 1, 32>}, {pipeline_mode = #tpu.pipeline_mode<synchronous>, transform_indices = @transform_24, window_bounds = array<i64: 1, 32>}, {pipeline_mode = #tpu.pipeline_mode<synchronous>, transform_indices = @transform_25, window_bounds = array<i64: 32, 128>}, {pipeline_mode = #tpu.pipeline_mode<synchronous>, transform_indices = @transform_26, window_bounds = array<i64: 1, 128>}, {transform_indices = @transform_27, window_bounds = array<i64: 8, 128>}]} {
    %c0_i32 = arith.constant 0 : i32
    %0 = arith.cmpi eq, %arg1, %c0_i32 : i32
    %1 = arith.extui %0 : i1 to i32
    %c0_i32_0 = arith.constant 0 : i32
    %2 = arith.cmpi ne, %1, %c0_i32_0 : i32
    scf.if %2 {
      %c0_411 = arith.constant 0 : index
      %c0_412 = arith.constant 0 : index
      %469 = vector.load %arg2[%c0_411, %c0_412] : memref<8x32xf32, #tpu.memory_space<vmem>>, vector<8x32xf32>
      %c0_413 = arith.constant 0 : index
      %c0_414 = arith.constant 0 : index
      %470 = vector.load %arg30[%c0_413, %c0_414] : memref<8x32xf32, #tpu.memory_space<vmem>>, vector<8x32xf32>
      tpu.vector_store %arg30[%c0_413, %c0_414], %469 {strides = array<i32>} : memref<8x32xf32, #tpu.memory_space<vmem>>, vector<8x32xf32>,
    } else {
    }
    %c0 = arith.constant 0 : index
    %c0_1 = arith.constant 0 : index
    %3 = vector.load %arg30[%c0, %c0_1] : memref<8x32xf32, #tpu.memory_space<vmem>>, vector<8x32xf32>
    %c0_2 = arith.constant 0 : index
    %c0_3 = arith.constant 0 : index
    %4 = vector.load %arg3[%c0_2, %c0_3] : memref<8x32xf32, #tpu.memory_space<vmem>>, vector<8x32xf32>
    %c0_4 = arith.constant 0 : index
    %c0_5 = arith.constant 0 : index
    %5 = vector.load %arg4[%c0_4, %c0_5] : memref<8x8xf32, #tpu.memory_space<vmem>>, vector<8x8xf32>
    %c0_6 = arith.constant 0 : index
    %c0_7 = arith.constant 0 : index
    %c0_8 = arith.constant 0 : index
    %6 = vector.load %arg5[%c0_6, %c0_7, %c0_8] : memref<1x1x8xf32, #tpu.memory_space<vmem>>, vector<1x1x8xf32>
    %7 = vector.shape_cast %6 : vector<1x1x8xf32> to vector<1x8xf32>
    %8 = vector.broadcast %7 : vector<1x8xf32> to vector<8x8xf32>
    %9 = arith.addf %5, %8 : vector<8x8xf32>
    %c0_9 = arith.constant 0 : index
    %c0_10 = arith.constant 0 : index
    %c0_11 = arith.constant 0 : index
    %10 = vector.load %arg6[%c0_9, %c0_10, %c0_11] : memref<1x1x8xf32, #tpu.memory_space<vmem>>, vector<1x1x8xf32>
    %11 = vector.shape_cast %10 : vector<1x1x8xf32> to vector<1x8xf32>
    %12 = arith.truncf %3 : vector<8x32xf32> to vector<8x32xbf16>
    %13 = arith.truncf %3 : vector<8x32xf32> to vector<8x32xbf16>
    %cst = arith.constant 0.000000e+00 : f32
    %14 = vector.broadcast %cst : f32 to vector<8x32xf32>
    %c0_12 = arith.constant 0 : index
    %c0_13 = arith.constant 0 : index
    %c0_14 = arith.constant 0 : index
    %c0_15 = arith.constant 0 : index
    %c0_16 = arith.constant 0 : index
    %15 = vector.load %arg7[%c0_12, %c0_13, %c0_14, %c0_15, %c0_16] : memref<1x3x4x32x8xbf16, #tpu.memory_space<vmem>>, vector<1x1x1x32x8xbf16>
    %16 = vector.shape_cast %15 : vector<1x1x1x32x8xbf16> to vector<32x8xbf16>
    %cst_17 = arith.constant dense<0.000000e+00> : vector<8x8xf32>
    %17 = tpu.matmul %12, %16, %cst_17 {dimension_numbers = #tpu.dot_dimension_numbers<[1], [0], [0], [1], [0, 0, 1, 1], [], []>} : vector<8x32xbf16>, vector<32x8xbf16>, vector<8x8xf32> -> vector<8x8xf32>
    %c0_18 = arith.constant 0 : index
    %c0_19 = arith.constant 0 : index
    %c0_20 = arith.constant 0 : index
    %c0_21 = arith.constant 0 : index
    %c0_22 = arith.constant 0 : index
    %18 = vector.load %arg8[%c0_18, %c0_19, %c0_20, %c0_21, %c0_22] : memref<1x3x4x1x8xf32, #tpu.memory_space<vmem>>, vector<1x1x1x1x8xf32>
    %19 = vector.shape_cast %18 : vector<1x1x1x1x8xf32> to vector<1x8xf32>
    %20 = vector.broadcast %19 : vector<1x8xf32> to vector<8x8xf32>
    %21 = arith.addf %17, %20 : vector<8x8xf32>
    %c0_23 = arith.constant 0 : index
    %c1 = arith.constant 1 : index
    %c0_24 = arith.constant 0 : index
    %c0_25 = arith.constant 0 : index
    %c0_26 = arith.constant 0 : index
    %22 = vector.load %arg7[%c0_23, %c1, %c0_24, %c0_25, %c0_26] : memref<1x3x4x32x8xbf16, #tpu.memory_space<vmem>>, vector<1x1x1x32x8xbf16>
    %23 = vector.shape_cast %22 : vector<1x1x1x32x8xbf16> to vector<32x8xbf16>
    %cst_27 = arith.constant dense<0.000000e+00> : vector<8x8xf32>
    %24 = tpu.matmul %13, %23, %cst_27 {dimension_numbers = #tpu.dot_dimension_numbers<[1], [0], [0], [1], [0, 0, 1, 1], [], []>} : vector<8x32xbf16>, vector<32x8xbf16>, vector<8x8xf32> -> vector<8x8xf32>
    %c0_28 = arith.constant 0 : index
    %c1_29 = arith.constant 1 : index
    %c0_30 = arith.constant 0 : index
    %c0_31 = arith.constant 0 : index
    %c0_32 = arith.constant 0 : index
    %25 = vector.load %arg8[%c0_28, %c1_29, %c0_30, %c0_31, %c0_32] : memref<1x3x4x1x8xf32, #tpu.memory_space<vmem>>, vector<1x1x1x1x8xf32>
    %26 = vector.shape_cast %25 : vector<1x1x1x1x8xf32> to vector<1x8xf32>
    %27 = vector.broadcast %26 : vector<1x8xf32> to vector<8x8xf32>
    %28 = arith.addf %24, %27 : vector<8x8xf32>
    %c0_33 = arith.constant 0 : index
    %c2 = arith.constant 2 : index
    %c0_34 = arith.constant 0 : index
    %c0_35 = arith.constant 0 : index
    %c0_36 = arith.constant 0 : index
    %29 = vector.load %arg7[%c0_33, %c2, %c0_34, %c0_35, %c0_36] : memref<1x3x4x32x8xbf16, #tpu.memory_space<vmem>>, vector<1x1x1x32x8xbf16>
    %30 = vector.shape_cast %29 : vector<1x1x1x32x8xbf16> to vector<32x8xbf16>
    %cst_37 = arith.constant dense<0.000000e+00> : vector<8x8xf32>
    %31 = tpu.matmul %13, %30, %cst_37 {dimension_numbers = #tpu.dot_dimension_numbers<[1], [0], [0], [1], [0, 0, 1, 1], [], []>} : vector<8x32xbf16>, vector<32x8xbf16>, vector<8x8xf32> -> vector<8x8xf32>
    %c0_38 = arith.constant 0 : index
    %c2_39 = arith.constant 2 : index
    %c0_40 = arith.constant 0 : index
    %c0_41 = arith.constant 0 : index
    %c0_42 = arith.constant 0 : index
    %32 = vector.load %arg8[%c0_38, %c2_39, %c0_40, %c0_41, %c0_42] : memref<1x3x4x1x8xf32, #tpu.memory_space<vmem>>, vector<1x1x1x1x8xf32>
    %33 = vector.shape_cast %32 : vector<1x1x1x1x8xf32> to vector<1x8xf32>
    %34 = vector.broadcast %33 : vector<1x8xf32> to vector<8x8xf32>
    %35 = arith.addf %31, %34 : vector<8x8xf32>
    %36 = tpu.transpose %28, [1, 0] : vector<8x8xf32> -> vector<8x8xf32>
    %cst_43 = arith.constant dense<0.000000e+00> : vector<8x8xf32>
    %37 = tpu.matmul %21, %36, %cst_43 {dimension_numbers = #tpu.dot_dimension_numbers<[1], [0], [0], [1], [0, 0, 1, 1], [], []>} : vector<8x8xf32>, vector<8x8xf32>, vector<8x8xf32> -> vector<8x8xf32>
    %cst_44 = arith.constant 0.353553385 : f32
    %38 = vector.broadcast %cst_44 : f32 to vector<8x8xf32>
    %39 = arith.mulf %37, %38 : vector<8x8xf32>
    %40 = arith.addf %39, %9 : vector<8x8xf32>
    %cst_45 = arith.constant dense<0xFF800000> : vector<8xf32>
    %41 = vector.multi_reduction <maximumf>, %40, %cst_45 [1] : vector<8x8xf32> to vector<8xf32>
    %42 = vector.shape_cast %41 : vector<8xf32> to vector<8x1xf32>
    %43 = vector.broadcast %42 : vector<8x1xf32> to vector<8x8xf32>
    %44 = arith.subf %40, %43 : vector<8x8xf32>
    %45 = math.exp %44 : vector<8x8xf32>
    %cst_46 = arith.constant dense<0.000000e+00> : vector<8xf32>
    %46 = vector.multi_reduction <add>, %45, %cst_46 [1] : vector<8x8xf32> to vector<8xf32>
    %47 = vector.shape_cast %46 : vector<8xf32> to vector<8x1xf32>
    %48 = tpu.reciprocal %47 {approx = true} : vector<8x1xf32> -> vector<8x1xf32>
    %49 = vector.broadcast %48 : vector<8x1xf32> to vector<8x8xf32>
    %50 = arith.mulf %45, %49 : vector<8x8xf32>
    %cst_47 = arith.constant dense<0.000000e+00> : vector<8x8xf32>
    %51 = tpu.matmul %50, %35, %cst_47 {dimension_numbers = #tpu.dot_dimension_numbers<[1], [0], [0], [1], [0, 0, 1, 1], [], []>} : vector<8x8xf32>, vector<8x8xf32>, vector<8x8xf32> -> vector<8x8xf32>
    %52 = arith.truncf %51 : vector<8x8xf32> to vector<8x8xbf16>
    %c0_48 = arith.constant 0 : index
    %c0_49 = arith.constant 0 : index
    %c0_50 = arith.constant 0 : index
    %c0_51 = arith.constant 0 : index
    %53 = vector.load %arg9[%c0_48, %c0_49, %c0_50, %c0_51] : memref<1x4x8x32xbf16, #tpu.memory_space<vmem>>, vector<1x1x8x32xbf16>
    %54 = vector.shape_cast %53 : vector<1x1x8x32xbf16> to vector<8x32xbf16>
    %cst_52 = arith.constant dense<0.000000e+00> : vector<8x32xf32>
    %55 = tpu.matmul %52, %54, %cst_52 {dimension_numbers = #tpu.dot_dimension_numbers<[1], [0], [0], [1], [0, 0, 1, 1], [], []>} : vector<8x8xbf16>, vector<8x32xbf16>, vector<8x32xf32> -> vector<8x32xf32>
    %56 = arith.addf %14, %55 : vector<8x32xf32>
    %c0_53 = arith.constant 0 : index
    %c0_54 = arith.constant 0 : index
    %c1_55 = arith.constant 1 : index
    %c0_56 = arith.constant 0 : index
    %c0_57 = arith.constant 0 : index
    %57 = vector.load %arg7[%c0_53, %c0_54, %c1_55, %c0_56, %c0_57] : memref<1x3x4x32x8xbf16, #tpu.memory_space<vmem>>, vector<1x1x1x32x8xbf16>
    %58 = vector.shape_cast %57 : vector<1x1x1x32x8xbf16> to vector<32x8xbf16>
    %cst_58 = arith.constant dense<0.000000e+00> : vector<8x8xf32>
    %59 = tpu.matmul %12, %58, %cst_58 {dimension_numbers = #tpu.dot_dimension_numbers<[1], [0], [0], [1], [0, 0, 1, 1], [], []>} : vector<8x32xbf16>, vector<32x8xbf16>, vector<8x8xf32> -> vector<8x8xf32>
    %c0_59 = arith.constant 0 : index
    %c0_60 = arith.constant 0 : index
    %c1_61 = arith.constant 1 : index
    %c0_62 = arith.constant 0 : index
    %c0_63 = arith.constant 0 : index
    %60 = vector.load %arg8[%c0_59, %c0_60, %c1_61, %c0_62, %c0_63] : memref<1x3x4x1x8xf32, #tpu.memory_space<vmem>>, vector<1x1x1x1x8xf32>
    %61 = vector.shape_cast %60 : vector<1x1x1x1x8xf32> to vector<1x8xf32>
    %62 = vector.broadcast %61 : vector<1x8xf32> to vector<8x8xf32>
    %63 = arith.addf %59, %62 : vector<8x8xf32>
    %c0_64 = arith.constant 0 : index
    %c1_65 = arith.constant 1 : index
    %c1_66 = arith.constant 1 : index
    %c0_67 = arith.constant 0 : index
    %c0_68 = arith.constant 0 : index
    %64 = vector.load %arg7[%c0_64, %c1_65, %c1_66, %c0_67, %c0_68] : memref<1x3x4x32x8xbf16, #tpu.memory_space<vmem>>, vector<1x1x1x32x8xbf16>
    %65 = vector.shape_cast %64 : vector<1x1x1x32x8xbf16> to vector<32x8xbf16>
    %cst_69 = arith.constant dense<0.000000e+00> : vector<8x8xf32>
    %66 = tpu.matmul %13, %65, %cst_69 {dimension_numbers = #tpu.dot_dimension_numbers<[1], [0], [0], [1], [0, 0, 1, 1], [], []>} : vector<8x32xbf16>, vector<32x8xbf16>, vector<8x8xf32> -> vector<8x8xf32>
    %c0_70 = arith.constant 0 : index
    %c1_71 = arith.constant 1 : index
    %c1_72 = arith.constant 1 : index
    %c0_73 = arith.constant 0 : index
    %c0_74 = arith.constant 0 : index
    %67 = vector.load %arg8[%c0_70, %c1_71, %c1_72, %c0_73, %c0_74] : memref<1x3x4x1x8xf32, #tpu.memory_space<vmem>>, vector<1x1x1x1x8xf32>
    %68 = vector.shape_cast %67 : vector<1x1x1x1x8xf32> to vector<1x8xf32>
    %69 = vector.broadcast %68 : vector<1x8xf32> to vector<8x8xf32>
    %70 = arith.addf %66, %69 : vector<8x8xf32>
    %c0_75 = arith.constant 0 : index
    %c2_76 = arith.constant 2 : index
    %c1_77 = arith.constant 1 : index
    %c0_78 = arith.constant 0 : index
    %c0_79 = arith.constant 0 : index
    %71 = vector.load %arg7[%c0_75, %c2_76, %c1_77, %c0_78, %c0_79] : memref<1x3x4x32x8xbf16, #tpu.memory_space<vmem>>, vector<1x1x1x32x8xbf16>
    %72 = vector.shape_cast %71 : vector<1x1x1x32x8xbf16> to vector<32x8xbf16>
    %cst_80 = arith.constant dense<0.000000e+00> : vector<8x8xf32>
    %73 = tpu.matmul %13, %72, %cst_80 {dimension_numbers = #tpu.dot_dimension_numbers<[1], [0], [0], [1], [0, 0, 1, 1], [], []>} : vector<8x32xbf16>, vector<32x8xbf16>, vector<8x8xf32> -> vector<8x8xf32>
    %c0_81 = arith.constant 0 : index
    %c2_82 = arith.constant 2 : index
    %c1_83 = arith.constant 1 : index
    %c0_84 = arith.constant 0 : index
    %c0_85 = arith.constant 0 : index
    %74 = vector.load %arg8[%c0_81, %c2_82, %c1_83, %c0_84, %c0_85] : memref<1x3x4x1x8xf32, #tpu.memory_space<vmem>>, vector<1x1x1x1x8xf32>
    %75 = vector.shape_cast %74 : vector<1x1x1x1x8xf32> to vector<1x8xf32>
    %76 = vector.broadcast %75 : vector<1x8xf32> to vector<8x8xf32>
    %77 = arith.addf %73, %76 : vector<8x8xf32>
    %78 = tpu.transpose %70, [1, 0] : vector<8x8xf32> -> vector<8x8xf32>
    %cst_86 = arith.constant dense<0.000000e+00> : vector<8x8xf32>
    %79 = tpu.matmul %63, %78, %cst_86 {dimension_numbers = #tpu.dot_dimension_numbers<[1], [0], [0], [1], [0, 0, 1, 1], [], []>} : vector<8x8xf32>, vector<8x8xf32>, vector<8x8xf32> -> vector<8x8xf32>
    %cst_87 = arith.constant 0.353553385 : f32
    %80 = vector.broadcast %cst_87 : f32 to vector<8x8xf32>
    %81 = arith.mulf %79, %80 : vector<8x8xf32>
    %82 = arith.addf %81, %9 : vector<8x8xf32>
    %cst_88 = arith.constant dense<0xFF800000> : vector<8xf32>
    %83 = vector.multi_reduction <maximumf>, %82, %cst_88 [1] : vector<8x8xf32> to vector<8xf32>
    %84 = vector.shape_cast %83 : vector<8xf32> to vector<8x1xf32>
    %85 = vector.broadcast %84 : vector<8x1xf32> to vector<8x8xf32>
    %86 = arith.subf %82, %85 : vector<8x8xf32>
    %87 = math.exp %86 : vector<8x8xf32>
    %cst_89 = arith.constant dense<0.000000e+00> : vector<8xf32>
    %88 = vector.multi_reduction <add>, %87, %cst_89 [1] : vector<8x8xf32> to vector<8xf32>
    %89 = vector.shape_cast %88 : vector<8xf32> to vector<8x1xf32>
    %90 = tpu.reciprocal %89 {approx = true} : vector<8x1xf32> -> vector<8x1xf32>
    %91 = vector.broadcast %90 : vector<8x1xf32> to vector<8x8xf32>
    %92 = arith.mulf %87, %91 : vector<8x8xf32>
    %cst_90 = arith.constant dense<0.000000e+00> : vector<8x8xf32>
    %93 = tpu.matmul %92, %77, %cst_90 {dimension_numbers = #tpu.dot_dimension_numbers<[1], [0], [0], [1], [0, 0, 1, 1], [], []>} : vector<8x8xf32>, vector<8x8xf32>, vector<8x8xf32> -> vector<8x8xf32>
    %94 = arith.truncf %93 : vector<8x8xf32> to vector<8x8xbf16>
    %c0_91 = arith.constant 0 : index
    %c1_92 = arith.constant 1 : index
    %c0_93 = arith.constant 0 : index
    %c0_94 = arith.constant 0 : index
    %95 = vector.load %arg9[%c0_91, %c1_92, %c0_93, %c0_94] : memref<1x4x8x32xbf16, #tpu.memory_space<vmem>>, vector<1x1x8x32xbf16>
    %96 = vector.shape_cast %95 : vector<1x1x8x32xbf16> to vector<8x32xbf16>
    %cst_95 = arith.constant dense<0.000000e+00> : vector<8x32xf32>
    %97 = tpu.matmul %94, %96, %cst_95 {dimension_numbers = #tpu.dot_dimension_numbers<[1], [0], [0], [1], [0, 0, 1, 1], [], []>} : vector<8x8xbf16>, vector<8x32xbf16>, vector<8x32xf32> -> vector<8x32xf32>
    %98 = arith.addf %56, %97 : vector<8x32xf32>
    %c0_96 = arith.constant 0 : index
    %c0_97 = arith.constant 0 : index
    %c2_98 = arith.constant 2 : index
    %c0_99 = arith.constant 0 : index
    %c0_100 = arith.constant 0 : index
    %99 = vector.load %arg7[%c0_96, %c0_97, %c2_98, %c0_99, %c0_100] : memref<1x3x4x32x8xbf16, #tpu.memory_space<vmem>>, vector<1x1x1x32x8xbf16>
    %100 = vector.shape_cast %99 : vector<1x1x1x32x8xbf16> to vector<32x8xbf16>
    %cst_101 = arith.constant dense<0.000000e+00> : vector<8x8xf32>
    %101 = tpu.matmul %12, %100, %cst_101 {dimension_numbers = #tpu.dot_dimension_numbers<[1], [0], [0], [1], [0, 0, 1, 1], [], []>} : vector<8x32xbf16>, vector<32x8xbf16>, vector<8x8xf32> -> vector<8x8xf32>
    %c0_102 = arith.constant 0 : index
    %c0_103 = arith.constant 0 : index
    %c2_104 = arith.constant 2 : index
    %c0_105 = arith.constant 0 : index
    %c0_106 = arith.constant 0 : index
    %102 = vector.load %arg8[%c0_102, %c0_103, %c2_104, %c0_105, %c0_106] : memref<1x3x4x1x8xf32, #tpu.memory_space<vmem>>, vector<1x1x1x1x8xf32>
    %103 = vector.shape_cast %102 : vector<1x1x1x1x8xf32> to vector<1x8xf32>
    %104 = vector.broadcast %103 : vector<1x8xf32> to vector<8x8xf32>
    %105 = arith.addf %101, %104 : vector<8x8xf32>
    %c0_107 = arith.constant 0 : index
    %c1_108 = arith.constant 1 : index
    %c2_109 = arith.constant 2 : index
    %c0_110 = arith.constant 0 : index
    %c0_111 = arith.constant 0 : index
    %106 = vector.load %arg7[%c0_107, %c1_108, %c2_109, %c0_110, %c0_111] : memref<1x3x4x32x8xbf16, #tpu.memory_space<vmem>>, vector<1x1x1x32x8xbf16>
    %107 = vector.shape_cast %106 : vector<1x1x1x32x8xbf16> to vector<32x8xbf16>
    %cst_112 = arith.constant dense<0.000000e+00> : vector<8x8xf32>
    %108 = tpu.matmul %13, %107, %cst_112 {dimension_numbers = #tpu.dot_dimension_numbers<[1], [0], [0], [1], [0, 0, 1, 1], [], []>} : vector<8x32xbf16>, vector<32x8xbf16>, vector<8x8xf32> -> vector<8x8xf32>
    %c0_113 = arith.constant 0 : index
    %c1_114 = arith.constant 1 : index
    %c2_115 = arith.constant 2 : index
    %c0_116 = arith.constant 0 : index
    %c0_117 = arith.constant 0 : index
    %109 = vector.load %arg8[%c0_113, %c1_114, %c2_115, %c0_116, %c0_117] : memref<1x3x4x1x8xf32, #tpu.memory_space<vmem>>, vector<1x1x1x1x8xf32>
    %110 = vector.shape_cast %109 : vector<1x1x1x1x8xf32> to vector<1x8xf32>
    %111 = vector.broadcast %110 : vector<1x8xf32> to vector<8x8xf32>
    %112 = arith.addf %108, %111 : vector<8x8xf32>
    %c0_118 = arith.constant 0 : index
    %c2_119 = arith.constant 2 : index
    %c2_120 = arith.constant 2 : index
    %c0_121 = arith.constant 0 : index
    %c0_122 = arith.constant 0 : index
    %113 = vector.load %arg7[%c0_118, %c2_119, %c2_120, %c0_121, %c0_122] : memref<1x3x4x32x8xbf16, #tpu.memory_space<vmem>>, vector<1x1x1x32x8xbf16>
    %114 = vector.shape_cast %113 : vector<1x1x1x32x8xbf16> to vector<32x8xbf16>
    %cst_123 = arith.constant dense<0.000000e+00> : vector<8x8xf32>
    %115 = tpu.matmul %13, %114, %cst_123 {dimension_numbers = #tpu.dot_dimension_numbers<[1], [0], [0], [1], [0, 0, 1, 1], [], []>} : vector<8x32xbf16>, vector<32x8xbf16>, vector<8x8xf32> -> vector<8x8xf32>
    %c0_124 = arith.constant 0 : index
    %c2_125 = arith.constant 2 : index
    %c2_126 = arith.constant 2 : index
    %c0_127 = arith.constant 0 : index
    %c0_128 = arith.constant 0 : index
    %116 = vector.load %arg8[%c0_124, %c2_125, %c2_126, %c0_127, %c0_128] : memref<1x3x4x1x8xf32, #tpu.memory_space<vmem>>, vector<1x1x1x1x8xf32>
    %117 = vector.shape_cast %116 : vector<1x1x1x1x8xf32> to vector<1x8xf32>
    %118 = vector.broadcast %117 : vector<1x8xf32> to vector<8x8xf32>
    %119 = arith.addf %115, %118 : vector<8x8xf32>
    %120 = tpu.transpose %112, [1, 0] : vector<8x8xf32> -> vector<8x8xf32>
    %cst_129 = arith.constant dense<0.000000e+00> : vector<8x8xf32>
    %121 = tpu.matmul %105, %120, %cst_129 {dimension_numbers = #tpu.dot_dimension_numbers<[1], [0], [0], [1], [0, 0, 1, 1], [], []>} : vector<8x8xf32>, vector<8x8xf32>, vector<8x8xf32> -> vector<8x8xf32>
    %cst_130 = arith.constant 0.353553385 : f32
    %122 = vector.broadcast %cst_130 : f32 to vector<8x8xf32>
    %123 = arith.mulf %121, %122 : vector<8x8xf32>
    %124 = arith.addf %123, %9 : vector<8x8xf32>
    %cst_131 = arith.constant dense<0xFF800000> : vector<8xf32>
    %125 = vector.multi_reduction <maximumf>, %124, %cst_131 [1] : vector<8x8xf32> to vector<8xf32>
    %126 = vector.shape_cast %125 : vector<8xf32> to vector<8x1xf32>
    %127 = vector.broadcast %126 : vector<8x1xf32> to vector<8x8xf32>
    %128 = arith.subf %124, %127 : vector<8x8xf32>
    %129 = math.exp %128 : vector<8x8xf32>
    %cst_132 = arith.constant dense<0.000000e+00> : vector<8xf32>
    %130 = vector.multi_reduction <add>, %129, %cst_132 [1] : vector<8x8xf32> to vector<8xf32>
    %131 = vector.shape_cast %130 : vector<8xf32> to vector<8x1xf32>
    %132 = tpu.reciprocal %131 {approx = true} : vector<8x1xf32> -> vector<8x1xf32>
    %133 = vector.broadcast %132 : vector<8x1xf32> to vector<8x8xf32>
    %134 = arith.mulf %129, %133 : vector<8x8xf32>
    %cst_133 = arith.constant dense<0.000000e+00> : vector<8x8xf32>
    %135 = tpu.matmul %134, %119, %cst_133 {dimension_numbers = #tpu.dot_dimension_numbers<[1], [0], [0], [1], [0, 0, 1, 1], [], []>} : vector<8x8xf32>, vector<8x8xf32>, vector<8x8xf32> -> vector<8x8xf32>
    %136 = arith.truncf %135 : vector<8x8xf32> to vector<8x8xbf16>
    %c0_134 = arith.constant 0 : index
    %c2_135 = arith.constant 2 : index
    %c0_136 = arith.constant 0 : index
    %c0_137 = arith.constant 0 : index
    %137 = vector.load %arg9[%c0_134, %c2_135, %c0_136, %c0_137] : memref<1x4x8x32xbf16, #tpu.memory_space<vmem>>, vector<1x1x8x32xbf16>
    %138 = vector.shape_cast %137 : vector<1x1x8x32xbf16> to vector<8x32xbf16>
    %cst_138 = arith.constant dense<0.000000e+00> : vector<8x32xf32>
    %139 = tpu.matmul %136, %138, %cst_138 {dimension_numbers = #tpu.dot_dimension_numbers<[1], [0], [0], [1], [0, 0, 1, 1], [], []>} : vector<8x8xbf16>, vector<8x32xbf16>, vector<8x32xf32> -> vector<8x32xf32>
    %140 = arith.addf %98, %139 : vector<8x32xf32>
    %c0_139 = arith.constant 0 : index
    %c0_140 = arith.constant 0 : index
    %c3 = arith.constant 3 : index
    %c0_141 = arith.constant 0 : index
    %c0_142 = arith.constant 0 : index
    %141 = vector.load %arg7[%c0_139, %c0_140, %c3, %c0_141, %c0_142] : memref<1x3x4x32x8xbf16, #tpu.memory_space<vmem>>, vector<1x1x1x32x8xbf16>
    %142 = vector.shape_cast %141 : vector<1x1x1x32x8xbf16> to vector<32x8xbf16>
    %cst_143 = arith.constant dense<0.000000e+00> : vector<8x8xf32>
    %143 = tpu.matmul %12, %142, %cst_143 {dimension_numbers = #tpu.dot_dimension_numbers<[1], [0], [0], [1], [0, 0, 1, 1], [], []>} : vector<8x32xbf16>, vector<32x8xbf16>, vector<8x8xf32> -> vector<8x8xf32>
    %c0_144 = arith.constant 0 : index
    %c0_145 = arith.constant 0 : index
    %c3_146 = arith.constant 3 : index
    %c0_147 = arith.constant 0 : index
    %c0_148 = arith.constant 0 : index
    %144 = vector.load %arg8[%c0_144, %c0_145, %c3_146, %c0_147, %c0_148] : memref<1x3x4x1x8xf32, #tpu.memory_space<vmem>>, vector<1x1x1x1x8xf32>
    %145 = vector.shape_cast %144 : vector<1x1x1x1x8xf32> to vector<1x8xf32>
    %146 = vector.broadcast %145 : vector<1x8xf32> to vector<8x8xf32>
    %147 = arith.addf %143, %146 : vector<8x8xf32>
    %c0_149 = arith.constant 0 : index
    %c1_150 = arith.constant 1 : index
    %c3_151 = arith.constant 3 : index
    %c0_152 = arith.constant 0 : index
    %c0_153 = arith.constant 0 : index
    %148 = vector.load %arg7[%c0_149, %c1_150, %c3_151, %c0_152, %c0_153] : memref<1x3x4x32x8xbf16, #tpu.memory_space<vmem>>, vector<1x1x1x32x8xbf16>
    %149 = vector.shape_cast %148 : vector<1x1x1x32x8xbf16> to vector<32x8xbf16>
    %cst_154 = arith.constant dense<0.000000e+00> : vector<8x8xf32>
    %150 = tpu.matmul %13, %149, %cst_154 {dimension_numbers = #tpu.dot_dimension_numbers<[1], [0], [0], [1], [0, 0, 1, 1], [], []>} : vector<8x32xbf16>, vector<32x8xbf16>, vector<8x8xf32> -> vector<8x8xf32>
    %c0_155 = arith.constant 0 : index
    %c1_156 = arith.constant 1 : index
    %c3_157 = arith.constant 3 : index
    %c0_158 = arith.constant 0 : index
    %c0_159 = arith.constant 0 : index
    %151 = vector.load %arg8[%c0_155, %c1_156, %c3_157, %c0_158, %c0_159] : memref<1x3x4x1x8xf32, #tpu.memory_space<vmem>>, vector<1x1x1x1x8xf32>
    %152 = vector.shape_cast %151 : vector<1x1x1x1x8xf32> to vector<1x8xf32>
    %153 = vector.broadcast %152 : vector<1x8xf32> to vector<8x8xf32>
    %154 = arith.addf %150, %153 : vector<8x8xf32>
    %c0_160 = arith.constant 0 : index
    %c2_161 = arith.constant 2 : index
    %c3_162 = arith.constant 3 : index
    %c0_163 = arith.constant 0 : index
    %c0_164 = arith.constant 0 : index
    %155 = vector.load %arg7[%c0_160, %c2_161, %c3_162, %c0_163, %c0_164] : memref<1x3x4x32x8xbf16, #tpu.memory_space<vmem>>, vector<1x1x1x32x8xbf16>
    %156 = vector.shape_cast %155 : vector<1x1x1x32x8xbf16> to vector<32x8xbf16>
    %cst_165 = arith.constant dense<0.000000e+00> : vector<8x8xf32>
    %157 = tpu.matmul %13, %156, %cst_165 {dimension_numbers = #tpu.dot_dimension_numbers<[1], [0], [0], [1], [0, 0, 1, 1], [], []>} : vector<8x32xbf16>, vector<32x8xbf16>, vector<8x8xf32> -> vector<8x8xf32>
    %c0_166 = arith.constant 0 : index
    %c2_167 = arith.constant 2 : index
    %c3_168 = arith.constant 3 : index
    %c0_169 = arith.constant 0 : index
    %c0_170 = arith.constant 0 : index
    %158 = vector.load %arg8[%c0_166, %c2_167, %c3_168, %c0_169, %c0_170] : memref<1x3x4x1x8xf32, #tpu.memory_space<vmem>>, vector<1x1x1x1x8xf32>
    %159 = vector.shape_cast %158 : vector<1x1x1x1x8xf32> to vector<1x8xf32>
    %160 = vector.broadcast %159 : vector<1x8xf32> to vector<8x8xf32>
    %161 = arith.addf %157, %160 : vector<8x8xf32>
    %162 = tpu.transpose %154, [1, 0] : vector<8x8xf32> -> vector<8x8xf32>
    %cst_171 = arith.constant dense<0.000000e+00> : vector<8x8xf32>
    %163 = tpu.matmul %147, %162, %cst_171 {dimension_numbers = #tpu.dot_dimension_numbers<[1], [0], [0], [1], [0, 0, 1, 1], [], []>} : vector<8x8xf32>, vector<8x8xf32>, vector<8x8xf32> -> vector<8x8xf32>
    %cst_172 = arith.constant 0.353553385 : f32
    %164 = vector.broadcast %cst_172 : f32 to vector<8x8xf32>
    %165 = arith.mulf %163, %164 : vector<8x8xf32>
    %166 = arith.addf %165, %9 : vector<8x8xf32>
    %cst_173 = arith.constant dense<0xFF800000> : vector<8xf32>
    %167 = vector.multi_reduction <maximumf>, %166, %cst_173 [1] : vector<8x8xf32> to vector<8xf32>
    %168 = vector.shape_cast %167 : vector<8xf32> to vector<8x1xf32>
    %169 = vector.broadcast %168 : vector<8x1xf32> to vector<8x8xf32>
    %170 = arith.subf %166, %169 : vector<8x8xf32>
    %171 = math.exp %170 : vector<8x8xf32>
    %cst_174 = arith.constant dense<0.000000e+00> : vector<8xf32>
    %172 = vector.multi_reduction <add>, %171, %cst_174 [1] : vector<8x8xf32> to vector<8xf32>
    %173 = vector.shape_cast %172 : vector<8xf32> to vector<8x1xf32>
    %174 = tpu.reciprocal %173 {approx = true} : vector<8x1xf32> -> vector<8x1xf32>
    %175 = vector.broadcast %174 : vector<8x1xf32> to vector<8x8xf32>
    %176 = arith.mulf %171, %175 : vector<8x8xf32>
    %cst_175 = arith.constant dense<0.000000e+00> : vector<8x8xf32>
    %177 = tpu.matmul %176, %161, %cst_175 {dimension_numbers = #tpu.dot_dimension_numbers<[1], [0], [0], [1], [0, 0, 1, 1], [], []>} : vector<8x8xf32>, vector<8x8xf32>, vector<8x8xf32> -> vector<8x8xf32>
    %178 = arith.truncf %177 : vector<8x8xf32> to vector<8x8xbf16>
    %c0_176 = arith.constant 0 : index
    %c3_177 = arith.constant 3 : index
    %c0_178 = arith.constant 0 : index
    %c0_179 = arith.constant 0 : index
    %179 = vector.load %arg9[%c0_176, %c3_177, %c0_178, %c0_179] : memref<1x4x8x32xbf16, #tpu.memory_space<vmem>>, vector<1x1x8x32xbf16>
    %180 = vector.shape_cast %179 : vector<1x1x8x32xbf16> to vector<8x32xbf16>
    %cst_180 = arith.constant dense<0.000000e+00> : vector<8x32xf32>
    %181 = tpu.matmul %178, %180, %cst_180 {dimension_numbers = #tpu.dot_dimension_numbers<[1], [0], [0], [1], [0, 0, 1, 1], [], []>} : vector<8x8xbf16>, vector<8x32xbf16>, vector<8x32xf32> -> vector<8x32xf32>
    %182 = arith.addf %140, %181 : vector<8x32xf32>
    %c0_181 = arith.constant 0 : index
    %c0_182 = arith.constant 0 : index
    %c0_183 = arith.constant 0 : index
    %183 = vector.load %arg10[%c0_181, %c0_182, %c0_183] : memref<1x1x32xf32, #tpu.memory_space<vmem>>, vector<1x1x32xf32>
    %184 = vector.shape_cast %183 : vector<1x1x32xf32> to vector<1x32xf32>
    %185 = vector.broadcast %184 : vector<1x32xf32> to vector<8x32xf32>
    %186 = arith.addf %182, %185 : vector<8x32xf32>
    %187 = arith.addf %3, %186 : vector<8x32xf32>
    %c0_184 = arith.constant 0 : index
    %c0_185 = arith.constant 0 : index
    %c0_186 = arith.constant 0 : index
    %188 = vector.load %arg11[%c0_184, %c0_185, %c0_186] : memref<1x1x32xf32, #tpu.memory_space<vmem>>, vector<1x1x32xf32>
    %189 = vector.shape_cast %188 : vector<1x1x32xf32> to vector<1x32xf32>
    %c0_187 = arith.constant 0 : index
    %c0_188 = arith.constant 0 : index
    %c0_189 = arith.constant 0 : index
    %190 = vector.load %arg12[%c0_187, %c0_188, %c0_189] : memref<1x1x32xf32, #tpu.memory_space<vmem>>, vector<1x1x32xf32>
    %191 = vector.shape_cast %190 : vector<1x1x32xf32> to vector<1x32xf32>
    %cst_190 = arith.constant dense<0.000000e+00> : vector<8xf32>
    %192 = vector.multi_reduction <add>, %187, %cst_190 [1] : vector<8x32xf32> to vector<8xf32>
    %193 = vector.shape_cast %192 : vector<8xf32> to vector<8x1xf32>
    %cst_191 = arith.constant 3.200000e+01 : f32
    %194 = vector.broadcast %cst_191 : f32 to vector<8x1xf32>
    %195 = arith.divf %193, %194 : vector<8x1xf32>
    %196 = vector.broadcast %195 : vector<8x1xf32> to vector<8x32xf32>
    %197 = arith.subf %187, %196 : vector<8x32xf32>
    %198 = arith.mulf %197, %197 : vector<8x32xf32>
    %cst_192 = arith.constant dense<0.000000e+00> : vector<8xf32>
    %199 = vector.multi_reduction <add>, %198, %cst_192 [1] : vector<8x32xf32> to vector<8xf32>
    %200 = vector.shape_cast %199 : vector<8xf32> to vector<8x1xf32>
    %cst_193 = arith.constant 3.200000e+01 : f32
    %201 = vector.broadcast %cst_193 : f32 to vector<8x1xf32>
    %202 = arith.divf %200, %201 : vector<8x1xf32>
    %203 = vector.broadcast %195 : vector<8x1xf32> to vector<8x32xf32>
    %204 = arith.subf %187, %203 : vector<8x32xf32>
    %cst_194 = arith.constant 9.99999974E-6 : f32
    %205 = vector.broadcast %cst_194 : f32 to vector<8x1xf32>
    %206 = arith.addf %202, %205 : vector<8x1xf32>
    %207 = math.rsqrt %206 : vector<8x1xf32>
    %208 = vector.broadcast %207 : vector<8x1xf32> to vector<8x32xf32>
    %209 = arith.mulf %204, %208 : vector<8x32xf32>
    %210 = vector.broadcast %189 : vector<1x32xf32> to vector<8x32xf32>
    %211 = arith.mulf %209, %210 : vector<8x32xf32>
    %212 = vector.broadcast %191 : vector<1x32xf32> to vector<8x32xf32>
    %213 = arith.addf %211, %212 : vector<8x32xf32>
    %214 = arith.truncf %213 : vector<8x32xf32> to vector<8x32xbf16>
    %215 = arith.truncf %4 : vector<8x32xf32> to vector<8x32xbf16>
    %cst_195 = arith.constant 0.000000e+00 : f32
    %216 = vector.broadcast %cst_195 : f32 to vector<8x32xf32>
    %c0_196 = arith.constant 0 : index
    %c0_197 = arith.constant 0 : index
    %c0_198 = arith.constant 0 : index
    %c0_199 = arith.constant 0 : index
    %c0_200 = arith.constant 0 : index
    %217 = vector.load %arg13[%c0_196, %c0_197, %c0_198, %c0_199, %c0_200] : memref<1x3x4x32x8xbf16, #tpu.memory_space<vmem>>, vector<1x1x1x32x8xbf16>
    %218 = vector.shape_cast %217 : vector<1x1x1x32x8xbf16> to vector<32x8xbf16>
    %cst_201 = arith.constant dense<0.000000e+00> : vector<8x8xf32>
    %219 = tpu.matmul %214, %218, %cst_201 {dimension_numbers = #tpu.dot_dimension_numbers<[1], [0], [0], [1], [0, 0, 1, 1], [], []>} : vector<8x32xbf16>, vector<32x8xbf16>, vector<8x8xf32> -> vector<8x8xf32>
    %c0_202 = arith.constant 0 : index
    %c0_203 = arith.constant 0 : index
    %c0_204 = arith.constant 0 : index
    %c0_205 = arith.constant 0 : index
    %c0_206 = arith.constant 0 : index
    %220 = vector.load %arg14[%c0_202, %c0_203, %c0_204, %c0_205, %c0_206] : memref<1x3x4x1x8xf32, #tpu.memory_space<vmem>>, vector<1x1x1x1x8xf32>
    %221 = vector.shape_cast %220 : vector<1x1x1x1x8xf32> to vector<1x8xf32>
    %222 = vector.broadcast %221 : vector<1x8xf32> to vector<8x8xf32>
    %223 = arith.addf %219, %222 : vector<8x8xf32>
    %c0_207 = arith.constant 0 : index
    %c1_208 = arith.constant 1 : index
    %c0_209 = arith.constant 0 : index
    %c0_210 = arith.constant 0 : index
    %c0_211 = arith.constant 0 : index
    %224 = vector.load %arg13[%c0_207, %c1_208, %c0_209, %c0_210, %c0_211] : memref<1x3x4x32x8xbf16, #tpu.memory_space<vmem>>, vector<1x1x1x32x8xbf16>
    %225 = vector.shape_cast %224 : vector<1x1x1x32x8xbf16> to vector<32x8xbf16>
    %cst_212 = arith.constant dense<0.000000e+00> : vector<8x8xf32>
    %226 = tpu.matmul %215, %225, %cst_212 {dimension_numbers = #tpu.dot_dimension_numbers<[1], [0], [0], [1], [0, 0, 1, 1], [], []>} : vector<8x32xbf16>, vector<32x8xbf16>, vector<8x8xf32> -> vector<8x8xf32>
    %c0_213 = arith.constant 0 : index
    %c1_214 = arith.constant 1 : index
    %c0_215 = arith.constant 0 : index
    %c0_216 = arith.constant 0 : index
    %c0_217 = arith.constant 0 : index
    %227 = vector.load %arg14[%c0_213, %c1_214, %c0_215, %c0_216, %c0_217] : memref<1x3x4x1x8xf32, #tpu.memory_space<vmem>>, vector<1x1x1x1x8xf32>
    %228 = vector.shape_cast %227 : vector<1x1x1x1x8xf32> to vector<1x8xf32>
    %229 = vector.broadcast %228 : vector<1x8xf32> to vector<8x8xf32>
    %230 = arith.addf %226, %229 : vector<8x8xf32>
    %c0_218 = arith.constant 0 : index
    %c2_219 = arith.constant 2 : index
    %c0_220 = arith.constant 0 : index
    %c0_221 = arith.constant 0 : index
    %c0_222 = arith.constant 0 : index
    %231 = vector.load %arg13[%c0_218, %c2_219, %c0_220, %c0_221, %c0_222] : memref<1x3x4x32x8xbf16, #tpu.memory_space<vmem>>, vector<1x1x1x32x8xbf16>
    %232 = vector.shape_cast %231 : vector<1x1x1x32x8xbf16> to vector<32x8xbf16>
    %cst_223 = arith.constant dense<0.000000e+00> : vector<8x8xf32>
    %233 = tpu.matmul %215, %232, %cst_223 {dimension_numbers = #tpu.dot_dimension_numbers<[1], [0], [0], [1], [0, 0, 1, 1], [], []>} : vector<8x32xbf16>, vector<32x8xbf16>, vector<8x8xf32> -> vector<8x8xf32>
    %c0_224 = arith.constant 0 : index
    %c2_225 = arith.constant 2 : index
    %c0_226 = arith.constant 0 : index
    %c0_227 = arith.constant 0 : index
    %c0_228 = arith.constant 0 : index
    %234 = vector.load %arg14[%c0_224, %c2_225, %c0_226, %c0_227, %c0_228] : memref<1x3x4x1x8xf32, #tpu.memory_space<vmem>>, vector<1x1x1x1x8xf32>
    %235 = vector.shape_cast %234 : vector<1x1x1x1x8xf32> to vector<1x8xf32>
    %236 = vector.broadcast %235 : vector<1x8xf32> to vector<8x8xf32>
    %237 = arith.addf %233, %236 : vector<8x8xf32>
    %238 = tpu.transpose %230, [1, 0] : vector<8x8xf32> -> vector<8x8xf32>
    %cst_229 = arith.constant dense<0.000000e+00> : vector<8x8xf32>
    %239 = tpu.matmul %223, %238, %cst_229 {dimension_numbers = #tpu.dot_dimension_numbers<[1], [0], [0], [1], [0, 0, 1, 1], [], []>} : vector<8x8xf32>, vector<8x8xf32>, vector<8x8xf32> -> vector<8x8xf32>
    %cst_230 = arith.constant 0.353553385 : f32
    %240 = vector.broadcast %cst_230 : f32 to vector<8x8xf32>
    %241 = arith.mulf %239, %240 : vector<8x8xf32>
    %242 = vector.broadcast %11 : vector<1x8xf32> to vector<8x8xf32>
    %243 = arith.addf %241, %242 : vector<8x8xf32>
    %cst_231 = arith.constant dense<0xFF800000> : vector<8xf32>
    %244 = vector.multi_reduction <maximumf>, %243, %cst_231 [1] : vector<8x8xf32> to vector<8xf32>
    %245 = vector.shape_cast %244 : vector<8xf32> to vector<8x1xf32>
    %246 = vector.broadcast %245 : vector<8x1xf32> to vector<8x8xf32>
    %247 = arith.subf %243, %246 : vector<8x8xf32>
    %248 = math.exp %247 : vector<8x8xf32>
    %cst_232 = arith.constant dense<0.000000e+00> : vector<8xf32>
    %249 = vector.multi_reduction <add>, %248, %cst_232 [1] : vector<8x8xf32> to vector<8xf32>
    %250 = vector.shape_cast %249 : vector<8xf32> to vector<8x1xf32>
    %251 = tpu.reciprocal %250 {approx = true} : vector<8x1xf32> -> vector<8x1xf32>
    %252 = vector.broadcast %251 : vector<8x1xf32> to vector<8x8xf32>
    %253 = arith.mulf %248, %252 : vector<8x8xf32>
    %cst_233 = arith.constant dense<0.000000e+00> : vector<8x8xf32>
    %254 = tpu.matmul %253, %237, %cst_233 {dimension_numbers = #tpu.dot_dimension_numbers<[1], [0], [0], [1], [0, 0, 1, 1], [], []>} : vector<8x8xf32>, vector<8x8xf32>, vector<8x8xf32> -> vector<8x8xf32>
    %255 = arith.truncf %254 : vector<8x8xf32> to vector<8x8xbf16>
    %c0_234 = arith.constant 0 : index
    %c0_235 = arith.constant 0 : index
    %c0_236 = arith.constant 0 : index
    %c0_237 = arith.constant 0 : index
    %256 = vector.load %arg15[%c0_234, %c0_235, %c0_236, %c0_237] : memref<1x4x8x32xbf16, #tpu.memory_space<vmem>>, vector<1x1x8x32xbf16>
    %257 = vector.shape_cast %256 : vector<1x1x8x32xbf16> to vector<8x32xbf16>
    %cst_238 = arith.constant dense<0.000000e+00> : vector<8x32xf32>
    %258 = tpu.matmul %255, %257, %cst_238 {dimension_numbers = #tpu.dot_dimension_numbers<[1], [0], [0], [1], [0, 0, 1, 1], [], []>} : vector<8x8xbf16>, vector<8x32xbf16>, vector<8x32xf32> -> vector<8x32xf32>
    %259 = arith.addf %216, %258 : vector<8x32xf32>
    %c0_239 = arith.constant 0 : index
    %c0_240 = arith.constant 0 : index
    %c1_241 = arith.constant 1 : index
    %c0_242 = arith.constant 0 : index
    %c0_243 = arith.constant 0 : index
    %260 = vector.load %arg13[%c0_239, %c0_240, %c1_241, %c0_242, %c0_243] : memref<1x3x4x32x8xbf16, #tpu.memory_space<vmem>>, vector<1x1x1x32x8xbf16>
    %261 = vector.shape_cast %260 : vector<1x1x1x32x8xbf16> to vector<32x8xbf16>
    %cst_244 = arith.constant dense<0.000000e+00> : vector<8x8xf32>
    %262 = tpu.matmul %214, %261, %cst_244 {dimension_numbers = #tpu.dot_dimension_numbers<[1], [0], [0], [1], [0, 0, 1, 1], [], []>} : vector<8x32xbf16>, vector<32x8xbf16>, vector<8x8xf32> -> vector<8x8xf32>
    %c0_245 = arith.constant 0 : index
    %c0_246 = arith.constant 0 : index
    %c1_247 = arith.constant 1 : index
    %c0_248 = arith.constant 0 : index
    %c0_249 = arith.constant 0 : index
    %263 = vector.load %arg14[%c0_245, %c0_246, %c1_247, %c0_248, %c0_249] : memref<1x3x4x1x8xf32, #tpu.memory_space<vmem>>, vector<1x1x1x1x8xf32>
    %264 = vector.shape_cast %263 : vector<1x1x1x1x8xf32> to vector<1x8xf32>
    %265 = vector.broadcast %264 : vector<1x8xf32> to vector<8x8xf32>
    %266 = arith.addf %262, %265 : vector<8x8xf32>
    %c0_250 = arith.constant 0 : index
    %c1_251 = arith.constant 1 : index
    %c1_252 = arith.constant 1 : index
    %c0_253 = arith.constant 0 : index
    %c0_254 = arith.constant 0 : index
    %267 = vector.load %arg13[%c0_250, %c1_251, %c1_252, %c0_253, %c0_254] : memref<1x3x4x32x8xbf16, #tpu.memory_space<vmem>>, vector<1x1x1x32x8xbf16>
    %268 = vector.shape_cast %267 : vector<1x1x1x32x8xbf16> to vector<32x8xbf16>
    %cst_255 = arith.constant dense<0.000000e+00> : vector<8x8xf32>
    %269 = tpu.matmul %215, %268, %cst_255 {dimension_numbers = #tpu.dot_dimension_numbers<[1], [0], [0], [1], [0, 0, 1, 1], [], []>} : vector<8x32xbf16>, vector<32x8xbf16>, vector<8x8xf32> -> vector<8x8xf32>
    %c0_256 = arith.constant 0 : index
    %c1_257 = arith.constant 1 : index
    %c1_258 = arith.constant 1 : index
    %c0_259 = arith.constant 0 : index
    %c0_260 = arith.constant 0 : index
    %270 = vector.load %arg14[%c0_256, %c1_257, %c1_258, %c0_259, %c0_260] : memref<1x3x4x1x8xf32, #tpu.memory_space<vmem>>, vector<1x1x1x1x8xf32>
    %271 = vector.shape_cast %270 : vector<1x1x1x1x8xf32> to vector<1x8xf32>
    %272 = vector.broadcast %271 : vector<1x8xf32> to vector<8x8xf32>
    %273 = arith.addf %269, %272 : vector<8x8xf32>
    %c0_261 = arith.constant 0 : index
    %c2_262 = arith.constant 2 : index
    %c1_263 = arith.constant 1 : index
    %c0_264 = arith.constant 0 : index
    %c0_265 = arith.constant 0 : index
    %274 = vector.load %arg13[%c0_261, %c2_262, %c1_263, %c0_264, %c0_265] : memref<1x3x4x32x8xbf16, #tpu.memory_space<vmem>>, vector<1x1x1x32x8xbf16>
    %275 = vector.shape_cast %274 : vector<1x1x1x32x8xbf16> to vector<32x8xbf16>
    %cst_266 = arith.constant dense<0.000000e+00> : vector<8x8xf32>
    %276 = tpu.matmul %215, %275, %cst_266 {dimension_numbers = #tpu.dot_dimension_numbers<[1], [0], [0], [1], [0, 0, 1, 1], [], []>} : vector<8x32xbf16>, vector<32x8xbf16>, vector<8x8xf32> -> vector<8x8xf32>
    %c0_267 = arith.constant 0 : index
    %c2_268 = arith.constant 2 : index
    %c1_269 = arith.constant 1 : index
    %c0_270 = arith.constant 0 : index
    %c0_271 = arith.constant 0 : index
    %277 = vector.load %arg14[%c0_267, %c2_268, %c1_269, %c0_270, %c0_271] : memref<1x3x4x1x8xf32, #tpu.memory_space<vmem>>, vector<1x1x1x1x8xf32>
    %278 = vector.shape_cast %277 : vector<1x1x1x1x8xf32> to vector<1x8xf32>
    %279 = vector.broadcast %278 : vector<1x8xf32> to vector<8x8xf32>
    %280 = arith.addf %276, %279 : vector<8x8xf32>
    %281 = tpu.transpose %273, [1, 0] : vector<8x8xf32> -> vector<8x8xf32>
    %cst_272 = arith.constant dense<0.000000e+00> : vector<8x8xf32>
    %282 = tpu.matmul %266, %281, %cst_272 {dimension_numbers = #tpu.dot_dimension_numbers<[1], [0], [0], [1], [0, 0, 1, 1], [], []>} : vector<8x8xf32>, vector<8x8xf32>, vector<8x8xf32> -> vector<8x8xf32>
    %cst_273 = arith.constant 0.353553385 : f32
    %283 = vector.broadcast %cst_273 : f32 to vector<8x8xf32>
    %284 = arith.mulf %282, %283 : vector<8x8xf32>
    %285 = vector.broadcast %11 : vector<1x8xf32> to vector<8x8xf32>
    %286 = arith.addf %284, %285 : vector<8x8xf32>
    %cst_274 = arith.constant dense<0xFF800000> : vector<8xf32>
    %287 = vector.multi_reduction <maximumf>, %286, %cst_274 [1] : vector<8x8xf32> to vector<8xf32>
    %288 = vector.shape_cast %287 : vector<8xf32> to vector<8x1xf32>
    %289 = vector.broadcast %288 : vector<8x1xf32> to vector<8x8xf32>
    %290 = arith.subf %286, %289 : vector<8x8xf32>
    %291 = math.exp %290 : vector<8x8xf32>
    %cst_275 = arith.constant dense<0.000000e+00> : vector<8xf32>
    %292 = vector.multi_reduction <add>, %291, %cst_275 [1] : vector<8x8xf32> to vector<8xf32>
    %293 = vector.shape_cast %292 : vector<8xf32> to vector<8x1xf32>
    %294 = tpu.reciprocal %293 {approx = true} : vector<8x1xf32> -> vector<8x1xf32>
    %295 = vector.broadcast %294 : vector<8x1xf32> to vector<8x8xf32>
    %296 = arith.mulf %291, %295 : vector<8x8xf32>
    %cst_276 = arith.constant dense<0.000000e+00> : vector<8x8xf32>
    %297 = tpu.matmul %296, %280, %cst_276 {dimension_numbers = #tpu.dot_dimension_numbers<[1], [0], [0], [1], [0, 0, 1, 1], [], []>} : vector<8x8xf32>, vector<8x8xf32>, vector<8x8xf32> -> vector<8x8xf32>
    %298 = arith.truncf %297 : vector<8x8xf32> to vector<8x8xbf16>
    %c0_277 = arith.constant 0 : index
    %c1_278 = arith.constant 1 : index
    %c0_279 = arith.constant 0 : index
    %c0_280 = arith.constant 0 : index
    %299 = vector.load %arg15[%c0_277, %c1_278, %c0_279, %c0_280] : memref<1x4x8x32xbf16, #tpu.memory_space<vmem>>, vector<1x1x8x32xbf16>
    %300 = vector.shape_cast %299 : vector<1x1x8x32xbf16> to vector<8x32xbf16>
    %cst_281 = arith.constant dense<0.000000e+00> : vector<8x32xf32>
    %301 = tpu.matmul %298, %300, %cst_281 {dimension_numbers = #tpu.dot_dimension_numbers<[1], [0], [0], [1], [0, 0, 1, 1], [], []>} : vector<8x8xbf16>, vector<8x32xbf16>, vector<8x32xf32> -> vector<8x32xf32>
    %302 = arith.addf %259, %301 : vector<8x32xf32>
    %c0_282 = arith.constant 0 : index
    %c0_283 = arith.constant 0 : index
    %c2_284 = arith.constant 2 : index
    %c0_285 = arith.constant 0 : index
    %c0_286 = arith.constant 0 : index
    %303 = vector.load %arg13[%c0_282, %c0_283, %c2_284, %c0_285, %c0_286] : memref<1x3x4x32x8xbf16, #tpu.memory_space<vmem>>, vector<1x1x1x32x8xbf16>
    %304 = vector.shape_cast %303 : vector<1x1x1x32x8xbf16> to vector<32x8xbf16>
    %cst_287 = arith.constant dense<0.000000e+00> : vector<8x8xf32>
    %305 = tpu.matmul %214, %304, %cst_287 {dimension_numbers = #tpu.dot_dimension_numbers<[1], [0], [0], [1], [0, 0, 1, 1], [], []>} : vector<8x32xbf16>, vector<32x8xbf16>, vector<8x8xf32> -> vector<8x8xf32>
    %c0_288 = arith.constant 0 : index
    %c0_289 = arith.constant 0 : index
    %c2_290 = arith.constant 2 : index
    %c0_291 = arith.constant 0 : index
    %c0_292 = arith.constant 0 : index
    %306 = vector.load %arg14[%c0_288, %c0_289, %c2_290, %c0_291, %c0_292] : memref<1x3x4x1x8xf32, #tpu.memory_space<vmem>>, vector<1x1x1x1x8xf32>
    %307 = vector.shape_cast %306 : vector<1x1x1x1x8xf32> to vector<1x8xf32>
    %308 = vector.broadcast %307 : vector<1x8xf32> to vector<8x8xf32>
    %309 = arith.addf %305, %308 : vector<8x8xf32>
    %c0_293 = arith.constant 0 : index
    %c1_294 = arith.constant 1 : index
    %c2_295 = arith.constant 2 : index
    %c0_296 = arith.constant 0 : index
    %c0_297 = arith.constant 0 : index
    %310 = vector.load %arg13[%c0_293, %c1_294, %c2_295, %c0_296, %c0_297] : memref<1x3x4x32x8xbf16, #tpu.memory_space<vmem>>, vector<1x1x1x32x8xbf16>
    %311 = vector.shape_cast %310 : vector<1x1x1x32x8xbf16> to vector<32x8xbf16>
    %cst_298 = arith.constant dense<0.000000e+00> : vector<8x8xf32>
    %312 = tpu.matmul %215, %311, %cst_298 {dimension_numbers = #tpu.dot_dimension_numbers<[1], [0], [0], [1], [0, 0, 1, 1], [], []>} : vector<8x32xbf16>, vector<32x8xbf16>, vector<8x8xf32> -> vector<8x8xf32>
    %c0_299 = arith.constant 0 : index
    %c1_300 = arith.constant 1 : index
    %c2_301 = arith.constant 2 : index
    %c0_302 = arith.constant 0 : index
    %c0_303 = arith.constant 0 : index
    %313 = vector.load %arg14[%c0_299, %c1_300, %c2_301, %c0_302, %c0_303] : memref<1x3x4x1x8xf32, #tpu.memory_space<vmem>>, vector<1x1x1x1x8xf32>
    %314 = vector.shape_cast %313 : vector<1x1x1x1x8xf32> to vector<1x8xf32>
    %315 = vector.broadcast %314 : vector<1x8xf32> to vector<8x8xf32>
    %316 = arith.addf %312, %315 : vector<8x8xf32>
    %c0_304 = arith.constant 0 : index
    %c2_305 = arith.constant 2 : index
    %c2_306 = arith.constant 2 : index
    %c0_307 = arith.constant 0 : index
    %c0_308 = arith.constant 0 : index
    %317 = vector.load %arg13[%c0_304, %c2_305, %c2_306, %c0_307, %c0_308] : memref<1x3x4x32x8xbf16, #tpu.memory_space<vmem>>, vector<1x1x1x32x8xbf16>
    %318 = vector.shape_cast %317 : vector<1x1x1x32x8xbf16> to vector<32x8xbf16>
    %cst_309 = arith.constant dense<0.000000e+00> : vector<8x8xf32>
    %319 = tpu.matmul %215, %318, %cst_309 {dimension_numbers = #tpu.dot_dimension_numbers<[1], [0], [0], [1], [0, 0, 1, 1], [], []>} : vector<8x32xbf16>, vector<32x8xbf16>, vector<8x8xf32> -> vector<8x8xf32>
    %c0_310 = arith.constant 0 : index
    %c2_311 = arith.constant 2 : index
    %c2_312 = arith.constant 2 : index
    %c0_313 = arith.constant 0 : index
    %c0_314 = arith.constant 0 : index
    %320 = vector.load %arg14[%c0_310, %c2_311, %c2_312, %c0_313, %c0_314] : memref<1x3x4x1x8xf32, #tpu.memory_space<vmem>>, vector<1x1x1x1x8xf32>
    %321 = vector.shape_cast %320 : vector<1x1x1x1x8xf32> to vector<1x8xf32>
    %322 = vector.broadcast %321 : vector<1x8xf32> to vector<8x8xf32>
    %323 = arith.addf %319, %322 : vector<8x8xf32>
    %324 = tpu.transpose %316, [1, 0] : vector<8x8xf32> -> vector<8x8xf32>
    %cst_315 = arith.constant dense<0.000000e+00> : vector<8x8xf32>
    %325 = tpu.matmul %309, %324, %cst_315 {dimension_numbers = #tpu.dot_dimension_numbers<[1], [0], [0], [1], [0, 0, 1, 1], [], []>} : vector<8x8xf32>, vector<8x8xf32>, vector<8x8xf32> -> vector<8x8xf32>
    %cst_316 = arith.constant 0.353553385 : f32
    %326 = vector.broadcast %cst_316 : f32 to vector<8x8xf32>
    %327 = arith.mulf %325, %326 : vector<8x8xf32>
    %328 = vector.broadcast %11 : vector<1x8xf32> to vector<8x8xf32>
    %329 = arith.addf %327, %328 : vector<8x8xf32>
    %cst_317 = arith.constant dense<0xFF800000> : vector<8xf32>
    %330 = vector.multi_reduction <maximumf>, %329, %cst_317 [1] : vector<8x8xf32> to vector<8xf32>
    %331 = vector.shape_cast %330 : vector<8xf32> to vector<8x1xf32>
    %332 = vector.broadcast %331 : vector<8x1xf32> to vector<8x8xf32>
    %333 = arith.subf %329, %332 : vector<8x8xf32>
    %334 = math.exp %333 : vector<8x8xf32>
    %cst_318 = arith.constant dense<0.000000e+00> : vector<8xf32>
    %335 = vector.multi_reduction <add>, %334, %cst_318 [1] : vector<8x8xf32> to vector<8xf32>
    %336 = vector.shape_cast %335 : vector<8xf32> to vector<8x1xf32>
    %337 = tpu.reciprocal %336 {approx = true} : vector<8x1xf32> -> vector<8x1xf32>
    %338 = vector.broadcast %337 : vector<8x1xf32> to vector<8x8xf32>
    %339 = arith.mulf %334, %338 : vector<8x8xf32>
    %cst_319 = arith.constant dense<0.000000e+00> : vector<8x8xf32>
    %340 = tpu.matmul %339, %323, %cst_319 {dimension_numbers = #tpu.dot_dimension_numbers<[1], [0], [0], [1], [0, 0, 1, 1], [], []>} : vector<8x8xf32>, vector<8x8xf32>, vector<8x8xf32> -> vector<8x8xf32>
    %341 = arith.truncf %340 : vector<8x8xf32> to vector<8x8xbf16>
    %c0_320 = arith.constant 0 : index
    %c2_321 = arith.constant 2 : index
    %c0_322 = arith.constant 0 : index
    %c0_323 = arith.constant 0 : index
    %342 = vector.load %arg15[%c0_320, %c2_321, %c0_322, %c0_323] : memref<1x4x8x32xbf16, #tpu.memory_space<vmem>>, vector<1x1x8x32xbf16>
    %343 = vector.shape_cast %342 : vector<1x1x8x32xbf16> to vector<8x32xbf16>
    %cst_324 = arith.constant dense<0.000000e+00> : vector<8x32xf32>
    %344 = tpu.matmul %341, %343, %cst_324 {dimension_numbers = #tpu.dot_dimension_numbers<[1], [0], [0], [1], [0, 0, 1, 1], [], []>} : vector<8x8xbf16>, vector<8x32xbf16>, vector<8x32xf32> -> vector<8x32xf32>
    %345 = arith.addf %302, %344 : vector<8x32xf32>
    %c0_325 = arith.constant 0 : index
    %c0_326 = arith.constant 0 : index
    %c3_327 = arith.constant 3 : index
    %c0_328 = arith.constant 0 : index
    %c0_329 = arith.constant 0 : index
    %346 = vector.load %arg13[%c0_325, %c0_326, %c3_327, %c0_328, %c0_329] : memref<1x3x4x32x8xbf16, #tpu.memory_space<vmem>>, vector<1x1x1x32x8xbf16>
    %347 = vector.shape_cast %346 : vector<1x1x1x32x8xbf16> to vector<32x8xbf16>
    %cst_330 = arith.constant dense<0.000000e+00> : vector<8x8xf32>
    %348 = tpu.matmul %214, %347, %cst_330 {dimension_numbers = #tpu.dot_dimension_numbers<[1], [0], [0], [1], [0, 0, 1, 1], [], []>} : vector<8x32xbf16>, vector<32x8xbf16>, vector<8x8xf32> -> vector<8x8xf32>
    %c0_331 = arith.constant 0 : index
    %c0_332 = arith.constant 0 : index
    %c3_333 = arith.constant 3 : index
    %c0_334 = arith.constant 0 : index
    %c0_335 = arith.constant 0 : index
    %349 = vector.load %arg14[%c0_331, %c0_332, %c3_333, %c0_334, %c0_335] : memref<1x3x4x1x8xf32, #tpu.memory_space<vmem>>, vector<1x1x1x1x8xf32>
    %350 = vector.shape_cast %349 : vector<1x1x1x1x8xf32> to vector<1x8xf32>
    %351 = vector.broadcast %350 : vector<1x8xf32> to vector<8x8xf32>
    %352 = arith.addf %348, %351 : vector<8x8xf32>
    %c0_336 = arith.constant 0 : index
    %c1_337 = arith.constant 1 : index
    %c3_338 = arith.constant 3 : index
    %c0_339 = arith.constant 0 : index
    %c0_340 = arith.constant 0 : index
    %353 = vector.load %arg13[%c0_336, %c1_337, %c3_338, %c0_339, %c0_340] : memref<1x3x4x32x8xbf16, #tpu.memory_space<vmem>>, vector<1x1x1x32x8xbf16>
    %354 = vector.shape_cast %353 : vector<1x1x1x32x8xbf16> to vector<32x8xbf16>
    %cst_341 = arith.constant dense<0.000000e+00> : vector<8x8xf32>
    %355 = tpu.matmul %215, %354, %cst_341 {dimension_numbers = #tpu.dot_dimension_numbers<[1], [0], [0], [1], [0, 0, 1, 1], [], []>} : vector<8x32xbf16>, vector<32x8xbf16>, vector<8x8xf32> -> vector<8x8xf32>
    %c0_342 = arith.constant 0 : index
    %c1_343 = arith.constant 1 : index
    %c3_344 = arith.constant 3 : index
    %c0_345 = arith.constant 0 : index
    %c0_346 = arith.constant 0 : index
    %356 = vector.load %arg14[%c0_342, %c1_343, %c3_344, %c0_345, %c0_346] : memref<1x3x4x1x8xf32, #tpu.memory_space<vmem>>, vector<1x1x1x1x8xf32>
    %357 = vector.shape_cast %356 : vector<1x1x1x1x8xf32> to vector<1x8xf32>
    %358 = vector.broadcast %357 : vector<1x8xf32> to vector<8x8xf32>
    %359 = arith.addf %355, %358 : vector<8x8xf32>
    %c0_347 = arith.constant 0 : index
    %c2_348 = arith.constant 2 : index
    %c3_349 = arith.constant 3 : index
    %c0_350 = arith.constant 0 : index
    %c0_351 = arith.constant 0 : index
    %360 = vector.load %arg13[%c0_347, %c2_348, %c3_349, %c0_350, %c0_351] : memref<1x3x4x32x8xbf16, #tpu.memory_space<vmem>>, vector<1x1x1x32x8xbf16>
    %361 = vector.shape_cast %360 : vector<1x1x1x32x8xbf16> to vector<32x8xbf16>
    %cst_352 = arith.constant dense<0.000000e+00> : vector<8x8xf32>
    %362 = tpu.matmul %215, %361, %cst_352 {dimension_numbers = #tpu.dot_dimension_numbers<[1], [0], [0], [1], [0, 0, 1, 1], [], []>} : vector<8x32xbf16>, vector<32x8xbf16>, vector<8x8xf32> -> vector<8x8xf32>
    %c0_353 = arith.constant 0 : index
    %c2_354 = arith.constant 2 : index
    %c3_355 = arith.constant 3 : index
    %c0_356 = arith.constant 0 : index
    %c0_357 = arith.constant 0 : index
    %363 = vector.load %arg14[%c0_353, %c2_354, %c3_355, %c0_356, %c0_357] : memref<1x3x4x1x8xf32, #tpu.memory_space<vmem>>, vector<1x1x1x1x8xf32>
    %364 = vector.shape_cast %363 : vector<1x1x1x1x8xf32> to vector<1x8xf32>
    %365 = vector.broadcast %364 : vector<1x8xf32> to vector<8x8xf32>
    %366 = arith.addf %362, %365 : vector<8x8xf32>
    %367 = tpu.transpose %359, [1, 0] : vector<8x8xf32> -> vector<8x8xf32>
    %cst_358 = arith.constant dense<0.000000e+00> : vector<8x8xf32>
    %368 = tpu.matmul %352, %367, %cst_358 {dimension_numbers = #tpu.dot_dimension_numbers<[1], [0], [0], [1], [0, 0, 1, 1], [], []>} : vector<8x8xf32>, vector<8x8xf32>, vector<8x8xf32> -> vector<8x8xf32>
    %cst_359 = arith.constant 0.353553385 : f32
    %369 = vector.broadcast %cst_359 : f32 to vector<8x8xf32>
    %370 = arith.mulf %368, %369 : vector<8x8xf32>
    %371 = vector.broadcast %11 : vector<1x8xf32> to vector<8x8xf32>
    %372 = arith.addf %370, %371 : vector<8x8xf32>
    %cst_360 = arith.constant dense<0xFF800000> : vector<8xf32>
    %373 = vector.multi_reduction <maximumf>, %372, %cst_360 [1] : vector<8x8xf32> to vector<8xf32>
    %374 = vector.shape_cast %373 : vector<8xf32> to vector<8x1xf32>
    %375 = vector.broadcast %374 : vector<8x1xf32> to vector<8x8xf32>
    %376 = arith.subf %372, %375 : vector<8x8xf32>
    %377 = math.exp %376 : vector<8x8xf32>
    %cst_361 = arith.constant dense<0.000000e+00> : vector<8xf32>
    %378 = vector.multi_reduction <add>, %377, %cst_361 [1] : vector<8x8xf32> to vector<8xf32>
    %379 = vector.shape_cast %378 : vector<8xf32> to vector<8x1xf32>
    %380 = tpu.reciprocal %379 {approx = true} : vector<8x1xf32> -> vector<8x1xf32>
    %381 = vector.broadcast %380 : vector<8x1xf32> to vector<8x8xf32>
    %382 = arith.mulf %377, %381 : vector<8x8xf32>
    %cst_362 = arith.constant dense<0.000000e+00> : vector<8x8xf32>
    %383 = tpu.matmul %382, %366, %cst_362 {dimension_numbers = #tpu.dot_dimension_numbers<[1], [0], [0], [1], [0, 0, 1, 1], [], []>} : vector<8x8xf32>, vector<8x8xf32>, vector<8x8xf32> -> vector<8x8xf32>
    %384 = arith.truncf %383 : vector<8x8xf32> to vector<8x8xbf16>
    %c0_363 = arith.constant 0 : index
    %c3_364 = arith.constant 3 : index
    %c0_365 = arith.constant 0 : index
    %c0_366 = arith.constant 0 : index
    %385 = vector.load %arg15[%c0_363, %c3_364, %c0_365, %c0_366] : memref<1x4x8x32xbf16, #tpu.memory_space<vmem>>, vector<1x1x8x32xbf16>
    %386 = vector.shape_cast %385 : vector<1x1x8x32xbf16> to vector<8x32xbf16>
    %cst_367 = arith.constant dense<0.000000e+00> : vector<8x32xf32>
    %387 = tpu.matmul %384, %386, %cst_367 {dimension_numbers = #tpu.dot_dimension_numbers<[1], [0], [0], [1], [0, 0, 1, 1], [], []>} : vector<8x8xbf16>, vector<8x32xbf16>, vector<8x32xf32> -> vector<8x32xf32>
    %388 = arith.addf %345, %387 : vector<8x32xf32>
    %c0_368 = arith.constant 0 : index
    %c0_369 = arith.constant 0 : index
    %c0_370 = arith.constant 0 : index
    %389 = vector.load %arg16[%c0_368, %c0_369, %c0_370] : memref<1x1x32xf32, #tpu.memory_space<vmem>>, vector<1x1x32xf32>
    %390 = vector.shape_cast %389 : vector<1x1x32xf32> to vector<1x32xf32>
    %391 = vector.broadcast %390 : vector<1x32xf32> to vector<8x32xf32>
    %392 = arith.addf %388, %391 : vector<8x32xf32>
    %393 = arith.addf %213, %392 : vector<8x32xf32>
    %c0_371 = arith.constant 0 : index
    %c0_372 = arith.constant 0 : index
    %c0_373 = arith.constant 0 : index
    %394 = vector.load %arg17[%c0_371, %c0_372, %c0_373] : memref<1x1x32xf32, #tpu.memory_space<vmem>>, vector<1x1x32xf32>
    %395 = vector.shape_cast %394 : vector<1x1x32xf32> to vector<1x32xf32>
    %c0_374 = arith.constant 0 : index
    %c0_375 = arith.constant 0 : index
    %c0_376 = arith.constant 0 : index
    %396 = vector.load %arg18[%c0_374, %c0_375, %c0_376] : memref<1x1x32xf32, #tpu.memory_space<vmem>>, vector<1x1x32xf32>
    %397 = vector.shape_cast %396 : vector<1x1x32xf32> to vector<1x32xf32>
    %cst_377 = arith.constant dense<0.000000e+00> : vector<8xf32>
    %398 = vector.multi_reduction <add>, %393, %cst_377 [1] : vector<8x32xf32> to vector<8xf32>
    %399 = vector.shape_cast %398 : vector<8xf32> to vector<8x1xf32>
    %cst_378 = arith.constant 3.200000e+01 : f32
    %400 = vector.broadcast %cst_378 : f32 to vector<8x1xf32>
    %401 = arith.divf %399, %400 : vector<8x1xf32>
    %402 = vector.broadcast %401 : vector<8x1xf32> to vector<8x32xf32>
    %403 = arith.subf %393, %402 : vector<8x32xf32>
    %404 = arith.mulf %403, %403 : vector<8x32xf32>
    %cst_379 = arith.constant dense<0.000000e+00> : vector<8xf32>
    %405 = vector.multi_reduction <add>, %404, %cst_379 [1] : vector<8x32xf32> to vector<8xf32>
    %406 = vector.shape_cast %405 : vector<8xf32> to vector<8x1xf32>
    %cst_380 = arith.constant 3.200000e+01 : f32
    %407 = vector.broadcast %cst_380 : f32 to vector<8x1xf32>
    %408 = arith.divf %406, %407 : vector<8x1xf32>
    %409 = vector.broadcast %401 : vector<8x1xf32> to vector<8x32xf32>
    %410 = arith.subf %393, %409 : vector<8x32xf32>
    %cst_381 = arith.constant 9.99999974E-6 : f32
    %411 = vector.broadcast %cst_381 : f32 to vector<8x1xf32>
    %412 = arith.addf %408, %411 : vector<8x1xf32>
    %413 = math.rsqrt %412 : vector<8x1xf32>
    %414 = vector.broadcast %413 : vector<8x1xf32> to vector<8x32xf32>
    %415 = arith.mulf %410, %414 : vector<8x32xf32>
    %416 = vector.broadcast %395 : vector<1x32xf32> to vector<8x32xf32>
    %417 = arith.mulf %415, %416 : vector<8x32xf32>
    %418 = vector.broadcast %397 : vector<1x32xf32> to vector<8x32xf32>
    %419 = arith.addf %417, %418 : vector<8x32xf32>
    %420 = arith.truncf %419 : vector<8x32xf32> to vector<8x32xbf16>
    %c0_382 = arith.constant 0 : index
    %c0_383 = arith.constant 0 : index
    %c0_384 = arith.constant 0 : index
    %421 = vector.load %arg19[%c0_382, %c0_383, %c0_384] : memref<1x32x64xbf16, #tpu.memory_space<vmem>>, vector<1x32x64xbf16>
    %422 = vector.shape_cast %421 : vector<1x32x64xbf16> to vector<32x64xbf16>
    %cst_385 = arith.constant dense<0.000000e+00> : vector<8x64xf32>
    %423 = tpu.matmul %420, %422, %cst_385 {dimension_numbers = #tpu.dot_dimension_numbers<[1], [0], [0], [1], [0, 0, 1, 1], [], []>} : vector<8x32xbf16>, vector<32x64xbf16>, vector<8x64xf32> -> vector<8x64xf32>
    %c0_386 = arith.constant 0 : index
    %c0_387 = arith.constant 0 : index
    %c0_388 = arith.constant 0 : index
    %424 = vector.load %arg20[%c0_386, %c0_387, %c0_388] : memref<1x1x64xf32, #tpu.memory_space<vmem>>, vector<1x1x64xf32>
    %425 = vector.shape_cast %424 : vector<1x1x64xf32> to vector<1x64xf32>
    %426 = vector.broadcast %425 : vector<1x64xf32> to vector<8x64xf32>
    %427 = arith.addf %423, %426 : vector<8x64xf32>
    %cst_389 = arith.constant 0.000000e+00 : f32
    %428 = vector.broadcast %cst_389 : f32 to vector<8x64xf32>
    %429 = arith.maximumf %427, %428 : vector<8x64xf32>
    %430 = arith.truncf %429 : vector<8x64xf32> to vector<8x64xbf16>
    %c0_390 = arith.constant 0 : index
    %c0_391 = arith.constant 0 : index
    %c0_392 = arith.constant 0 : index
    %431 = vector.load %arg21[%c0_390, %c0_391, %c0_392] : memref<1x64x32xbf16, #tpu.memory_space<vmem>>, vector<1x64x32xbf16>
    %432 = vector.shape_cast %431 : vector<1x64x32xbf16> to vector<64x32xbf16>
    %cst_393 = arith.constant dense<0.000000e+00> : vector<8x32xf32>
    %433 = tpu.matmul %430, %432, %cst_393 {dimension_numbers = #tpu.dot_dimension_numbers<[1], [0], [0], [1], [0, 0, 1, 1], [], []>} : vector<8x64xbf16>, vector<64x32xbf16>, vector<8x32xf32> -> vector<8x32xf32>
    %c0_394 = arith.constant 0 : index
    %c0_395 = arith.constant 0 : index
    %c0_396 = arith.constant 0 : index
    %434 = vector.load %arg22[%c0_394, %c0_395, %c0_396] : memref<1x1x32xf32, #tpu.memory_space<vmem>>, vector<1x1x32xf32>
    %435 = vector.shape_cast %434 : vector<1x1x32xf32> to vector<1x32xf32>
    %436 = vector.broadcast %435 : vector<1x32xf32> to vector<8x32xf32>
    %437 = arith.addf %433, %436 : vector<8x32xf32>
    %438 = arith.addf %419, %437 : vector<8x32xf32>
    %c0_397 = arith.constant 0 : index
    %c0_398 = arith.constant 0 : index
    %c0_399 = arith.constant 0 : index
    %439 = vector.load %arg23[%c0_397, %c0_398, %c0_399] : memref<1x1x32xf32, #tpu.memory_space<vmem>>, vector<1x1x32xf32>
    %440 = vector.shape_cast %439 : vector<1x1x32xf32> to vector<1x32xf32>
    %c0_400 = arith.constant 0 : index
    %c0_401 = arith.constant 0 : index
    %c0_402 = arith.constant 0 : index
    %441 = vector.load %arg24[%c0_400, %c0_401, %c0_402] : memref<1x1x32xf32, #tpu.memory_space<vmem>>, vector<1x1x32xf32>
    %442 = vector.shape_cast %441 : vector<1x1x32xf32> to vector<1x32xf32>
    %cst_403 = arith.constant dense<0.000000e+00> : vector<8xf32>
    %443 = vector.multi_reduction <add>, %438, %cst_403 [1] : vector<8x32xf32> to vector<8xf32>
    %444 = vector.shape_cast %443 : vector<8xf32> to vector<8x1xf32>
    %cst_404 = arith.constant 3.200000e+01 : f32
    %445 = vector.broadcast %cst_404 : f32 to vector<8x1xf32>
    %446 = arith.divf %444, %445 : vector<8x1xf32>
    %447 = vector.broadcast %446 : vector<8x1xf32> to vector<8x32xf32>
    %448 = arith.subf %438, %447 : vector<8x32xf32>
    %449 = arith.mulf %448, %448 : vector<8x32xf32>
    %cst_405 = arith.constant dense<0.000000e+00> : vector<8xf32>
    %450 = vector.multi_reduction <add>, %449, %cst_405 [1] : vector<8x32xf32> to vector<8xf32>
    %451 = vector.shape_cast %450 : vector<8xf32> to vector<8x1xf32>
    %cst_406 = arith.constant 3.200000e+01 : f32
    %452 = vector.broadcast %cst_406 : f32 to vector<8x1xf32>
    %453 = arith.divf %451, %452 : vector<8x1xf32>
    %454 = vector.broadcast %446 : vector<8x1xf32> to vector<8x32xf32>
    %455 = arith.subf %438, %454 : vector<8x32xf32>
    %cst_407 = arith.constant 9.99999974E-6 : f32
    %456 = vector.broadcast %cst_407 : f32 to vector<8x1xf32>
    %457 = arith.addf %453, %456 : vector<8x1xf32>
    %458 = math.rsqrt %457 : vector<8x1xf32>
    %459 = vector.broadcast %458 : vector<8x1xf32> to vector<8x32xf32>
    %460 = arith.mulf %455, %459 : vector<8x32xf32>
    %461 = vector.broadcast %440 : vector<1x32xf32> to vector<8x32xf32>
    %462 = arith.mulf %460, %461 : vector<8x32xf32>
    %463 = vector.broadcast %442 : vector<1x32xf32> to vector<8x32xf32>
    %464 = arith.addf %462, %463 : vector<8x32xf32>
    %c0_408 = arith.constant 0 : index
    %c0_409 = arith.constant 0 : index
    %465 = vector.load %arg30[%c0_408, %c0_409] : memref<8x32xf32, #tpu.memory_space<vmem>>, vector<8x32xf32>
    tpu.vector_store %arg30[%c0_408, %c0_409], %464 {strides = array<i32>} : memref<8x32xf32, #tpu.memory_space<vmem>>, vector<8x32xf32>,
    %c1_i32 = arith.constant 1 : i32
    %466 = arith.cmpi eq, %arg1, %c1_i32 : i32
    %467 = arith.extui %466 : i1 to i32
    %c0_i32_410 = arith.constant 0 : i32
    %468 = arith.cmpi ne, %467, %c0_i32_410 : i32
    scf.if %468 {
      %c0_411 = arith.constant 0 : index
      %c0_412 = arith.constant 0 : index
      %469 = vector.load %arg30[%c0_411, %c0_412] : memref<8x32xf32, #tpu.memory_space<vmem>>, vector<8x32xf32>
      %c0_413 = arith.constant 0 : index
      %c0_414 = arith.constant 0 : index
      %470 = vector.load %arg25[%c0_413, %c0_414] : memref<1x32xf32, #tpu.memory_space<vmem>>, vector<1x32xf32>
      %c0_415 = arith.constant 0 : index
      %c0_416 = arith.constant 0 : index
      %471 = vector.load %arg26[%c0_415, %c0_416] : memref<1x32xf32, #tpu.memory_space<vmem>>, vector<1x32xf32>
      %cst_417 = arith.constant dense<0.000000e+00> : vector<8xf32>
      %472 = vector.multi_reduction <add>, %469, %cst_417 [1] : vector<8x32xf32> to vector<8xf32>
      %473 = vector.shape_cast %472 : vector<8xf32> to vector<8x1xf32>
      %cst_418 = arith.constant 3.200000e+01 : f32
      %474 = vector.broadcast %cst_418 : f32 to vector<8x1xf32>
      %475 = arith.divf %473, %474 : vector<8x1xf32>
      %476 = vector.broadcast %475 : vector<8x1xf32> to vector<8x32xf32>
      %477 = arith.subf %469, %476 : vector<8x32xf32>
      %478 = arith.mulf %477, %477 : vector<8x32xf32>
      %cst_419 = arith.constant dense<0.000000e+00> : vector<8xf32>
      %479 = vector.multi_reduction <add>, %478, %cst_419 [1] : vector<8x32xf32> to vector<8xf32>
      %480 = vector.shape_cast %479 : vector<8xf32> to vector<8x1xf32>
      %cst_420 = arith.constant 3.200000e+01 : f32
      %481 = vector.broadcast %cst_420 : f32 to vector<8x1xf32>
      %482 = arith.divf %480, %481 : vector<8x1xf32>
      %483 = vector.broadcast %475 : vector<8x1xf32> to vector<8x32xf32>
      %484 = arith.subf %469, %483 : vector<8x32xf32>
      %cst_421 = arith.constant 9.99999974E-6 : f32
      %485 = vector.broadcast %cst_421 : f32 to vector<8x1xf32>
      %486 = arith.addf %482, %485 : vector<8x1xf32>
      %487 = math.rsqrt %486 : vector<8x1xf32>
      %488 = vector.broadcast %487 : vector<8x1xf32> to vector<8x32xf32>
      %489 = arith.mulf %484, %488 : vector<8x32xf32>
      %490 = vector.broadcast %470 : vector<1x32xf32> to vector<8x32xf32>
      %491 = arith.mulf %489, %490 : vector<8x32xf32>
      %492 = vector.broadcast %471 : vector<1x32xf32> to vector<8x32xf32>
      %493 = arith.addf %491, %492 : vector<8x32xf32>
      %494 = arith.truncf %493 : vector<8x32xf32> to vector<8x32xbf16>
      %c0_422 = arith.constant 0 : index
      %c0_423 = arith.constant 0 : index
      %495 = vector.load %arg27[%c0_422, %c0_423] : memref<32x128xbf16, #tpu.memory_space<vmem>>, vector<32x128xbf16>
      %cst_424 = arith.constant dense<0.000000e+00> : vector<8x128xf32>
      %496 = tpu.matmul %494, %495, %cst_424 {dimension_numbers = #tpu.dot_dimension_numbers<[1], [0], [0], [1], [0, 0, 1, 1], [], []>} : vector<8x32xbf16>, vector<32x128xbf16>, vector<8x128xf32> -> vector<8x128xf32>
      %c0_425 = arith.constant 0 : index
      %c0_426 = arith.constant 0 : index
      %497 = vector.load %arg28[%c0_425, %c0_426] : memref<1x128xf32, #tpu.memory_space<vmem>>, vector<1x128xf32>
      %498 = vector.broadcast %497 : vector<1x128xf32> to vector<8x128xf32>
      %499 = arith.addf %496, %498 : vector<8x128xf32>
      %c0_427 = arith.constant 0 : index
      %c0_428 = arith.constant 0 : index
      %500 = vector.load %arg29[%c0_427, %c0_428] : memref<8x128xf32, #tpu.memory_space<vmem>>, vector<8x128xf32>
      tpu.vector_store %arg29[%c0_427, %c0_428], %499 {strides = array<i32>} : memref<8x128xf32, #tpu.memory_space<vmem>>, vector<8x128xf32>,
    } else {
    }
    return
  }
  func.func @transform_0(%arg0: i32, %arg1: i32) -> (i32, i32) {
    %c0_i32 = arith.constant 0 : i32
    %c0_i32_0 = arith.constant 0 : i32
    return %arg0, %c0_i32 : i32, i32
  }
  func.func @transform_1(%arg0: i32, %arg1: i32) -> (i32, i32) {
    %c0_i32 = arith.constant 0 : i32
    %c0_i32_0 = arith.constant 0 : i32
    return %arg0, %c0_i32 : i32, i32
  }
  func.func @transform_2(%arg0: i32, %arg1: i32) -> (i32, i32) {
    %c0_i32 = arith.constant 0 : i32
    %c0_i32_0 = arith.constant 0 : i32
    %c0_i32_1 = arith.constant 0 : i32
    return %c0_i32, %c0_i32_0 : i32, i32
  }
  func.func @transform_3(%arg0: i32, %arg1: i32) -> (i32, i32, i32) {
    %c0_i32 = arith.constant 0 : i32
    %c0_i32_0 = arith.constant 0 : i32
    %c0_i32_1 = arith.constant 0 : i32
    return %arg0, %c0_i32, %c0_i32_0 : i32, i32, i32
  }
  func.func @transform_4(%arg0: i32, %arg1: i32) -> (i32, i32, i32) {
    %c0_i32 = arith.constant 0 : i32
    %c0_i32_0 = arith.constant 0 : i32
    %c0_i32_1 = arith.constant 0 : i32
    return %arg0, %c0_i32, %c0_i32_0 : i32, i32, i32
  }
  func.func @transform_5(%arg0: i32, %arg1: i32) -> (i32, i32, i32, i32, i32) {
    %c0_i32 = arith.constant 0 : i32
    %c0_i32_0 = arith.constant 0 : i32
    %c0_i32_1 = arith.constant 0 : i32
    %c0_i32_2 = arith.constant 0 : i32
    %c0_i32_3 = arith.constant 0 : i32
    return %arg1, %c0_i32, %c0_i32_0, %c0_i32_1, %c0_i32_2 : i32, i32, i32, i32, i32
  }
  func.func @transform_6(%arg0: i32, %arg1: i32) -> (i32, i32, i32, i32, i32) {
    %c0_i32 = arith.constant 0 : i32
    %c0_i32_0 = arith.constant 0 : i32
    %c0_i32_1 = arith.constant 0 : i32
    %c0_i32_2 = arith.constant 0 : i32
    %c0_i32_3 = arith.constant 0 : i32
    return %arg1, %c0_i32, %c0_i32_0, %c0_i32_1, %c0_i32_2 : i32, i32, i32, i32, i32
  }
  func.func @transform_7(%arg0: i32, %arg1: i32) -> (i32, i32, i32, i32) {
    %c0_i32 = arith.constant 0 : i32
    %c0_i32_0 = arith.constant 0 : i32
    %c0_i32_1 = arith.constant 0 : i32
    %c0_i32_2 = arith.constant 0 : i32
    return %arg1, %c0_i32, %c0_i32_0, %c0_i32_1 : i32, i32, i32, i32
  }
  func.func @transform_8(%arg0: i32, %arg1: i32) -> (i32, i32, i32) {
    %c0_i32 = arith.constant 0 : i32
    %c0_i32_0 = arith.constant 0 : i32
    %c0_i32_1 = arith.constant 0 : i32
    return %arg1, %c0_i32, %c0_i32_0 : i32, i32, i32
  }
  func.func @transform_9(%arg0: i32, %arg1: i32) -> (i32, i32, i32) {
    %c0_i32 = arith.constant 0 : i32
    %c0_i32_0 = arith.constant 0 : i32
    %c0_i32_1 = arith.constant 0 : i32
    return %arg1, %c0_i32, %c0_i32_0 : i32, i32, i32
  }
  func.func @transform_10(%arg0: i32, %arg1: i32) -> (i32, i32, i32) {
    %c0_i32 = arith.constant 0 : i32
    %c0_i32_0 = arith.constant 0 : i32
    %c0_i32_1 = arith.constant 0 : i32
    return %arg1, %c0_i32, %c0_i32_0 : i32, i32, i32
  }
  func.func @transform_11(%arg0: i32, %arg1: i32) -> (i32, i32, i32, i32, i32) {
    %c0_i32 = arith.constant 0 : i32
    %c0_i32_0 = arith.constant 0 : i32
    %c0_i32_1 = arith.constant 0 : i32
    %c0_i32_2 = arith.constant 0 : i32
    %c0_i32_3 = arith.constant 0 : i32
    return %arg1, %c0_i32, %c0_i32_0, %c0_i32_1, %c0_i32_2 : i32, i32, i32, i32, i32
  }
  func.func @transform_12(%arg0: i32, %arg1: i32) -> (i32, i32, i32, i32, i32) {
    %c0_i32 = arith.constant 0 : i32
    %c0_i32_0 = arith.constant 0 : i32
    %c0_i32_1 = arith.constant 0 : i32
    %c0_i32_2 = arith.constant 0 : i32
    %c0_i32_3 = arith.constant 0 : i32
    return %arg1, %c0_i32, %c0_i32_0, %c0_i32_1, %c0_i32_2 : i32, i32, i32, i32, i32
  }
  func.func @transform_13(%arg0: i32, %arg1: i32) -> (i32, i32, i32, i32) {
    %c0_i32 = arith.constant 0 : i32
    %c0_i32_0 = arith.constant 0 : i32
    %c0_i32_1 = arith.constant 0 : i32
    %c0_i32_2 = arith.constant 0 : i32
    return %arg1, %c0_i32, %c0_i32_0, %c0_i32_1 : i32, i32, i32, i32
  }
  func.func @transform_14(%arg0: i32, %arg1: i32) -> (i32, i32, i32) {
    %c0_i32 = arith.constant 0 : i32
    %c0_i32_0 = arith.constant 0 : i32
    %c0_i32_1 = arith.constant 0 : i32
    return %arg1, %c0_i32, %c0_i32_0 : i32, i32, i32
  }
  func.func @transform_15(%arg0: i32, %arg1: i32) -> (i32, i32, i32) {
    %c0_i32 = arith.constant 0 : i32
    %c0_i32_0 = arith.constant 0 : i32
    %c0_i32_1 = arith.constant 0 : i32
    return %arg1, %c0_i32, %c0_i32_0 : i32, i32, i32
  }
  func.func @transform_16(%arg0: i32, %arg1: i32) -> (i32, i32, i32) {
    %c0_i32 = arith.constant 0 : i32
    %c0_i32_0 = arith.constant 0 : i32
    %c0_i32_1 = arith.constant 0 : i32
    return %arg1, %c0_i32, %c0_i32_0 : i32, i32, i32
  }
  func.func @transform_17(%arg0: i32, %arg1: i32) -> (i32, i32, i32) {
    %c0_i32 = arith.constant 0 : i32
    %c0_i32_0 = arith.constant 0 : i32
    %c0_i32_1 = arith.constant 0 : i32
    return %arg1, %c0_i32, %c0_i32_0 : i32, i32, i32
  }
  func.func @transform_18(%arg0: i32, %arg1: i32) -> (i32, i32, i32) {
    %c0_i32 = arith.constant 0 : i32
    %c0_i32_0 = arith.constant 0 : i32
    %c0_i32_1 = arith.constant 0 : i32
    return %arg1, %c0_i32, %c0_i32_0 : i32, i32, i32
  }
  func.func @transform_19(%arg0: i32, %arg1: i32) -> (i32, i32, i32) {
    %c0_i32 = arith.constant 0 : i32
    %c0_i32_0 = arith.constant 0 : i32
    %c0_i32_1 = arith.constant 0 : i32
    return %arg1, %c0_i32, %c0_i32_0 : i32, i32, i32
  }
  func.func @transform_20(%arg0: i32, %arg1: i32) -> (i32, i32, i32) {
    %c0_i32 = arith.constant 0 : i32
    %c0_i32_0 = arith.constant 0 : i32
    %c0_i32_1 = arith.constant 0 : i32
    return %arg1, %c0_i32, %c0_i32_0 : i32, i32, i32
  }
  func.func @transform_21(%arg0: i32, %arg1: i32) -> (i32, i32, i32) {
    %c0_i32 = arith.constant 0 : i32
    %c0_i32_0 = arith.constant 0 : i32
    %c0_i32_1 = arith.constant 0 : i32
    return %arg1, %c0_i32, %c0_i32_0 : i32, i32, i32
  }
  func.func @transform_22(%arg0: i32, %arg1: i32) -> (i32, i32, i32) {
    %c0_i32 = arith.constant 0 : i32
    %c0_i32_0 = arith.constant 0 : i32
    %c0_i32_1 = arith.constant 0 : i32
    return %arg1, %c0_i32, %c0_i32_0 : i32, i32, i32
  }
  func.func @transform_23(%arg0: i32, %arg1: i32) -> (i32, i32) {
    %c0_i32 = arith.constant 0 : i32
    %c0_i32_0 = arith.constant 0 : i32
    %c0_i32_1 = arith.constant 0 : i32
    return %c0_i32, %c0_i32_0 : i32, i32
  }
  func.func @transform_24(%arg0: i32, %arg1: i32) -> (i32, i32) {
    %c0_i32 = arith.constant 0 : i32
    %c0_i32_0 = arith.constant 0 : i32
    %c0_i32_1 = arith.constant 0 : i32
    return %c0_i32, %c0_i32_0 : i32, i32
  }
  func.func @transform_25(%arg0: i32, %arg1: i32) -> (i32, i32) {
    %c0_i32 = arith.constant 0 : i32
    %c0_i32_0 = arith.constant 0 : i32
    %c0_i32_1 = arith.constant 0 : i32
    return %c0_i32, %c0_i32_0 : i32, i32
  }
  func.func @transform_26(%arg0: i32, %arg1: i32) -> (i32, i32) {
    %c0_i32 = arith.constant 0 : i32
    %c0_i32_0 = arith.constant 0 : i32
    %c0_i32_1 = arith.constant 0 : i32
    return %c0_i32, %c0_i32_0 : i32, i32
  }
  func.func @transform_27(%arg0: i32, %arg1: i32) -> (i32, i32) {
    %c0_i32 = arith.constant 0 : i32
    %c0_i32_0 = arith.constant 0 : i32
    return %arg0, %c0_i32 : i32, i32
  }
}

</mosaic_0001>

<llo_original>
// kernel: seq2seq_forward.2
$region0: #{seq2seq_forward.2}
  #allocation0 [shape = 'u32[]', space=smem, size = 0x4, offset = 0x4, fixed_abs, tag = 'smem constant byte address 0x4 - core index']
  #allocation1 [shape = 'u32[72,128]{1,0:T(1,128)}', space=vmem, size = 0x9000, scoped, tag = 'internal scratch']
  %s0 = inlined_call_operand.vmem [shape: f32[16,32], index: 0, kind: input, shape index: {}]
  %s1 = inlined_call_operand.vmem [shape: f32[8,8], index: 1, kind: input, shape index: {}]
  %s2 = inlined_call_operand.vmem [shape: f32[2,1,8], index: 2, kind: input, shape index: {}]
  %s3 = inlined_call_operand.vmem [shape: bf16[2,3,4,32,8], index: 3, kind: input, shape index: {}]
  %s4 = inlined_call_operand.vmem [shape: f32[2,3,4,1,8], index: 4, kind: input, shape index: {}]
  %s5 = inlined_call_operand.vmem [shape: bf16[2,4,8,32], index: 5, kind: input, shape index: {}]
  %s6 = inlined_call_operand.vmem [shape: f32[2,1,32], index: 6, kind: input, shape index: {}]
  %s7 = inlined_call_operand.vmem [shape: f32[2,1,32], index: 7, kind: input, shape index: {}]
  %s8 = inlined_call_operand.vmem [shape: f32[2,1,32], index: 8, kind: input, shape index: {}]
  %s9 = inlined_call_operand.vmem [shape: bf16[2,32,64], index: 9, kind: input, shape index: {}]
  %s10 = inlined_call_operand.vmem [shape: f32[2,1,64], index: 10, kind: input, shape index: {}]
  %s11 = inlined_call_operand.vmem [shape: bf16[2,64,32], index: 11, kind: input, shape index: {}]
  %s12 = inlined_call_operand.vmem [shape: f32[2,1,32], index: 12, kind: input, shape index: {}]
  %s13 = inlined_call_operand.vmem [shape: f32[2,1,32], index: 13, kind: input, shape index: {}]
  %s14 = inlined_call_operand.vmem [shape: f32[2,1,32], index: 14, kind: input, shape index: {}]
  %s15 = inlined_call_operand.vmem [shape: f32[1,32], index: 15, kind: input, shape index: {}]
  %s16 = inlined_call_operand.vmem [shape: f32[1,32], index: 16, kind: input, shape index: {}]
  %s17 = inlined_call_operand.vmem [shape: f32[16,32], index: 17, kind: output, shape index: {}]
  %s18 = sld [smem:[#allocation0]]
  $region109: #{seq2seq_forward.2} parent=0
    _
  %s20 = ssub.s32 1, %s18
  %s21 = scalar_select 0, %s20, %s18
  loop: start=0, step=1, limit=6
  $region2: #{seq2seq_forward.2} parent=0 // loop_pre_header
    _
  $region3: #{seq2seq_forward.2} parent=0 // loop_header
    %s23 = sphi 0, %s27
    %p24 = scmp.ge.s32.totalorder %s23, 6
    %s30 = sphi 0, %s42
    %s31 = sphi 0, %s38
    %s32 = sphi 0, %s30
    %s33 = sphi 0, %s31
    %s34 = sphi 0, %s32
    %s35 = sphi 0, %s33
    %s45 = sphi 0, %s47
    %s48 = sphi 0, %s45
    %s49 = sphi 0, %s48
    %s65 = sphi 0, %s49
    %s69 = sphi 0, %s69
    %s71 = sphi 0, %s69
    %s72 = sphi 0, %s71
    %s86 = sphi 0, %s72
    %s92 = sphi 0, %s94
    %s95 = sphi 0, %s92
    %s96 = sphi 0, %s95
    %s112 = sphi 0, %s96
    %s118 = sphi 0, %s120
    %s121 = sphi 0, %s118
    %s122 = sphi 0, %s121
    %s138 = sphi 0, %s122
    %s144 = sphi 0, %s146
    %s147 = sphi 0, %s144
    %s148 = sphi 0, %s147
    %s164 = sphi 0, %s148
    %s170 = sphi 0, %s172
    %s173 = sphi 0, %s170
    %s174 = sphi 0, %s173
    %s190 = sphi 0, %s174
    %s196 = sphi 0, %s198
    %s199 = sphi 0, %s196
    %s200 = sphi 0, %s199
    %s216 = sphi 0, %s200
    %s222 = sphi 0, %s224
    %s225 = sphi 0, %s222
    %s226 = sphi 0, %s225
    %s242 = sphi 0, %s226
    %s248 = sphi 0, %s250
    %s251 = sphi 0, %s248
    %s252 = sphi 0, %s251
    %s268 = sphi 0, %s252
    %s274 = sphi 0, %s276
    %s277 = sphi 0, %s274
    %s278 = sphi 0, %s277
    %s294 = sphi 0, %s278
    %s300 = sphi 0, %s302
    %s303 = sphi 0, %s300
    %s304 = sphi 0, %s303
    %s320 = sphi 0, %s304
    %s326 = sphi 0, %s328
    %s329 = sphi 0, %s326
    %s330 = sphi 0, %s329
    %s346 = sphi 0, %s330
    %s352 = sphi 0, %s354
    %s355 = sphi 0, %s352
    %s356 = sphi 0, %s355
    %s372 = sphi 0, %s356
    %s378 = sphi 0, %s380
    %s381 = sphi 0, %s378
    %s382 = sphi 0, %s381
    %s398 = sphi 0, %s382
    %s404 = sphi 0, %s406
    %s407 = sphi 0, %s404
    %s408 = sphi 0, %s407
    %s424 = sphi 0, %s408
    %s428 = sphi 0, %s428
    %s430 = sphi 0, %s428
    %s431 = sphi 0, %s430
    %s445 = sphi 0, %s431
    %s449 = sphi 0, %s449
    %s451 = sphi 0, %s449
    %s452 = sphi 0, %s451
    %s466 = sphi 0, %s452
    %s472 = sphi 0, %s474
    %s475 = sphi 0, %s472
    %s476 = sphi 0, %s475
    %s492 = sphi 0, %s476
  $region4: #{seq2seq_forward.2} parent=0 // loop_header_branch
    %26 = sbr.rel (%p24) target = $region8
  $region5: #{seq2seq_forward.2} parent=0 // loop_body
    %s28 = ssub.s32 %s23, 1
    %s29 = ssub.s32 %s23, 2
    %s36 = sadd.s32 1, %s31
    %p37 = scmp.ge.s32.totalorder %s36, 2
    %s38 = scalar_select %p37, 0, %s36
    %s39 = sadd.s32 1, %s30
    %s40 = scalar_select %p37, %s39, %s30
    %p41 = scmp.ge.s32.totalorder %s40, 2
    %s42 = scalar_select %p41, 0, %s40
    %s43 = ssub.s32 %s30, %s42
    %p44 = scmp.eq.s32.totalorder %s43, 0
    %s46 = sadd.s32 %s45, 1
    %s47 = scalar_select %p44, %s45, %s46
    %p50 = pneg %p44
    %p51 = scmp.eq.s32.totalorder %s23, 3
    %p52 = por %p50, %p51
    %p53 = scmp.ne.s32.totalorder %s45, %s48
    %p54 = scmp.eq.s32.totalorder %s23, 0
    %p55 = por %p53, %p54
    %p56 = scmp.ne.s32.totalorder %s45, %s48
    %p57 = scmp.eq.s32.totalorder %s28, 3
    %p58 = por %p56, %p57
    %p59 = scmp.ne.s32.totalorder %s48, %s49
    %p60 = scmp.eq.s32.totalorder %s28, 0
    %p61 = por %p59, %p60
    %p62 = scmp.ne.s32.totalorder %s48, %s49
    %p63 = scmp.eq.s32.totalorder %s29, 3
    %p64 = por %p62, %p63
    %p66 = scmp.ne.s32.totalorder %s49, %s65
    %p67 = scmp.eq.s32.totalorder %s29, 0
    %p68 = por %p66, %p67
    %s70 = sadd.s32 %s69, 1
    %p73 = scmp.eq.s32.totalorder %s23, 3
    %p74 = scmp.ne.s32.totalorder %s69, %s71
    %p75 = scmp.eq.s32.totalorder %s23, 0
    %p76 = por %p74, %p75
    %p77 = scmp.ne.s32.totalorder %s69, %s71
    %p78 = scmp.eq.s32.totalorder %s28, 3
    %p79 = por %p77, %p78
    %p80 = scmp.ne.s32.totalorder %s71, %s72
    %p81 = scmp.eq.s32.totalorder %s28, 0
    %p82 = por %p80, %p81
    %p83 = scmp.ne.s32.totalorder %s71, %s72
    %p84 = scmp.eq.s32.totalorder %s29, 3
    %p85 = por %p83, %p84
    %p87 = scmp.ne.s32.totalorder %s72, %s86
    %p88 = scmp.eq.s32.totalorder %s29, 0
    %p89 = por %p87, %p88
    %s90 = ssub.s32 %s30, %s42
    %p91 = scmp.eq.s32.totalorder %s90, 0
    %s93 = sadd.s32 %s92, 1
    %s94 = scalar_select %p91, %s92, %s93
    %p97 = pneg %p91
    %p98 = scmp.eq.s32.totalorder %s23, 3
    %p99 = por %p97, %p98
    %p100 = scmp.ne.s32.totalorder %s92, %s95
    %p101 = scmp.eq.s32.totalorder %s23, 0
    %p102 = por %p100, %p101
    %p103 = scmp.ne.s32.totalorder %s92, %s95
    %p104 = scmp.eq.s32.totalorder %s28, 3
    %p105 = por %p103, %p104
    %p106 = scmp.ne.s32.totalorder %s95, %s96
    %p107 = scmp.eq.s32.totalorder %s28, 0
    %p108 = por %p106, %p107
    %p109 = scmp.ne.s32.totalorder %s95, %s96
    %p110 = scmp.eq.s32.totalorder %s29, 3
    %p111 = por %p109, %p110
    %p113 = scmp.ne.s32.totalorder %s96, %s112
    %p114 = scmp.eq.s32.totalorder %s29, 0
    %p115 = por %p113, %p114
    %s116 = ssub.s32 %s31, %s38
    %p117 = scmp.eq.s32.totalorder %s116, 0
    %s119 = sadd.s32 %s118, 1
    %s120 = scalar_select %p117, %s118, %s119
    %p123 = pneg %p117
    %p124 = scmp.eq.s32.totalorder %s23, 3
    %p125 = por %p123, %p124
    %p126 = scmp.ne.s32.totalorder %s118, %s121
    %p127 = scmp.eq.s32.totalorder %s23, 0
    %p128 = por %p126, %p127
    %p129 = scmp.ne.s32.totalorder %s118, %s121
    %p130 = scmp.eq.s32.totalorder %s28, 3
    %p131 = por %p129, %p130
    %p132 = scmp.ne.s32.totalorder %s121, %s122
    %p133 = scmp.eq.s32.totalorder %s28, 0
    %p134 = por %p132, %p133
    %p135 = scmp.ne.s32.totalorder %s121, %s122
    %p136 = scmp.eq.s32.totalorder %s29, 3
    %p137 = por %p135, %p136
    %p139 = scmp.ne.s32.totalorder %s122, %s138
    %p140 = scmp.eq.s32.totalorder %s29, 0
    %p141 = por %p139, %p140
    %s142 = ssub.s32 %s31, %s38
    %p143 = scmp.eq.s32.totalorder %s142, 0
    %s145 = sadd.s32 %s144, 1
    %s146 = scalar_select %p143, %s144, %s145
    %p149 = pneg %p143
    %p150 = scmp.eq.s32.totalorder %s23, 3
    %p151 = por %p149, %p150
    %p152 = scmp.ne.s32.totalorder %s144, %s147
    %p153 = scmp.eq.s32.totalorder %s23, 0
    %p154 = por %p152, %p153
    %p155 = scmp.ne.s32.totalorder %s144, %s147
    %p156 = scmp.eq.s32.totalorder %s28, 3
    %p157 = por %p155, %p156
    %p158 = scmp.ne.s32.totalorder %s147, %s148
    %p159 = scmp.eq.s32.totalorder %s28, 0
    %p160 = por %p158, %p159
    %p161 = scmp.ne.s32.totalorder %s147, %s148
    %p162 = scmp.eq.s32.totalorder %s29, 3
    %p163 = por %p161, %p162
    %p165 = scmp.ne.s32.totalorder %s148, %s164
    %p166 = scmp.eq.s32.totalorder %s29, 0
    %p167 = por %p165, %p166
    %s168 = ssub.s32 %s31, %s38
    %p169 = scmp.eq.s32.totalorder %s168, 0
    %s171 = sadd.s32 %s170, 1
    %s172 = scalar_select %p169, %s170, %s171
    %p175 = pneg %p169
    %p176 = scmp.eq.s32.totalorder %s23, 3
    %p177 = por %p175, %p176
    %p178 = scmp.ne.s32.totalorder %s170, %s173
    %p179 = scmp.eq.s32.totalorder %s23, 0
    %p180 = por %p178, %p179
    %p181 = scmp.ne.s32.totalorder %s170, %s173
    %p182 = scmp.eq.s32.totalorder %s28, 3
    %p183 = por %p181, %p182
    %p184 = scmp.ne.s32.totalorder %s173, %s174
    %p185 = scmp.eq.s32.totalorder %s28, 0
    %p186 = por %p184, %p185
    %p187 = scmp.ne.s32.totalorder %s173, %s174
    %p188 = scmp.eq.s32.totalorder %s29, 3
    %p189 = por %p187, %p188
    %p191 = scmp.ne.s32.totalorder %s174, %s190
    %p192 = scmp.eq.s32.totalorder %s29, 0
    %p193 = por %p191, %p192
    %s194 = ssub.s32 %s31, %s38
    %p195 = scmp.eq.s32.totalorder %s194, 0
    %s197 = sadd.s32 %s196, 1
    %s198 = scalar_select %p195, %s196, %s197
    %p201 = pneg %p195
    %p202 = scmp.eq.s32.totalorder %s23, 3
    %p203 = por %p201, %p202
    %p204 = scmp.ne.s32.totalorder %s196, %s199
    %p205 = scmp.eq.s32.totalorder %s23, 0
    %p206 = por %p204, %p205
    %p207 = scmp.ne.s32.totalorder %s196, %s199
    %p208 = scmp.eq.s32.totalorder %s28, 3
    %p209 = por %p207, %p208
    %p210 = scmp.ne.s32.totalorder %s199, %s200
    %p211 = scmp.eq.s32.totalorder %s28, 0
    %p212 = por %p210, %p211
    %p213 = scmp.ne.s32.totalorder %s199, %s200
    %p214 = scmp.eq.s32.totalorder %s29, 3
    %p215 = por %p213, %p214
    %p217 = scmp.ne.s32.totalorder %s200, %s216
    %p218 = scmp.eq.s32.totalorder %s29, 0
    %p219 = por %p217, %p218
    %s220 = ssub.s32 %s31, %s38
    %p221 = scmp.eq.s32.totalorder %s220, 0
    %s223 = sadd.s32 %s222, 1
    %s224 = scalar_select %p221, %s222, %s223
    %p227 = pneg %p221
    %p228 = scmp.eq.s32.totalorder %s23, 3
    %p229 = por %p227, %p228
    %p230 = scmp.ne.s32.totalorder %s222, %s225
    %p231 = scmp.eq.s32.totalorder %s23, 0
    %p232 = por %p230, %p231
    %p233 = scmp.ne.s32.totalorder %s222, %s225
    %p234 = scmp.eq.s32.totalorder %s28, 3
    %p235 = por %p233, %p234
    %p236 = scmp.ne.s32.totalorder %s225, %s226
    %p237 = scmp.eq.s32.totalorder %s28, 0
    %p238 = por %p236, %p237
    %p239 = scmp.ne.s32.totalorder %s225, %s226
    %p240 = scmp.eq.s32.totalorder %s29, 3
    %p241 = por %p239, %p240
    %p243 = scmp.ne.s32.totalorder %s226, %s242
    %p244 = scmp.eq.s32.totalorder %s29, 0
    %p245 = por %p243, %p244
    %s246 = ssub.s32 %s31, %s38
    %p247 = scmp.eq.s32.totalorder %s246, 0
    %s249 = sadd.s32 %s248, 1
    %s250 = scalar_select %p247, %s248, %s249
    %p253 = pneg %p247
    %p254 = scmp.eq.s32.totalorder %s23, 3
    %p255 = por %p253, %p254
    %p256 = scmp.ne.s32.totalorder %s248, %s251
    %p257 = scmp.eq.s32.totalorder %s23, 0
    %p258 = por %p256, %p257
    %p259 = scmp.ne.s32.totalorder %s248, %s251
    %p260 = scmp.eq.s32.totalorder %s28, 3
    %p261 = por %p259, %p260
    %p262 = scmp.ne.s32.totalorder %s251, %s252
    %p263 = scmp.eq.s32.totalorder %s28, 0
    %p264 = por %p262, %p263
    %p265 = scmp.ne.s32.totalorder %s251, %s252
    %p266 = scmp.eq.s32.totalorder %s29, 3
    %p267 = por %p265, %p266
    %p269 = scmp.ne.s32.totalorder %s252, %s268
    %p270 = scmp.eq.s32.totalorder %s29, 0
    %p271 = por %p269, %p270
    %s272 = ssub.s32 %s31, %s38
    %p273 = scmp.eq.s32.totalorder %s272, 0
    %s275 = sadd.s32 %s274, 1
    %s276 = scalar_select %p273, %s274, %s275
    %p279 = pneg %p273
    %p280 = scmp.eq.s32.totalorder %s23, 3
    %p281 = por %p279, %p280
    %p282 = scmp.ne.s32.totalorder %s274, %s277
    %p283 = scmp.eq.s32.totalorder %s23, 0
    %p284 = por %p282, %p283
    %p285 = scmp.ne.s32.totalorder %s274, %s277
    %p286 = scmp.eq.s32.totalorder %s28, 3
    %p287 = por %p285, %p286
    %p288 = scmp.ne.s32.totalorder %s277, %s278
    %p289 = scmp.eq.s32.totalorder %s28, 0
    %p290 = por %p288, %p289
    %p291 = scmp.ne.s32.totalorder %s277, %s278
    %p292 = scmp.eq.s32.totalorder %s29, 3
    %p293 = por %p291, %p292
    %p295 = scmp.ne.s32.totalorder %s278, %s294
    %p296 = scmp.eq.s32.totalorder %s29, 0
    %p297 = por %p295, %p296
    %s298 = ssub.s32 %s31, %s38
    %p299 = scmp.eq.s32.totalorder %s298, 0
    %s301 = sadd.s32 %s300, 1
    %s302 = scalar_select %p299, %s300, %s301
    %p305 = pneg %p299
    %p306 = scmp.eq.s32.totalorder %s23, 3
    %p307 = por %p305, %p306
    %p308 = scmp.ne.s32.totalorder %s300, %s303
    %p309 = scmp.eq.s32.totalorder %s23, 0
    %p310 = por %p308, %p309
    %p311 = scmp.ne.s32.totalorder %s300, %s303
    %p312 = scmp.eq.s32.totalorder %s28, 3
    %p313 = por %p311, %p312
    %p314 = scmp.ne.s32.totalorder %s303, %s304
    %p315 = scmp.eq.s32.totalorder %s28, 0
    %p316 = por %p314, %p315
    %p317 = scmp.ne.s32.totalorder %s303, %s304
    %p318 = scmp.eq.s32.totalorder %s29, 3
    %p319 = por %p317, %p318
    %p321 = scmp.ne.s32.totalorder %s304, %s320
    %p322 = scmp.eq.s32.totalorder %s29, 0
    %p323 = por %p321, %p322
    %s324 = ssub.s32 %s31, %s38
    %p325 = scmp.eq.s32.totalorder %s324, 0
    %s327 = sadd.s32 %s326, 1
    %s328 = scalar_select %p325, %s326, %s327
    %p331 = pneg %p325
    %p332 = scmp.eq.s32.totalorder %s23, 3
    %p333 = por %p331, %p332
    %p334 = scmp.ne.s32.totalorder %s326, %s329
    %p335 = scmp.eq.s32.totalorder %s23, 0
    %p336 = por %p334, %p335
    %p337 = scmp.ne.s32.totalorder %s326, %s329
    %p338 = scmp.eq.s32.totalorder %s28, 3
    %p339 = por %p337, %p338
    %p340 = scmp.ne.s32.totalorder %s329, %s330
    %p341 = scmp.eq.s32.totalorder %s28, 0
    %p342 = por %p340, %p341
    %p343 = scmp.ne.s32.totalorder %s329, %s330
    %p344 = scmp.eq.s32.totalorder %s29, 3
    %p345 = por %p343, %p344
    %p347 = scmp.ne.s32.totalorder %s330, %s346
    %p348 = scmp.eq.s32.totalorder %s29, 0
    %p349 = por %p347, %p348
    %s350 = ssub.s32 %s31, %s38
    %p351 = scmp.eq.s32.totalorder %s350, 0
    %s353 = sadd.s32 %s352, 1
    %s354 = scalar_select %p351, %s352, %s353
    %p357 = pneg %p351
    %p358 = scmp.eq.s32.totalorder %s23, 3
    %p359 = por %p357, %p358
    %p360 = scmp.ne.s32.totalorder %s352, %s355
    %p361 = scmp.eq.s32.totalorder %s23, 0
    %p362 = por %p360, %p361
    %p363 = scmp.ne.s32.totalorder %s352, %s355
    %p364 = scmp.eq.s32.totalorder %s28, 3
    %p365 = por %p363, %p364
    %p366 = scmp.ne.s32.totalorder %s355, %s356
    %p367 = scmp.eq.s32.totalorder %s28, 0
    %p368 = por %p366, %p367
    %p369 = scmp.ne.s32.totalorder %s355, %s356
    %p370 = scmp.eq.s32.totalorder %s29, 3
    %p371 = por %p369, %p370
    %p373 = scmp.ne.s32.totalorder %s356, %s372
    %p374 = scmp.eq.s32.totalorder %s29, 0
    %p375 = por %p373, %p374
    %s376 = ssub.s32 %s31, %s38
    %p377 = scmp.eq.s32.totalorder %s376, 0
    %s379 = sadd.s32 %s378, 1
    %s380 = scalar_select %p377, %s378, %s379
    %p383 = pneg %p377
    %p384 = scmp.eq.s32.totalorder %s23, 3
    %p385 = por %p383, %p384
    %p386 = scmp.ne.s32.totalorder %s378, %s381
    %p387 = scmp.eq.s32.totalorder %s23, 0
    %p388 = por %p386, %p387
    %p389 = scmp.ne.s32.totalorder %s378, %s381
    %p390 = scmp.eq.s32.totalorder %s28, 3
    %p391 = por %p389, %p390
    %p392 = scmp.ne.s32.totalorder %s381, %s382
    %p393 = scmp.eq.s32.totalorder %s28, 0
    %p394 = por %p392, %p393
    %p395 = scmp.ne.s32.totalorder %s381, %s382
    %p396 = scmp.eq.s32.totalorder %s29, 3
    %p397 = por %p395, %p396
    %p399 = scmp.ne.s32.totalorder %s382, %s398
    %p400 = scmp.eq.s32.totalorder %s29, 0
    %p401 = por %p399, %p400
    %s402 = ssub.s32 %s31, %s38
    %p403 = scmp.eq.s32.totalorder %s402, 0
    %s405 = sadd.s32 %s404, 1
    %s406 = scalar_select %p403, %s404, %s405
    %p409 = pneg %p403
    %p410 = scmp.eq.s32.totalorder %s23, 3
    %p411 = por %p409, %p410
    %p412 = scmp.ne.s32.totalorder %s404, %s407
    %p413 = scmp.eq.s32.totalorder %s23, 0
    %p414 = por %p412, %p413
    %p415 = scmp.ne.s32.totalorder %s404, %s407
    %p416 = scmp.eq.s32.totalorder %s28, 3
    %p417 = por %p415, %p416
    %p418 = scmp.ne.s32.totalorder %s407, %s408
    %p419 = scmp.eq.s32.totalorder %s28, 0
    %p420 = por %p418, %p419
    %p421 = scmp.ne.s32.totalorder %s407, %s408
    %p422 = scmp.eq.s32.totalorder %s29, 3
    %p423 = por %p421, %p422
    %p425 = scmp.ne.s32.totalorder %s408, %s424
    %p426 = scmp.eq.s32.totalorder %s29, 0
    %p427 = por %p425, %p426
    %s429 = sadd.s32 %s428, 1
    %p432 = scmp.eq.s32.totalorder %s23, 3
    %p433 = scmp.ne.s32.totalorder %s428, %s430
    %p434 = scmp.eq.s32.totalorder %s23, 0
    %p435 = por %p433, %p434
    %p436 = scmp.ne.s32.totalorder %s428, %s430
    %p437 = scmp.eq.s32.totalorder %s28, 3
    %p438 = por %p436, %p437
    %p439 = scmp.ne.s32.totalorder %s430, %s431
    %p440 = scmp.eq.s32.totalorder %s28, 0
    %p441 = por %p439, %p440
    %p442 = scmp.ne.s32.totalorder %s430, %s431
    %p443 = scmp.eq.s32.totalorder %s29, 3
    %p444 = por %p442, %p443
    %p446 = scmp.ne.s32.totalorder %s431, %s445
    %p447 = scmp.eq.s32.totalorder %s29, 0
    %p448 = por %p446, %p447
    %s450 = sadd.s32 %s449, 1
    %p453 = scmp.eq.s32.totalorder %s23, 3
    %p454 = scmp.ne.s32.totalorder %s449, %s451
    %p455 = scmp.eq.s32.totalorder %s23, 0
    %p456 = por %p454, %p455
    %p457 = scmp.ne.s32.totalorder %s449, %s451
    %p458 = scmp.eq.s32.totalorder %s28, 3
    %p459 = por %p457, %p458
    %p460 = scmp.ne.s32.totalorder %s451, %s452
    %p461 = scmp.eq.s32.totalorder %s28, 0
    %p462 = por %p460, %p461
    %p463 = scmp.ne.s32.totalorder %s451, %s452
    %p464 = scmp.eq.s32.totalorder %s29, 3
    %p465 = por %p463, %p464
    %p467 = scmp.ne.s32.totalorder %s452, %s466
    %p468 = scmp.eq.s32.totalorder %s29, 0
    %p469 = por %p467, %p468
    %s470 = ssub.s32 %s30, %s42
    %p471 = scmp.eq.s32.totalorder %s470, 0
    %s473 = sadd.s32 %s472, 1
    %s474 = scalar_select %p471, %s472, %s473
    %p477 = pneg %p471
    %p478 = scmp.eq.s32.totalorder %s23, 3
    %p479 = por %p477, %p478
    %p480 = scmp.ne.s32.totalorder %s472, %s475
    %p481 = scmp.eq.s32.totalorder %s23, 0
    %p482 = por %p480, %p481
    %p483 = scmp.ne.s32.totalorder %s472, %s475
    %p484 = scmp.eq.s32.totalorder %s28, 3
    %p485 = por %p483, %p484
    %p486 = scmp.ne.s32.totalorder %s475, %s476
    %p487 = scmp.eq.s32.totalorder %s28, 0
    %p488 = por %p486, %p487
    %p489 = scmp.ne.s32.totalorder %s475, %s476
    %p490 = scmp.eq.s32.totalorder %s29, 3
    %p491 = por %p489, %p490
    %p493 = scmp.ne.s32.totalorder %s476, %s492
    %p494 = scmp.eq.s32.totalorder %s29, 0
    %p495 = por %p493, %p494
    %p496 = scmp.le.s32.totalorder 1, %s23
    %p497 = scmp.lt.s32.totalorder %s23, 5
    %p498 = pnand %p496, %p497
    %p499 = pneg %p498
    // Predicated region
    $region9: #{seq2seq_forward.2} parent=5 // pred_check
      _
    $region10: #{seq2seq_forward.2} parent=5 // pred_check_branch
      %501 = sbr.rel (%p498) target = $region12
    $region11: #{seq2seq_forward.2} parent=5 // pred_region
      %s502 = ssub.s32 %s23, 1
      // Predicated region
      $region13: #{seq2seq_forward.2} parent=11 // pred_check
        %p503 = pneg %p82
      $region14: #{seq2seq_forward.2} parent=11 // pred_check_branch
        %505 = sbr.rel (%p503) target = $region16
      $region15: #{seq2seq_forward.2} parent=11 // pred_region
        _
      $region16: #{seq2seq_forward.2} parent=11 // pred_fallthru
        _
      // Predicated region
      $region17: #{seq2seq_forward.2} parent=11 // pred_check
        %p506 = pneg %p441
      $region18: #{seq2seq_forward.2} parent=11 // pred_check_branch
        %508 = sbr.rel (%p506) target = $region20
      $region19: #{seq2seq_forward.2} parent=11 // pred_region
        _
      $region20: #{seq2seq_forward.2} parent=11 // pred_fallthru
        _
      // Predicated region
      $region21: #{seq2seq_forward.2} parent=11 // pred_check
        %p509 = pneg %p462
      $region22: #{seq2seq_forward.2} parent=11 // pred_check_branch
        %511 = sbr.rel (%p509) target = $region24
      $region23: #{seq2seq_forward.2} parent=11 // pred_region
        _
      $region24: #{seq2seq_forward.2} parent=11 // pred_fallthru
        _
    $region12: #{seq2seq_forward.2} parent=5 // pred_fallthru
      _
    %p512 = scmp.lt.s32.totalorder %s23, 4
    // Predicated region
    $region25: #{seq2seq_forward.2} parent=5 // pred_check
      %p513 = pneg %p512
    $region26: #{seq2seq_forward.2} parent=5 // pred_check_branch
      %515 = sbr.rel (%p513) target = $region28
    $region27: #{seq2seq_forward.2} parent=5 // pred_region
      // Predicated region
      $region29: #{seq2seq_forward.2} parent=27 // pred_check
        %p516 = pneg %p55
      $region30: #{seq2seq_forward.2} parent=27 // pred_check_branch
        %518 = sbr.rel (%p516) target = $region32
      $region31: #{seq2seq_forward.2} parent=27 // pred_region
        %p519 = scmp.lt.s32.totalorder %s30, 1
        %s520 = scalar_select %p519, %s30, 1
        %s521 = smul.addr %s520, 8
        %s522 = scalar_lea.vmem %s0, %s521
      $region32: #{seq2seq_forward.2} parent=27 // pred_fallthru
        _
      // Predicated region
      $region33: #{seq2seq_forward.2} parent=27 // pred_check
        %p523 = pneg %p102
      $region34: #{seq2seq_forward.2} parent=27 // pred_check_branch
        %525 = sbr.rel (%p523) target = $region36
      $region35: #{seq2seq_forward.2} parent=27 // pred_region
        %p526 = scmp.lt.s32.totalorder %s30, 1
        %s527 = scalar_select %p526, %s30, 1
        %s528 = scalar_lea.vmem %s2, %s527
      $region36: #{seq2seq_forward.2} parent=27 // pred_fallthru
        _
      // Predicated region
      $region37: #{seq2seq_forward.2} parent=27 // pred_check
        %p529 = pneg %p128
      $region38: #{seq2seq_forward.2} parent=27 // pred_check_branch
        %531 = sbr.rel (%p529) target = $region40
      $region39: #{seq2seq_forward.2} parent=27 // pred_region
        %p532 = scmp.lt.s32.totalorder %s31, 1
        %s533 = scalar_select %p532, %s31, 1
        %s534 = smul.addr %s533, 48
        %s535 = smul.addr %s534, 4
        %s536 = scalar_lea.vmem %s3, %s535
      $region40: #{seq2seq_forward.2} parent=27 // pred_fallthru
        _
      // Predicated region
      $region41: #{seq2seq_forward.2} parent=27 // pred_check
        %p537 = pneg %p154
      $region42: #{seq2seq_forward.2} parent=27 // pred_check_branch
        %539 = sbr.rel (%p537) target = $region44
      $region43: #{seq2seq_forward.2} parent=27 // pred_region
        %p540 = scmp.lt.s32.totalorder %s31, 1
        %s541 = scalar_select %p540, %s31, 1
        %s542 = smul.addr %s541, 12
        %s543 = scalar_lea.vmem %s4, %s542
      $region44: #{seq2seq_forward.2} parent=27 // pred_fallthru
        _
      // Predicated region
      $region45: #{seq2seq_forward.2} parent=27 // pred_check
        %p544 = pneg %p180
      $region46: #{seq2seq_forward.2} parent=27 // pred_check_branch
        %546 = sbr.rel (%p544) target = $region48
      $region47: #{seq2seq_forward.2} parent=27 // pred_region
        %p547 = scmp.lt.s32.totalorder %s31, 1
        %s548 = scalar_select %p547, %s31, 1
        %s549 = smul.addr %s548, 4
        %s550 = smul.addr %s549, 4
        %s551 = scalar_lea.vmem %s5, %s550
      $region48: #{seq2seq_forward.2} parent=27 // pred_fallthru
        _
      // Predicated region
      $region49: #{seq2seq_forward.2} parent=27 // pred_check
        %p552 = pneg %p206
      $region50: #{seq2seq_forward.2} parent=27 // pred_check_branch
        %554 = sbr.rel (%p552) target = $region52
      $region51: #{seq2seq_forward.2} parent=27 // pred_region
        %p555 = scmp.lt.s32.totalorder %s31, 1
        %s556 = scalar_select %p555, %s31, 1
        %s557 = scalar_lea.vmem %s6, %s556
      $region52: #{seq2seq_forward.2} parent=27 // pred_fallthru
        _
      // Predicated region
      $region53: #{seq2seq_forward.2} parent=27 // pred_check
        %p558 = pneg %p232
      $region54: #{seq2seq_forward.2} parent=27 // pred_check_branch
        %560 = sbr.rel (%p558) target = $region56
      $region55: #{seq2seq_forward.2} parent=27 // pred_region
        %p561 = scmp.lt.s32.totalorder %s31, 1
        %s562 = scalar_select %p561, %s31, 1
        %s563 = scalar_lea.vmem %s7, %s562
      $region56: #{seq2seq_forward.2} parent=27 // pred_fallthru
        _
      // Predicated region
      $region57: #{seq2seq_forward.2} parent=27 // pred_check
        %p564 = pneg %p258
      $region58: #{seq2seq_forward.2} parent=27 // pred_check_branch
        %566 = sbr.rel (%p564) target = $region60
      $region59: #{seq2seq_forward.2} parent=27 // pred_region
        %p567 = scmp.lt.s32.totalorder %s31, 1
        %s568 = scalar_select %p567, %s31, 1
        %s569 = scalar_lea.vmem %s8, %s568
      $region60: #{seq2seq_forward.2} parent=27 // pred_fallthru
        _
      // Predicated region
      $region61: #{seq2seq_forward.2} parent=27 // pred_check
        %p570 = pneg %p284
      $region62: #{seq2seq_forward.2} parent=27 // pred_check_branch
        %572 = sbr.rel (%p570) target = $region64
      $region63: #{seq2seq_forward.2} parent=27 // pred_region
        %p573 = scmp.lt.s32.totalorder %s31, 1
        %s574 = scalar_select %p573, %s31, 1
        %s575 = smul.addr %s574, 4
        %s576 = smul.addr %s575, 4
        %s577 = scalar_lea.vmem %s9, %s576
      $region64: #{seq2seq_forward.2} parent=27 // pred_fallthru
        _
      // Predicated region
      $region65: #{seq2seq_forward.2} parent=27 // pred_check
        %p578 = pneg %p310
      $region66: #{seq2seq_forward.2} parent=27 // pred_check_branch
        %580 = sbr.rel (%p578) target = $region68
      $region67: #{seq2seq_forward.2} parent=27 // pred_region
        %p581 = scmp.lt.s32.totalorder %s31, 1
        %s582 = scalar_select %p581, %s31, 1
        %s583 = scalar_lea.vmem %s10, %s582
      $region68: #{seq2seq_forward.2} parent=27 // pred_fallthru
        _
      // Predicated region
      $region69: #{seq2seq_forward.2} parent=27 // pred_check
        %p584 = pneg %p336
      $region70: #{seq2seq_forward.2} parent=27 // pred_check_branch
        %586 = sbr.rel (%p584) target = $region72
      $region71: #{seq2seq_forward.2} parent=27 // pred_region
        %p587 = scmp.lt.s32.totalorder %s31, 1
        %s588 = scalar_select %p587, %s31, 1
        %s589 = smul.addr %s588, 8
        %s590 = smul.addr %s589, 4
        %s591 = scalar_lea.vmem %s11, %s590
      $region72: #{seq2seq_forward.2} parent=27 // pred_fallthru
        _
      // Predicated region
      $region73: #{seq2seq_forward.2} parent=27 // pred_check
        %p592 = pneg %p362
      $region74: #{seq2seq_forward.2} parent=27 // pred_check_branch
        %594 = sbr.rel (%p592) target = $region76
      $region75: #{seq2seq_forward.2} parent=27 // pred_region
        %p595 = scmp.lt.s32.totalorder %s31, 1
        %s596 = scalar_select %p595, %s31, 1
        %s597 = scalar_lea.vmem %s12, %s596
      $region76: #{seq2seq_forward.2} parent=27 // pred_fallthru
        _
      // Predicated region
      $region77: #{seq2seq_forward.2} parent=27 // pred_check
        %p598 = pneg %p388
      $region78: #{seq2seq_forward.2} parent=27 // pred_check_branch
        %600 = sbr.rel (%p598) target = $region80
      $region79: #{seq2seq_forward.2} parent=27 // pred_region
        %p601 = scmp.lt.s32.totalorder %s31, 1
        %s602 = scalar_select %p601, %s31, 1
        %s603 = scalar_lea.vmem %s13, %s602
      $region80: #{seq2seq_forward.2} parent=27 // pred_fallthru
        _
      // Predicated region
      $region81: #{seq2seq_forward.2} parent=27 // pred_check
        %p604 = pneg %p414
      $region82: #{seq2seq_forward.2} parent=27 // pred_check_branch
        %606 = sbr.rel (%p604) target = $region84
      $region83: #{seq2seq_forward.2} parent=27 // pred_region
        %p607 = scmp.lt.s32.totalorder %s31, 1
        %s608 = scalar_select %p607, %s31, 1
        %s609 = scalar_lea.vmem %s14, %s608
      $region84: #{seq2seq_forward.2} parent=27 // pred_fallthru
        _
    $region28: #{seq2seq_forward.2} parent=5 // pred_fallthru
      _
    %p610 = scmp.le.s32.totalorder 1, %s23
    %p611 = scmp.lt.s32.totalorder %s23, 5
    %p612 = pnand %p610, %p611
    %p613 = pneg %p612
    // Predicated region
    $region85: #{seq2seq_forward.2} parent=5 // pred_check
      _
    $region86: #{seq2seq_forward.2} parent=5 // pred_check_branch
      %615 = sbr.rel (%p612) target = $region88
    $region87: #{seq2seq_forward.2} parent=5 // pred_region
      %s616 = ssub.s32 %s23, 1
      %p617 = scmp.lt.s32.totalorder %s32, 1
      %s618 = scalar_select %p617, %s32, 1
      %s619 = smul.addr %s618, 8
      %s620 = scalar_lea.vmem %s0, %s619
      %p621 = pneg %p61
      %p622 = pneg %p58
      %p623 = pneg %p82
      %p624 = pneg %p79
      %p625 = scmp.lt.s32.totalorder %s32, 1
      %s626 = scalar_select %p625, %s32, 1
      %s627 = scalar_lea.vmem %s2, %s626
      %p628 = pneg %p108
      %p629 = pneg %p105
      %p630 = scmp.lt.s32.totalorder %s33, 1
      %s631 = scalar_select %p630, %s33, 1
      %s632 = smul.addr %s631, 48
      %s633 = smul.addr %s632, 4
      %s634 = scalar_lea.vmem %s3, %s633
      %p635 = pneg %p134
      %p636 = pneg %p131
      %p637 = scmp.lt.s32.totalorder %s33, 1
      %s638 = scalar_select %p637, %s33, 1
      %s639 = smul.addr %s638, 12
      %s640 = scalar_lea.vmem %s4, %s639
      %p641 = pneg %p160
      %p642 = pneg %p157
      %p643 = scmp.lt.s32.totalorder %s33, 1
      %s644 = scalar_select %p643, %s33, 1
      %s645 = smul.addr %s644, 4
      %s646 = smul.addr %s645, 4
      %s647 = scalar_lea.vmem %s5, %s646
      %p648 = pneg %p186
      %p649 = pneg %p183
      %p650 = scmp.lt.s32.totalorder %s33, 1
      %s651 = scalar_select %p650, %s33, 1
      %s652 = scalar_lea.vmem %s6, %s651
      %p653 = pneg %p212
      %p654 = pneg %p209
      %p655 = scmp.lt.s32.totalorder %s33, 1
      %s656 = scalar_select %p655, %s33, 1
      %s657 = scalar_lea.vmem %s7, %s656
      %p658 = pneg %p238
      %p659 = pneg %p235
      %p660 = scmp.lt.s32.totalorder %s33, 1
      %s661 = scalar_select %p660, %s33, 1
      %s662 = scalar_lea.vmem %s8, %s661
      %p663 = pneg %p264
      %p664 = pneg %p261
      %p665 = scmp.lt.s32.totalorder %s33, 1
      %s666 = scalar_select %p665, %s33, 1
      %s667 = smul.addr %s666, 4
      %s668 = smul.addr %s667, 4
      %s669 = scalar_lea.vmem %s9, %s668
      %p670 = pneg %p290
      %p671 = pneg %p287
      %p672 = scmp.lt.s32.totalorder %s33, 1
      %s673 = scalar_select %p672, %s33, 1
      %s674 = scalar_lea.vmem %s10, %s673
      %p675 = pneg %p316
      %p676 = pneg %p313
      %p677 = scmp.lt.s32.totalorder %s33, 1
      %s678 = scalar_select %p677, %s33, 1
      %s679 = smul.addr %s678, 8
      %s680 = smul.addr %s679, 4
      %s681 = scalar_lea.vmem %s11, %s680
      %p682 = pneg %p342
      %p683 = pneg %p339
      %p684 = scmp.lt.s32.totalorder %s33, 1
      %s685 = scalar_select %p684, %s33, 1
      %s686 = scalar_lea.vmem %s12, %s685
      %p687 = pneg %p368
      %p688 = pneg %p365
      %p689 = scmp.lt.s32.totalorder %s33, 1
      %s690 = scalar_select %p689, %s33, 1
      %s691 = scalar_lea.vmem %s13, %s690
      %p692 = pneg %p394
      %p693 = pneg %p391
      %p694 = scmp.lt.s32.totalorder %s33, 1
      %s695 = scalar_select %p694, %s33, 1
      %s696 = scalar_lea.vmem %s14, %s695
      %p697 = pneg %p420
      %p698 = pneg %p417
      %p699 = pneg %p441
      %p700 = pneg %p438
      %p701 = pneg %p462
      %p702 = pneg %p459
      %p703 = pneg %p488
      %p704 = pneg %p485
      %p705 = scmp.lt.s32.totalorder %s32, 1
      %s706 = scalar_select %p705, %s32, 1
      %s707 = smul.addr %s706, 8
      %s708 = scalar_lea.vmem %s17, %s707
      %p709 = scmp.lt.s32.totalorder %s32, 1
      %s710 = scalar_select %p709, %s32, 1
      %s711 = smul.addr %s710, 8
      %s712 = scalar_lea.vmem %s0, %s711
      %p713 = scmp.lt.s32.totalorder %s32, 1
      %s714 = scalar_select %p713, %s32, 1
      %s715 = scalar_lea.vmem %s2, %s714
      %p716 = scmp.lt.s32.totalorder %s33, 1
      %s717 = scalar_select %p716, %s33, 1
      %s718 = smul.addr %s717, 48
      %s719 = smul.addr %s718, 4
      %s720 = scalar_lea.vmem %s3, %s719
      %p721 = scmp.lt.s32.totalorder %s33, 1
      %s722 = scalar_select %p721, %s33, 1
      %s723 = smul.addr %s722, 12
      %s724 = scalar_lea.vmem %s4, %s723
      %p725 = scmp.lt.s32.totalorder %s33, 1
      %s726 = scalar_select %p725, %s33, 1
      %s727 = smul.addr %s726, 4
      %s728 = smul.addr %s727, 4
      %s729 = scalar_lea.vmem %s5, %s728
      %p730 = scmp.lt.s32.totalorder %s33, 1
      %s731 = scalar_select %p730, %s33, 1
      %s732 = scalar_lea.vmem %s6, %s731
      %p733 = scmp.lt.s32.totalorder %s33, 1
      %s734 = scalar_select %p733, %s33, 1
      %s735 = scalar_lea.vmem %s7, %s734
      %p736 = scmp.lt.s32.totalorder %s33, 1
      %s737 = scalar_select %p736, %s33, 1
      %s738 = scalar_lea.vmem %s8, %s737
      %p739 = scmp.lt.s32.totalorder %s33, 1
      %s740 = scalar_select %p739, %s33, 1
      %s741 = smul.addr %s740, 4
      %s742 = smul.addr %s741, 4
      %s743 = scalar_lea.vmem %s9, %s742
      %p744 = scmp.lt.s32.totalorder %s33, 1
      %s745 = scalar_select %p744, %s33, 1
      %s746 = scalar_lea.vmem %s10, %s745
      %p747 = scmp.lt.s32.totalorder %s33, 1
      %s748 = scalar_select %p747, %s33, 1
      %s749 = smul.addr %s748, 8
      %s750 = smul.addr %s749, 4
      %s751 = scalar_lea.vmem %s11, %s750
      %p752 = scmp.lt.s32.totalorder %s33, 1
      %s753 = scalar_select %p752, %s33, 1
      %s754 = scalar_lea.vmem %s12, %s753
      %p755 = scmp.lt.s32.totalorder %s33, 1
      %s756 = scalar_select %p755, %s33, 1
      %s757 = scalar_lea.vmem %s13, %s756
      %p758 = scmp.lt.s32.totalorder %s33, 1
      %s759 = scalar_select %p758, %s33, 1
      %s760 = scalar_lea.vmem %s14, %s759
      %p761 = scmp.lt.s32.totalorder %s32, 1
      %s762 = scalar_select %p761, %s32, 1
      %s763 = smul.addr %s762, 8
      %s764 = scalar_lea.vmem %s17, %s763
      %p766 = scmp.eq.s32.totalorder %s33, 0
      // Predicated region
      $region89: #{seq2seq_forward.2} parent=87 // pred_check
        %p767 = pneg %p766
      $region90: #{seq2seq_forward.2} parent=87 // pred_check_branch
        %769 = sbr.rel (%p767) target = $region92
      $region91: #{seq2seq_forward.2} parent=87 // pred_region
        %v770 = vld [vmem:[%s712] sm:$0xff]
        %vm771 = vcmask 261120
        %772 = vst.msk [vmem:[%s764] sm:$0xff] %vm771, %v770
      $region92: #{seq2seq_forward.2} parent=87 // pred_fallthru
        _
      %v773 = vld [vmem:[%s764] sm:$0xff]
      %v774 = vld [vmem:[%s1] sm:$0xff]
      %v775 = vld [vmem:[%s715] sm:$0x1]
      %v777 = vperm.slane %v775, 0
      %v779 = vadd.f32 %v774, %v777
      %v780 = vpack.c.bf16 %v773, %v773
      %v781 = vld [vmem:[%s720] sm:$0xf]
      %v782 = vld [vmem:[%s720 + $0x4] sm:$0xf]
      %v783 = vld [vmem:[%s720 + $0x8] sm:$0xf]
      %v784 = vld [vmem:[%s720 + $0xc] sm:$0xf]
      %v785 = vld [vmem:[%s724] sm:$0x1]
      %v787 = vperm.slane %v785, 0
      %v793 = vunpack.c.l.b16 %v781
      %v794 = vunpack.c.l.b16 %v782
      %v795 = vunpack.c.l.b16 %v783
      %v796 = vunpack.c.l.b16 %v784
      %v797 = vpack.c.b16 %v794, %v793
      %v798 = vpack.c.b16 %v796, %v795
      %vm801 = vcmask 261120
      %v803 = vsel %vm801, %v780, 0
      %805 = vmatpush.bf16.msra.mxu0 0
      %806 = vmatpush.bf16.msra.mxu0 0
      %807 = vmatpush.bf16.msra.mxu0 0
      %808 = vmatpush.bf16.msra.mxu0 0
      %809 = vmatpush.bf16.msra.mxu0 0
      %810 = vmatpush.bf16.msra.mxu0 0
      %811 = vmatpush.bf16.msra.mxu0 %v798
      %812 = vmatpush.bf16.msra.mxu0 %v797
      %813 = vmatmul.bf16.gmra.mxu0 %v803
      %v814 = vpop.f32.mrf.mxu0
      %v815 = vadd.f32 %v787, %v814
      %v816 = vpop.f32.mrf.mxu0
      %817 = vdwg.mxu0
      %s818 = scalar_lea.vmem %s720, 64
      %v819 = vld [vmem:[%s818] sm:$0xf]
      %v820 = vld [vmem:[%s818 + $0x4] sm:$0xf]
      %v821 = vld [vmem:[%s818 + $0x8] sm:$0xf]
      %v822 = vld [vmem:[%s818 + $0xc] sm:$0xf]
      %s823 = scalar_lea.vmem %s724, 4
      %v824 = vld [vmem:[%s823] sm:$0x1]
      %v826 = vperm.slane %v824, 0
      %v832 = vunpack.c.l.b16 %v819
      %v833 = vunpack.c.l.b16 %v820
      %v834 = vunpack.c.l.b16 %v821
      %v835 = vunpack.c.l.b16 %v822
      %v836 = vpack.c.b16 %v833, %v832
      %v837 = vpack.c.b16 %v835, %v834
      %840 = vmatpush.bf16.msra.mxu0 0
      %841 = vmatpush.bf16.msra.mxu0 0
      %842 = vmatpush.bf16.msra.mxu0 0
      %843 = vmatpush.bf16.msra.mxu0 0
      %844 = vmatpush.bf16.msra.mxu0 0
      %845 = vmatpush.bf16.msra.mxu0 0
      %846 = vmatpush.bf16.msra.mxu0 %v837
      %847 = vmatpush.bf16.msra.mxu0 %v836
      %848 = vmatmul.bf16.gmra.mxu0 %v803
      %v849 = vpop.f32.mrf.mxu0
      %v850 = vadd.f32 %v826, %v849
      %v851 = vpop.f32.mrf.mxu0
      %852 = vdwg.mxu0
      %s853 = scalar_lea.vmem %s720, 128
      %v854 = vld [vmem:[%s853] sm:$0xf]
      %v855 = vld [vmem:[%s853 + $0x4] sm:$0xf]
      %v856 = vld [vmem:[%s853 + $0x8] sm:$0xf]
      %v857 = vld [vmem:[%s853 + $0xc] sm:$0xf]
      %s858 = scalar_lea.vmem %s724, 8
      %v859 = vld [vmem:[%s858] sm:$0x1]
      %v861 = vperm.slane %v859, 0
      %v867 = vunpack.c.l.b16 %v854
      %v868 = vunpack.c.l.b16 %v855
      %v869 = vunpack.c.l.b16 %v856
      %v870 = vunpack.c.l.b16 %v857
      %v871 = vpack.c.b16 %v868, %v867
      %v872 = vpack.c.b16 %v870, %v869
      %875 = vmatpush.bf16.msra.mxu0 0
      %876 = vmatpush.bf16.msra.mxu0 0
      %877 = vmatpush.bf16.msra.mxu0 0
      %878 = vmatpush.bf16.msra.mxu0 0
      %879 = vmatpush.bf16.msra.mxu0 0
      %880 = vmatpush.bf16.msra.mxu0 0
      %881 = vmatpush.bf16.msra.mxu0 %v872
      %882 = vmatpush.bf16.msra.mxu0 %v871
      %883 = vmatmul.bf16.gmra.mxu0 %v803
      %v884 = vpop.f32.mrf.mxu0
      %v885 = vadd.f32 %v861, %v884
      %v886 = vpop.f32.mrf.mxu0
      %887 = vdwg.mxu0
      %vm888 = vcmask 64512
      %v890 = vsel %vm888, %v815, 0
      %v893 = vsel %vm888, %v850, 0
      %895 = vmatpush.xpose.msra.mxu0 0.0
      %896 = vmatpush.xpose.msra.mxu0 0.0
      %897 = vmatpush.xpose.msra.mxu0 0.0
      %898 = vmatpush.xpose.msra.mxu0 0.0
      %899 = vmatpush.xpose.msra.mxu0 0.0
      %900 = vmatpush.xpose.msra.mxu0 0.0
      %901 = vmatpush.xpose.msra.mxu0 0.0
      %902 = vmatpush.xpose.msra.mxu0 0.0
      %903 = vmatpush.xpose.msra.mxu0 0.0
      %904 = vmatpush.xpose.msra.mxu0 0.0
      %905 = vmatpush.xpose.msra.mxu0 0.0
      %906 = vmatpush.xpose.msra.mxu0 0.0
      %907 = vmatpush.xpose.msra.mxu0 0.0
      %908 = vmatpush.xpose.msra.mxu0 0.0
      %909 = vmatpush.xpose.msra.mxu0 0.0
      %910 = vmatpush.xpose.msra.mxu0 %v893
      %911 = vmatmul.f32.gmra.mxu0 %v890
      %v912 = vpop.f32.mrf.mxu0
      %v913 = vadd.f32 0.0, %v912
      %914 = vdwg.mxu0
      %v915 = vmul.f32 %v913, 0.35355338
      %v916 = vadd.f32 %v915, %v779
      %v917 = vsel %vm888, %v916, -inf
      %918 = vmax.xlane.f32.xlu0 %v917
      %v919 = vpop.xlane.xlu0 %918
      %v920 = vsub.f32 %v916, %v919
      %v921 = vmul.f32 %v920, 1.442695
      %v922 = vpow.pop %v921
      %v923 = vsel %vm888, %v922, 0.0
      %924 = vadd.xlane.f32.xlu0 %v923
      %v925 = vpop.xlane.xlu0 %924
      %v926 = vrcp.pop %v925
      %v927 = vmul.f32 %v922, %v926
      %v929 = vsel %vm888, %v927, 0
      %931 = vmatpush.msra.mxu0 0.0
      %932 = vmatpush.msra.mxu0 0.0
      %933 = vmatpush.msra.mxu0 0.0
      %934 = vmatpush.msra.mxu0 0.0
      %935 = vmatpush.msra.mxu0 0.0
      %936 = vmatpush.msra.mxu0 0.0
      %937 = vmatpush.msra.mxu0 0.0
      %938 = vmatpush.msra.mxu0 0.0
      %939 = vmatpush.msra.mxu0 0.0
      %940 = vmatpush.msra.mxu0 0.0
      %941 = vmatpush.msra.mxu0 0.0
      %942 = vmatpush.msra.mxu0 0.0
      %943 = vmatpush.msra.mxu0 0.0
      %944 = vmatpush.msra.mxu0 0.0
      %945 = vmatpush.msra.mxu0 0.0
      %946 = vmatpush.msra.mxu0 %v885
      %947 = vmatmul.f32.gmra.mxu0 %v929
      %v948 = vpop.f32.mrf.mxu0
      %v949 = vadd.f32 0.0, %v948
      %950 = vdwg.mxu0
      %v951 = vpack.c.bf16 %v949, %v949
      %v952 = vld [vmem:[%s729] sm:$0xf]
      %s953 = scalar_lea.vmem %s720, 16
      %v954 = vld [vmem:[%s953] sm:$0xf]
      %v955 = vld [vmem:[%s953 + $0x4] sm:$0xf]
      %v956 = vld [vmem:[%s953 + $0x8] sm:$0xf]
      %v957 = vld [vmem:[%s953 + $0xc] sm:$0xf]
      %s958 = scalar_lea.vmem %s724, 1
      %v959 = vld [vmem:[%s958] sm:$0x1]
      %v961 = vperm.slane %v959, 0
      %v967 = vunpack.c.l.b16 %v954
      %v968 = vunpack.c.l.b16 %v955
      %v969 = vunpack.c.l.b16 %v956
      %v970 = vunpack.c.l.b16 %v957
      %v971 = vpack.c.b16 %v968, %v967
      %v972 = vpack.c.b16 %v970, %v969
      %975 = vmatpush.bf16.msra.mxu0 0
      %976 = vmatpush.bf16.msra.mxu0 0
      %977 = vmatpush.bf16.msra.mxu0 0
      %978 = vmatpush.bf16.msra.mxu0 0
      %979 = vmatpush.bf16.msra.mxu0 0
      %980 = vmatpush.bf16.msra.mxu0 0
      %981 = vmatpush.bf16.msra.mxu0 %v972
      %982 = vmatpush.bf16.msra.mxu0 %v971
      %983 = vmatmul.bf16.gmra.mxu0 %v803
      %v984 = vpop.f32.mrf.mxu0
      %v985 = vadd.f32 %v961, %v984
      %v986 = vpop.f32.mrf.mxu0
      %987 = vdwg.mxu0
      %s988 = scalar_lea.vmem %s720, 80
      %v989 = vld [vmem:[%s988] sm:$0xf]
      %v990 = vld [vmem:[%s988 + $0x4] sm:$0xf]
      %v991 = vld [vmem:[%s988 + $0x8] sm:$0xf]
      %v992 = vld [vmem:[%s988 + $0xc] sm:$0xf]
      %s993 = scalar_lea.vmem %s724, 5
      %v994 = vld [vmem:[%s993] sm:$0x1]
      %v996 = vperm.slane %v994, 0
      %v1002 = vunpack.c.l.b16 %v989
      %v1003 = vunpack.c.l.b16 %v990
      %v1004 = vunpack.c.l.b16 %v991
      %v1005 = vunpack.c.l.b16 %v992
      %v1006 = vpack.c.b16 %v1003, %v1002
      %v1007 = vpack.c.b16 %v1005, %v1004
      %1010 = vmatpush.bf16.msra.mxu0 0
      %1011 = vmatpush.bf16.msra.mxu0 0
      %1012 = vmatpush.bf16.msra.mxu0 0
      %1013 = vmatpush.bf16.msra.mxu0 0
      %1014 = vmatpush.bf16.msra.mxu0 0
      %1015 = vmatpush.bf16.msra.mxu0 0
      %1016 = vmatpush.bf16.msra.mxu0 %v1007
      %1017 = vmatpush.bf16.msra.mxu0 %v1006
      %1018 = vmatmul.bf16.gmra.mxu0 %v803
      %v1019 = vpop.f32.mrf.mxu0
      %v1020 = vadd.f32 %v996, %v1019
      %v1021 = vpop.f32.mrf.mxu0
      %1022 = vdwg.mxu0
      %s1023 = scalar_lea.vmem %s720, 144
      %v1024 = vld [vmem:[%s1023] sm:$0xf]
      %v1025 = vld [vmem:[%s1023 + $0x4] sm:$0xf]
      %v1026 = vld [vmem:[%s1023 + $0x8] sm:$0xf]
      %v1027 = vld [vmem:[%s1023 + $0xc] sm:$0xf]
      %s1028 = scalar_lea.vmem %s724, 9
      %v1029 = vld [vmem:[%s1028] sm:$0x1]
      %v1031 = vperm.slane %v1029, 0
      %v1037 = vunpack.c.l.b16 %v1024
      %v1038 = vunpack.c.l.b16 %v1025
      %v1039 = vunpack.c.l.b16 %v1026
      %v1040 = vunpack.c.l.b16 %v1027
      %v1041 = vpack.c.b16 %v1038, %v1037
      %v1042 = vpack.c.b16 %v1040, %v1039
      %1045 = vmatpush.bf16.msra.mxu0 0
      %1046 = vmatpush.bf16.msra.mxu0 0
      %1047 = vmatpush.bf16.msra.mxu0 0
      %1048 = vmatpush.bf16.msra.mxu0 0
      %1049 = vmatpush.bf16.msra.mxu0 0
      %1050 = vmatpush.bf16.msra.mxu0 0
      %1051 = vmatpush.bf16.msra.mxu0 %v1042
      %1052 = vmatpush.bf16.msra.mxu0 %v1041
      %1053 = vmatmul.bf16.gmra.mxu0 %v803
      %v1054 = vpop.f32.mrf.mxu0
      %v1055 = vadd.f32 %v1031, %v1054
      %v1056 = vpop.f32.mrf.mxu0
      %1057 = vdwg.mxu0
      %v1059 = vsel %vm888, %v985, 0
      %v1062 = vsel %vm888, %v1020, 0
      %1064 = vmatpush.xpose.msra.mxu0 0.0
      %1065 = vmatpush.xpose.msra.mxu0 0.0
      %1066 = vmatpush.xpose.msra.mxu0 0.0
      %1067 = vmatpush.xpose.msra.mxu0 0.0
      %1068 = vmatpush.xpose.msra.mxu0 0.0
      %1069 = vmatpush.xpose.msra.mxu0 0.0
      %1070 = vmatpush.xpose.msra.mxu0 0.0
      %1071 = vmatpush.xpose.msra.mxu0 0.0
      %1072 = vmatpush.xpose.msra.mxu0 0.0
      %1073 = vmatpush.xpose.msra.mxu0 0.0
      %1074 = vmatpush.xpose.msra.mxu0 0.0
      %1075 = vmatpush.xpose.msra.mxu0 0.0
      %1076 = vmatpush.xpose.msra.mxu0 0.0
      %1077 = vmatpush.xpose.msra.mxu0 0.0
      %1078 = vmatpush.xpose.msra.mxu0 0.0
      %1079 = vmatpush.xpose.msra.mxu0 %v1062
      %1080 = vmatmul.f32.gmra.mxu0 %v1059
      %v1081 = vpop.f32.mrf.mxu0
      %v1082 = vadd.f32 0.0, %v1081
      %1083 = vdwg.mxu0
      %v1084 = vmul.f32 %v1082, 0.35355338
      %v1085 = vadd.f32 %v1084, %v779
      %v1086 = vsel %vm888, %v1085, -inf
      %1087 = vmax.xlane.f32.xlu0 %v1086
      %v1088 = vpop.xlane.xlu0 %1087
      %v1089 = vsub.f32 %v1085, %v1088
      %v1090 = vmul.f32 %v1089, 1.442695
      %v1091 = vpow.pop %v1090
      %v1092 = vsel %vm888, %v1091, 0.0
      %1093 = vadd.xlane.f32.xlu0 %v1092
      %v1094 = vpop.xlane.xlu0 %1093
      %v1095 = vrcp.pop %v1094
      %v1096 = vmul.f32 %v1091, %v1095
      %v1098 = vsel %vm888, %v1096, 0
      %1100 = vmatpush.msra.mxu0 0.0
      %1101 = vmatpush.msra.mxu0 0.0
      %1102 = vmatpush.msra.mxu0 0.0
      %1103 = vmatpush.msra.mxu0 0.0
      %1104 = vmatpush.msra.mxu0 0.0
      %1105 = vmatpush.msra.mxu0 0.0
      %1106 = vmatpush.msra.mxu0 0.0
      %1107 = vmatpush.msra.mxu0 0.0
      %1108 = vmatpush.msra.mxu0 0.0
      %1109 = vmatpush.msra.mxu0 0.0
      %1110 = vmatpush.msra.mxu0 0.0
      %1111 = vmatpush.msra.mxu0 0.0
      %1112 = vmatpush.msra.mxu0 0.0
      %1113 = vmatpush.msra.mxu0 0.0
      %1114 = vmatpush.msra.mxu0 0.0
      %1115 = vmatpush.msra.mxu0 %v1055
      %1116 = vmatmul.f32.gmra.mxu0 %v1098
      %v1117 = vpop.f32.mrf.mxu0
      %v1118 = vadd.f32 0.0, %v1117
      %1119 = vdwg.mxu0
      %v1120 = vpack.c.bf16 %v1118, %v1118
      %s1121 = scalar_lea.vmem %s729, 4
      %v1122 = vld [vmem:[%s1121] sm:$0xf]
      %v1124 = vsel %vm888, %v1120, 0
      %vm1126 = vcmask 1043456
      %v1128 = vsel %vm1126, %v1122, 0
      %1130 = vmatpush.bf16.msra.mxu0 0
      %1131 = vmatpush.bf16.msra.mxu0 0
      %1132 = vmatpush.bf16.msra.mxu0 0
      %1133 = vmatpush.bf16.msra.mxu0 0
      %1134 = vmatpush.bf16.msra.mxu0 0
      %1135 = vmatpush.bf16.msra.mxu0 0
      %1136 = vmatpush.bf16.msra.mxu0 0
      %1137 = vmatpush.bf16.msra.mxu0 %v1128
      %1138 = vmatmul.bf16.gmra.mxu0 %v1124
      %v1139 = vpop.f32.mrf.mxu0
      %v1140 = vadd.f32 0.0, %v1139
      %v1141 = vpop.f32.mrf.mxu0
      %1142 = vdwg.mxu0
      %v1144 = vsel %vm888, %v951, 0
      %v1147 = vsel %vm1126, %v952, 0
      %1149 = vmatpush.bf16.msra.mxu0 0
      %1150 = vmatpush.bf16.msra.mxu0 0
      %1151 = vmatpush.bf16.msra.mxu0 0
      %1152 = vmatpush.bf16.msra.mxu0 0
      %1153 = vmatpush.bf16.msra.mxu0 0
      %1154 = vmatpush.bf16.msra.mxu0 0
      %1155 = vmatpush.bf16.msra.mxu0 0
      %1156 = vmatpush.bf16.msra.mxu0 %v1147
      %1157 = vmatmul.bf16.gmra.mxu0 %v1144
      %v1158 = vpop.f32.mrf.mxu0
      %v1159 = vadd.f32 %v1140, %v1158
      %v1160 = vpop.f32.mrf.mxu0
      %1161 = vdwg.mxu0
      %s1162 = scalar_lea.vmem %s720, 32
      %v1163 = vld [vmem:[%s1162] sm:$0xf]
      %v1164 = vld [vmem:[%s1162 + $0x4] sm:$0xf]
      %v1165 = vld [vmem:[%s1162 + $0x8] sm:$0xf]
      %v1166 = vld [vmem:[%s1162 + $0xc] sm:$0xf]
      %s1167 = scalar_lea.vmem %s724, 2
      %v1168 = vld [vmem:[%s1167] sm:$0x1]
      %v1170 = vperm.slane %v1168, 0
      %v1176 = vunpack.c.l.b16 %v1163
      %v1177 = vunpack.c.l.b16 %v1164
      %v1178 = vunpack.c.l.b16 %v1165
      %v1179 = vunpack.c.l.b16 %v1166
      %v1180 = vpack.c.b16 %v1177, %v1176
      %v1181 = vpack.c.b16 %v1179, %v1178
      %1184 = vmatpush.bf16.msra.mxu0 0
      %1185 = vmatpush.bf16.msra.mxu0 0
      %1186 = vmatpush.bf16.msra.mxu0 0
      %1187 = vmatpush.bf16.msra.mxu0 0
      %1188 = vmatpush.bf16.msra.mxu0 0
      %1189 = vmatpush.bf16.msra.mxu0 0
      %1190 = vmatpush.bf16.msra.mxu0 %v1181
      %1191 = vmatpush.bf16.msra.mxu0 %v1180
      %1192 = vmatmul.bf16.gmra.mxu0 %v803
      %v1193 = vpop.f32.mrf.mxu0
      %v1194 = vadd.f32 %v1170, %v1193
      %v1195 = vpop.f32.mrf.mxu0
      %1196 = vdwg.mxu0
      %s1197 = scalar_lea.vmem %s720, 96
      %v1198 = vld [vmem:[%s1197] sm:$0xf]
      %v1199 = vld [vmem:[%s1197 + $0x4] sm:$0xf]
      %v1200 = vld [vmem:[%s1197 + $0x8] sm:$0xf]
      %v1201 = vld [vmem:[%s1197 + $0xc] sm:$0xf]
      %s1202 = scalar_lea.vmem %s724, 6
      %v1203 = vld [vmem:[%s1202] sm:$0x1]
      %v1205 = vperm.slane %v1203, 0
      %v1211 = vunpack.c.l.b16 %v1198
      %v1212 = vunpack.c.l.b16 %v1199
      %v1213 = vunpack.c.l.b16 %v1200
      %v1214 = vunpack.c.l.b16 %v1201
      %v1215 = vpack.c.b16 %v1212, %v1211
      %v1216 = vpack.c.b16 %v1214, %v1213
      %1219 = vmatpush.bf16.msra.mxu0 0
      %1220 = vmatpush.bf16.msra.mxu0 0
      %1221 = vmatpush.bf16.msra.mxu0 0
      %1222 = vmatpush.bf16.msra.mxu0 0
      %1223 = vmatpush.bf16.msra.mxu0 0
      %1224 = vmatpush.bf16.msra.mxu0 0
      %1225 = vmatpush.bf16.msra.mxu0 %v1216
      %1226 = vmatpush.bf16.msra.mxu0 %v1215
      %1227 = vmatmul.bf16.gmra.mxu0 %v803
      %v1228 = vpop.f32.mrf.mxu0
      %v1229 = vadd.f32 %v1205, %v1228
      %v1230 = vpop.f32.mrf.mxu0
      %1231 = vdwg.mxu0
      %s1232 = scalar_lea.vmem %s720, 160
      %v1233 = vld [vmem:[%s1232] sm:$0xf]
      %v1234 = vld [vmem:[%s1232 + $0x4] sm:$0xf]
      %v1235 = vld [vmem:[%s1232 + $0x8] sm:$0xf]
      %v1236 = vld [vmem:[%s1232 + $0xc] sm:$0xf]
      %s1237 = scalar_lea.vmem %s724, 10
      %v1238 = vld [vmem:[%s1237] sm:$0x1]
      %v1240 = vperm.slane %v1238, 0
      %v1246 = vunpack.c.l.b16 %v1233
      %v1247 = vunpack.c.l.b16 %v1234
      %v1248 = vunpack.c.l.b16 %v1235
      %v1249 = vunpack.c.l.b16 %v1236
      %v1250 = vpack.c.b16 %v1247, %v1246
      %v1251 = vpack.c.b16 %v1249, %v1248
      %1254 = vmatpush.bf16.msra.mxu0 0
      %1255 = vmatpush.bf16.msra.mxu0 0
      %1256 = vmatpush.bf16.msra.mxu0 0
      %1257 = vmatpush.bf16.msra.mxu0 0
      %1258 = vmatpush.bf16.msra.mxu0 0
      %1259 = vmatpush.bf16.msra.mxu0 0
      %1260 = vmatpush.bf16.msra.mxu0 %v1251
      %1261 = vmatpush.bf16.msra.mxu0 %v1250
      %1262 = vmatmul.bf16.gmra.mxu0 %v803
      %v1263 = vpop.f32.mrf.mxu0
      %v1264 = vadd.f32 %v1240, %v1263
      %v1265 = vpop.f32.mrf.mxu0
      %1266 = vdwg.mxu0
      %v1268 = vsel %vm888, %v1194, 0
      %v1271 = vsel %vm888, %v1229, 0
      %1273 = vmatpush.xpose.msra.mxu0 0.0
      %1274 = vmatpush.xpose.msra.mxu0 0.0
      %1275 = vmatpush.xpose.msra.mxu0 0.0
      %1276 = vmatpush.xpose.msra.mxu0 0.0
      %1277 = vmatpush.xpose.msra.mxu0 0.0
      %1278 = vmatpush.xpose.msra.mxu0 0.0
      %1279 = vmatpush.xpose.msra.mxu0 0.0
      %1280 = vmatpush.xpose.msra.mxu0 0.0
      %1281 = vmatpush.xpose.msra.mxu0 0.0
      %1282 = vmatpush.xpose.msra.mxu0 0.0
      %1283 = vmatpush.xpose.msra.mxu0 0.0
      %1284 = vmatpush.xpose.msra.mxu0 0.0
      %1285 = vmatpush.xpose.msra.mxu0 0.0
      %1286 = vmatpush.xpose.msra.mxu0 0.0
      %1287 = vmatpush.xpose.msra.mxu0 0.0
      %1288 = vmatpush.xpose.msra.mxu0 %v1271
      %1289 = vmatmul.f32.gmra.mxu0 %v1268
      %v1290 = vpop.f32.mrf.mxu0
      %v1291 = vadd.f32 0.0, %v1290
      %1292 = vdwg.mxu0
      %v1293 = vmul.f32 %v1291, 0.35355338
      %v1294 = vadd.f32 %v1293, %v779
      %v1295 = vsel %vm888, %v1294, -inf
      %1296 = vmax.xlane.f32.xlu0 %v1295
      %v1297 = vpop.xlane.xlu0 %1296
      %v1298 = vsub.f32 %v1294, %v1297
      %v1299 = vmul.f32 %v1298, 1.442695
      %v1300 = vpow.pop %v1299
      %v1301 = vsel %vm888, %v1300, 0.0
      %1302 = vadd.xlane.f32.xlu0 %v1301
      %v1303 = vpop.xlane.xlu0 %1302
      %v1304 = vrcp.pop %v1303
      %v1305 = vmul.f32 %v1300, %v1304
      %v1307 = vsel %vm888, %v1305, 0
      %1309 = vmatpush.msra.mxu0 0.0
      %1310 = vmatpush.msra.mxu0 0.0
      %1311 = vmatpush.msra.mxu0 0.0
      %1312 = vmatpush.msra.mxu0 0.0
      %1313 = vmatpush.msra.mxu0 0.0
      %1314 = vmatpush.msra.mxu0 0.0
      %1315 = vmatpush.msra.mxu0 0.0
      %1316 = vmatpush.msra.mxu0 0.0
      %1317 = vmatpush.msra.mxu0 0.0
      %1318 = vmatpush.msra.mxu0 0.0
      %1319 = vmatpush.msra.mxu0 0.0
      %1320 = vmatpush.msra.mxu0 0.0
      %1321 = vmatpush.msra.mxu0 0.0
      %1322 = vmatpush.msra.mxu0 0.0
      %1323 = vmatpush.msra.mxu0 0.0
      %1324 = vmatpush.msra.mxu0 %v1264
      %1325 = vmatmul.f32.gmra.mxu0 %v1307
      %v1326 = vpop.f32.mrf.mxu0
      %v1327 = vadd.f32 0.0, %v1326
      %1328 = vdwg.mxu0
      %v1329 = vpack.c.bf16 %v1327, %v1327
      %s1330 = scalar_lea.vmem %s729, 8
      %v1331 = vld [vmem:[%s1330] sm:$0xf]
      %v1333 = vsel %vm888, %v1329, 0
      %v1336 = vsel %vm1126, %v1331, 0
      %1338 = vmatpush.bf16.msra.mxu0 0
      %1339 = vmatpush.bf16.msra.mxu0 0
      %1340 = vmatpush.bf16.msra.mxu0 0
      %1341 = vmatpush.bf16.msra.mxu0 0
      %1342 = vmatpush.bf16.msra.mxu0 0
      %1343 = vmatpush.bf16.msra.mxu0 0
      %1344 = vmatpush.bf16.msra.mxu0 0
      %1345 = vmatpush.bf16.msra.mxu0 %v1336
      %1346 = vmatmul.bf16.gmra.mxu0 %v1333
      %v1347 = vpop.f32.mrf.mxu0
      %v1348 = vadd.f32 0.0, %v1347
      %v1349 = vpop.f32.mrf.mxu0
      %1350 = vdwg.mxu0
      %v1351 = vadd.f32 %v1159, %v1348
      %s1352 = scalar_lea.vmem %s720, 48
      %v1353 = vld [vmem:[%s1352] sm:$0xf]
      %v1354 = vld [vmem:[%s1352 + $0x4] sm:$0xf]
      %v1355 = vld [vmem:[%s1352 + $0x8] sm:$0xf]
      %v1356 = vld [vmem:[%s1352 + $0xc] sm:$0xf]
      %s1357 = scalar_lea.vmem %s724, 3
      %v1358 = vld [vmem:[%s1357] sm:$0x1]
      %v1360 = vperm.slane %v1358, 0
      %v1366 = vunpack.c.l.b16 %v1353
      %v1367 = vunpack.c.l.b16 %v1354
      %v1368 = vunpack.c.l.b16 %v1355
      %v1369 = vunpack.c.l.b16 %v1356
      %v1370 = vpack.c.b16 %v1367, %v1366
      %v1371 = vpack.c.b16 %v1369, %v1368
      %1374 = vmatpush.bf16.msra.mxu0 0
      %1375 = vmatpush.bf16.msra.mxu0 0
      %1376 = vmatpush.bf16.msra.mxu0 0
      %1377 = vmatpush.bf16.msra.mxu0 0
      %1378 = vmatpush.bf16.msra.mxu0 0
      %1379 = vmatpush.bf16.msra.mxu0 0
      %1380 = vmatpush.bf16.msra.mxu0 %v1371
      %1381 = vmatpush.bf16.msra.mxu0 %v1370
      %1382 = vmatmul.bf16.gmra.mxu0 %v803
      %v1383 = vpop.f32.mrf.mxu0
      %v1384 = vadd.f32 %v1360, %v1383
      %v1385 = vpop.f32.mrf.mxu0
      %1386 = vdwg.mxu0
      %s1387 = scalar_lea.vmem %s720, 112
      %v1388 = vld [vmem:[%s1387] sm:$0xf]
      %v1389 = vld [vmem:[%s1387 + $0x4] sm:$0xf]
      %v1390 = vld [vmem:[%s1387 + $0x8] sm:$0xf]
      %v1391 = vld [vmem:[%s1387 + $0xc] sm:$0xf]
      %s1392 = scalar_lea.vmem %s724, 7
      %v1393 = vld [vmem:[%s1392] sm:$0x1]
      %v1395 = vperm.slane %v1393, 0
      %v1401 = vunpack.c.l.b16 %v1388
      %v1402 = vunpack.c.l.b16 %v1389
      %v1403 = vunpack.c.l.b16 %v1390
      %v1404 = vunpack.c.l.b16 %v1391
      %v1405 = vpack.c.b16 %v1402, %v1401
      %v1406 = vpack.c.b16 %v1404, %v1403
      %1409 = vmatpush.bf16.msra.mxu0 0
      %1410 = vmatpush.bf16.msra.mxu0 0
      %1411 = vmatpush.bf16.msra.mxu0 0
      %1412 = vmatpush.bf16.msra.mxu0 0
      %1413 = vmatpush.bf16.msra.mxu0 0
      %1414 = vmatpush.bf16.msra.mxu0 0
      %1415 = vmatpush.bf16.msra.mxu0 %v1406
      %1416 = vmatpush.bf16.msra.mxu0 %v1405
      %1417 = vmatmul.bf16.gmra.mxu0 %v803
      %v1418 = vpop.f32.mrf.mxu0
      %v1419 = vadd.f32 %v1395, %v1418
      %v1420 = vpop.f32.mrf.mxu0
      %1421 = vdwg.mxu0
      %s1422 = scalar_lea.vmem %s720, 176
      %v1423 = vld [vmem:[%s1422] sm:$0xf]
      %v1424 = vld [vmem:[%s1422 + $0x4] sm:$0xf]
      %v1425 = vld [vmem:[%s1422 + $0x8] sm:$0xf]
      %v1426 = vld [vmem:[%s1422 + $0xc] sm:$0xf]
      %s1427 = scalar_lea.vmem %s724, 11
      %v1428 = vld [vmem:[%s1427] sm:$0x1]
      %v1430 = vperm.slane %v1428, 0
      %v1436 = vunpack.c.l.b16 %v1423
      %v1437 = vunpack.c.l.b16 %v1424
      %v1438 = vunpack.c.l.b16 %v1425
      %v1439 = vunpack.c.l.b16 %v1426
      %v1440 = vpack.c.b16 %v1437, %v1436
      %v1441 = vpack.c.b16 %v1439, %v1438
      %1444 = vmatpush.bf16.msra.mxu0 0
      %1445 = vmatpush.bf16.msra.mxu0 0
      %1446 = vmatpush.bf16.msra.mxu0 0
      %1447 = vmatpush.bf16.msra.mxu0 0
      %1448 = vmatpush.bf16.msra.mxu0 0
      %1449 = vmatpush.bf16.msra.mxu0 0
      %1450 = vmatpush.bf16.msra.mxu0 %v1441
      %1451 = vmatpush.bf16.msra.mxu0 %v1440
      %1452 = vmatmul.bf16.gmra.mxu0 %v803
      %v1453 = vpop.f32.mrf.mxu0
      %v1454 = vadd.f32 %v1430, %v1453
      %v1455 = vpop.f32.mrf.mxu0
      %1456 = vdwg.mxu0
      %v1458 = vsel %vm888, %v1384, 0
      %v1461 = vsel %vm888, %v1419, 0
      %1463 = vmatpush.xpose.msra.mxu0 0.0
      %1464 = vmatpush.xpose.msra.mxu0 0.0
      %1465 = vmatpush.xpose.msra.mxu0 0.0
      %1466 = vmatpush.xpose.msra.mxu0 0.0
      %1467 = vmatpush.xpose.msra.mxu0 0.0
      %1468 = vmatpush.xpose.msra.mxu0 0.0
      %1469 = vmatpush.xpose.msra.mxu0 0.0
      %1470 = vmatpush.xpose.msra.mxu0 0.0
      %1471 = vmatpush.xpose.msra.mxu0 0.0
      %1472 = vmatpush.xpose.msra.mxu0 0.0
      %1473 = vmatpush.xpose.msra.mxu0 0.0
      %1474 = vmatpush.xpose.msra.mxu0 0.0
      %1475 = vmatpush.xpose.msra.mxu0 0.0
      %1476 = vmatpush.xpose.msra.mxu0 0.0
      %1477 = vmatpush.xpose.msra.mxu0 0.0
      %1478 = vmatpush.xpose.msra.mxu0 %v1461
      %1479 = vmatmul.f32.gmra.mxu0 %v1458
      %v1480 = vpop.f32.mrf.mxu0
      %v1481 = vadd.f32 0.0, %v1480
      %1482 = vdwg.mxu0
      %v1483 = vmul.f32 %v1481, 0.35355338
      %v1484 = vadd.f32 %v1483, %v779
      %v1485 = vsel %vm888, %v1484, -inf
      %1486 = vmax.xlane.f32.xlu0 %v1485
      %v1487 = vpop.xlane.xlu0 %1486
      %v1488 = vsub.f32 %v1484, %v1487
      %v1489 = vmul.f32 %v1488, 1.442695
      %v1490 = vpow.pop %v1489
      %v1491 = vsel %vm888, %v1490, 0.0
      %1492 = vadd.xlane.f32.xlu0 %v1491
      %v1493 = vpop.xlane.xlu0 %1492
      %v1494 = vrcp.pop %v1493
      %v1495 = vmul.f32 %v1490, %v1494
      %v1497 = vsel %vm888, %v1495, 0
      %1499 = vmatpush.msra.mxu0 0.0
      %1500 = vmatpush.msra.mxu0 0.0
      %1501 = vmatpush.msra.mxu0 0.0
      %1502 = vmatpush.msra.mxu0 0.0
      %1503 = vmatpush.msra.mxu0 0.0
      %1504 = vmatpush.msra.mxu0 0.0
      %1505 = vmatpush.msra.mxu0 0.0
      %1506 = vmatpush.msra.mxu0 0.0
      %1507 = vmatpush.msra.mxu0 0.0
      %1508 = vmatpush.msra.mxu0 0.0
      %1509 = vmatpush.msra.mxu0 0.0
      %1510 = vmatpush.msra.mxu0 0.0
      %1511 = vmatpush.msra.mxu0 0.0
      %1512 = vmatpush.msra.mxu0 0.0
      %1513 = vmatpush.msra.mxu0 0.0
      %1514 = vmatpush.msra.mxu0 %v1454
      %1515 = vmatmul.f32.gmra.mxu0 %v1497
      %v1516 = vpop.f32.mrf.mxu0
      %v1517 = vadd.f32 0.0, %v1516
      %1518 = vdwg.mxu0
      %v1519 = vpack.c.bf16 %v1517, %v1517
      %s1520 = scalar_lea.vmem %s729, 12
      %v1521 = vld [vmem:[%s1520] sm:$0xf]
      %v1523 = vsel %vm888, %v1519, 0
      %v1526 = vsel %vm1126, %v1521, 0
      %1528 = vmatpush.bf16.msra.mxu0 0
      %1529 = vmatpush.bf16.msra.mxu0 0
      %1530 = vmatpush.bf16.msra.mxu0 0
      %1531 = vmatpush.bf16.msra.mxu0 0
      %1532 = vmatpush.bf16.msra.mxu0 0
      %1533 = vmatpush.bf16.msra.mxu0 0
      %1534 = vmatpush.bf16.msra.mxu0 0
      %1535 = vmatpush.bf16.msra.mxu0 %v1526
      %1536 = vmatmul.bf16.gmra.mxu0 %v1523
      %v1537 = vpop.f32.mrf.mxu0
      %v1538 = vadd.f32 0.0, %v1537
      %v1539 = vpop.f32.mrf.mxu0
      %1540 = vdwg.mxu0
      %v1541 = vadd.f32 %v1351, %v1538
      %v1542 = vld [vmem:[%s732] sm:$0x1]
      %v1544 = vperm.slane %v1542, 0
      %v1546 = vadd.f32 %v1541, %v1544
      %v1547 = vadd.f32 %v773, %v1546
      %v1548 = vld [vmem:[%s735] sm:$0x1]
      %v1549 = vld [vmem:[%s738] sm:$0x1]
      %v1550 = vsel %vm801, %v1547, 0.0
      %1551 = vadd.xlane.f32.xlu0 %v1550
      %v1552 = vpop.xlane.xlu0 %1551
      %v1553 = vrcp.pop 32.0
      %v1554 = vmul.f32 32.0, %v1553
      %v1555 = vsub.f32 1.0, %v1554
      %v1556 = vmul.f32 %v1553, %v1555
      %v1557 = vadd.f32 %v1553, %v1556
      %vm1558 = vweird.f32 %v1553
      %v1559 = vsel %vm1558, %v1553, %v1557
      %v1560 = vmul.f32 %v1552, %v1559
      %v1561 = vsub.f32 %v1547, %v1560
      %v1562 = vmul.f32 %v1561, %v1561
      %v1563 = vsel %vm801, %v1562, 0.0
      %1564 = vadd.xlane.f32.xlu0 %v1563
      %v1565 = vpop.xlane.xlu0 %1564
      %v1566 = vmul.f32 %v1565, %v1559
      %v1567 = vadd.f32 %v1566, 1e-05
      %v1568 = vrsqrt.pop %v1567
      %v1569 = vmul.f32 %v1568, %v1567
      %v1570 = vmul.f32 %v1569, %v1568
      %v1571 = vmul.f32 0.5, %v1570
      %v1572 = vsub.f32 1.5, %v1571
      %v1573 = vmul.f32 %v1568, %v1572
      %vm1574 = vweird.f32 %v1567
      %vm1575 = vweird.f32 %v1568
      %vm1576 = vmor %vm1574, %vm1575
      %v1577 = vsel %vm1576, %v1568, %v1573
      %v1578 = vmul.f32 %v1561, %v1577
      %v1580 = vperm.slane %v1548, 0
      %v1582 = vmul.f32 %v1578, %v1580
      %v1584 = vperm.slane %v1549, 0
      %v1586 = vadd.f32 %v1582, %v1584
      %v1587 = vpack.c.bf16 %v1586, %v1586
      %v1588 = vld [vmem:[%s743] sm:$0xf]
      %v1589 = vld [vmem:[%s743 + $0x4] sm:$0xf]
      %v1590 = vld [vmem:[%s743 + $0x8] sm:$0xf]
      %v1591 = vld [vmem:[%s743 + $0xc] sm:$0xf]
      %v1592 = vld [vmem:[%s746] sm:$0x1]
      %v1594 = vperm.slane %v1592, 0
      %v1600 = vunpack.c.l.b16 %v1588
      %v1601 = vunpack.c.l.b16 %v1589
      %v1602 = vunpack.c.l.b16 %v1590
      %v1603 = vunpack.c.l.b16 %v1591
      %v1604 = vpack.c.b16 %v1601, %v1600
      %v1605 = vpack.c.b16 %v1603, %v1602
      %v1609 = vsel %vm801, %v1587, 0
      %1611 = vmatpush.bf16.msra.mxu0 0
      %1612 = vmatpush.bf16.msra.mxu0 0
      %1613 = vmatpush.bf16.msra.mxu0 0
      %1614 = vmatpush.bf16.msra.mxu0 0
      %1615 = vmatpush.bf16.msra.mxu0 0
      %1616 = vmatpush.bf16.msra.mxu0 0
      %1617 = vmatpush.bf16.msra.mxu0 %v1605
      %1618 = vmatpush.bf16.msra.mxu0 %v1604
      %1619 = vmatmul.bf16.gmra.mxu0 %v1609
      %v1620 = vpop.f32.mrf.mxu0
      %v1621 = vadd.f32 %v1594, %v1620
      %v1622 = vpop.f32.mrf.mxu0
      %1623 = vdwg.mxu0
      %v1624 = vmax.f32 %v1621, 0.0
      %v1625 = vpack.c.bf16 %v1624, %v1624
      %v1626 = vld [vmem:[%s751] sm:$0xf]
      %v1627 = vld [vmem:[%s751 + $0x4] sm:$0xf]
      %v1628 = vld [vmem:[%s751 + $0x8] sm:$0xf]
      %v1629 = vld [vmem:[%s751 + $0xc] sm:$0xf]
      %v1630 = vld [vmem:[%s751 + $0x10] sm:$0xf]
      %v1631 = vld [vmem:[%s751 + $0x14] sm:$0xf]
      %v1632 = vld [vmem:[%s751 + $0x18] sm:$0xf]
      %v1633 = vld [vmem:[%s751 + $0x1c] sm:$0xf]
      %v1634 = vld [vmem:[%s754] sm:$0x1]
      %v1636 = vperm.slane %v1634, 0
      %v1646 = vunpack.c.l.b16 %v1626
      %v1647 = vunpack.c.l.b16 %v1627
      %v1648 = vunpack.c.l.b16 %v1628
      %v1649 = vunpack.c.l.b16 %v1629
      %v1650 = vunpack.c.l.b16 %v1630
      %v1651 = vunpack.c.l.b16 %v1631
      %v1652 = vunpack.c.l.b16 %v1632
      %v1653 = vunpack.c.l.b16 %v1633
      %v1654 = vpack.c.b16 %v1647, %v1646
      %v1655 = vpack.c.b16 %v1649, %v1648
      %v1656 = vpack.c.b16 %v1651, %v1650
      %v1657 = vpack.c.b16 %v1653, %v1652
      %vm1662 = vcmask 523264
      %v1664 = vsel %vm1662, %v1625, 0
      %1666 = vmatpush.bf16.msra.mxu0 0
      %1667 = vmatpush.bf16.msra.mxu0 0
      %1668 = vmatpush.bf16.msra.mxu0 0
      %1669 = vmatpush.bf16.msra.mxu0 0
      %1670 = vmatpush.bf16.msra.mxu0 %v1657
      %1671 = vmatpush.bf16.msra.mxu0 %v1656
      %1672 = vmatpush.bf16.msra.mxu0 %v1655
      %1673 = vmatpush.bf16.msra.mxu0 %v1654
      %1674 = vmatmul.bf16.gmra.mxu0 %v1664
      %v1675 = vpop.f32.mrf.mxu0
      %v1676 = vadd.f32 %v1636, %v1675
      %v1677 = vpop.f32.mrf.mxu0
      %1678 = vdwg.mxu0
      %v1679 = vadd.f32 %v1586, %v1676
      %v1680 = vld [vmem:[%s757] sm:$0x1]
      %v1681 = vld [vmem:[%s760] sm:$0x1]
      %v1682 = vsel %vm801, %v1679, 0.0
      %1683 = vadd.xlane.f32.xlu0 %v1682
      %v1684 = vpop.xlane.xlu0 %1683
      %v1685 = vmul.f32 %v1684, %v1559
      %v1686 = vsub.f32 %v1679, %v1685
      %v1687 = vmul.f32 %v1686, %v1686
      %v1688 = vsel %vm801, %v1687, 0.0
      %1689 = vadd.xlane.f32.xlu0 %v1688
      %v1690 = vpop.xlane.xlu0 %1689
      %v1691 = vmul.f32 %v1690, %v1559
      %v1692 = vadd.f32 %v1691, 1e-05
      %v1693 = vrsqrt.pop %v1692
      %v1694 = vmul.f32 %v1693, %v1692
      %v1695 = vmul.f32 %v1694, %v1693
      %v1696 = vmul.f32 0.5, %v1695
      %v1697 = vsub.f32 1.5, %v1696
      %v1698 = vmul.f32 %v1693, %v1697
      %vm1699 = vweird.f32 %v1692
      %vm1700 = vweird.f32 %v1693
      %vm1701 = vmor %vm1699, %vm1700
      %v1702 = vsel %vm1701, %v1693, %v1698
      %v1703 = vmul.f32 %v1686, %v1702
      %v1705 = vperm.slane %v1680, 0
      %v1707 = vmul.f32 %v1703, %v1705
      %v1709 = vperm.slane %v1681, 0
      %v1711 = vadd.f32 %v1707, %v1709
      %1712 = vst.msk [vmem:[%s764] sm:$0xff] %vm801, %v1711
      %p1713 = scmp.eq.s32.totalorder %s33, 1
      // Predicated region
      $region93: #{seq2seq_forward.2} parent=87 // pred_check
        %p1714 = pneg %p1713
      $region94: #{seq2seq_forward.2} parent=87 // pred_check_branch
        %1716 = sbr.rel (%p1714) target = $region96
      $region95: #{seq2seq_forward.2} parent=87 // pred_region
        %v1717 = vld [vmem:[%s764] sm:$0xff]
        %v1718 = vld [vmem:[%s15] sm:$0x1]
        %v1719 = vld [vmem:[%s16] sm:$0x1]
        %v1720 = vsel %vm801, %v1717, 0.0
        %1721 = vadd.xlane.f32.xlu0 %v1720
        %v1722 = vpop.xlane.xlu0 %1721
        %v1723 = vmul.f32 %v1722, %v1559
        %v1724 = vsub.f32 %v1717, %v1723
        %v1725 = vmul.f32 %v1724, %v1724
        %v1726 = vsel %vm801, %v1725, 0.0
        %1727 = vadd.xlane.f32.xlu0 %v1726
        %v1728 = vpop.xlane.xlu0 %1727
        %v1729 = vmul.f32 %v1728, %v1559
        %v1730 = vadd.f32 %v1729, 1e-05
        %v1731 = vrsqrt.pop %v1730
        %v1732 = vmul.f32 %v1731, %v1730
        %v1733 = vmul.f32 %v1732, %v1731
        %v1734 = vmul.f32 0.5, %v1733
        %v1735 = vsub.f32 1.5, %v1734
        %v1736 = vmul.f32 %v1731, %v1735
        %vm1737 = vweird.f32 %v1730
        %vm1738 = vweird.f32 %v1731
        %vm1739 = vmor %vm1737, %vm1738
        %v1740 = vsel %vm1739, %v1731, %v1736
        %v1741 = vmul.f32 %v1724, %v1740
        %v1743 = vperm.slane %v1718, 0
        %v1745 = vmul.f32 %v1741, %v1743
        %v1747 = vperm.slane %v1719, 0
        %v1749 = vadd.f32 %v1745, %v1747
        %1750 = vst.msk [vmem:[%s764] sm:$0xff] %vm801, %v1749
      $region96: #{seq2seq_forward.2} parent=87 // pred_fallthru
        _
      %p1751 = scmp.lt.s32.totalorder %s32, 1
      %s1752 = scalar_select %p1751, %s32, 1
      %s1753 = smul.addr %s1752, 8
      %s1754 = scalar_lea.vmem %s17, %s1753
      // Predicated region
      $region97: #{seq2seq_forward.2} parent=87 // pred_check
        %p1755 = pneg %p485
      $region98: #{seq2seq_forward.2} parent=87 // pred_check_branch
        %1757 = sbr.rel (%p1755) target = $region100
      $region99: #{seq2seq_forward.2} parent=87 // pred_region
        _
      $region100: #{seq2seq_forward.2} parent=87 // pred_fallthru
        _
    $region88: #{seq2seq_forward.2} parent=5 // pred_fallthru
      _
    %p1758 = scmp.le.s32.totalorder 2, %s23
    // Predicated region
    $region101: #{seq2seq_forward.2} parent=5 // pred_check
      %p1759 = pneg %p1758
    $region102: #{seq2seq_forward.2} parent=5 // pred_check_branch
      %1761 = sbr.rel (%p1759) target = $region104
    $region103: #{seq2seq_forward.2} parent=5 // pred_region
      %s1762 = ssub.s32 %s23, 2
      // Predicated region
      $region105: #{seq2seq_forward.2} parent=103 // pred_check
        %p1763 = pneg %p491
      $region106: #{seq2seq_forward.2} parent=103 // pred_check_branch
        %1765 = sbr.rel (%p1763) target = $region108
      $region107: #{seq2seq_forward.2} parent=103 // pred_region
        %p1766 = scmp.lt.s32.totalorder %s34, 1
        %s1767 = scalar_select %p1766, %s34, 1
        %s1768 = smul.addr %s1767, 8
        %s1769 = scalar_lea.vmem %s17, %s1768
      $region108: #{seq2seq_forward.2} parent=103 // pred_fallthru
        _
    $region104: #{seq2seq_forward.2} parent=5 // pred_fallthru
      _
  $region6: #{seq2seq_forward.2} parent=0 // loop_footer
    %s27 = sadd.s32 1, %s23
  $region7: #{seq2seq_forward.2} parent=0 // loop_footer_branch
    %22 = sbr.rel target = $region3
  $region8: #{seq2seq_forward.2} parent=0 // loop_exit
    _

// kernel: seq2seq_forward.3
$region0: #{seq2seq_forward.3}
  #allocation0 [shape = 'u32[]', space=smem, size = 0x4, offset = 0x4, fixed_abs, tag = 'smem constant byte address 0x4 - core index']
  #allocation1 [shape = 'u32[72,128]{1,0:T(1,128)}', space=vmem, size = 0x9000, scoped, tag = 'internal scratch']
  #allocation2 [shape = 'f32[8,32]{1,0:T(8,128)}', space=vmem, size = 0x1000, scoped, tag = 'scratch operand']
  %s0 = inlined_call_operand.vmem [shape: f32[16,32], index: 0, kind: input, shape index: {}]
  %s1 = inlined_call_operand.vmem [shape: f32[16,32], index: 1, kind: input, shape index: {}]
  %s2 = inlined_call_operand.vmem [shape: f32[8,8], index: 2, kind: input, shape index: {}]
  %s3 = inlined_call_operand.vmem [shape: f32[2,1,8], index: 3, kind: input, shape index: {}]
  %s4 = inlined_call_operand.vmem [shape: f32[2,1,8], index: 4, kind: input, shape index: {}]
  %s5 = inlined_call_operand.vmem [shape: bf16[2,3,4,32,8], index: 5, kind: input, shape index: {}]
  %s6 = inlined_call_operand.vmem [shape: f32[2,3,4,1,8], index: 6, kind: input, shape index: {}]
  %s7 = inlined_call_operand.vmem [shape: bf16[2,4,8,32], index: 7, kind: input, shape index: {}]
  %s8 = inlined_call_operand.vmem [shape: f32[2,1,32], index: 8, kind: input, shape index: {}]
  %s9 = inlined_call_operand.vmem [shape: f32[2,1,32], index: 9, kind: input, shape index: {}]
  %s10 = inlined_call_operand.vmem [shape: f32[2,1,32], index: 10, kind: input, shape index: {}]
  %s11 = inlined_call_operand.vmem [shape: bf16[2,3,4,32,8], index: 11, kind: input, shape index: {}]
  %s12 = inlined_call_operand.vmem [shape: f32[2,3,4,1,8], index: 12, kind: input, shape index: {}]
  %s13 = inlined_call_operand.vmem [shape: bf16[2,4,8,32], index: 13, kind: input, shape index: {}]
  %s14 = inlined_call_operand.vmem [shape: f32[2,1,32], index: 14, kind: input, shape index: {}]
  %s15 = inlined_call_operand.vmem [shape: f32[2,1,32], index: 15, kind: input, shape index: {}]
  %s16 = inlined_call_operand.vmem [shape: f32[2,1,32], index: 16, kind: input, shape index: {}]
  %s17 = inlined_call_operand.vmem [shape: bf16[2,32,64], index: 17, kind: input, shape index: {}]
  %s18 = inlined_call_operand.vmem [shape: f32[2,1,64], index: 18, kind: input, shape index: {}]
  %s19 = inlined_call_operand.vmem [shape: bf16[2,64,32], index: 19, kind: input, shape index: {}]
  %s20 = inlined_call_operand.vmem [shape: f32[2,1,32], index: 20, kind: input, shape index: {}]
  %s21 = inlined_call_operand.vmem [shape: f32[2,1,32], index: 21, kind: input, shape index: {}]
  %s22 = inlined_call_operand.vmem [shape: f32[2,1,32], index: 22, kind: input, shape index: {}]
  %s23 = inlined_call_operand.vmem [shape: f32[1,32], index: 23, kind: input, shape index: {}]
  %s24 = inlined_call_operand.vmem [shape: f32[1,32], index: 24, kind: input, shape index: {}]
  %s25 = inlined_call_operand.vmem [shape: bf16[32,128], index: 25, kind: input, shape index: {}]
  %s26 = inlined_call_operand.vmem [shape: f32[1,128], index: 26, kind: input, shape index: {}]
  %s27 = inlined_call_operand.vmem [shape: f32[16,128], index: 27, kind: output, shape index: {}]
  %s28 = sld [smem:[#allocation0]]
  $region149: #{seq2seq_forward.3} parent=0
    _
  %s30 = ssub.s32 1, %s28
  %s31 = scalar_select 0, %s30, %s28
  loop: start=0, step=1, limit=6
  $region2: #{seq2seq_forward.3} parent=0 // loop_pre_header
    _
  $region3: #{seq2seq_forward.3} parent=0 // loop_header
    %s33 = sphi 0, %s37
    %p34 = scmp.ge.s32.totalorder %s33, 6
    %s40 = sphi 0, %s52
    %s41 = sphi 0, %s48
    %s42 = sphi 0, %s40
    %s43 = sphi 0, %s41
    %s44 = sphi 0, %s42
    %s45 = sphi 0, %s43
    %s55 = sphi 0, %s57
    %s58 = sphi 0, %s55
    %s59 = sphi 0, %s58
    %s75 = sphi 0, %s59
    %s81 = sphi 0, %s83
    %s84 = sphi 0, %s81
    %s85 = sphi 0, %s84
    %s101 = sphi 0, %s85
    %s105 = sphi 0, %s105
    %s107 = sphi 0, %s105
    %s108 = sphi 0, %s107
    %s122 = sphi 0, %s108
    %s128 = sphi 0, %s130
    %s131 = sphi 0, %s128
    %s132 = sphi 0, %s131
    %s148 = sphi 0, %s132
    %s154 = sphi 0, %s156
    %s157 = sphi 0, %s154
    %s158 = sphi 0, %s157
    %s174 = sphi 0, %s158
    %s180 = sphi 0, %s182
    %s183 = sphi 0, %s180
    %s184 = sphi 0, %s183
    %s200 = sphi 0, %s184
    %s206 = sphi 0, %s208
    %s209 = sphi 0, %s206
    %s210 = sphi 0, %s209
    %s226 = sphi 0, %s210
    %s232 = sphi 0, %s234
    %s235 = sphi 0, %s232
    %s236 = sphi 0, %s235
    %s252 = sphi 0, %s236
    %s258 = sphi 0, %s260
    %s261 = sphi 0, %s258
    %s262 = sphi 0, %s261
    %s278 = sphi 0, %s262
    %s284 = sphi 0, %s286
    %s287 = sphi 0, %s284
    %s288 = sphi 0, %s287
    %s304 = sphi 0, %s288
    %s310 = sphi 0, %s312
    %s313 = sphi 0, %s310
    %s314 = sphi 0, %s313
    %s330 = sphi 0, %s314
    %s336 = sphi 0, %s338
    %s339 = sphi 0, %s336
    %s340 = sphi 0, %s339
    %s356 = sphi 0, %s340
    %s362 = sphi 0, %s364
    %s365 = sphi 0, %s362
    %s366 = sphi 0, %s365
    %s382 = sphi 0, %s366
    %s388 = sphi 0, %s390
    %s391 = sphi 0, %s388
    %s392 = sphi 0, %s391
    %s408 = sphi 0, %s392
    %s414 = sphi 0, %s416
    %s417 = sphi 0, %s414
    %s418 = sphi 0, %s417
    %s434 = sphi 0, %s418
    %s440 = sphi 0, %s442
    %s443 = sphi 0, %s440
    %s444 = sphi 0, %s443
    %s460 = sphi 0, %s444
    %s466 = sphi 0, %s468
    %s469 = sphi 0, %s466
    %s470 = sphi 0, %s469
    %s486 = sphi 0, %s470
    %s492 = sphi 0, %s494
    %s495 = sphi 0, %s492
    %s496 = sphi 0, %s495
    %s512 = sphi 0, %s496
    %s518 = sphi 0, %s520
    %s521 = sphi 0, %s518
    %s522 = sphi 0, %s521
    %s538 = sphi 0, %s522
    %s544 = sphi 0, %s546
    %s547 = sphi 0, %s544
    %s548 = sphi 0, %s547
    %s564 = sphi 0, %s548
    %s570 = sphi 0, %s572
    %s573 = sphi 0, %s570
    %s574 = sphi 0, %s573
    %s590 = sphi 0, %s574
    %s596 = sphi 0, %s598
    %s599 = sphi 0, %s596
    %s600 = sphi 0, %s599
    %s616 = sphi 0, %s600
    %s622 = sphi 0, %s624
    %s625 = sphi 0, %s622
    %s626 = sphi 0, %s625
    %s642 = sphi 0, %s626
    %s646 = sphi 0, %s646
    %s648 = sphi 0, %s646
    %s649 = sphi 0, %s648
    %s663 = sphi 0, %s649
    %s667 = sphi 0, %s667
    %s669 = sphi 0, %s667
    %s670 = sphi 0, %s669
    %s684 = sphi 0, %s670
    %s688 = sphi 0, %s688
    %s690 = sphi 0, %s688
    %s691 = sphi 0, %s690
    %s705 = sphi 0, %s691
    %s709 = sphi 0, %s709
    %s711 = sphi 0, %s709
    %s712 = sphi 0, %s711
    %s726 = sphi 0, %s712
    %s732 = sphi 0, %s734
    %s735 = sphi 0, %s732
    %s736 = sphi 0, %s735
    %s752 = sphi 0, %s736
  $region4: #{seq2seq_forward.3} parent=0 // loop_header_branch
    %36 = sbr.rel (%p34) target = $region8
  $region5: #{seq2seq_forward.3} parent=0 // loop_body
    %s38 = ssub.s32 %s33, 1
    %s39 = ssub.s32 %s33, 2
    %s46 = sadd.s32 1, %s41
    %p47 = scmp.ge.s32.totalorder %s46, 2
    %s48 = scalar_select %p47, 0, %s46
    %s49 = sadd.s32 1, %s40
    %s50 = scalar_select %p47, %s49, %s40
    %p51 = scmp.ge.s32.totalorder %s50, 2
    %s52 = scalar_select %p51, 0, %s50
    %s53 = ssub.s32 %s40, %s52
    %p54 = scmp.eq.s32.totalorder %s53, 0
    %s56 = sadd.s32 %s55, 1
    %s57 = scalar_select %p54, %s55, %s56
    %p60 = pneg %p54
    %p61 = scmp.eq.s32.totalorder %s33, 3
    %p62 = por %p60, %p61
    %p63 = scmp.ne.s32.totalorder %s55, %s58
    %p64 = scmp.eq.s32.totalorder %s33, 0
    %p65 = por %p63, %p64
    %p66 = scmp.ne.s32.totalorder %s55, %s58
    %p67 = scmp.eq.s32.totalorder %s38, 3
    %p68 = por %p66, %p67
    %p69 = scmp.ne.s32.totalorder %s58, %s59
    %p70 = scmp.eq.s32.totalorder %s38, 0
    %p71 = por %p69, %p70
    %p72 = scmp.ne.s32.totalorder %s58, %s59
    %p73 = scmp.eq.s32.totalorder %s39, 3
    %p74 = por %p72, %p73
    %p76 = scmp.ne.s32.totalorder %s59, %s75
    %p77 = scmp.eq.s32.totalorder %s39, 0
    %p78 = por %p76, %p77
    %s79 = ssub.s32 %s40, %s52
    %p80 = scmp.eq.s32.totalorder %s79, 0
    %s82 = sadd.s32 %s81, 1
    %s83 = scalar_select %p80, %s81, %s82
    %p86 = pneg %p80
    %p87 = scmp.eq.s32.totalorder %s33, 3
    %p88 = por %p86, %p87
    %p89 = scmp.ne.s32.totalorder %s81, %s84
    %p90 = scmp.eq.s32.totalorder %s33, 0
    %p91 = por %p89, %p90
    %p92 = scmp.ne.s32.totalorder %s81, %s84
    %p93 = scmp.eq.s32.totalorder %s38, 3
    %p94 = por %p92, %p93
    %p95 = scmp.ne.s32.totalorder %s84, %s85
    %p96 = scmp.eq.s32.totalorder %s38, 0
    %p97 = por %p95, %p96
    %p98 = scmp.ne.s32.totalorder %s84, %s85
    %p99 = scmp.eq.s32.totalorder %s39, 3
    %p100 = por %p98, %p99
    %p102 = scmp.ne.s32.totalorder %s85, %s101
    %p103 = scmp.eq.s32.totalorder %s39, 0
    %p104 = por %p102, %p103
    %s106 = sadd.s32 %s105, 1
    %p109 = scmp.eq.s32.totalorder %s33, 3
    %p110 = scmp.ne.s32.totalorder %s105, %s107
    %p111 = scmp.eq.s32.totalorder %s33, 0
    %p112 = por %p110, %p111
    %p113 = scmp.ne.s32.totalorder %s105, %s107
    %p114 = scmp.eq.s32.totalorder %s38, 3
    %p115 = por %p113, %p114
    %p116 = scmp.ne.s32.totalorder %s107, %s108
    %p117 = scmp.eq.s32.totalorder %s38, 0
    %p118 = por %p116, %p117
    %p119 = scmp.ne.s32.totalorder %s107, %s108
    %p120 = scmp.eq.s32.totalorder %s39, 3
    %p121 = por %p119, %p120
    %p123 = scmp.ne.s32.totalorder %s108, %s122
    %p124 = scmp.eq.s32.totalorder %s39, 0
    %p125 = por %p123, %p124
    %s126 = ssub.s32 %s40, %s52
    %p127 = scmp.eq.s32.totalorder %s126, 0
    %s129 = sadd.s32 %s128, 1
    %s130 = scalar_select %p127, %s128, %s129
    %p133 = pneg %p127
    %p134 = scmp.eq.s32.totalorder %s33, 3
    %p135 = por %p133, %p134
    %p136 = scmp.ne.s32.totalorder %s128, %s131
    %p137 = scmp.eq.s32.totalorder %s33, 0
    %p138 = por %p136, %p137
    %p139 = scmp.ne.s32.totalorder %s128, %s131
    %p140 = scmp.eq.s32.totalorder %s38, 3
    %p141 = por %p139, %p140
    %p142 = scmp.ne.s32.totalorder %s131, %s132
    %p143 = scmp.eq.s32.totalorder %s38, 0
    %p144 = por %p142, %p143
    %p145 = scmp.ne.s32.totalorder %s131, %s132
    %p146 = scmp.eq.s32.totalorder %s39, 3
    %p147 = por %p145, %p146
    %p149 = scmp.ne.s32.totalorder %s132, %s148
    %p150 = scmp.eq.s32.totalorder %s39, 0
    %p151 = por %p149, %p150
    %s152 = ssub.s32 %s40, %s52
    %p153 = scmp.eq.s32.totalorder %s152, 0
    %s155 = sadd.s32 %s154, 1
    %s156 = scalar_select %p153, %s154, %s155
    %p159 = pneg %p153
    %p160 = scmp.eq.s32.totalorder %s33, 3
    %p161 = por %p159, %p160
    %p162 = scmp.ne.s32.totalorder %s154, %s157
    %p163 = scmp.eq.s32.totalorder %s33, 0
    %p164 = por %p162, %p163
    %p165 = scmp.ne.s32.totalorder %s154, %s157
    %p166 = scmp.eq.s32.totalorder %s38, 3
    %p167 = por %p165, %p166
    %p168 = scmp.ne.s32.totalorder %s157, %s158
    %p169 = scmp.eq.s32.totalorder %s38, 0
    %p170 = por %p168, %p169
    %p171 = scmp.ne.s32.totalorder %s157, %s158
    %p172 = scmp.eq.s32.totalorder %s39, 3
    %p173 = por %p171, %p172
    %p175 = scmp.ne.s32.totalorder %s158, %s174
    %p176 = scmp.eq.s32.totalorder %s39, 0
    %p177 = por %p175, %p176
    %s178 = ssub.s32 %s41, %s48
    %p179 = scmp.eq.s32.totalorder %s178, 0
    %s181 = sadd.s32 %s180, 1
    %s182 = scalar_select %p179, %s180, %s181
    %p185 = pneg %p179
    %p186 = scmp.eq.s32.totalorder %s33, 3
    %p187 = por %p185, %p186
    %p188 = scmp.ne.s32.totalorder %s180, %s183
    %p189 = scmp.eq.s32.totalorder %s33, 0
    %p190 = por %p188, %p189
    %p191 = scmp.ne.s32.totalorder %s180, %s183
    %p192 = scmp.eq.s32.totalorder %s38, 3
    %p193 = por %p191, %p192
    %p194 = scmp.ne.s32.totalorder %s183, %s184
    %p195 = scmp.eq.s32.totalorder %s38, 0
    %p196 = por %p194, %p195
    %p197 = scmp.ne.s32.totalorder %s183, %s184
    %p198 = scmp.eq.s32.totalorder %s39, 3
    %p199 = por %p197, %p198
    %p201 = scmp.ne.s32.totalorder %s184, %s200
    %p202 = scmp.eq.s32.totalorder %s39, 0
    %p203 = por %p201, %p202
    %s204 = ssub.s32 %s41, %s48
    %p205 = scmp.eq.s32.totalorder %s204, 0
    %s207 = sadd.s32 %s206, 1
    %s208 = scalar_select %p205, %s206, %s207
    %p211 = pneg %p205
    %p212 = scmp.eq.s32.totalorder %s33, 3
    %p213 = por %p211, %p212
    %p214 = scmp.ne.s32.totalorder %s206, %s209
    %p215 = scmp.eq.s32.totalorder %s33, 0
    %p216 = por %p214, %p215
    %p217 = scmp.ne.s32.totalorder %s206, %s209
    %p218 = scmp.eq.s32.totalorder %s38, 3
    %p219 = por %p217, %p218
    %p220 = scmp.ne.s32.totalorder %s209, %s210
    %p221 = scmp.eq.s32.totalorder %s38, 0
    %p222 = por %p220, %p221
    %p223 = scmp.ne.s32.totalorder %s209, %s210
    %p224 = scmp.eq.s32.totalorder %s39, 3
    %p225 = por %p223, %p224
    %p227 = scmp.ne.s32.totalorder %s210, %s226
    %p228 = scmp.eq.s32.totalorder %s39, 0
    %p229 = por %p227, %p228
    %s230 = ssub.s32 %s41, %s48
    %p231 = scmp.eq.s32.totalorder %s230, 0
    %s233 = sadd.s32 %s232, 1
    %s234 = scalar_select %p231, %s232, %s233
    %p237 = pneg %p231
    %p238 = scmp.eq.s32.totalorder %s33, 3
    %p239 = por %p237, %p238
    %p240 = scmp.ne.s32.totalorder %s232, %s235
    %p241 = scmp.eq.s32.totalorder %s33, 0
    %p242 = por %p240, %p241
    %p243 = scmp.ne.s32.totalorder %s232, %s235
    %p244 = scmp.eq.s32.totalorder %s38, 3
    %p245 = por %p243, %p244
    %p246 = scmp.ne.s32.totalorder %s235, %s236
    %p247 = scmp.eq.s32.totalorder %s38, 0
    %p248 = por %p246, %p247
    %p249 = scmp.ne.s32.totalorder %s235, %s236
    %p250 = scmp.eq.s32.totalorder %s39, 3
    %p251 = por %p249, %p250
    %p253 = scmp.ne.s32.totalorder %s236, %s252
    %p254 = scmp.eq.s32.totalorder %s39, 0
    %p255 = por %p253, %p254
    %s256 = ssub.s32 %s41, %s48
    %p257 = scmp.eq.s32.totalorder %s256, 0
    %s259 = sadd.s32 %s258, 1
    %s260 = scalar_select %p257, %s258, %s259
    %p263 = pneg %p257
    %p264 = scmp.eq.s32.totalorder %s33, 3
    %p265 = por %p263, %p264
    %p266 = scmp.ne.s32.totalorder %s258, %s261
    %p267 = scmp.eq.s32.totalorder %s33, 0
    %p268 = por %p266, %p267
    %p269 = scmp.ne.s32.totalorder %s258, %s261
    %p270 = scmp.eq.s32.totalorder %s38, 3
    %p271 = por %p269, %p270
    %p272 = scmp.ne.s32.totalorder %s261, %s262
    %p273 = scmp.eq.s32.totalorder %s38, 0
    %p274 = por %p272, %p273
    %p275 = scmp.ne.s32.totalorder %s261, %s262
    %p276 = scmp.eq.s32.totalorder %s39, 3
    %p277 = por %p275, %p276
    %p279 = scmp.ne.s32.totalorder %s262, %s278
    %p280 = scmp.eq.s32.totalorder %s39, 0
    %p281 = por %p279, %p280
    %s282 = ssub.s32 %s41, %s48
    %p283 = scmp.eq.s32.totalorder %s282, 0
    %s285 = sadd.s32 %s284, 1
    %s286 = scalar_select %p283, %s284, %s285
    %p289 = pneg %p283
    %p290 = scmp.eq.s32.totalorder %s33, 3
    %p291 = por %p289, %p290
    %p292 = scmp.ne.s32.totalorder %s284, %s287
    %p293 = scmp.eq.s32.totalorder %s33, 0
    %p294 = por %p292, %p293
    %p295 = scmp.ne.s32.totalorder %s284, %s287
    %p296 = scmp.eq.s32.totalorder %s38, 3
    %p297 = por %p295, %p296
    %p298 = scmp.ne.s32.totalorder %s287, %s288
    %p299 = scmp.eq.s32.totalorder %s38, 0
    %p300 = por %p298, %p299
    %p301 = scmp.ne.s32.totalorder %s287, %s288
    %p302 = scmp.eq.s32.totalorder %s39, 3
    %p303 = por %p301, %p302
    %p305 = scmp.ne.s32.totalorder %s288, %s304
    %p306 = scmp.eq.s32.totalorder %s39, 0
    %p307 = por %p305, %p306
    %s308 = ssub.s32 %s41, %s48
    %p309 = scmp.eq.s32.totalorder %s308, 0
    %s311 = sadd.s32 %s310, 1
    %s312 = scalar_select %p309, %s310, %s311
    %p315 = pneg %p309
    %p316 = scmp.eq.s32.totalorder %s33, 3
    %p317 = por %p315, %p316
    %p318 = scmp.ne.s32.totalorder %s310, %s313
    %p319 = scmp.eq.s32.totalorder %s33, 0
    %p320 = por %p318, %p319
    %p321 = scmp.ne.s32.totalorder %s310, %s313
    %p322 = scmp.eq.s32.totalorder %s38, 3
    %p323 = por %p321, %p322
    %p324 = scmp.ne.s32.totalorder %s313, %s314
    %p325 = scmp.eq.s32.totalorder %s38, 0
    %p326 = por %p324, %p325
    %p327 = scmp.ne.s32.totalorder %s313, %s314
    %p328 = scmp.eq.s32.totalorder %s39, 3
    %p329 = por %p327, %p328
    %p331 = scmp.ne.s32.totalorder %s314, %s330
    %p332 = scmp.eq.s32.totalorder %s39, 0
    %p333 = por %p331, %p332
    %s334 = ssub.s32 %s41, %s48
    %p335 = scmp.eq.s32.totalorder %s334, 0
    %s337 = sadd.s32 %s336, 1
    %s338 = scalar_select %p335, %s336, %s337
    %p341 = pneg %p335
    %p342 = scmp.eq.s32.totalorder %s33, 3
    %p343 = por %p341, %p342
    %p344 = scmp.ne.s32.totalorder %s336, %s339
    %p345 = scmp.eq.s32.totalorder %s33, 0
    %p346 = por %p344, %p345
    %p347 = scmp.ne.s32.totalorder %s336, %s339
    %p348 = scmp.eq.s32.totalorder %s38, 3
    %p349 = por %p347, %p348
    %p350 = scmp.ne.s32.totalorder %s339, %s340
    %p351 = scmp.eq.s32.totalorder %s38, 0
    %p352 = por %p350, %p351
    %p353 = scmp.ne.s32.totalorder %s339, %s340
    %p354 = scmp.eq.s32.totalorder %s39, 3
    %p355 = por %p353, %p354
    %p357 = scmp.ne.s32.totalorder %s340, %s356
    %p358 = scmp.eq.s32.totalorder %s39, 0
    %p359 = por %p357, %p358
    %s360 = ssub.s32 %s41, %s48
    %p361 = scmp.eq.s32.totalorder %s360, 0
    %s363 = sadd.s32 %s362, 1
    %s364 = scalar_select %p361, %s362, %s363
    %p367 = pneg %p361
    %p368 = scmp.eq.s32.totalorder %s33, 3
    %p369 = por %p367, %p368
    %p370 = scmp.ne.s32.totalorder %s362, %s365
    %p371 = scmp.eq.s32.totalorder %s33, 0
    %p372 = por %p370, %p371
    %p373 = scmp.ne.s32.totalorder %s362, %s365
    %p374 = scmp.eq.s32.totalorder %s38, 3
    %p375 = por %p373, %p374
    %p376 = scmp.ne.s32.totalorder %s365, %s366
    %p377 = scmp.eq.s32.totalorder %s38, 0
    %p378 = por %p376, %p377
    %p379 = scmp.ne.s32.totalorder %s365, %s366
    %p380 = scmp.eq.s32.totalorder %s39, 3
    %p381 = por %p379, %p380
    %p383 = scmp.ne.s32.totalorder %s366, %s382
    %p384 = scmp.eq.s32.totalorder %s39, 0
    %p385 = por %p383, %p384
    %s386 = ssub.s32 %s41, %s48
    %p387 = scmp.eq.s32.totalorder %s386, 0
    %s389 = sadd.s32 %s388, 1
    %s390 = scalar_select %p387, %s388, %s389
    %p393 = pneg %p387
    %p394 = scmp.eq.s32.totalorder %s33, 3
    %p395 = por %p393, %p394
    %p396 = scmp.ne.s32.totalorder %s388, %s391
    %p397 = scmp.eq.s32.totalorder %s33, 0
    %p398 = por %p396, %p397
    %p399 = scmp.ne.s32.totalorder %s388, %s391
    %p400 = scmp.eq.s32.totalorder %s38, 3
    %p401 = por %p399, %p400
    %p402 = scmp.ne.s32.totalorder %s391, %s392
    %p403 = scmp.eq.s32.totalorder %s38, 0
    %p404 = por %p402, %p403
    %p405 = scmp.ne.s32.totalorder %s391, %s392
    %p406 = scmp.eq.s32.totalorder %s39, 3
    %p407 = por %p405, %p406
    %p409 = scmp.ne.s32.totalorder %s392, %s408
    %p410 = scmp.eq.s32.totalorder %s39, 0
    %p411 = por %p409, %p410
    %s412 = ssub.s32 %s41, %s48
    %p413 = scmp.eq.s32.totalorder %s412, 0
    %s415 = sadd.s32 %s414, 1
    %s416 = scalar_select %p413, %s414, %s415
    %p419 = pneg %p413
    %p420 = scmp.eq.s32.totalorder %s33, 3
    %p421 = por %p419, %p420
    %p422 = scmp.ne.s32.totalorder %s414, %s417
    %p423 = scmp.eq.s32.totalorder %s33, 0
    %p424 = por %p422, %p423
    %p425 = scmp.ne.s32.totalorder %s414, %s417
    %p426 = scmp.eq.s32.totalorder %s38, 3
    %p427 = por %p425, %p426
    %p428 = scmp.ne.s32.totalorder %s417, %s418
    %p429 = scmp.eq.s32.totalorder %s38, 0
    %p430 = por %p428, %p429
    %p431 = scmp.ne.s32.totalorder %s417, %s418
    %p432 = scmp.eq.s32.totalorder %s39, 3
    %p433 = por %p431, %p432
    %p435 = scmp.ne.s32.totalorder %s418, %s434
    %p436 = scmp.eq.s32.totalorder %s39, 0
    %p437 = por %p435, %p436
    %s438 = ssub.s32 %s41, %s48
    %p439 = scmp.eq.s32.totalorder %s438, 0
    %s441 = sadd.s32 %s440, 1
    %s442 = scalar_select %p439, %s440, %s441
    %p445 = pneg %p439
    %p446 = scmp.eq.s32.totalorder %s33, 3
    %p447 = por %p445, %p446
    %p448 = scmp.ne.s32.totalorder %s440, %s443
    %p449 = scmp.eq.s32.totalorder %s33, 0
    %p450 = por %p448, %p449
    %p451 = scmp.ne.s32.totalorder %s440, %s443
    %p452 = scmp.eq.s32.totalorder %s38, 3
    %p453 = por %p451, %p452
    %p454 = scmp.ne.s32.totalorder %s443, %s444
    %p455 = scmp.eq.s32.totalorder %s38, 0
    %p456 = por %p454, %p455
    %p457 = scmp.ne.s32.totalorder %s443, %s444
    %p458 = scmp.eq.s32.totalorder %s39, 3
    %p459 = por %p457, %p458
    %p461 = scmp.ne.s32.totalorder %s444, %s460
    %p462 = scmp.eq.s32.totalorder %s39, 0
    %p463 = por %p461, %p462
    %s464 = ssub.s32 %s41, %s48
    %p465 = scmp.eq.s32.totalorder %s464, 0
    %s467 = sadd.s32 %s466, 1
    %s468 = scalar_select %p465, %s466, %s467
    %p471 = pneg %p465
    %p472 = scmp.eq.s32.totalorder %s33, 3
    %p473 = por %p471, %p472
    %p474 = scmp.ne.s32.totalorder %s466, %s469
    %p475 = scmp.eq.s32.totalorder %s33, 0
    %p476 = por %p474, %p475
    %p477 = scmp.ne.s32.totalorder %s466, %s469
    %p478 = scmp.eq.s32.totalorder %s38, 3
    %p479 = por %p477, %p478
    %p480 = scmp.ne.s32.totalorder %s469, %s470
    %p481 = scmp.eq.s32.totalorder %s38, 0
    %p482 = por %p480, %p481
    %p483 = scmp.ne.s32.totalorder %s469, %s470
    %p484 = scmp.eq.s32.totalorder %s39, 3
    %p485 = por %p483, %p484
    %p487 = scmp.ne.s32.totalorder %s470, %s486
    %p488 = scmp.eq.s32.totalorder %s39, 0
    %p489 = por %p487, %p488
    %s490 = ssub.s32 %s41, %s48
    %p491 = scmp.eq.s32.totalorder %s490, 0
    %s493 = sadd.s32 %s492, 1
    %s494 = scalar_select %p491, %s492, %s493
    %p497 = pneg %p491
    %p498 = scmp.eq.s32.totalorder %s33, 3
    %p499 = por %p497, %p498
    %p500 = scmp.ne.s32.totalorder %s492, %s495
    %p501 = scmp.eq.s32.totalorder %s33, 0
    %p502 = por %p500, %p501
    %p503 = scmp.ne.s32.totalorder %s492, %s495
    %p504 = scmp.eq.s32.totalorder %s38, 3
    %p505 = por %p503, %p504
    %p506 = scmp.ne.s32.totalorder %s495, %s496
    %p507 = scmp.eq.s32.totalorder %s38, 0
    %p508 = por %p506, %p507
    %p509 = scmp.ne.s32.totalorder %s495, %s496
    %p510 = scmp.eq.s32.totalorder %s39, 3
    %p511 = por %p509, %p510
    %p513 = scmp.ne.s32.totalorder %s496, %s512
    %p514 = scmp.eq.s32.totalorder %s39, 0
    %p515 = por %p513, %p514
    %s516 = ssub.s32 %s41, %s48
    %p517 = scmp.eq.s32.totalorder %s516, 0
    %s519 = sadd.s32 %s518, 1
    %s520 = scalar_select %p517, %s518, %s519
    %p523 = pneg %p517
    %p524 = scmp.eq.s32.totalorder %s33, 3
    %p525 = por %p523, %p524
    %p526 = scmp.ne.s32.totalorder %s518, %s521
    %p527 = scmp.eq.s32.totalorder %s33, 0
    %p528 = por %p526, %p527
    %p529 = scmp.ne.s32.totalorder %s518, %s521
    %p530 = scmp.eq.s32.totalorder %s38, 3
    %p531 = por %p529, %p530
    %p532 = scmp.ne.s32.totalorder %s521, %s522
    %p533 = scmp.eq.s32.totalorder %s38, 0
    %p534 = por %p532, %p533
    %p535 = scmp.ne.s32.totalorder %s521, %s522
    %p536 = scmp.eq.s32.totalorder %s39, 3
    %p537 = por %p535, %p536
    %p539 = scmp.ne.s32.totalorder %s522, %s538
    %p540 = scmp.eq.s32.totalorder %s39, 0
    %p541 = por %p539, %p540
    %s542 = ssub.s32 %s41, %s48
    %p543 = scmp.eq.s32.totalorder %s542, 0
    %s545 = sadd.s32 %s544, 1
    %s546 = scalar_select %p543, %s544, %s545
    %p549 = pneg %p543
    %p550 = scmp.eq.s32.totalorder %s33, 3
    %p551 = por %p549, %p550
    %p552 = scmp.ne.s32.totalorder %s544, %s547
    %p553 = scmp.eq.s32.totalorder %s33, 0
    %p554 = por %p552, %p553
    %p555 = scmp.ne.s32.totalorder %s544, %s547
    %p556 = scmp.eq.s32.totalorder %s38, 3
    %p557 = por %p555, %p556
    %p558 = scmp.ne.s32.totalorder %s547, %s548
    %p559 = scmp.eq.s32.totalorder %s38, 0
    %p560 = por %p558, %p559
    %p561 = scmp.ne.s32.totalorder %s547, %s548
    %p562 = scmp.eq.s32.totalorder %s39, 3
    %p563 = por %p561, %p562
    %p565 = scmp.ne.s32.totalorder %s548, %s564
    %p566 = scmp.eq.s32.totalorder %s39, 0
    %p567 = por %p565, %p566
    %s568 = ssub.s32 %s41, %s48
    %p569 = scmp.eq.s32.totalorder %s568, 0
    %s571 = sadd.s32 %s570, 1
    %s572 = scalar_select %p569, %s570, %s571
    %p575 = pneg %p569
    %p576 = scmp.eq.s32.totalorder %s33, 3
    %p577 = por %p575, %p576
    %p578 = scmp.ne.s32.totalorder %s570, %s573
    %p579 = scmp.eq.s32.totalorder %s33, 0
    %p580 = por %p578, %p579
    %p581 = scmp.ne.s32.totalorder %s570, %s573
    %p582 = scmp.eq.s32.totalorder %s38, 3
    %p583 = por %p581, %p582
    %p584 = scmp.ne.s32.totalorder %s573, %s574
    %p585 = scmp.eq.s32.totalorder %s38, 0
    %p586 = por %p584, %p585
    %p587 = scmp.ne.s32.totalorder %s573, %s574
    %p588 = scmp.eq.s32.totalorder %s39, 3
    %p589 = por %p587, %p588
    %p591 = scmp.ne.s32.totalorder %s574, %s590
    %p592 = scmp.eq.s32.totalorder %s39, 0
    %p593 = por %p591, %p592
    %s594 = ssub.s32 %s41, %s48
    %p595 = scmp.eq.s32.totalorder %s594, 0
    %s597 = sadd.s32 %s596, 1
    %s598 = scalar_select %p595, %s596, %s597
    %p601 = pneg %p595
    %p602 = scmp.eq.s32.totalorder %s33, 3
    %p603 = por %p601, %p602
    %p604 = scmp.ne.s32.totalorder %s596, %s599
    %p605 = scmp.eq.s32.totalorder %s33, 0
    %p606 = por %p604, %p605
    %p607 = scmp.ne.s32.totalorder %s596, %s599
    %p608 = scmp.eq.s32.totalorder %s38, 3
    %p609 = por %p607, %p608
    %p610 = scmp.ne.s32.totalorder %s599, %s600
    %p611 = scmp.eq.s32.totalorder %s38, 0
    %p612 = por %p610, %p611
    %p613 = scmp.ne.s32.totalorder %s599, %s600
    %p614 = scmp.eq.s32.totalorder %s39, 3
    %p615 = por %p613, %p614
    %p617 = scmp.ne.s32.totalorder %s600, %s616
    %p618 = scmp.eq.s32.totalorder %s39, 0
    %p619 = por %p617, %p618
    %s620 = ssub.s32 %s41, %s48
    %p621 = scmp.eq.s32.totalorder %s620, 0
    %s623 = sadd.s32 %s622, 1
    %s624 = scalar_select %p621, %s622, %s623
    %p627 = pneg %p621
    %p628 = scmp.eq.s32.totalorder %s33, 3
    %p629 = por %p627, %p628
    %p630 = scmp.ne.s32.totalorder %s622, %s625
    %p631 = scmp.eq.s32.totalorder %s33, 0
    %p632 = por %p630, %p631
    %p633 = scmp.ne.s32.totalorder %s622, %s625
    %p634 = scmp.eq.s32.totalorder %s38, 3
    %p635 = por %p633, %p634
    %p636 = scmp.ne.s32.totalorder %s625, %s626
    %p637 = scmp.eq.s32.totalorder %s38, 0
    %p638 = por %p636, %p637
    %p639 = scmp.ne.s32.totalorder %s625, %s626
    %p640 = scmp.eq.s32.totalorder %s39, 3
    %p641 = por %p639, %p640
    %p643 = scmp.ne.s32.totalorder %s626, %s642
    %p644 = scmp.eq.s32.totalorder %s39, 0
    %p645 = por %p643, %p644
    %s647 = sadd.s32 %s646, 1
    %p650 = scmp.eq.s32.totalorder %s33, 3
    %p651 = scmp.ne.s32.totalorder %s646, %s648
    %p652 = scmp.eq.s32.totalorder %s33, 0
    %p653 = por %p651, %p652
    %p654 = scmp.ne.s32.totalorder %s646, %s648
    %p655 = scmp.eq.s32.totalorder %s38, 3
    %p656 = por %p654, %p655
    %p657 = scmp.ne.s32.totalorder %s648, %s649
    %p658 = scmp.eq.s32.totalorder %s38, 0
    %p659 = por %p657, %p658
    %p660 = scmp.ne.s32.totalorder %s648, %s649
    %p661 = scmp.eq.s32.totalorder %s39, 3
    %p662 = por %p660, %p661
    %p664 = scmp.ne.s32.totalorder %s649, %s663
    %p665 = scmp.eq.s32.totalorder %s39, 0
    %p666 = por %p664, %p665
    %s668 = sadd.s32 %s667, 1
    %p671 = scmp.eq.s32.totalorder %s33, 3
    %p672 = scmp.ne.s32.totalorder %s667, %s669
    %p673 = scmp.eq.s32.totalorder %s33, 0
    %p674 = por %p672, %p673
    %p675 = scmp.ne.s32.totalorder %s667, %s669
    %p676 = scmp.eq.s32.totalorder %s38, 3
    %p677 = por %p675, %p676
    %p678 = scmp.ne.s32.totalorder %s669, %s670
    %p679 = scmp.eq.s32.totalorder %s38, 0
    %p680 = por %p678, %p679
    %p681 = scmp.ne.s32.totalorder %s669, %s670
    %p682 = scmp.eq.s32.totalorder %s39, 3
    %p683 = por %p681, %p682
    %p685 = scmp.ne.s32.totalorder %s670, %s684
    %p686 = scmp.eq.s32.totalorder %s39, 0
    %p687 = por %p685, %p686
    %s689 = sadd.s32 %s688, 1
    %p692 = scmp.eq.s32.totalorder %s33, 3
    %p693 = scmp.ne.s32.totalorder %s688, %s690
    %p694 = scmp.eq.s32.totalorder %s33, 0
    %p695 = por %p693, %p694
    %p696 = scmp.ne.s32.totalorder %s688, %s690
    %p697 = scmp.eq.s32.totalorder %s38, 3
    %p698 = por %p696, %p697
    %p699 = scmp.ne.s32.totalorder %s690, %s691
    %p700 = scmp.eq.s32.totalorder %s38, 0
    %p701 = por %p699, %p700
    %p702 = scmp.ne.s32.totalorder %s690, %s691
    %p703 = scmp.eq.s32.totalorder %s39, 3
    %p704 = por %p702, %p703
    %p706 = scmp.ne.s32.totalorder %s691, %s705
    %p707 = scmp.eq.s32.totalorder %s39, 0
    %p708 = por %p706, %p707
    %s710 = sadd.s32 %s709, 1
    %p713 = scmp.eq.s32.totalorder %s33, 3
    %p714 = scmp.ne.s32.totalorder %s709, %s711
    %p715 = scmp.eq.s32.totalorder %s33, 0
    %p716 = por %p714, %p715
    %p717 = scmp.ne.s32.totalorder %s709, %s711
    %p718 = scmp.eq.s32.totalorder %s38, 3
    %p719 = por %p717, %p718
    %p720 = scmp.ne.s32.totalorder %s711, %s712
    %p721 = scmp.eq.s32.totalorder %s38, 0
    %p722 = por %p720, %p721
    %p723 = scmp.ne.s32.totalorder %s711, %s712
    %p724 = scmp.eq.s32.totalorder %s39, 3
    %p725 = por %p723, %p724
    %p727 = scmp.ne.s32.totalorder %s712, %s726
    %p728 = scmp.eq.s32.totalorder %s39, 0
    %p729 = por %p727, %p728
    %s730 = ssub.s32 %s40, %s52
    %p731 = scmp.eq.s32.totalorder %s730, 0
    %s733 = sadd.s32 %s732, 1
    %s734 = scalar_select %p731, %s732, %s733
    %p737 = pneg %p731
    %p738 = scmp.eq.s32.totalorder %s33, 3
    %p739 = por %p737, %p738
    %p740 = scmp.ne.s32.totalorder %s732, %s735
    %p741 = scmp.eq.s32.totalorder %s33, 0
    %p742 = por %p740, %p741
    %p743 = scmp.ne.s32.totalorder %s732, %s735
    %p744 = scmp.eq.s32.totalorder %s38, 3
    %p745 = por %p743, %p744
    %p746 = scmp.ne.s32.totalorder %s735, %s736
    %p747 = scmp.eq.s32.totalorder %s38, 0
    %p748 = por %p746, %p747
    %p749 = scmp.ne.s32.totalorder %s735, %s736
    %p750 = scmp.eq.s32.totalorder %s39, 3
    %p751 = por %p749, %p750
    %p753 = scmp.ne.s32.totalorder %s736, %s752
    %p754 = scmp.eq.s32.totalorder %s39, 0
    %p755 = por %p753, %p754
    %p756 = scmp.le.s32.totalorder 1, %s33
    %p757 = scmp.lt.s32.totalorder %s33, 5
    %p758 = pnand %p756, %p757
    %p759 = pneg %p758
    // Predicated region
    $region9: #{seq2seq_forward.3} parent=5 // pred_check
      _
    $region10: #{seq2seq_forward.3} parent=5 // pred_check_branch
      %761 = sbr.rel (%p758) target = $region12
    $region11: #{seq2seq_forward.3} parent=5 // pred_region
      %s762 = ssub.s32 %s33, 1
      // Predicated region
      $region13: #{seq2seq_forward.3} parent=11 // pred_check
        %p763 = pneg %p118
      $region14: #{seq2seq_forward.3} parent=11 // pred_check_branch
        %765 = sbr.rel (%p763) target = $region16
      $region15: #{seq2seq_forward.3} parent=11 // pred_region
        _
      $region16: #{seq2seq_forward.3} parent=11 // pred_fallthru
        _
      // Predicated region
      $region17: #{seq2seq_forward.3} parent=11 // pred_check
        %p766 = pneg %p659
      $region18: #{seq2seq_forward.3} parent=11 // pred_check_branch
        %768 = sbr.rel (%p766) target = $region20
      $region19: #{seq2seq_forward.3} parent=11 // pred_region
        _
      $region20: #{seq2seq_forward.3} parent=11 // pred_fallthru
        _
      // Predicated region
      $region21: #{seq2seq_forward.3} parent=11 // pred_check
        %p769 = pneg %p680
      $region22: #{seq2seq_forward.3} parent=11 // pred_check_branch
        %771 = sbr.rel (%p769) target = $region24
      $region23: #{seq2seq_forward.3} parent=11 // pred_region
        _
      $region24: #{seq2seq_forward.3} parent=11 // pred_fallthru
        _
      // Predicated region
      $region25: #{seq2seq_forward.3} parent=11 // pred_check
        %p772 = pneg %p701
      $region26: #{seq2seq_forward.3} parent=11 // pred_check_branch
        %774 = sbr.rel (%p772) target = $region28
      $region27: #{seq2seq_forward.3} parent=11 // pred_region
        _
      $region28: #{seq2seq_forward.3} parent=11 // pred_fallthru
        _
      // Predicated region
      $region29: #{seq2seq_forward.3} parent=11 // pred_check
        %p775 = pneg %p722
      $region30: #{seq2seq_forward.3} parent=11 // pred_check_branch
        %777 = sbr.rel (%p775) target = $region32
      $region31: #{seq2seq_forward.3} parent=11 // pred_region
        _
      $region32: #{seq2seq_forward.3} parent=11 // pred_fallthru
        _
    $region12: #{seq2seq_forward.3} parent=5 // pred_fallthru
      _
    %p778 = scmp.lt.s32.totalorder %s33, 4
    // Predicated region
    $region33: #{seq2seq_forward.3} parent=5 // pred_check
      %p779 = pneg %p778
    $region34: #{seq2seq_forward.3} parent=5 // pred_check_branch
      %781 = sbr.rel (%p779) target = $region36
    $region35: #{seq2seq_forward.3} parent=5 // pred_region
      // Predicated region
      $region37: #{seq2seq_forward.3} parent=35 // pred_check
        %p782 = pneg %p65
      $region38: #{seq2seq_forward.3} parent=35 // pred_check_branch
        %784 = sbr.rel (%p782) target = $region40
      $region39: #{seq2seq_forward.3} parent=35 // pred_region
        %p785 = scmp.lt.s32.totalorder %s40, 1
        %s786 = scalar_select %p785, %s40, 1
        %s787 = smul.addr %s786, 8
        %s788 = scalar_lea.vmem %s0, %s787
      $region40: #{seq2seq_forward.3} parent=35 // pred_fallthru
        _
      // Predicated region
      $region41: #{seq2seq_forward.3} parent=35 // pred_check
        %p789 = pneg %p91
      $region42: #{seq2seq_forward.3} parent=35 // pred_check_branch
        %791 = sbr.rel (%p789) target = $region44
      $region43: #{seq2seq_forward.3} parent=35 // pred_region
        %p792 = scmp.lt.s32.totalorder %s40, 1
        %s793 = scalar_select %p792, %s40, 1
        %s794 = smul.addr %s793, 8
        %s795 = scalar_lea.vmem %s1, %s794
      $region44: #{seq2seq_forward.3} parent=35 // pred_fallthru
        _
      // Predicated region
      $region45: #{seq2seq_forward.3} parent=35 // pred_check
        %p796 = pneg %p138
      $region46: #{seq2seq_forward.3} parent=35 // pred_check_branch
        %798 = sbr.rel (%p796) target = $region48
      $region47: #{seq2seq_forward.3} parent=35 // pred_region
        %p799 = scmp.lt.s32.totalorder %s40, 1
        %s800 = scalar_select %p799, %s40, 1
        %s801 = scalar_lea.vmem %s3, %s800
      $region48: #{seq2seq_forward.3} parent=35 // pred_fallthru
        _
      // Predicated region
      $region49: #{seq2seq_forward.3} parent=35 // pred_check
        %p802 = pneg %p164
      $region50: #{seq2seq_forward.3} parent=35 // pred_check_branch
        %804 = sbr.rel (%p802) target = $region52
      $region51: #{seq2seq_forward.3} parent=35 // pred_region
        %p805 = scmp.lt.s32.totalorder %s40, 1
        %s806 = scalar_select %p805, %s40, 1
        %s807 = scalar_lea.vmem %s4, %s806
      $region52: #{seq2seq_forward.3} parent=35 // pred_fallthru
        _
      // Predicated region
      $region53: #{seq2seq_forward.3} parent=35 // pred_check
        %p808 = pneg %p190
      $region54: #{seq2seq_forward.3} parent=35 // pred_check_branch
        %810 = sbr.rel (%p808) target = $region56
      $region55: #{seq2seq_forward.3} parent=35 // pred_region
        %p811 = scmp.lt.s32.totalorder %s41, 1
        %s812 = scalar_select %p811, %s41, 1
        %s813 = smul.addr %s812, 48
        %s814 = smul.addr %s813, 4
        %s815 = scalar_lea.vmem %s5, %s814
      $region56: #{seq2seq_forward.3} parent=35 // pred_fallthru
        _
      // Predicated region
      $region57: #{seq2seq_forward.3} parent=35 // pred_check
        %p816 = pneg %p216
      $region58: #{seq2seq_forward.3} parent=35 // pred_check_branch
        %818 = sbr.rel (%p816) target = $region60
      $region59: #{seq2seq_forward.3} parent=35 // pred_region
        %p819 = scmp.lt.s32.totalorder %s41, 1
        %s820 = scalar_select %p819, %s41, 1
        %s821 = smul.addr %s820, 12
        %s822 = scalar_lea.vmem %s6, %s821
      $region60: #{seq2seq_forward.3} parent=35 // pred_fallthru
        _
      // Predicated region
      $region61: #{seq2seq_forward.3} parent=35 // pred_check
        %p823 = pneg %p242
      $region62: #{seq2seq_forward.3} parent=35 // pred_check_branch
        %825 = sbr.rel (%p823) target = $region64
      $region63: #{seq2seq_forward.3} parent=35 // pred_region
        %p826 = scmp.lt.s32.totalorder %s41, 1
        %s827 = scalar_select %p826, %s41, 1
        %s828 = smul.addr %s827, 4
        %s829 = smul.addr %s828, 4
        %s830 = scalar_lea.vmem %s7, %s829
      $region64: #{seq2seq_forward.3} parent=35 // pred_fallthru
        _
      // Predicated region
      $region65: #{seq2seq_forward.3} parent=35 // pred_check
        %p831 = pneg %p268
      $region66: #{seq2seq_forward.3} parent=35 // pred_check_branch
        %833 = sbr.rel (%p831) target = $region68
      $region67: #{seq2seq_forward.3} parent=35 // pred_region
        %p834 = scmp.lt.s32.totalorder %s41, 1
        %s835 = scalar_select %p834, %s41, 1
        %s836 = scalar_lea.vmem %s8, %s835
      $region68: #{seq2seq_forward.3} parent=35 // pred_fallthru
        _
      // Predicated region
      $region69: #{seq2seq_forward.3} parent=35 // pred_check
        %p837 = pneg %p294
      $region70: #{seq2seq_forward.3} parent=35 // pred_check_branch
        %839 = sbr.rel (%p837) target = $region72
      $region71: #{seq2seq_forward.3} parent=35 // pred_region
        %p840 = scmp.lt.s32.totalorder %s41, 1
        %s841 = scalar_select %p840, %s41, 1
        %s842 = scalar_lea.vmem %s9, %s841
      $region72: #{seq2seq_forward.3} parent=35 // pred_fallthru
        _
      // Predicated region
      $region73: #{seq2seq_forward.3} parent=35 // pred_check
        %p843 = pneg %p320
      $region74: #{seq2seq_forward.3} parent=35 // pred_check_branch
        %845 = sbr.rel (%p843) target = $region76
      $region75: #{seq2seq_forward.3} parent=35 // pred_region
        %p846 = scmp.lt.s32.totalorder %s41, 1
        %s847 = scalar_select %p846, %s41, 1
        %s848 = scalar_lea.vmem %s10, %s847
      $region76: #{seq2seq_forward.3} parent=35 // pred_fallthru
        _
      // Predicated region
      $region77: #{seq2seq_forward.3} parent=35 // pred_check
        %p849 = pneg %p346
      $region78: #{seq2seq_forward.3} parent=35 // pred_check_branch
        %851 = sbr.rel (%p849) target = $region80
      $region79: #{seq2seq_forward.3} parent=35 // pred_region
        %p852 = scmp.lt.s32.totalorder %s41, 1
        %s853 = scalar_select %p852, %s41, 1
        %s854 = smul.addr %s853, 48
        %s855 = smul.addr %s854, 4
        %s856 = scalar_lea.vmem %s11, %s855
      $region80: #{seq2seq_forward.3} parent=35 // pred_fallthru
        _
      // Predicated region
      $region81: #{seq2seq_forward.3} parent=35 // pred_check
        %p857 = pneg %p372
      $region82: #{seq2seq_forward.3} parent=35 // pred_check_branch
        %859 = sbr.rel (%p857) target = $region84
      $region83: #{seq2seq_forward.3} parent=35 // pred_region
        %p860 = scmp.lt.s32.totalorder %s41, 1
        %s861 = scalar_select %p860, %s41, 1
        %s862 = smul.addr %s861, 12
        %s863 = scalar_lea.vmem %s12, %s862
      $region84: #{seq2seq_forward.3} parent=35 // pred_fallthru
        _
      // Predicated region
      $region85: #{seq2seq_forward.3} parent=35 // pred_check
        %p864 = pneg %p398
      $region86: #{seq2seq_forward.3} parent=35 // pred_check_branch
        %866 = sbr.rel (%p864) target = $region88
      $region87: #{seq2seq_forward.3} parent=35 // pred_region
        %p867 = scmp.lt.s32.totalorder %s41, 1
        %s868 = scalar_select %p867, %s41, 1
        %s869 = smul.addr %s868, 4
        %s870 = smul.addr %s869, 4
        %s871 = scalar_lea.vmem %s13, %s870
      $region88: #{seq2seq_forward.3} parent=35 // pred_fallthru
        _
      // Predicated region
      $region89: #{seq2seq_forward.3} parent=35 // pred_check
        %p872 = pneg %p424
      $region90: #{seq2seq_forward.3} parent=35 // pred_check_branch
        %874 = sbr.rel (%p872) target = $region92
      $region91: #{seq2seq_forward.3} parent=35 // pred_region
        %p875 = scmp.lt.s32.totalorder %s41, 1
        %s876 = scalar_select %p875, %s41, 1
        %s877 = scalar_lea.vmem %s14, %s876
      $region92: #{seq2seq_forward.3} parent=35 // pred_fallthru
        _
      // Predicated region
      $region93: #{seq2seq_forward.3} parent=35 // pred_check
        %p878 = pneg %p450
      $region94: #{seq2seq_forward.3} parent=35 // pred_check_branch
        %880 = sbr.rel (%p878) target = $region96
      $region95: #{seq2seq_forward.3} parent=35 // pred_region
        %p881 = scmp.lt.s32.totalorder %s41, 1
        %s882 = scalar_select %p881, %s41, 1
        %s883 = scalar_lea.vmem %s15, %s882
      $region96: #{seq2seq_forward.3} parent=35 // pred_fallthru
        _
      // Predicated region
      $region97: #{seq2seq_forward.3} parent=35 // pred_check
        %p884 = pneg %p476
      $region98: #{seq2seq_forward.3} parent=35 // pred_check_branch
        %886 = sbr.rel (%p884) target = $region100
      $region99: #{seq2seq_forward.3} parent=35 // pred_region
        %p887 = scmp.lt.s32.totalorder %s41, 1
        %s888 = scalar_select %p887, %s41, 1
        %s889 = scalar_lea.vmem %s16, %s888
      $region100: #{seq2seq_forward.3} parent=35 // pred_fallthru
        _
      // Predicated region
      $region101: #{seq2seq_forward.3} parent=35 // pred_check
        %p890 = pneg %p502
      $region102: #{seq2seq_forward.3} parent=35 // pred_check_branch
        %892 = sbr.rel (%p890) target = $region104
      $region103: #{seq2seq_forward.3} parent=35 // pred_region
        %p893 = scmp.lt.s32.totalorder %s41, 1
        %s894 = scalar_select %p893, %s41, 1
        %s895 = smul.addr %s894, 4
        %s896 = smul.addr %s895, 4
        %s897 = scalar_lea.vmem %s17, %s896
      $region104: #{seq2seq_forward.3} parent=35 // pred_fallthru
        _
      // Predicated region
      $region105: #{seq2seq_forward.3} parent=35 // pred_check
        %p898 = pneg %p528
      $region106: #{seq2seq_forward.3} parent=35 // pred_check_branch
        %900 = sbr.rel (%p898) target = $region108
      $region107: #{seq2seq_forward.3} parent=35 // pred_region
        %p901 = scmp.lt.s32.totalorder %s41, 1
        %s902 = scalar_select %p901, %s41, 1
        %s903 = scalar_lea.vmem %s18, %s902
      $region108: #{seq2seq_forward.3} parent=35 // pred_fallthru
        _
      // Predicated region
      $region109: #{seq2seq_forward.3} parent=35 // pred_check
        %p904 = pneg %p554
      $region110: #{seq2seq_forward.3} parent=35 // pred_check_branch
        %906 = sbr.rel (%p904) target = $region112
      $region111: #{seq2seq_forward.3} parent=35 // pred_region
        %p907 = scmp.lt.s32.totalorder %s41, 1
        %s908 = scalar_select %p907, %s41, 1
        %s909 = smul.addr %s908, 8
        %s910 = smul.addr %s909, 4
        %s911 = scalar_lea.vmem %s19, %s910
      $region112: #{seq2seq_forward.3} parent=35 // pred_fallthru
        _
      // Predicated region
      $region113: #{seq2seq_forward.3} parent=35 // pred_check
        %p912 = pneg %p580
      $region114: #{seq2seq_forward.3} parent=35 // pred_check_branch
        %914 = sbr.rel (%p912) target = $region116
      $region115: #{seq2seq_forward.3} parent=35 // pred_region
        %p915 = scmp.lt.s32.totalorder %s41, 1
        %s916 = scalar_select %p915, %s41, 1
        %s917 = scalar_lea.vmem %s20, %s916
      $region116: #{seq2seq_forward.3} parent=35 // pred_fallthru
        _
      // Predicated region
      $region117: #{seq2seq_forward.3} parent=35 // pred_check
        %p918 = pneg %p606
      $region118: #{seq2seq_forward.3} parent=35 // pred_check_branch
        %920 = sbr.rel (%p918) target = $region120
      $region119: #{seq2seq_forward.3} parent=35 // pred_region
        %p921 = scmp.lt.s32.totalorder %s41, 1
        %s922 = scalar_select %p921, %s41, 1
        %s923 = scalar_lea.vmem %s21, %s922
      $region120: #{seq2seq_forward.3} parent=35 // pred_fallthru
        _
      // Predicated region
      $region121: #{seq2seq_forward.3} parent=35 // pred_check
        %p924 = pneg %p632
      $region122: #{seq2seq_forward.3} parent=35 // pred_check_branch
        %926 = sbr.rel (%p924) target = $region124
      $region123: #{seq2seq_forward.3} parent=35 // pred_region
        %p927 = scmp.lt.s32.totalorder %s41, 1
        %s928 = scalar_select %p927, %s41, 1
        %s929 = scalar_lea.vmem %s22, %s928
      $region124: #{seq2seq_forward.3} parent=35 // pred_fallthru
        _
    $region36: #{seq2seq_forward.3} parent=5 // pred_fallthru
      _
    %p930 = scmp.le.s32.totalorder 1, %s33
    %p931 = scmp.lt.s32.totalorder %s33, 5
    %p932 = pnand %p930, %p931
    %p933 = pneg %p932
    // Predicated region
    $region125: #{seq2seq_forward.3} parent=5 // pred_check
      _
    $region126: #{seq2seq_forward.3} parent=5 // pred_check_branch
      %935 = sbr.rel (%p932) target = $region128
    $region127: #{seq2seq_forward.3} parent=5 // pred_region
      %s936 = ssub.s32 %s33, 1
      %p937 = scmp.lt.s32.totalorder %s42, 1
      %s938 = scalar_select %p937, %s42, 1
      %s939 = smul.addr %s938, 8
      %s940 = scalar_lea.vmem %s0, %s939
      %p941 = pneg %p71
      %p942 = pneg %p68
      %p943 = scmp.lt.s32.totalorder %s42, 1
      %s944 = scalar_select %p943, %s42, 1
      %s945 = smul.addr %s944, 8
      %s946 = scalar_lea.vmem %s1, %s945
      %p947 = pneg %p97
      %p948 = pneg %p94
      %p949 = pneg %p118
      %p950 = pneg %p115
      %p951 = scmp.lt.s32.totalorder %s42, 1
      %s952 = scalar_select %p951, %s42, 1
      %s953 = scalar_lea.vmem %s3, %s952
      %p954 = pneg %p144
      %p955 = pneg %p141
      %p956 = scmp.lt.s32.totalorder %s42, 1
      %s957 = scalar_select %p956, %s42, 1
      %s958 = scalar_lea.vmem %s4, %s957
      %p959 = pneg %p170
      %p960 = pneg %p167
      %p961 = scmp.lt.s32.totalorder %s43, 1
      %s962 = scalar_select %p961, %s43, 1
      %s963 = smul.addr %s962, 48
      %s964 = smul.addr %s963, 4
      %s965 = scalar_lea.vmem %s5, %s964
      %p966 = pneg %p196
      %p967 = pneg %p193
      %p968 = scmp.lt.s32.totalorder %s43, 1
      %s969 = scalar_select %p968, %s43, 1
      %s970 = smul.addr %s969, 12
      %s971 = scalar_lea.vmem %s6, %s970
      %p972 = pneg %p222
      %p973 = pneg %p219
      %p974 = scmp.lt.s32.totalorder %s43, 1
      %s975 = scalar_select %p974, %s43, 1
      %s976 = smul.addr %s975, 4
      %s977 = smul.addr %s976, 4
      %s978 = scalar_lea.vmem %s7, %s977
      %p979 = pneg %p248
      %p980 = pneg %p245
      %p981 = scmp.lt.s32.totalorder %s43, 1
      %s982 = scalar_select %p981, %s43, 1
      %s983 = scalar_lea.vmem %s8, %s982
      %p984 = pneg %p274
      %p985 = pneg %p271
      %p986 = scmp.lt.s32.totalorder %s43, 1
      %s987 = scalar_select %p986, %s43, 1
      %s988 = scalar_lea.vmem %s9, %s987
      %p989 = pneg %p300
      %p990 = pneg %p297
      %p991 = scmp.lt.s32.totalorder %s43, 1
      %s992 = scalar_select %p991, %s43, 1
      %s993 = scalar_lea.vmem %s10, %s992
      %p994 = pneg %p326
      %p995 = pneg %p323
      %p996 = scmp.lt.s32.totalorder %s43, 1
      %s997 = scalar_select %p996, %s43, 1
      %s998 = smul.addr %s997, 48
      %s999 = smul.addr %s998, 4
      %s1000 = scalar_lea.vmem %s11, %s999
      %p1001 = pneg %p352
      %p1002 = pneg %p349
      %p1003 = scmp.lt.s32.totalorder %s43, 1
      %s1004 = scalar_select %p1003, %s43, 1
      %s1005 = smul.addr %s1004, 12
      %s1006 = scalar_lea.vmem %s12, %s1005
      %p1007 = pneg %p378
      %p1008 = pneg %p375
      %p1009 = scmp.lt.s32.totalorder %s43, 1
      %s1010 = scalar_select %p1009, %s43, 1
      %s1011 = smul.addr %s1010, 4
      %s1012 = smul.addr %s1011, 4
      %s1013 = scalar_lea.vmem %s13, %s1012
      %p1014 = pneg %p404
      %p1015 = pneg %p401
      %p1016 = scmp.lt.s32.totalorder %s43, 1
      %s1017 = scalar_select %p1016, %s43, 1
      %s1018 = scalar_lea.vmem %s14, %s1017
      %p1019 = pneg %p430
      %p1020 = pneg %p427
      %p1021 = scmp.lt.s32.totalorder %s43, 1
      %s1022 = scalar_select %p1021, %s43, 1
      %s1023 = scalar_lea.vmem %s15, %s1022
      %p1024 = pneg %p456
      %p1025 = pneg %p453
      %p1026 = scmp.lt.s32.totalorder %s43, 1
      %s1027 = scalar_select %p1026, %s43, 1
      %s1028 = scalar_lea.vmem %s16, %s1027
      %p1029 = pneg %p482
      %p1030 = pneg %p479
      %p1031 = scmp.lt.s32.totalorder %s43, 1
      %s1032 = scalar_select %p1031, %s43, 1
      %s1033 = smul.addr %s1032, 4
      %s1034 = smul.addr %s1033, 4
      %s1035 = scalar_lea.vmem %s17, %s1034
      %p1036 = pneg %p508
      %p1037 = pneg %p505
      %p1038 = scmp.lt.s32.totalorder %s43, 1
      %s1039 = scalar_select %p1038, %s43, 1
      %s1040 = scalar_lea.vmem %s18, %s1039
      %p1041 = pneg %p534
      %p1042 = pneg %p531
      %p1043 = scmp.lt.s32.totalorder %s43, 1
      %s1044 = scalar_select %p1043, %s43, 1
      %s1045 = smul.addr %s1044, 8
      %s1046 = smul.addr %s1045, 4
      %s1047 = scalar_lea.vmem %s19, %s1046
      %p1048 = pneg %p560
      %p1049 = pneg %p557
      %p1050 = scmp.lt.s32.totalorder %s43, 1
      %s1051 = scalar_select %p1050, %s43, 1
      %s1052 = scalar_lea.vmem %s20, %s1051
      %p1053 = pneg %p586
      %p1054 = pneg %p583
      %p1055 = scmp.lt.s32.totalorder %s43, 1
      %s1056 = scalar_select %p1055, %s43, 1
      %s1057 = scalar_lea.vmem %s21, %s1056
      %p1058 = pneg %p612
      %p1059 = pneg %p609
      %p1060 = scmp.lt.s32.totalorder %s43, 1
      %s1061 = scalar_select %p1060, %s43, 1
      %s1062 = scalar_lea.vmem %s22, %s1061
      %p1063 = pneg %p638
      %p1064 = pneg %p635
      %p1065 = pneg %p659
      %p1066 = pneg %p656
      %p1067 = pneg %p680
      %p1068 = pneg %p677
      %p1069 = pneg %p701
      %p1070 = pneg %p698
      %p1071 = pneg %p722
      %p1072 = pneg %p719
      %p1073 = pneg %p748
      %p1074 = pneg %p745
      %p1075 = scmp.lt.s32.totalorder %s42, 1
      %s1076 = scalar_select %p1075, %s42, 1
      %s1077 = smul.addr %s1076, 8
      %s1078 = scalar_lea.vmem %s27, %s1077
      %p1079 = scmp.lt.s32.totalorder %s42, 1
      %s1080 = scalar_select %p1079, %s42, 1
      %s1081 = smul.addr %s1080, 8
      %s1082 = scalar_lea.vmem %s0, %s1081
      %p1083 = scmp.lt.s32.totalorder %s42, 1
      %s1084 = scalar_select %p1083, %s42, 1
      %s1085 = smul.addr %s1084, 8
      %s1086 = scalar_lea.vmem %s1, %s1085
      %p1087 = scmp.lt.s32.totalorder %s42, 1
      %s1088 = scalar_select %p1087, %s42, 1
      %s1089 = scalar_lea.vmem %s3, %s1088
      %p1090 = scmp.lt.s32.totalorder %s42, 1
      %s1091 = scalar_select %p1090, %s42, 1
      %s1092 = scalar_lea.vmem %s4, %s1091
      %p1093 = scmp.lt.s32.totalorder %s43, 1
      %s1094 = scalar_select %p1093, %s43, 1
      %s1095 = smul.addr %s1094, 48
      %s1096 = smul.addr %s1095, 4
      %s1097 = scalar_lea.vmem %s5, %s1096
      %p1098 = scmp.lt.s32.totalorder %s43, 1
      %s1099 = scalar_select %p1098, %s43, 1
      %s1100 = smul.addr %s1099, 12
      %s1101 = scalar_lea.vmem %s6, %s1100
      %p1102 = scmp.lt.s32.totalorder %s43, 1
      %s1103 = scalar_select %p1102, %s43, 1
      %s1104 = smul.addr %s1103, 4
      %s1105 = smul.addr %s1104, 4
      %s1106 = scalar_lea.vmem %s7, %s1105
      %p1107 = scmp.lt.s32.totalorder %s43, 1
      %s1108 = scalar_select %p1107, %s43, 1
      %s1109 = scalar_lea.vmem %s8, %s1108
      %p1110 = scmp.lt.s32.totalorder %s43, 1
      %s1111 = scalar_select %p1110, %s43, 1
      %s1112 = scalar_lea.vmem %s9, %s1111
      %p1113 = scmp.lt.s32.totalorder %s43, 1
      %s1114 = scalar_select %p1113, %s43, 1
      %s1115 = scalar_lea.vmem %s10, %s1114
      %p1116 = scmp.lt.s32.totalorder %s43, 1
      %s1117 = scalar_select %p1116, %s43, 1
      %s1118 = smul.addr %s1117, 48
      %s1119 = smul.addr %s1118, 4
      %s1120 = scalar_lea.vmem %s11, %s1119
      %p1121 = scmp.lt.s32.totalorder %s43, 1
      %s1122 = scalar_select %p1121, %s43, 1
      %s1123 = smul.addr %s1122, 12
      %s1124 = scalar_lea.vmem %s12, %s1123
      %p1125 = scmp.lt.s32.totalorder %s43, 1
      %s1126 = scalar_select %p1125, %s43, 1
      %s1127 = smul.addr %s1126, 4
      %s1128 = smul.addr %s1127, 4
      %s1129 = scalar_lea.vmem %s13, %s1128
      %p1130 = scmp.lt.s32.totalorder %s43, 1
      %s1131 = scalar_select %p1130, %s43, 1
      %s1132 = scalar_lea.vmem %s14, %s1131
      %p1133 = scmp.lt.s32.totalorder %s43, 1
      %s1134 = scalar_select %p1133, %s43, 1
      %s1135 = scalar_lea.vmem %s15, %s1134
      %p1136 = scmp.lt.s32.totalorder %s43, 1
      %s1137 = scalar_select %p1136, %s43, 1
      %s1138 = scalar_lea.vmem %s16, %s1137
      %p1139 = scmp.lt.s32.totalorder %s43, 1
      %s1140 = scalar_select %p1139, %s43, 1
      %s1141 = smul.addr %s1140, 4
      %s1142 = smul.addr %s1141, 4
      %s1143 = scalar_lea.vmem %s17, %s1142
      %p1144 = scmp.lt.s32.totalorder %s43, 1
      %s1145 = scalar_select %p1144, %s43, 1
      %s1146 = scalar_lea.vmem %s18, %s1145
      %p1147 = scmp.lt.s32.totalorder %s43, 1
      %s1148 = scalar_select %p1147, %s43, 1
      %s1149 = smul.addr %s1148, 8
      %s1150 = smul.addr %s1149, 4
      %s1151 = scalar_lea.vmem %s19, %s1150
      %p1152 = scmp.lt.s32.totalorder %s43, 1
      %s1153 = scalar_select %p1152, %s43, 1
      %s1154 = scalar_lea.vmem %s20, %s1153
      %p1155 = scmp.lt.s32.totalorder %s43, 1
      %s1156 = scalar_select %p1155, %s43, 1
      %s1157 = scalar_lea.vmem %s21, %s1156
      %p1158 = scmp.lt.s32.totalorder %s43, 1
      %s1159 = scalar_select %p1158, %s43, 1
      %s1160 = scalar_lea.vmem %s22, %s1159
      %p1161 = scmp.lt.s32.totalorder %s42, 1
      %s1162 = scalar_select %p1161, %s42, 1
      %s1163 = smul.addr %s1162, 8
      %s1164 = scalar_lea.vmem %s27, %s1163
      %p1166 = scmp.eq.s32.totalorder %s43, 0
      // Predicated region
      $region129: #{seq2seq_forward.3} parent=127 // pred_check
        %p1167 = pneg %p1166
      $region130: #{seq2seq_forward.3} parent=127 // pred_check_branch
        %1169 = sbr.rel (%p1167) target = $region132
      $region131: #{seq2seq_forward.3} parent=127 // pred_region
        %v1170 = vld [vmem:[%s1082] sm:$0xff]
        %vm1171 = vcmask 261120
        %1172 = vst.msk [vmem:[#allocation2] sm:$0xff] %vm1171, %v1170
      $region132: #{seq2seq_forward.3} parent=127 // pred_fallthru
        _
      %v1173 = vld [vmem:[#allocation2] sm:$0xff]
      %v1174 = vld [vmem:[%s1086] sm:$0xff]
      %v1175 = vld [vmem:[%s2] sm:$0xff]
      %v1176 = vld [vmem:[%s1089] sm:$0x1]
      %v1178 = vperm.slane %v1176, 0
      %v1180 = vadd.f32 %v1175, %v1178
      %v1181 = vld [vmem:[%s1092] sm:$0x1]
      %v1182 = vpack.c.bf16 %v1173, %v1173
      %v1183 = vld [vmem:[%s1097] sm:$0xf]
      %v1184 = vld [vmem:[%s1097 + $0x4] sm:$0xf]
      %v1185 = vld [vmem:[%s1097 + $0x8] sm:$0xf]
      %v1186 = vld [vmem:[%s1097 + $0xc] sm:$0xf]
      %v1187 = vld [vmem:[%s1101] sm:$0x1]
      %v1189 = vperm.slane %v1187, 0
      %v1195 = vunpack.c.l.b16 %v1183
      %v1196 = vunpack.c.l.b16 %v1184
      %v1197 = vunpack.c.l.b16 %v1185
      %v1198 = vunpack.c.l.b16 %v1186
      %v1199 = vpack.c.b16 %v1196, %v1195
      %v1200 = vpack.c.b16 %v1198, %v1197
      %vm1203 = vcmask 261120
      %v1205 = vsel %vm1203, %v1182, 0
      %1207 = vmatpush.bf16.msra.mxu0 0
      %1208 = vmatpush.bf16.msra.mxu0 0
      %1209 = vmatpush.bf16.msra.mxu0 0
      %1210 = vmatpush.bf16.msra.mxu0 0
      %1211 = vmatpush.bf16.msra.mxu0 0
      %1212 = vmatpush.bf16.msra.mxu0 0
      %1213 = vmatpush.bf16.msra.mxu0 %v1200
      %1214 = vmatpush.bf16.msra.mxu0 %v1199
      %1215 = vmatmul.bf16.gmra.mxu0 %v1205
      %v1216 = vpop.f32.mrf.mxu0
      %v1217 = vadd.f32 %v1189, %v1216
      %v1218 = vpop.f32.mrf.mxu0
      %1219 = vdwg.mxu0
      %s1220 = scalar_lea.vmem %s1097, 64
      %v1221 = vld [vmem:[%s1220] sm:$0xf]
      %v1222 = vld [vmem:[%s1220 + $0x4] sm:$0xf]
      %v1223 = vld [vmem:[%s1220 + $0x8] sm:$0xf]
      %v1224 = vld [vmem:[%s1220 + $0xc] sm:$0xf]
      %s1225 = scalar_lea.vmem %s1101, 4
      %v1226 = vld [vmem:[%s1225] sm:$0x1]
      %v1228 = vperm.slane %v1226, 0
      %v1234 = vunpack.c.l.b16 %v1221
      %v1235 = vunpack.c.l.b16 %v1222
      %v1236 = vunpack.c.l.b16 %v1223
      %v1237 = vunpack.c.l.b16 %v1224
      %v1238 = vpack.c.b16 %v1235, %v1234
      %v1239 = vpack.c.b16 %v1237, %v1236
      %1242 = vmatpush.bf16.msra.mxu0 0
      %1243 = vmatpush.bf16.msra.mxu0 0
      %1244 = vmatpush.bf16.msra.mxu0 0
      %1245 = vmatpush.bf16.msra.mxu0 0
      %1246 = vmatpush.bf16.msra.mxu0 0
      %1247 = vmatpush.bf16.msra.mxu0 0
      %1248 = vmatpush.bf16.msra.mxu0 %v1239
      %1249 = vmatpush.bf16.msra.mxu0 %v1238
      %1250 = vmatmul.bf16.gmra.mxu0 %v1205
      %v1251 = vpop.f32.mrf.mxu0
      %v1252 = vadd.f32 %v1228, %v1251
      %v1253 = vpop.f32.mrf.mxu0
      %1254 = vdwg.mxu0
      %s1255 = scalar_lea.vmem %s1097, 128
      %v1256 = vld [vmem:[%s1255] sm:$0xf]
      %v1257 = vld [vmem:[%s1255 + $0x4] sm:$0xf]
      %v1258 = vld [vmem:[%s1255 + $0x8] sm:$0xf]
      %v1259 = vld [vmem:[%s1255 + $0xc] sm:$0xf]
      %s1260 = scalar_lea.vmem %s1101, 8
      %v1261 = vld [vmem:[%s1260] sm:$0x1]
      %v1263 = vperm.slane %v1261, 0
      %v1269 = vunpack.c.l.b16 %v1256
      %v1270 = vunpack.c.l.b16 %v1257
      %v1271 = vunpack.c.l.b16 %v1258
      %v1272 = vunpack.c.l.b16 %v1259
      %v1273 = vpack.c.b16 %v1270, %v1269
      %v1274 = vpack.c.b16 %v1272, %v1271
      %1277 = vmatpush.bf16.msra.mxu0 0
      %1278 = vmatpush.bf16.msra.mxu0 0
      %1279 = vmatpush.bf16.msra.mxu0 0
      %1280 = vmatpush.bf16.msra.mxu0 0
      %1281 = vmatpush.bf16.msra.mxu0 0
      %1282 = vmatpush.bf16.msra.mxu0 0
      %1283 = vmatpush.bf16.msra.mxu0 %v1274
      %1284 = vmatpush.bf16.msra.mxu0 %v1273
      %1285 = vmatmul.bf16.gmra.mxu0 %v1205
      %v1286 = vpop.f32.mrf.mxu0
      %v1287 = vadd.f32 %v1263, %v1286
      %v1288 = vpop.f32.mrf.mxu0
      %1289 = vdwg.mxu0
      %vm1290 = vcmask 64512
      %v1292 = vsel %vm1290, %v1217, 0
      %v1295 = vsel %vm1290, %v1252, 0
      %1297 = vmatpush.xpose.msra.mxu0 0.0
      %1298 = vmatpush.xpose.msra.mxu0 0.0
      %1299 = vmatpush.xpose.msra.mxu0 0.0
      %1300 = vmatpush.xpose.msra.mxu0 0.0
      %1301 = vmatpush.xpose.msra.mxu0 0.0
      %1302 = vmatpush.xpose.msra.mxu0 0.0
      %1303 = vmatpush.xpose.msra.mxu0 0.0
      %1304 = vmatpush.xpose.msra.mxu0 0.0
      %1305 = vmatpush.xpose.msra.mxu0 0.0
      %1306 = vmatpush.xpose.msra.mxu0 0.0
      %1307 = vmatpush.xpose.msra.mxu0 0.0
      %1308 = vmatpush.xpose.msra.mxu0 0.0
      %1309 = vmatpush.xpose.msra.mxu0 0.0
      %1310 = vmatpush.xpose.msra.mxu0 0.0
      %1311 = vmatpush.xpose.msra.mxu0 0.0
      %1312 = vmatpush.xpose.msra.mxu0 %v1295
      %1313 = vmatmul.f32.gmra.mxu0 %v1292
      %v1314 = vpop.f32.mrf.mxu0
      %v1315 = vadd.f32 0.0, %v1314
      %1316 = vdwg.mxu0
      %v1317 = vmul.f32 %v1315, 0.35355338
      %v1318 = vadd.f32 %v1317, %v1180
      %v1319 = vsel %vm1290, %v1318, -inf
      %1320 = vmax.xlane.f32.xlu0 %v1319
      %v1321 = vpop.xlane.xlu0 %1320
      %v1322 = vsub.f32 %v1318, %v1321
      %v1323 = vmul.f32 %v1322, 1.442695
      %v1324 = vpow.pop %v1323
      %v1325 = vsel %vm1290, %v1324, 0.0
      %1326 = vadd.xlane.f32.xlu0 %v1325
      %v1327 = vpop.xlane.xlu0 %1326
      %v1328 = vrcp.pop %v1327
      %v1329 = vmul.f32 %v1324, %v1328
      %v1331 = vsel %vm1290, %v1329, 0
      %1333 = vmatpush.msra.mxu0 0.0
      %1334 = vmatpush.msra.mxu0 0.0
      %1335 = vmatpush.msra.mxu0 0.0
      %1336 = vmatpush.msra.mxu0 0.0
      %1337 = vmatpush.msra.mxu0 0.0
      %1338 = vmatpush.msra.mxu0 0.0
      %1339 = vmatpush.msra.mxu0 0.0
      %1340 = vmatpush.msra.mxu0 0.0
      %1341 = vmatpush.msra.mxu0 0.0
      %1342 = vmatpush.msra.mxu0 0.0
      %1343 = vmatpush.msra.mxu0 0.0
      %1344 = vmatpush.msra.mxu0 0.0
      %1345 = vmatpush.msra.mxu0 0.0
      %1346 = vmatpush.msra.mxu0 0.0
      %1347 = vmatpush.msra.mxu0 0.0
      %1348 = vmatpush.msra.mxu0 %v1287
      %1349 = vmatmul.f32.gmra.mxu0 %v1331
      %v1350 = vpop.f32.mrf.mxu0
      %v1351 = vadd.f32 0.0, %v1350
      %1352 = vdwg.mxu0
      %v1353 = vpack.c.bf16 %v1351, %v1351
      %v1354 = vld [vmem:[%s1106] sm:$0xf]
      %s1355 = scalar_lea.vmem %s1097, 16
      %v1356 = vld [vmem:[%s1355] sm:$0xf]
      %v1357 = vld [vmem:[%s1355 + $0x4] sm:$0xf]
      %v1358 = vld [vmem:[%s1355 + $0x8] sm:$0xf]
      %v1359 = vld [vmem:[%s1355 + $0xc] sm:$0xf]
      %s1360 = scalar_lea.vmem %s1101, 1
      %v1361 = vld [vmem:[%s1360] sm:$0x1]
      %v1363 = vperm.slane %v1361, 0
      %v1369 = vunpack.c.l.b16 %v1356
      %v1370 = vunpack.c.l.b16 %v1357
      %v1371 = vunpack.c.l.b16 %v1358
      %v1372 = vunpack.c.l.b16 %v1359
      %v1373 = vpack.c.b16 %v1370, %v1369
      %v1374 = vpack.c.b16 %v1372, %v1371
      %1377 = vmatpush.bf16.msra.mxu0 0
      %1378 = vmatpush.bf16.msra.mxu0 0
      %1379 = vmatpush.bf16.msra.mxu0 0
      %1380 = vmatpush.bf16.msra.mxu0 0
      %1381 = vmatpush.bf16.msra.mxu0 0
      %1382 = vmatpush.bf16.msra.mxu0 0
      %1383 = vmatpush.bf16.msra.mxu0 %v1374
      %1384 = vmatpush.bf16.msra.mxu0 %v1373
      %1385 = vmatmul.bf16.gmra.mxu0 %v1205
      %v1386 = vpop.f32.mrf.mxu0
      %v1387 = vadd.f32 %v1363, %v1386
      %v1388 = vpop.f32.mrf.mxu0
      %1389 = vdwg.mxu0
      %s1390 = scalar_lea.vmem %s1097, 80
      %v1391 = vld [vmem:[%s1390] sm:$0xf]
      %v1392 = vld [vmem:[%s1390 + $0x4] sm:$0xf]
      %v1393 = vld [vmem:[%s1390 + $0x8] sm:$0xf]
      %v1394 = vld [vmem:[%s1390 + $0xc] sm:$0xf]
      %s1395 = scalar_lea.vmem %s1101, 5
      %v1396 = vld [vmem:[%s1395] sm:$0x1]
      %v1398 = vperm.slane %v1396, 0
      %v1404 = vunpack.c.l.b16 %v1391
      %v1405 = vunpack.c.l.b16 %v1392
      %v1406 = vunpack.c.l.b16 %v1393
      %v1407 = vunpack.c.l.b16 %v1394
      %v1408 = vpack.c.b16 %v1405, %v1404
      %v1409 = vpack.c.b16 %v1407, %v1406
      %1412 = vmatpush.bf16.msra.mxu0 0
      %1413 = vmatpush.bf16.msra.mxu0 0
      %1414 = vmatpush.bf16.msra.mxu0 0
      %1415 = vmatpush.bf16.msra.mxu0 0
      %1416 = vmatpush.bf16.msra.mxu0 0
      %1417 = vmatpush.bf16.msra.mxu0 0
      %1418 = vmatpush.bf16.msra.mxu0 %v1409
      %1419 = vmatpush.bf16.msra.mxu0 %v1408
      %1420 = vmatmul.bf16.gmra.mxu0 %v1205
      %v1421 = vpop.f32.mrf.mxu0
      %v1422 = vadd.f32 %v1398, %v1421
      %v1423 = vpop.f32.mrf.mxu0
      %1424 = vdwg.mxu0
      %s1425 = scalar_lea.vmem %s1097, 144
      %v1426 = vld [vmem:[%s1425] sm:$0xf]
      %v1427 = vld [vmem:[%s1425 + $0x4] sm:$0xf]
      %v1428 = vld [vmem:[%s1425 + $0x8] sm:$0xf]
      %v1429 = vld [vmem:[%s1425 + $0xc] sm:$0xf]
      %s1430 = scalar_lea.vmem %s1101, 9
      %v1431 = vld [vmem:[%s1430] sm:$0x1]
      %v1433 = vperm.slane %v1431, 0
      %v1439 = vunpack.c.l.b16 %v1426
      %v1440 = vunpack.c.l.b16 %v1427
      %v1441 = vunpack.c.l.b16 %v1428
      %v1442 = vunpack.c.l.b16 %v1429
      %v1443 = vpack.c.b16 %v1440, %v1439
      %v1444 = vpack.c.b16 %v1442, %v1441
      %1447 = vmatpush.bf16.msra.mxu0 0
      %1448 = vmatpush.bf16.msra.mxu0 0
      %1449 = vmatpush.bf16.msra.mxu0 0
      %1450 = vmatpush.bf16.msra.mxu0 0
      %1451 = vmatpush.bf16.msra.mxu0 0
      %1452 = vmatpush.bf16.msra.mxu0 0
      %1453 = vmatpush.bf16.msra.mxu0 %v1444
      %1454 = vmatpush.bf16.msra.mxu0 %v1443
      %1455 = vmatmul.bf16.gmra.mxu0 %v1205
      %v1456 = vpop.f32.mrf.mxu0
      %v1457 = vadd.f32 %v1433, %v1456
      %v1458 = vpop.f32.mrf.mxu0
      %1459 = vdwg.mxu0
      %v1461 = vsel %vm1290, %v1387, 0
      %v1464 = vsel %vm1290, %v1422, 0
      %1466 = vmatpush.xpose.msra.mxu0 0.0
      %1467 = vmatpush.xpose.msra.mxu0 0.0
      %1468 = vmatpush.xpose.msra.mxu0 0.0
      %1469 = vmatpush.xpose.msra.mxu0 0.0
      %1470 = vmatpush.xpose.msra.mxu0 0.0
      %1471 = vmatpush.xpose.msra.mxu0 0.0
      %1472 = vmatpush.xpose.msra.mxu0 0.0
      %1473 = vmatpush.xpose.msra.mxu0 0.0
      %1474 = vmatpush.xpose.msra.mxu0 0.0
      %1475 = vmatpush.xpose.msra.mxu0 0.0
      %1476 = vmatpush.xpose.msra.mxu0 0.0
      %1477 = vmatpush.xpose.msra.mxu0 0.0
      %1478 = vmatpush.xpose.msra.mxu0 0.0
      %1479 = vmatpush.xpose.msra.mxu0 0.0
      %1480 = vmatpush.xpose.msra.mxu0 0.0
      %1481 = vmatpush.xpose.msra.mxu0 %v1464
      %1482 = vmatmul.f32.gmra.mxu0 %v1461
      %v1483 = vpop.f32.mrf.mxu0
      %v1484 = vadd.f32 0.0, %v1483
      %1485 = vdwg.mxu0
      %v1486 = vmul.f32 %v1484, 0.35355338
      %v1487 = vadd.f32 %v1486, %v1180
      %v1488 = vsel %vm1290, %v1487, -inf
      %1489 = vmax.xlane.f32.xlu0 %v1488
      %v1490 = vpop.xlane.xlu0 %1489
      %v1491 = vsub.f32 %v1487, %v1490
      %v1492 = vmul.f32 %v1491, 1.442695
      %v1493 = vpow.pop %v1492
      %v1494 = vsel %vm1290, %v1493, 0.0
      %1495 = vadd.xlane.f32.xlu0 %v1494
      %v1496 = vpop.xlane.xlu0 %1495
      %v1497 = vrcp.pop %v1496
      %v1498 = vmul.f32 %v1493, %v1497
      %v1500 = vsel %vm1290, %v1498, 0
      %1502 = vmatpush.msra.mxu0 0.0
      %1503 = vmatpush.msra.mxu0 0.0
      %1504 = vmatpush.msra.mxu0 0.0
      %1505 = vmatpush.msra.mxu0 0.0
      %1506 = vmatpush.msra.mxu0 0.0
      %1507 = vmatpush.msra.mxu0 0.0
      %1508 = vmatpush.msra.mxu0 0.0
      %1509 = vmatpush.msra.mxu0 0.0
      %1510 = vmatpush.msra.mxu0 0.0
      %1511 = vmatpush.msra.mxu0 0.0
      %1512 = vmatpush.msra.mxu0 0.0
      %1513 = vmatpush.msra.mxu0 0.0
      %1514 = vmatpush.msra.mxu0 0.0
      %1515 = vmatpush.msra.mxu0 0.0
      %1516 = vmatpush.msra.mxu0 0.0
      %1517 = vmatpush.msra.mxu0 %v1457
      %1518 = vmatmul.f32.gmra.mxu0 %v1500
      %v1519 = vpop.f32.mrf.mxu0
      %v1520 = vadd.f32 0.0, %v1519
      %1521 = vdwg.mxu0
      %v1522 = vpack.c.bf16 %v1520, %v1520
      %s1523 = scalar_lea.vmem %s1106, 4
      %v1524 = vld [vmem:[%s1523] sm:$0xf]
      %v1526 = vsel %vm1290, %v1522, 0
      %vm1528 = vcmask 1043456
      %v1530 = vsel %vm1528, %v1524, 0
      %1532 = vmatpush.bf16.msra.mxu0 0
      %1533 = vmatpush.bf16.msra.mxu0 0
      %1534 = vmatpush.bf16.msra.mxu0 0
      %1535 = vmatpush.bf16.msra.mxu0 0
      %1536 = vmatpush.bf16.msra.mxu0 0
      %1537 = vmatpush.bf16.msra.mxu0 0
      %1538 = vmatpush.bf16.msra.mxu0 0
      %1539 = vmatpush.bf16.msra.mxu0 %v1530
      %1540 = vmatmul.bf16.gmra.mxu0 %v1526
      %v1541 = vpop.f32.mrf.mxu0
      %v1542 = vadd.f32 0.0, %v1541
      %v1543 = vpop.f32.mrf.mxu0
      %1544 = vdwg.mxu0
      %v1546 = vsel %vm1290, %v1353, 0
      %v1549 = vsel %vm1528, %v1354, 0
      %1551 = vmatpush.bf16.msra.mxu0 0
      %1552 = vmatpush.bf16.msra.mxu0 0
      %1553 = vmatpush.bf16.msra.mxu0 0
      %1554 = vmatpush.bf16.msra.mxu0 0
      %1555 = vmatpush.bf16.msra.mxu0 0
      %1556 = vmatpush.bf16.msra.mxu0 0
      %1557 = vmatpush.bf16.msra.mxu0 0
      %1558 = vmatpush.bf16.msra.mxu0 %v1549
      %1559 = vmatmul.bf16.gmra.mxu0 %v1546
      %v1560 = vpop.f32.mrf.mxu0
      %v1561 = vadd.f32 %v1542, %v1560
      %v1562 = vpop.f32.mrf.mxu0
      %1563 = vdwg.mxu0
      %s1564 = scalar_lea.vmem %s1097, 32
      %v1565 = vld [vmem:[%s1564] sm:$0xf]
      %v1566 = vld [vmem:[%s1564 + $0x4] sm:$0xf]
      %v1567 = vld [vmem:[%s1564 + $0x8] sm:$0xf]
      %v1568 = vld [vmem:[%s1564 + $0xc] sm:$0xf]
      %s1569 = scalar_lea.vmem %s1101, 2
      %v1570 = vld [vmem:[%s1569] sm:$0x1]
      %v1572 = vperm.slane %v1570, 0
      %v1578 = vunpack.c.l.b16 %v1565
      %v1579 = vunpack.c.l.b16 %v1566
      %v1580 = vunpack.c.l.b16 %v1567
      %v1581 = vunpack.c.l.b16 %v1568
      %v1582 = vpack.c.b16 %v1579, %v1578
      %v1583 = vpack.c.b16 %v1581, %v1580
      %1586 = vmatpush.bf16.msra.mxu0 0
      %1587 = vmatpush.bf16.msra.mxu0 0
      %1588 = vmatpush.bf16.msra.mxu0 0
      %1589 = vmatpush.bf16.msra.mxu0 0
      %1590 = vmatpush.bf16.msra.mxu0 0
      %1591 = vmatpush.bf16.msra.mxu0 0
      %1592 = vmatpush.bf16.msra.mxu0 %v1583
      %1593 = vmatpush.bf16.msra.mxu0 %v1582
      %1594 = vmatmul.bf16.gmra.mxu0 %v1205
      %v1595 = vpop.f32.mrf.mxu0
      %v1596 = vadd.f32 %v1572, %v1595
      %v1597 = vpop.f32.mrf.mxu0
      %1598 = vdwg.mxu0
      %s1599 = scalar_lea.vmem %s1097, 96
      %v1600 = vld [vmem:[%s1599] sm:$0xf]
      %v1601 = vld [vmem:[%s1599 + $0x4] sm:$0xf]
      %v1602 = vld [vmem:[%s1599 + $0x8] sm:$0xf]
      %v1603 = vld [vmem:[%s1599 + $0xc] sm:$0xf]
      %s1604 = scalar_lea.vmem %s1101, 6
      %v1605 = vld [vmem:[%s1604] sm:$0x1]
      %v1607 = vperm.slane %v1605, 0
      %v1613 = vunpack.c.l.b16 %v1600
      %v1614 = vunpack.c.l.b16 %v1601
      %v1615 = vunpack.c.l.b16 %v1602
      %v1616 = vunpack.c.l.b16 %v1603
      %v1617 = vpack.c.b16 %v1614, %v1613
      %v1618 = vpack.c.b16 %v1616, %v1615
      %1621 = vmatpush.bf16.msra.mxu0 0
      %1622 = vmatpush.bf16.msra.mxu0 0
      %1623 = vmatpush.bf16.msra.mxu0 0
      %1624 = vmatpush.bf16.msra.mxu0 0
      %1625 = vmatpush.bf16.msra.mxu0 0
      %1626 = vmatpush.bf16.msra.mxu0 0
      %1627 = vmatpush.bf16.msra.mxu0 %v1618
      %1628 = vmatpush.bf16.msra.mxu0 %v1617
      %1629 = vmatmul.bf16.gmra.mxu0 %v1205
      %v1630 = vpop.f32.mrf.mxu0
      %v1631 = vadd.f32 %v1607, %v1630
      %v1632 = vpop.f32.mrf.mxu0
      %1633 = vdwg.mxu0
      %s1634 = scalar_lea.vmem %s1097, 160
      %v1635 = vld [vmem:[%s1634] sm:$0xf]
      %v1636 = vld [vmem:[%s1634 + $0x4] sm:$0xf]
      %v1637 = vld [vmem:[%s1634 + $0x8] sm:$0xf]
      %v1638 = vld [vmem:[%s1634 + $0xc] sm:$0xf]
      %s1639 = scalar_lea.vmem %s1101, 10
      %v1640 = vld [vmem:[%s1639] sm:$0x1]
      %v1642 = vperm.slane %v1640, 0
      %v1648 = vunpack.c.l.b16 %v1635
      %v1649 = vunpack.c.l.b16 %v1636
      %v1650 = vunpack.c.l.b16 %v1637
      %v1651 = vunpack.c.l.b16 %v1638
      %v1652 = vpack.c.b16 %v1649, %v1648
      %v1653 = vpack.c.b16 %v1651, %v1650
      %1656 = vmatpush.bf16.msra.mxu0 0
      %1657 = vmatpush.bf16.msra.mxu0 0
      %1658 = vmatpush.bf16.msra.mxu0 0
      %1659 = vmatpush.bf16.msra.mxu0 0
      %1660 = vmatpush.bf16.msra.mxu0 0
      %1661 = vmatpush.bf16.msra.mxu0 0
      %1662 = vmatpush.bf16.msra.mxu0 %v1653
      %1663 = vmatpush.bf16.msra.mxu0 %v1652
      %1664 = vmatmul.bf16.gmra.mxu0 %v1205
      %v1665 = vpop.f32.mrf.mxu0
      %v1666 = vadd.f32 %v1642, %v1665
      %v1667 = vpop.f32.mrf.mxu0
      %1668 = vdwg.mxu0
      %v1670 = vsel %vm1290, %v1596, 0
      %v1673 = vsel %vm1290, %v1631, 0
      %1675 = vmatpush.xpose.msra.mxu0 0.0
      %1676 = vmatpush.xpose.msra.mxu0 0.0
      %1677 = vmatpush.xpose.msra.mxu0 0.0
      %1678 = vmatpush.xpose.msra.mxu0 0.0
      %1679 = vmatpush.xpose.msra.mxu0 0.0
      %1680 = vmatpush.xpose.msra.mxu0 0.0
      %1681 = vmatpush.xpose.msra.mxu0 0.0
      %1682 = vmatpush.xpose.msra.mxu0 0.0
      %1683 = vmatpush.xpose.msra.mxu0 0.0
      %1684 = vmatpush.xpose.msra.mxu0 0.0
      %1685 = vmatpush.xpose.msra.mxu0 0.0
      %1686 = vmatpush.xpose.msra.mxu0 0.0
      %1687 = vmatpush.xpose.msra.mxu0 0.0
      %1688 = vmatpush.xpose.msra.mxu0 0.0
      %1689 = vmatpush.xpose.msra.mxu0 0.0
      %1690 = vmatpush.xpose.msra.mxu0 %v1673
      %1691 = vmatmul.f32.gmra.mxu0 %v1670
      %v1692 = vpop.f32.mrf.mxu0
      %v1693 = vadd.f32 0.0, %v1692
      %1694 = vdwg.mxu0
      %v1695 = vmul.f32 %v1693, 0.35355338
      %v1696 = vadd.f32 %v1695, %v1180
      %v1697 = vsel %vm1290, %v1696, -inf
      %1698 = vmax.xlane.f32.xlu0 %v1697
      %v1699 = vpop.xlane.xlu0 %1698
      %v1700 = vsub.f32 %v1696, %v1699
      %v1701 = vmul.f32 %v1700, 1.442695
      %v1702 = vpow.pop %v1701
      %v1703 = vsel %vm1290, %v1702, 0.0
      %1704 = vadd.xlane.f32.xlu0 %v1703
      %v1705 = vpop.xlane.xlu0 %1704
      %v1706 = vrcp.pop %v1705
      %v1707 = vmul.f32 %v1702, %v1706
      %v1709 = vsel %vm1290, %v1707, 0
      %1711 = vmatpush.msra.mxu0 0.0
      %1712 = vmatpush.msra.mxu0 0.0
      %1713 = vmatpush.msra.mxu0 0.0
      %1714 = vmatpush.msra.mxu0 0.0
      %1715 = vmatpush.msra.mxu0 0.0
      %1716 = vmatpush.msra.mxu0 0.0
      %1717 = vmatpush.msra.mxu0 0.0
      %1718 = vmatpush.msra.mxu0 0.0
      %1719 = vmatpush.msra.mxu0 0.0
      %1720 = vmatpush.msra.mxu0 0.0
      %1721 = vmatpush.msra.mxu0 0.0
      %1722 = vmatpush.msra.mxu0 0.0
      %1723 = vmatpush.msra.mxu0 0.0
      %1724 = vmatpush.msra.mxu0 0.0
      %1725 = vmatpush.msra.mxu0 0.0
      %1726 = vmatpush.msra.mxu0 %v1666
      %1727 = vmatmul.f32.gmra.mxu0 %v1709
      %v1728 = vpop.f32.mrf.mxu0
      %v1729 = vadd.f32 0.0, %v1728
      %1730 = vdwg.mxu0
      %v1731 = vpack.c.bf16 %v1729, %v1729
      %s1732 = scalar_lea.vmem %s1106, 8
      %v1733 = vld [vmem:[%s1732] sm:$0xf]
      %v1735 = vsel %vm1290, %v1731, 0
      %v1738 = vsel %vm1528, %v1733, 0
      %1740 = vmatpush.bf16.msra.mxu0 0
      %1741 = vmatpush.bf16.msra.mxu0 0
      %1742 = vmatpush.bf16.msra.mxu0 0
      %1743 = vmatpush.bf16.msra.mxu0 0
      %1744 = vmatpush.bf16.msra.mxu0 0
      %1745 = vmatpush.bf16.msra.mxu0 0
      %1746 = vmatpush.bf16.msra.mxu0 0
      %1747 = vmatpush.bf16.msra.mxu0 %v1738
      %1748 = vmatmul.bf16.gmra.mxu0 %v1735
      %v1749 = vpop.f32.mrf.mxu0
      %v1750 = vadd.f32 0.0, %v1749
      %v1751 = vpop.f32.mrf.mxu0
      %1752 = vdwg.mxu0
      %v1753 = vadd.f32 %v1561, %v1750
      %s1754 = scalar_lea.vmem %s1097, 48
      %v1755 = vld [vmem:[%s1754] sm:$0xf]
      %v1756 = vld [vmem:[%s1754 + $0x4] sm:$0xf]
      %v1757 = vld [vmem:[%s1754 + $0x8] sm:$0xf]
      %v1758 = vld [vmem:[%s1754 + $0xc] sm:$0xf]
      %s1759 = scalar_lea.vmem %s1101, 3
      %v1760 = vld [vmem:[%s1759] sm:$0x1]
      %v1762 = vperm.slane %v1760, 0
      %v1768 = vunpack.c.l.b16 %v1755
      %v1769 = vunpack.c.l.b16 %v1756
      %v1770 = vunpack.c.l.b16 %v1757
      %v1771 = vunpack.c.l.b16 %v1758
      %v1772 = vpack.c.b16 %v1769, %v1768
      %v1773 = vpack.c.b16 %v1771, %v1770
      %1776 = vmatpush.bf16.msra.mxu0 0
      %1777 = vmatpush.bf16.msra.mxu0 0
      %1778 = vmatpush.bf16.msra.mxu0 0
      %1779 = vmatpush.bf16.msra.mxu0 0
      %1780 = vmatpush.bf16.msra.mxu0 0
      %1781 = vmatpush.bf16.msra.mxu0 0
      %1782 = vmatpush.bf16.msra.mxu0 %v1773
      %1783 = vmatpush.bf16.msra.mxu0 %v1772
      %1784 = vmatmul.bf16.gmra.mxu0 %v1205
      %v1785 = vpop.f32.mrf.mxu0
      %v1786 = vadd.f32 %v1762, %v1785
      %v1787 = vpop.f32.mrf.mxu0
      %1788 = vdwg.mxu0
      %s1789 = scalar_lea.vmem %s1097, 112
      %v1790 = vld [vmem:[%s1789] sm:$0xf]
      %v1791 = vld [vmem:[%s1789 + $0x4] sm:$0xf]
      %v1792 = vld [vmem:[%s1789 + $0x8] sm:$0xf]
      %v1793 = vld [vmem:[%s1789 + $0xc] sm:$0xf]
      %s1794 = scalar_lea.vmem %s1101, 7
      %v1795 = vld [vmem:[%s1794] sm:$0x1]
      %v1797 = vperm.slane %v1795, 0
      %v1803 = vunpack.c.l.b16 %v1790
      %v1804 = vunpack.c.l.b16 %v1791
      %v1805 = vunpack.c.l.b16 %v1792
      %v1806 = vunpack.c.l.b16 %v1793
      %v1807 = vpack.c.b16 %v1804, %v1803
      %v1808 = vpack.c.b16 %v1806, %v1805
      %1811 = vmatpush.bf16.msra.mxu0 0
      %1812 = vmatpush.bf16.msra.mxu0 0
      %1813 = vmatpush.bf16.msra.mxu0 0
      %1814 = vmatpush.bf16.msra.mxu0 0
      %1815 = vmatpush.bf16.msra.mxu0 0
      %1816 = vmatpush.bf16.msra.mxu0 0
      %1817 = vmatpush.bf16.msra.mxu0 %v1808
      %1818 = vmatpush.bf16.msra.mxu0 %v1807
      %1819 = vmatmul.bf16.gmra.mxu0 %v1205
      %v1820 = vpop.f32.mrf.mxu0
      %v1821 = vadd.f32 %v1797, %v1820
      %v1822 = vpop.f32.mrf.mxu0
      %1823 = vdwg.mxu0
      %s1824 = scalar_lea.vmem %s1097, 176
      %v1825 = vld [vmem:[%s1824] sm:$0xf]
      %v1826 = vld [vmem:[%s1824 + $0x4] sm:$0xf]
      %v1827 = vld [vmem:[%s1824 + $0x8] sm:$0xf]
      %v1828 = vld [vmem:[%s1824 + $0xc] sm:$0xf]
      %s1829 = scalar_lea.vmem %s1101, 11
      %v1830 = vld [vmem:[%s1829] sm:$0x1]
      %v1832 = vperm.slane %v1830, 0
      %v1838 = vunpack.c.l.b16 %v1825
      %v1839 = vunpack.c.l.b16 %v1826
      %v1840 = vunpack.c.l.b16 %v1827
      %v1841 = vunpack.c.l.b16 %v1828
      %v1842 = vpack.c.b16 %v1839, %v1838
      %v1843 = vpack.c.b16 %v1841, %v1840
      %1846 = vmatpush.bf16.msra.mxu0 0
      %1847 = vmatpush.bf16.msra.mxu0 0
      %1848 = vmatpush.bf16.msra.mxu0 0
      %1849 = vmatpush.bf16.msra.mxu0 0
      %1850 = vmatpush.bf16.msra.mxu0 0
      %1851 = vmatpush.bf16.msra.mxu0 0
      %1852 = vmatpush.bf16.msra.mxu0 %v1843
      %1853 = vmatpush.bf16.msra.mxu0 %v1842
      %1854 = vmatmul.bf16.gmra.mxu0 %v1205
      %v1855 = vpop.f32.mrf.mxu0
      %v1856 = vadd.f32 %v1832, %v1855
      %v1857 = vpop.f32.mrf.mxu0
      %1858 = vdwg.mxu0
      %v1860 = vsel %vm1290, %v1786, 0
      %v1863 = vsel %vm1290, %v1821, 0
      %1865 = vmatpush.xpose.msra.mxu0 0.0
      %1866 = vmatpush.xpose.msra.mxu0 0.0
      %1867 = vmatpush.xpose.msra.mxu0 0.0
      %1868 = vmatpush.xpose.msra.mxu0 0.0
      %1869 = vmatpush.xpose.msra.mxu0 0.0
      %1870 = vmatpush.xpose.msra.mxu0 0.0
      %1871 = vmatpush.xpose.msra.mxu0 0.0
      %1872 = vmatpush.xpose.msra.mxu0 0.0
      %1873 = vmatpush.xpose.msra.mxu0 0.0
      %1874 = vmatpush.xpose.msra.mxu0 0.0
      %1875 = vmatpush.xpose.msra.mxu0 0.0
      %1876 = vmatpush.xpose.msra.mxu0 0.0
      %1877 = vmatpush.xpose.msra.mxu0 0.0
      %1878 = vmatpush.xpose.msra.mxu0 0.0
      %1879 = vmatpush.xpose.msra.mxu0 0.0
      %1880 = vmatpush.xpose.msra.mxu0 %v1863
      %1881 = vmatmul.f32.gmra.mxu0 %v1860
      %v1882 = vpop.f32.mrf.mxu0
      %v1883 = vadd.f32 0.0, %v1882
      %1884 = vdwg.mxu0
      %v1885 = vmul.f32 %v1883, 0.35355338
      %v1886 = vadd.f32 %v1885, %v1180
      %v1887 = vsel %vm1290, %v1886, -inf
      %1888 = vmax.xlane.f32.xlu0 %v1887
      %v1889 = vpop.xlane.xlu0 %1888
      %v1890 = vsub.f32 %v1886, %v1889
      %v1891 = vmul.f32 %v1890, 1.442695
      %v1892 = vpow.pop %v1891
      %v1893 = vsel %vm1290, %v1892, 0.0
      %1894 = vadd.xlane.f32.xlu0 %v1893
      %v1895 = vpop.xlane.xlu0 %1894
      %v1896 = vrcp.pop %v1895
      %v1897 = vmul.f32 %v1892, %v1896
      %v1899 = vsel %vm1290, %v1897, 0
      %1901 = vmatpush.msra.mxu0 0.0
      %1902 = vmatpush.msra.mxu0 0.0
      %1903 = vmatpush.msra.mxu0 0.0
      %1904 = vmatpush.msra.mxu0 0.0
      %1905 = vmatpush.msra.mxu0 0.0
      %1906 = vmatpush.msra.mxu0 0.0
      %1907 = vmatpush.msra.mxu0 0.0
      %1908 = vmatpush.msra.mxu0 0.0
      %1909 = vmatpush.msra.mxu0 0.0
      %1910 = vmatpush.msra.mxu0 0.0
      %1911 = vmatpush.msra.mxu0 0.0
      %1912 = vmatpush.msra.mxu0 0.0
      %1913 = vmatpush.msra.mxu0 0.0
      %1914 = vmatpush.msra.mxu0 0.0
      %1915 = vmatpush.msra.mxu0 0.0
      %1916 = vmatpush.msra.mxu0 %v1856
      %1917 = vmatmul.f32.gmra.mxu0 %v1899
      %v1918 = vpop.f32.mrf.mxu0
      %v1919 = vadd.f32 0.0, %v1918
      %1920 = vdwg.mxu0
      %v1921 = vpack.c.bf16 %v1919, %v1919
      %s1922 = scalar_lea.vmem %s1106, 12
      %v1923 = vld [vmem:[%s1922] sm:$0xf]
      %v1925 = vsel %vm1290, %v1921, 0
      %v1928 = vsel %vm1528, %v1923, 0
      %1930 = vmatpush.bf16.msra.mxu0 0
      %1931 = vmatpush.bf16.msra.mxu0 0
      %1932 = vmatpush.bf16.msra.mxu0 0
      %1933 = vmatpush.bf16.msra.mxu0 0
      %1934 = vmatpush.bf16.msra.mxu0 0
      %1935 = vmatpush.bf16.msra.mxu0 0
      %1936 = vmatpush.bf16.msra.mxu0 0
      %1937 = vmatpush.bf16.msra.mxu0 %v1928
      %1938 = vmatmul.bf16.gmra.mxu0 %v1925
      %v1939 = vpop.f32.mrf.mxu0
      %v1940 = vadd.f32 0.0, %v1939
      %v1941 = vpop.f32.mrf.mxu0
      %1942 = vdwg.mxu0
      %v1943 = vadd.f32 %v1753, %v1940
      %v1944 = vld [vmem:[%s1109] sm:$0x1]
      %v1946 = vperm.slane %v1944, 0
      %v1948 = vadd.f32 %v1943, %v1946
      %v1949 = vadd.f32 %v1173, %v1948
      %v1950 = vld [vmem:[%s1112] sm:$0x1]
      %v1951 = vld [vmem:[%s1115] sm:$0x1]
      %v1952 = vsel %vm1203, %v1949, 0.0
      %1953 = vadd.xlane.f32.xlu0 %v1952
      %v1954 = vpop.xlane.xlu0 %1953
      %v1955 = vrcp.pop 32.0
      %v1956 = vmul.f32 32.0, %v1955
      %v1957 = vsub.f32 1.0, %v1956
      %v1958 = vmul.f32 %v1955, %v1957
      %v1959 = vadd.f32 %v1955, %v1958
      %vm1960 = vweird.f32 %v1955
      %v1961 = vsel %vm1960, %v1955, %v1959
      %v1962 = vmul.f32 %v1954, %v1961
      %v1963 = vsub.f32 %v1949, %v1962
      %v1964 = vmul.f32 %v1963, %v1963
      %v1965 = vsel %vm1203, %v1964, 0.0
      %1966 = vadd.xlane.f32.xlu0 %v1965
      %v1967 = vpop.xlane.xlu0 %1966
      %v1968 = vmul.f32 %v1967, %v1961
      %v1969 = vadd.f32 %v1968, 1e-05
      %v1970 = vrsqrt.pop %v1969
      %v1971 = vmul.f32 %v1970, %v1969
      %v1972 = vmul.f32 %v1971, %v1970
      %v1973 = vmul.f32 0.5, %v1972
      %v1974 = vsub.f32 1.5, %v1973
      %v1975 = vmul.f32 %v1970, %v1974
      %vm1976 = vweird.f32 %v1969
      %vm1977 = vweird.f32 %v1970
      %vm1978 = vmor %vm1976, %vm1977
      %v1979 = vsel %vm1978, %v1970, %v1975
      %v1980 = vmul.f32 %v1963, %v1979
      %v1982 = vperm.slane %v1950, 0
      %v1984 = vmul.f32 %v1980, %v1982
      %v1986 = vperm.slane %v1951, 0
      %v1988 = vadd.f32 %v1984, %v1986
      %v1989 = vpack.c.bf16 %v1988, %v1988
      %v1990 = vpack.c.bf16 %v1174, %v1174
      %v1991 = vld [vmem:[%s1120] sm:$0xf]
      %v1992 = vld [vmem:[%s1120 + $0x4] sm:$0xf]
      %v1993 = vld [vmem:[%s1120 + $0x8] sm:$0xf]
      %v1994 = vld [vmem:[%s1120 + $0xc] sm:$0xf]
      %v1995 = vld [vmem:[%s1124] sm:$0x1]
      %v1997 = vperm.slane %v1995, 0
      %v2003 = vunpack.c.l.b16 %v1991
      %v2004 = vunpack.c.l.b16 %v1992
      %v2005 = vunpack.c.l.b16 %v1993
      %v2006 = vunpack.c.l.b16 %v1994
      %v2007 = vpack.c.b16 %v2004, %v2003
      %v2008 = vpack.c.b16 %v2006, %v2005
      %v2012 = vsel %vm1203, %v1989, 0
      %2014 = vmatpush.bf16.msra.mxu0 0
      %2015 = vmatpush.bf16.msra.mxu0 0
      %2016 = vmatpush.bf16.msra.mxu0 0
      %2017 = vmatpush.bf16.msra.mxu0 0
      %2018 = vmatpush.bf16.msra.mxu0 0
      %2019 = vmatpush.bf16.msra.mxu0 0
      %2020 = vmatpush.bf16.msra.mxu0 %v2008
      %2021 = vmatpush.bf16.msra.mxu0 %v2007
      %2022 = vmatmul.bf16.gmra.mxu0 %v2012
      %v2023 = vpop.f32.mrf.mxu0
      %v2024 = vadd.f32 %v1997, %v2023
      %v2025 = vpop.f32.mrf.mxu0
      %2026 = vdwg.mxu0
      %s2027 = scalar_lea.vmem %s1120, 64
      %v2028 = vld [vmem:[%s2027] sm:$0xf]
      %v2029 = vld [vmem:[%s2027 + $0x4] sm:$0xf]
      %v2030 = vld [vmem:[%s2027 + $0x8] sm:$0xf]
      %v2031 = vld [vmem:[%s2027 + $0xc] sm:$0xf]
      %s2032 = scalar_lea.vmem %s1124, 4
      %v2033 = vld [vmem:[%s2032] sm:$0x1]
      %v2035 = vperm.slane %v2033, 0
      %v2041 = vunpack.c.l.b16 %v2028
      %v2042 = vunpack.c.l.b16 %v2029
      %v2043 = vunpack.c.l.b16 %v2030
      %v2044 = vunpack.c.l.b16 %v2031
      %v2045 = vpack.c.b16 %v2042, %v2041
      %v2046 = vpack.c.b16 %v2044, %v2043
      %v2050 = vsel %vm1203, %v1990, 0
      %2052 = vmatpush.bf16.msra.mxu0 0
      %2053 = vmatpush.bf16.msra.mxu0 0
      %2054 = vmatpush.bf16.msra.mxu0 0
      %2055 = vmatpush.bf16.msra.mxu0 0
      %2056 = vmatpush.bf16.msra.mxu0 0
      %2057 = vmatpush.bf16.msra.mxu0 0
      %2058 = vmatpush.bf16.msra.mxu0 %v2046
      %2059 = vmatpush.bf16.msra.mxu0 %v2045
      %2060 = vmatmul.bf16.gmra.mxu0 %v2050
      %v2061 = vpop.f32.mrf.mxu0
      %v2062 = vadd.f32 %v2035, %v2061
      %v2063 = vpop.f32.mrf.mxu0
      %2064 = vdwg.mxu0
      %s2065 = scalar_lea.vmem %s1120, 128
      %v2066 = vld [vmem:[%s2065] sm:$0xf]
      %v2067 = vld [vmem:[%s2065 + $0x4] sm:$0xf]
      %v2068 = vld [vmem:[%s2065 + $0x8] sm:$0xf]
      %v2069 = vld [vmem:[%s2065 + $0xc] sm:$0xf]
      %s2070 = scalar_lea.vmem %s1124, 8
      %v2071 = vld [vmem:[%s2070] sm:$0x1]
      %v2073 = vperm.slane %v2071, 0
      %v2079 = vunpack.c.l.b16 %v2066
      %v2080 = vunpack.c.l.b16 %v2067
      %v2081 = vunpack.c.l.b16 %v2068
      %v2082 = vunpack.c.l.b16 %v2069
      %v2083 = vpack.c.b16 %v2080, %v2079
      %v2084 = vpack.c.b16 %v2082, %v2081
      %2087 = vmatpush.bf16.msra.mxu0 0
      %2088 = vmatpush.bf16.msra.mxu0 0
      %2089 = vmatpush.bf16.msra.mxu0 0
      %2090 = vmatpush.bf16.msra.mxu0 0
      %2091 = vmatpush.bf16.msra.mxu0 0
      %2092 = vmatpush.bf16.msra.mxu0 0
      %2093 = vmatpush.bf16.msra.mxu0 %v2084
      %2094 = vmatpush.bf16.msra.mxu0 %v2083
      %2095 = vmatmul.bf16.gmra.mxu0 %v2050
      %v2096 = vpop.f32.mrf.mxu0
      %v2097 = vadd.f32 %v2073, %v2096
      %v2098 = vpop.f32.mrf.mxu0
      %2099 = vdwg.mxu0
      %v2101 = vsel %vm1290, %v2024, 0
      %v2104 = vsel %vm1290, %v2062, 0
      %2106 = vmatpush.xpose.msra.mxu0 0.0
      %2107 = vmatpush.xpose.msra.mxu0 0.0
      %2108 = vmatpush.xpose.msra.mxu0 0.0
      %2109 = vmatpush.xpose.msra.mxu0 0.0
      %2110 = vmatpush.xpose.msra.mxu0 0.0
      %2111 = vmatpush.xpose.msra.mxu0 0.0
      %2112 = vmatpush.xpose.msra.mxu0 0.0
      %2113 = vmatpush.xpose.msra.mxu0 0.0
      %2114 = vmatpush.xpose.msra.mxu0 0.0
      %2115 = vmatpush.xpose.msra.mxu0 0.0
      %2116 = vmatpush.xpose.msra.mxu0 0.0
      %2117 = vmatpush.xpose.msra.mxu0 0.0
      %2118 = vmatpush.xpose.msra.mxu0 0.0
      %2119 = vmatpush.xpose.msra.mxu0 0.0
      %2120 = vmatpush.xpose.msra.mxu0 0.0
      %2121 = vmatpush.xpose.msra.mxu0 %v2104
      %2122 = vmatmul.f32.gmra.mxu0 %v2101
      %v2123 = vpop.f32.mrf.mxu0
      %v2124 = vadd.f32 0.0, %v2123
      %2125 = vdwg.mxu0
      %v2126 = vmul.f32 %v2124, 0.35355338
      %v2128 = vperm.slane %v1181, 0
      %v2130 = vadd.f32 %v2126, %v2128
      %v2131 = vsel %vm1290, %v2130, -inf
      %2132 = vmax.xlane.f32.xlu0 %v2131
      %v2133 = vpop.xlane.xlu0 %2132
      %v2134 = vsub.f32 %v2130, %v2133
      %v2135 = vmul.f32 %v2134, 1.442695
      %v2136 = vpow.pop %v2135
      %v2137 = vsel %vm1290, %v2136, 0.0
      %2138 = vadd.xlane.f32.xlu0 %v2137
      %v2139 = vpop.xlane.xlu0 %2138
      %v2140 = vrcp.pop %v2139
      %v2141 = vmul.f32 %v2136, %v2140
      %v2143 = vsel %vm1290, %v2141, 0
      %2145 = vmatpush.msra.mxu0 0.0
      %2146 = vmatpush.msra.mxu0 0.0
      %2147 = vmatpush.msra.mxu0 0.0
      %2148 = vmatpush.msra.mxu0 0.0
      %2149 = vmatpush.msra.mxu0 0.0
      %2150 = vmatpush.msra.mxu0 0.0
      %2151 = vmatpush.msra.mxu0 0.0
      %2152 = vmatpush.msra.mxu0 0.0
      %2153 = vmatpush.msra.mxu0 0.0
      %2154 = vmatpush.msra.mxu0 0.0
      %2155 = vmatpush.msra.mxu0 0.0
      %2156 = vmatpush.msra.mxu0 0.0
      %2157 = vmatpush.msra.mxu0 0.0
      %2158 = vmatpush.msra.mxu0 0.0
      %2159 = vmatpush.msra.mxu0 0.0
      %2160 = vmatpush.msra.mxu0 %v2097
      %2161 = vmatmul.f32.gmra.mxu0 %v2143
      %v2162 = vpop.f32.mrf.mxu0
      %v2163 = vadd.f32 0.0, %v2162
      %2164 = vdwg.mxu0
      %v2165 = vpack.c.bf16 %v2163, %v2163
      %v2166 = vld [vmem:[%s1129] sm:$0xf]
      %s2167 = scalar_lea.vmem %s1120, 16
      %v2168 = vld [vmem:[%s2167] sm:$0xf]
      %v2169 = vld [vmem:[%s2167 + $0x4] sm:$0xf]
      %v2170 = vld [vmem:[%s2167 + $0x8] sm:$0xf]
      %v2171 = vld [vmem:[%s2167 + $0xc] sm:$0xf]
      %s2172 = scalar_lea.vmem %s1124, 1
      %v2173 = vld [vmem:[%s2172] sm:$0x1]
      %v2175 = vperm.slane %v2173, 0
      %v2181 = vunpack.c.l.b16 %v2168
      %v2182 = vunpack.c.l.b16 %v2169
      %v2183 = vunpack.c.l.b16 %v2170
      %v2184 = vunpack.c.l.b16 %v2171
      %v2185 = vpack.c.b16 %v2182, %v2181
      %v2186 = vpack.c.b16 %v2184, %v2183
      %2189 = vmatpush.bf16.msra.mxu0 0
      %2190 = vmatpush.bf16.msra.mxu0 0
      %2191 = vmatpush.bf16.msra.mxu0 0
      %2192 = vmatpush.bf16.msra.mxu0 0
      %2193 = vmatpush.bf16.msra.mxu0 0
      %2194 = vmatpush.bf16.msra.mxu0 0
      %2195 = vmatpush.bf16.msra.mxu0 %v2186
      %2196 = vmatpush.bf16.msra.mxu0 %v2185
      %2197 = vmatmul.bf16.gmra.mxu0 %v2012
      %v2198 = vpop.f32.mrf.mxu0
      %v2199 = vadd.f32 %v2175, %v2198
      %v2200 = vpop.f32.mrf.mxu0
      %2201 = vdwg.mxu0
      %s2202 = scalar_lea.vmem %s1120, 80
      %v2203 = vld [vmem:[%s2202] sm:$0xf]
      %v2204 = vld [vmem:[%s2202 + $0x4] sm:$0xf]
      %v2205 = vld [vmem:[%s2202 + $0x8] sm:$0xf]
      %v2206 = vld [vmem:[%s2202 + $0xc] sm:$0xf]
      %s2207 = scalar_lea.vmem %s1124, 5
      %v2208 = vld [vmem:[%s2207] sm:$0x1]
      %v2210 = vperm.slane %v2208, 0
      %v2216 = vunpack.c.l.b16 %v2203
      %v2217 = vunpack.c.l.b16 %v2204
      %v2218 = vunpack.c.l.b16 %v2205
      %v2219 = vunpack.c.l.b16 %v2206
      %v2220 = vpack.c.b16 %v2217, %v2216
      %v2221 = vpack.c.b16 %v2219, %v2218
      %2224 = vmatpush.bf16.msra.mxu0 0
      %2225 = vmatpush.bf16.msra.mxu0 0
      %2226 = vmatpush.bf16.msra.mxu0 0
      %2227 = vmatpush.bf16.msra.mxu0 0
      %2228 = vmatpush.bf16.msra.mxu0 0
      %2229 = vmatpush.bf16.msra.mxu0 0
      %2230 = vmatpush.bf16.msra.mxu0 %v2221
      %2231 = vmatpush.bf16.msra.mxu0 %v2220
      %2232 = vmatmul.bf16.gmra.mxu0 %v2050
      %v2233 = vpop.f32.mrf.mxu0
      %v2234 = vadd.f32 %v2210, %v2233
      %v2235 = vpop.f32.mrf.mxu0
      %2236 = vdwg.mxu0
      %s2237 = scalar_lea.vmem %s1120, 144
      %v2238 = vld [vmem:[%s2237] sm:$0xf]
      %v2239 = vld [vmem:[%s2237 + $0x4] sm:$0xf]
      %v2240 = vld [vmem:[%s2237 + $0x8] sm:$0xf]
      %v2241 = vld [vmem:[%s2237 + $0xc] sm:$0xf]
      %s2242 = scalar_lea.vmem %s1124, 9
      %v2243 = vld [vmem:[%s2242] sm:$0x1]
      %v2245 = vperm.slane %v2243, 0
      %v2251 = vunpack.c.l.b16 %v2238
      %v2252 = vunpack.c.l.b16 %v2239
      %v2253 = vunpack.c.l.b16 %v2240
      %v2254 = vunpack.c.l.b16 %v2241
      %v2255 = vpack.c.b16 %v2252, %v2251
      %v2256 = vpack.c.b16 %v2254, %v2253
      %2259 = vmatpush.bf16.msra.mxu0 0
      %2260 = vmatpush.bf16.msra.mxu0 0
      %2261 = vmatpush.bf16.msra.mxu0 0
      %2262 = vmatpush.bf16.msra.mxu0 0
      %2263 = vmatpush.bf16.msra.mxu0 0
      %2264 = vmatpush.bf16.msra.mxu0 0
      %2265 = vmatpush.bf16.msra.mxu0 %v2256
      %2266 = vmatpush.bf16.msra.mxu0 %v2255
      %2267 = vmatmul.bf16.gmra.mxu0 %v2050
      %v2268 = vpop.f32.mrf.mxu0
      %v2269 = vadd.f32 %v2245, %v2268
      %v2270 = vpop.f32.mrf.mxu0
      %2271 = vdwg.mxu0
      %v2273 = vsel %vm1290, %v2199, 0
      %v2276 = vsel %vm1290, %v2234, 0
      %2278 = vmatpush.xpose.msra.mxu0 0.0
      %2279 = vmatpush.xpose.msra.mxu0 0.0
      %2280 = vmatpush.xpose.msra.mxu0 0.0
      %2281 = vmatpush.xpose.msra.mxu0 0.0
      %2282 = vmatpush.xpose.msra.mxu0 0.0
      %2283 = vmatpush.xpose.msra.mxu0 0.0
      %2284 = vmatpush.xpose.msra.mxu0 0.0
      %2285 = vmatpush.xpose.msra.mxu0 0.0
      %2286 = vmatpush.xpose.msra.mxu0 0.0
      %2287 = vmatpush.xpose.msra.mxu0 0.0
      %2288 = vmatpush.xpose.msra.mxu0 0.0
      %2289 = vmatpush.xpose.msra.mxu0 0.0
      %2290 = vmatpush.xpose.msra.mxu0 0.0
      %2291 = vmatpush.xpose.msra.mxu0 0.0
      %2292 = vmatpush.xpose.msra.mxu0 0.0
      %2293 = vmatpush.xpose.msra.mxu0 %v2276
      %2294 = vmatmul.f32.gmra.mxu0 %v2273
      %v2295 = vpop.f32.mrf.mxu0
      %v2296 = vadd.f32 0.0, %v2295
      %2297 = vdwg.mxu0
      %v2298 = vmul.f32 %v2296, 0.35355338
      %v2299 = vadd.f32 %v2298, %v2128
      %v2300 = vsel %vm1290, %v2299, -inf
      %2301 = vmax.xlane.f32.xlu0 %v2300
      %v2302 = vpop.xlane.xlu0 %2301
      %v2303 = vsub.f32 %v2299, %v2302
      %v2304 = vmul.f32 %v2303, 1.442695
      %v2305 = vpow.pop %v2304
      %v2306 = vsel %vm1290, %v2305, 0.0
      %2307 = vadd.xlane.f32.xlu0 %v2306
      %v2308 = vpop.xlane.xlu0 %2307
      %v2309 = vrcp.pop %v2308
      %v2310 = vmul.f32 %v2305, %v2309
      %v2312 = vsel %vm1290, %v2310, 0
      %2314 = vmatpush.msra.mxu0 0.0
      %2315 = vmatpush.msra.mxu0 0.0
      %2316 = vmatpush.msra.mxu0 0.0
      %2317 = vmatpush.msra.mxu0 0.0
      %2318 = vmatpush.msra.mxu0 0.0
      %2319 = vmatpush.msra.mxu0 0.0
      %2320 = vmatpush.msra.mxu0 0.0
      %2321 = vmatpush.msra.mxu0 0.0
      %2322 = vmatpush.msra.mxu0 0.0
      %2323 = vmatpush.msra.mxu0 0.0
      %2324 = vmatpush.msra.mxu0 0.0
      %2325 = vmatpush.msra.mxu0 0.0
      %2326 = vmatpush.msra.mxu0 0.0
      %2327 = vmatpush.msra.mxu0 0.0
      %2328 = vmatpush.msra.mxu0 0.0
      %2329 = vmatpush.msra.mxu0 %v2269
      %2330 = vmatmul.f32.gmra.mxu0 %v2312
      %v2331 = vpop.f32.mrf.mxu0
      %v2332 = vadd.f32 0.0, %v2331
      %2333 = vdwg.mxu0
      %v2334 = vpack.c.bf16 %v2332, %v2332
      %s2335 = scalar_lea.vmem %s1129, 4
      %v2336 = vld [vmem:[%s2335] sm:$0xf]
      %v2338 = vsel %vm1290, %v2334, 0
      %v2341 = vsel %vm1528, %v2336, 0
      %2343 = vmatpush.bf16.msra.mxu0 0
      %2344 = vmatpush.bf16.msra.mxu0 0
      %2345 = vmatpush.bf16.msra.mxu0 0
      %2346 = vmatpush.bf16.msra.mxu0 0
      %2347 = vmatpush.bf16.msra.mxu0 0
      %2348 = vmatpush.bf16.msra.mxu0 0
      %2349 = vmatpush.bf16.msra.mxu0 0
      %2350 = vmatpush.bf16.msra.mxu0 %v2341
      %2351 = vmatmul.bf16.gmra.mxu0 %v2338
      %v2352 = vpop.f32.mrf.mxu0
      %v2353 = vadd.f32 0.0, %v2352
      %v2354 = vpop.f32.mrf.mxu0
      %2355 = vdwg.mxu0
      %v2357 = vsel %vm1290, %v2165, 0
      %v2360 = vsel %vm1528, %v2166, 0
      %2362 = vmatpush.bf16.msra.mxu0 0
      %2363 = vmatpush.bf16.msra.mxu0 0
      %2364 = vmatpush.bf16.msra.mxu0 0
      %2365 = vmatpush.bf16.msra.mxu0 0
      %2366 = vmatpush.bf16.msra.mxu0 0
      %2367 = vmatpush.bf16.msra.mxu0 0
      %2368 = vmatpush.bf16.msra.mxu0 0
      %2369 = vmatpush.bf16.msra.mxu0 %v2360
      %2370 = vmatmul.bf16.gmra.mxu0 %v2357
      %v2371 = vpop.f32.mrf.mxu0
      %v2372 = vadd.f32 %v2353, %v2371
      %v2373 = vpop.f32.mrf.mxu0
      %2374 = vdwg.mxu0
      %s2375 = scalar_lea.vmem %s1120, 32
      %v2376 = vld [vmem:[%s2375] sm:$0xf]
      %v2377 = vld [vmem:[%s2375 + $0x4] sm:$0xf]
      %v2378 = vld [vmem:[%s2375 + $0x8] sm:$0xf]
      %v2379 = vld [vmem:[%s2375 + $0xc] sm:$0xf]
      %s2380 = scalar_lea.vmem %s1124, 2
      %v2381 = vld [vmem:[%s2380] sm:$0x1]
      %v2383 = vperm.slane %v2381, 0
      %v2389 = vunpack.c.l.b16 %v2376
      %v2390 = vunpack.c.l.b16 %v2377
      %v2391 = vunpack.c.l.b16 %v2378
      %v2392 = vunpack.c.l.b16 %v2379
      %v2393 = vpack.c.b16 %v2390, %v2389
      %v2394 = vpack.c.b16 %v2392, %v2391
      %2397 = vmatpush.bf16.msra.mxu0 0
      %2398 = vmatpush.bf16.msra.mxu0 0
      %2399 = vmatpush.bf16.msra.mxu0 0
      %2400 = vmatpush.bf16.msra.mxu0 0
      %2401 = vmatpush.bf16.msra.mxu0 0
      %2402 = vmatpush.bf16.msra.mxu0 0
      %2403 = vmatpush.bf16.msra.mxu0 %v2394
      %2404 = vmatpush.bf16.msra.mxu0 %v2393
      %2405 = vmatmul.bf16.gmra.mxu0 %v2012
      %v2406 = vpop.f32.mrf.mxu0
      %v2407 = vadd.f32 %v2383, %v2406
      %v2408 = vpop.f32.mrf.mxu0
      %2409 = vdwg.mxu0
      %s2410 = scalar_lea.vmem %s1120, 96
      %v2411 = vld [vmem:[%s2410] sm:$0xf]
      %v2412 = vld [vmem:[%s2410 + $0x4] sm:$0xf]
      %v2413 = vld [vmem:[%s2410 + $0x8] sm:$0xf]
      %v2414 = vld [vmem:[%s2410 + $0xc] sm:$0xf]
      %s2415 = scalar_lea.vmem %s1124, 6
      %v2416 = vld [vmem:[%s2415] sm:$0x1]
      %v2418 = vperm.slane %v2416, 0
      %v2424 = vunpack.c.l.b16 %v2411
      %v2425 = vunpack.c.l.b16 %v2412
      %v2426 = vunpack.c.l.b16 %v2413
      %v2427 = vunpack.c.l.b16 %v2414
      %v2428 = vpack.c.b16 %v2425, %v2424
      %v2429 = vpack.c.b16 %v2427, %v2426
      %2432 = vmatpush.bf16.msra.mxu0 0
      %2433 = vmatpush.bf16.msra.mxu0 0
      %2434 = vmatpush.bf16.msra.mxu0 0
      %2435 = vmatpush.bf16.msra.mxu0 0
      %2436 = vmatpush.bf16.msra.mxu0 0
      %2437 = vmatpush.bf16.msra.mxu0 0
      %2438 = vmatpush.bf16.msra.mxu0 %v2429
      %2439 = vmatpush.bf16.msra.mxu0 %v2428
      %2440 = vmatmul.bf16.gmra.mxu0 %v2050
      %v2441 = vpop.f32.mrf.mxu0
      %v2442 = vadd.f32 %v2418, %v2441
      %v2443 = vpop.f32.mrf.mxu0
      %2444 = vdwg.mxu0
      %s2445 = scalar_lea.vmem %s1120, 160
      %v2446 = vld [vmem:[%s2445] sm:$0xf]
      %v2447 = vld [vmem:[%s2445 + $0x4] sm:$0xf]
      %v2448 = vld [vmem:[%s2445 + $0x8] sm:$0xf]
      %v2449 = vld [vmem:[%s2445 + $0xc] sm:$0xf]
      %s2450 = scalar_lea.vmem %s1124, 10
      %v2451 = vld [vmem:[%s2450] sm:$0x1]
      %v2453 = vperm.slane %v2451, 0
      %v2459 = vunpack.c.l.b16 %v2446
      %v2460 = vunpack.c.l.b16 %v2447
      %v2461 = vunpack.c.l.b16 %v2448
      %v2462 = vunpack.c.l.b16 %v2449
      %v2463 = vpack.c.b16 %v2460, %v2459
      %v2464 = vpack.c.b16 %v2462, %v2461
      %2467 = vmatpush.bf16.msra.mxu0 0
      %2468 = vmatpush.bf16.msra.mxu0 0
      %2469 = vmatpush.bf16.msra.mxu0 0
      %2470 = vmatpush.bf16.msra.mxu0 0
      %2471 = vmatpush.bf16.msra.mxu0 0
      %2472 = vmatpush.bf16.msra.mxu0 0
      %2473 = vmatpush.bf16.msra.mxu0 %v2464
      %2474 = vmatpush.bf16.msra.mxu0 %v2463
      %2475 = vmatmul.bf16.gmra.mxu0 %v2050
      %v2476 = vpop.f32.mrf.mxu0
      %v2477 = vadd.f32 %v2453, %v2476
      %v2478 = vpop.f32.mrf.mxu0
      %2479 = vdwg.mxu0
      %v2481 = vsel %vm1290, %v2407, 0
      %v2484 = vsel %vm1290, %v2442, 0
      %2486 = vmatpush.xpose.msra.mxu0 0.0
      %2487 = vmatpush.xpose.msra.mxu0 0.0
      %2488 = vmatpush.xpose.msra.mxu0 0.0
      %2489 = vmatpush.xpose.msra.mxu0 0.0
      %2490 = vmatpush.xpose.msra.mxu0 0.0
      %2491 = vmatpush.xpose.msra.mxu0 0.0
      %2492 = vmatpush.xpose.msra.mxu0 0.0
      %2493 = vmatpush.xpose.msra.mxu0 0.0
      %2494 = vmatpush.xpose.msra.mxu0 0.0
      %2495 = vmatpush.xpose.msra.mxu0 0.0
      %2496 = vmatpush.xpose.msra.mxu0 0.0
      %2497 = vmatpush.xpose.msra.mxu0 0.0
      %2498 = vmatpush.xpose.msra.mxu0 0.0
      %2499 = vmatpush.xpose.msra.mxu0 0.0
      %2500 = vmatpush.xpose.msra.mxu0 0.0
      %2501 = vmatpush.xpose.msra.mxu0 %v2484
      %2502 = vmatmul.f32.gmra.mxu0 %v2481
      %v2503 = vpop.f32.mrf.mxu0
      %v2504 = vadd.f32 0.0, %v2503
      %2505 = vdwg.mxu0
      %v2506 = vmul.f32 %v2504, 0.35355338
      %v2507 = vadd.f32 %v2506, %v2128
      %v2508 = vsel %vm1290, %v2507, -inf
      %2509 = vmax.xlane.f32.xlu0 %v2508
      %v2510 = vpop.xlane.xlu0 %2509
      %v2511 = vsub.f32 %v2507, %v2510
      %v2512 = vmul.f32 %v2511, 1.442695
      %v2513 = vpow.pop %v2512
      %v2514 = vsel %vm1290, %v2513, 0.0
      %2515 = vadd.xlane.f32.xlu0 %v2514
      %v2516 = vpop.xlane.xlu0 %2515
      %v2517 = vrcp.pop %v2516
      %v2518 = vmul.f32 %v2513, %v2517
      %v2520 = vsel %vm1290, %v2518, 0
      %2522 = vmatpush.msra.mxu0 0.0
      %2523 = vmatpush.msra.mxu0 0.0
      %2524 = vmatpush.msra.mxu0 0.0
      %2525 = vmatpush.msra.mxu0 0.0
      %2526 = vmatpush.msra.mxu0 0.0
      %2527 = vmatpush.msra.mxu0 0.0
      %2528 = vmatpush.msra.mxu0 0.0
      %2529 = vmatpush.msra.mxu0 0.0
      %2530 = vmatpush.msra.mxu0 0.0
      %2531 = vmatpush.msra.mxu0 0.0
      %2532 = vmatpush.msra.mxu0 0.0
      %2533 = vmatpush.msra.mxu0 0.0
      %2534 = vmatpush.msra.mxu0 0.0
      %2535 = vmatpush.msra.mxu0 0.0
      %2536 = vmatpush.msra.mxu0 0.0
      %2537 = vmatpush.msra.mxu0 %v2477
      %2538 = vmatmul.f32.gmra.mxu0 %v2520
      %v2539 = vpop.f32.mrf.mxu0
      %v2540 = vadd.f32 0.0, %v2539
      %2541 = vdwg.mxu0
      %v2542 = vpack.c.bf16 %v2540, %v2540
      %s2543 = scalar_lea.vmem %s1129, 8
      %v2544 = vld [vmem:[%s2543] sm:$0xf]
      %v2546 = vsel %vm1290, %v2542, 0
      %v2549 = vsel %vm1528, %v2544, 0
      %2551 = vmatpush.bf16.msra.mxu0 0
      %2552 = vmatpush.bf16.msra.mxu0 0
      %2553 = vmatpush.bf16.msra.mxu0 0
      %2554 = vmatpush.bf16.msra.mxu0 0
      %2555 = vmatpush.bf16.msra.mxu0 0
      %2556 = vmatpush.bf16.msra.mxu0 0
      %2557 = vmatpush.bf16.msra.mxu0 0
      %2558 = vmatpush.bf16.msra.mxu0 %v2549
      %2559 = vmatmul.bf16.gmra.mxu0 %v2546
      %v2560 = vpop.f32.mrf.mxu0
      %v2561 = vadd.f32 0.0, %v2560
      %v2562 = vpop.f32.mrf.mxu0
      %2563 = vdwg.mxu0
      %v2564 = vadd.f32 %v2372, %v2561
      %s2565 = scalar_lea.vmem %s1120, 48
      %v2566 = vld [vmem:[%s2565] sm:$0xf]
      %v2567 = vld [vmem:[%s2565 + $0x4] sm:$0xf]
      %v2568 = vld [vmem:[%s2565 + $0x8] sm:$0xf]
      %v2569 = vld [vmem:[%s2565 + $0xc] sm:$0xf]
      %s2570 = scalar_lea.vmem %s1124, 3
      %v2571 = vld [vmem:[%s2570] sm:$0x1]
      %v2573 = vperm.slane %v2571, 0
      %v2579 = vunpack.c.l.b16 %v2566
      %v2580 = vunpack.c.l.b16 %v2567
      %v2581 = vunpack.c.l.b16 %v2568
      %v2582 = vunpack.c.l.b16 %v2569
      %v2583 = vpack.c.b16 %v2580, %v2579
      %v2584 = vpack.c.b16 %v2582, %v2581
      %2587 = vmatpush.bf16.msra.mxu0 0
      %2588 = vmatpush.bf16.msra.mxu0 0
      %2589 = vmatpush.bf16.msra.mxu0 0
      %2590 = vmatpush.bf16.msra.mxu0 0
      %2591 = vmatpush.bf16.msra.mxu0 0
      %2592 = vmatpush.bf16.msra.mxu0 0
      %2593 = vmatpush.bf16.msra.mxu0 %v2584
      %2594 = vmatpush.bf16.msra.mxu0 %v2583
      %2595 = vmatmul.bf16.gmra.mxu0 %v2012
      %v2596 = vpop.f32.mrf.mxu0
      %v2597 = vadd.f32 %v2573, %v2596
      %v2598 = vpop.f32.mrf.mxu0
      %2599 = vdwg.mxu0
      %s2600 = scalar_lea.vmem %s1120, 112
      %v2601 = vld [vmem:[%s2600] sm:$0xf]
      %v2602 = vld [vmem:[%s2600 + $0x4] sm:$0xf]
      %v2603 = vld [vmem:[%s2600 + $0x8] sm:$0xf]
      %v2604 = vld [vmem:[%s2600 + $0xc] sm:$0xf]
      %s2605 = scalar_lea.vmem %s1124, 7
      %v2606 = vld [vmem:[%s2605] sm:$0x1]
      %v2608 = vperm.slane %v2606, 0
      %v2614 = vunpack.c.l.b16 %v2601
      %v2615 = vunpack.c.l.b16 %v2602
      %v2616 = vunpack.c.l.b16 %v2603
      %v2617 = vunpack.c.l.b16 %v2604
      %v2618 = vpack.c.b16 %v2615, %v2614
      %v2619 = vpack.c.b16 %v2617, %v2616
      %2622 = vmatpush.bf16.msra.mxu0 0
      %2623 = vmatpush.bf16.msra.mxu0 0
      %2624 = vmatpush.bf16.msra.mxu0 0
      %2625 = vmatpush.bf16.msra.mxu0 0
      %2626 = vmatpush.bf16.msra.mxu0 0
      %2627 = vmatpush.bf16.msra.mxu0 0
      %2628 = vmatpush.bf16.msra.mxu0 %v2619
      %2629 = vmatpush.bf16.msra.mxu0 %v2618
      %2630 = vmatmul.bf16.gmra.mxu0 %v2050
      %v2631 = vpop.f32.mrf.mxu0
      %v2632 = vadd.f32 %v2608, %v2631
      %v2633 = vpop.f32.mrf.mxu0
      %2634 = vdwg.mxu0
      %s2635 = scalar_lea.vmem %s1120, 176
      %v2636 = vld [vmem:[%s2635] sm:$0xf]
      %v2637 = vld [vmem:[%s2635 + $0x4] sm:$0xf]
      %v2638 = vld [vmem:[%s2635 + $0x8] sm:$0xf]
      %v2639 = vld [vmem:[%s2635 + $0xc] sm:$0xf]
      %s2640 = scalar_lea.vmem %s1124, 11
      %v2641 = vld [vmem:[%s2640] sm:$0x1]
      %v2643 = vperm.slane %v2641, 0
      %v2649 = vunpack.c.l.b16 %v2636
      %v2650 = vunpack.c.l.b16 %v2637
      %v2651 = vunpack.c.l.b16 %v2638
      %v2652 = vunpack.c.l.b16 %v2639
      %v2653 = vpack.c.b16 %v2650, %v2649
      %v2654 = vpack.c.b16 %v2652, %v2651
      %2657 = vmatpush.bf16.msra.mxu0 0
      %2658 = vmatpush.bf16.msra.mxu0 0
      %2659 = vmatpush.bf16.msra.mxu0 0
      %2660 = vmatpush.bf16.msra.mxu0 0
      %2661 = vmatpush.bf16.msra.mxu0 0
      %2662 = vmatpush.bf16.msra.mxu0 0
      %2663 = vmatpush.bf16.msra.mxu0 %v2654
      %2664 = vmatpush.bf16.msra.mxu0 %v2653
      %2665 = vmatmul.bf16.gmra.mxu0 %v2050
      %v2666 = vpop.f32.mrf.mxu0
      %v2667 = vadd.f32 %v2643, %v2666
      %v2668 = vpop.f32.mrf.mxu0
      %2669 = vdwg.mxu0
      %v2671 = vsel %vm1290, %v2597, 0
      %v2674 = vsel %vm1290, %v2632, 0
      %2676 = vmatpush.xpose.msra.mxu0 0.0
      %2677 = vmatpush.xpose.msra.mxu0 0.0
      %2678 = vmatpush.xpose.msra.mxu0 0.0
      %2679 = vmatpush.xpose.msra.mxu0 0.0
      %2680 = vmatpush.xpose.msra.mxu0 0.0
      %2681 = vmatpush.xpose.msra.mxu0 0.0
      %2682 = vmatpush.xpose.msra.mxu0 0.0
      %2683 = vmatpush.xpose.msra.mxu0 0.0
      %2684 = vmatpush.xpose.msra.mxu0 0.0
      %2685 = vmatpush.xpose.msra.mxu0 0.0
      %2686 = vmatpush.xpose.msra.mxu0 0.0
      %2687 = vmatpush.xpose.msra.mxu0 0.0
      %2688 = vmatpush.xpose.msra.mxu0 0.0
      %2689 = vmatpush.xpose.msra.mxu0 0.0
      %2690 = vmatpush.xpose.msra.mxu0 0.0
      %2691 = vmatpush.xpose.msra.mxu0 %v2674
      %2692 = vmatmul.f32.gmra.mxu0 %v2671
      %v2693 = vpop.f32.mrf.mxu0
      %v2694 = vadd.f32 0.0, %v2693
      %2695 = vdwg.mxu0
      %v2696 = vmul.f32 %v2694, 0.35355338
      %v2697 = vadd.f32 %v2696, %v2128
      %v2698 = vsel %vm1290, %v2697, -inf
      %2699 = vmax.xlane.f32.xlu0 %v2698
      %v2700 = vpop.xlane.xlu0 %2699
      %v2701 = vsub.f32 %v2697, %v2700
      %v2702 = vmul.f32 %v2701, 1.442695
      %v2703 = vpow.pop %v2702
      %v2704 = vsel %vm1290, %v2703, 0.0
      %2705 = vadd.xlane.f32.xlu0 %v2704
      %v2706 = vpop.xlane.xlu0 %2705
      %v2707 = vrcp.pop %v2706
      %v2708 = vmul.f32 %v2703, %v2707
      %v2710 = vsel %vm1290, %v2708, 0
      %2712 = vmatpush.msra.mxu0 0.0
      %2713 = vmatpush.msra.mxu0 0.0
      %2714 = vmatpush.msra.mxu0 0.0
      %2715 = vmatpush.msra.mxu0 0.0
      %2716 = vmatpush.msra.mxu0 0.0
      %2717 = vmatpush.msra.mxu0 0.0
      %2718 = vmatpush.msra.mxu0 0.0
      %2719 = vmatpush.msra.mxu0 0.0
      %2720 = vmatpush.msra.mxu0 0.0
      %2721 = vmatpush.msra.mxu0 0.0
      %2722 = vmatpush.msra.mxu0 0.0
      %2723 = vmatpush.msra.mxu0 0.0
      %2724 = vmatpush.msra.mxu0 0.0
      %2725 = vmatpush.msra.mxu0 0.0
      %2726 = vmatpush.msra.mxu0 0.0
      %2727 = vmatpush.msra.mxu0 %v2667
      %2728 = vmatmul.f32.gmra.mxu0 %v2710
      %v2729 = vpop.f32.mrf.mxu0
      %v2730 = vadd.f32 0.0, %v2729
      %2731 = vdwg.mxu0
      %v2732 = vpack.c.bf16 %v2730, %v2730
      %s2733 = scalar_lea.vmem %s1129, 12
      %v2734 = vld [vmem:[%s2733] sm:$0xf]
      %v2736 = vsel %vm1290, %v2732, 0
      %v2739 = vsel %vm1528, %v2734, 0
      %2741 = vmatpush.bf16.msra.mxu0 0
      %2742 = vmatpush.bf16.msra.mxu0 0
      %2743 = vmatpush.bf16.msra.mxu0 0
      %2744 = vmatpush.bf16.msra.mxu0 0
      %2745 = vmatpush.bf16.msra.mxu0 0
      %2746 = vmatpush.bf16.msra.mxu0 0
      %2747 = vmatpush.bf16.msra.mxu0 0
      %2748 = vmatpush.bf16.msra.mxu0 %v2739
      %2749 = vmatmul.bf16.gmra.mxu0 %v2736
      %v2750 = vpop.f32.mrf.mxu0
      %v2751 = vadd.f32 0.0, %v2750
      %v2752 = vpop.f32.mrf.mxu0
      %2753 = vdwg.mxu0
      %v2754 = vadd.f32 %v2564, %v2751
      %v2755 = vld [vmem:[%s1132] sm:$0x1]
      %v2757 = vperm.slane %v2755, 0
      %v2759 = vadd.f32 %v2754, %v2757
      %v2760 = vadd.f32 %v1988, %v2759
      %v2761 = vld [vmem:[%s1135] sm:$0x1]
      %v2762 = vld [vmem:[%s1138] sm:$0x1]
      %v2763 = vsel %vm1203, %v2760, 0.0
      %2764 = vadd.xlane.f32.xlu0 %v2763
      %v2765 = vpop.xlane.xlu0 %2764
      %v2766 = vmul.f32 %v2765, %v1961
      %v2767 = vsub.f32 %v2760, %v2766
      %v2768 = vmul.f32 %v2767, %v2767
      %v2769 = vsel %vm1203, %v2768, 0.0
      %2770 = vadd.xlane.f32.xlu0 %v2769
      %v2771 = vpop.xlane.xlu0 %2770
      %v2772 = vmul.f32 %v2771, %v1961
      %v2773 = vadd.f32 %v2772, 1e-05
      %v2774 = vrsqrt.pop %v2773
      %v2775 = vmul.f32 %v2774, %v2773
      %v2776 = vmul.f32 %v2775, %v2774
      %v2777 = vmul.f32 0.5, %v2776
      %v2778 = vsub.f32 1.5, %v2777
      %v2779 = vmul.f32 %v2774, %v2778
      %vm2780 = vweird.f32 %v2773
      %vm2781 = vweird.f32 %v2774
      %vm2782 = vmor %vm2780, %vm2781
      %v2783 = vsel %vm2782, %v2774, %v2779
      %v2784 = vmul.f32 %v2767, %v2783
      %v2786 = vperm.slane %v2761, 0
      %v2788 = vmul.f32 %v2784, %v2786
      %v2790 = vperm.slane %v2762, 0
      %v2792 = vadd.f32 %v2788, %v2790
      %v2793 = vpack.c.bf16 %v2792, %v2792
      %v2794 = vld [vmem:[%s1143] sm:$0xf]
      %v2795 = vld [vmem:[%s1143 + $0x4] sm:$0xf]
      %v2796 = vld [vmem:[%s1143 + $0x8] sm:$0xf]
      %v2797 = vld [vmem:[%s1143 + $0xc] sm:$0xf]
      %v2798 = vld [vmem:[%s1146] sm:$0x1]
      %v2800 = vperm.slane %v2798, 0
      %v2806 = vunpack.c.l.b16 %v2794
      %v2807 = vunpack.c.l.b16 %v2795
      %v2808 = vunpack.c.l.b16 %v2796
      %v2809 = vunpack.c.l.b16 %v2797
      %v2810 = vpack.c.b16 %v2807, %v2806
      %v2811 = vpack.c.b16 %v2809, %v2808
      %v2815 = vsel %vm1203, %v2793, 0
      %2817 = vmatpush.bf16.msra.mxu0 0
      %2818 = vmatpush.bf16.msra.mxu0 0
      %2819 = vmatpush.bf16.msra.mxu0 0
      %2820 = vmatpush.bf16.msra.mxu0 0
      %2821 = vmatpush.bf16.msra.mxu0 0
      %2822 = vmatpush.bf16.msra.mxu0 0
      %2823 = vmatpush.bf16.msra.mxu0 %v2811
      %2824 = vmatpush.bf16.msra.mxu0 %v2810
      %2825 = vmatmul.bf16.gmra.mxu0 %v2815
      %v2826 = vpop.f32.mrf.mxu0
      %v2827 = vadd.f32 %v2800, %v2826
      %v2828 = vpop.f32.mrf.mxu0
      %2829 = vdwg.mxu0
      %v2830 = vmax.f32 %v2827, 0.0
      %v2831 = vpack.c.bf16 %v2830, %v2830
      %v2832 = vld [vmem:[%s1151] sm:$0xf]
      %v2833 = vld [vmem:[%s1151 + $0x4] sm:$0xf]
      %v2834 = vld [vmem:[%s1151 + $0x8] sm:$0xf]
      %v2835 = vld [vmem:[%s1151 + $0xc] sm:$0xf]
      %v2836 = vld [vmem:[%s1151 + $0x10] sm:$0xf]
      %v2837 = vld [vmem:[%s1151 + $0x14] sm:$0xf]
      %v2838 = vld [vmem:[%s1151 + $0x18] sm:$0xf]
      %v2839 = vld [vmem:[%s1151 + $0x1c] sm:$0xf]
      %v2840 = vld [vmem:[%s1154] sm:$0x1]
      %v2842 = vperm.slane %v2840, 0
      %v2852 = vunpack.c.l.b16 %v2832
      %v2853 = vunpack.c.l.b16 %v2833
      %v2854 = vunpack.c.l.b16 %v2834
      %v2855 = vunpack.c.l.b16 %v2835
      %v2856 = vunpack.c.l.b16 %v2836
      %v2857 = vunpack.c.l.b16 %v2837
      %v2858 = vunpack.c.l.b16 %v2838
      %v2859 = vunpack.c.l.b16 %v2839
      %v2860 = vpack.c.b16 %v2853, %v2852
      %v2861 = vpack.c.b16 %v2855, %v2854
      %v2862 = vpack.c.b16 %v2857, %v2856
      %v2863 = vpack.c.b16 %v2859, %v2858
      %vm2868 = vcmask 523264
      %v2870 = vsel %vm2868, %v2831, 0
      %2872 = vmatpush.bf16.msra.mxu0 0
      %2873 = vmatpush.bf16.msra.mxu0 0
      %2874 = vmatpush.bf16.msra.mxu0 0
      %2875 = vmatpush.bf16.msra.mxu0 0
      %2876 = vmatpush.bf16.msra.mxu0 %v2863
      %2877 = vmatpush.bf16.msra.mxu0 %v2862
      %2878 = vmatpush.bf16.msra.mxu0 %v2861
      %2879 = vmatpush.bf16.msra.mxu0 %v2860
      %2880 = vmatmul.bf16.gmra.mxu0 %v2870
      %v2881 = vpop.f32.mrf.mxu0
      %v2882 = vadd.f32 %v2842, %v2881
      %v2883 = vpop.f32.mrf.mxu0
      %2884 = vdwg.mxu0
      %v2885 = vadd.f32 %v2792, %v2882
      %v2886 = vld [vmem:[%s1157] sm:$0x1]
      %v2887 = vld [vmem:[%s1160] sm:$0x1]
      %v2888 = vsel %vm1203, %v2885, 0.0
      %2889 = vadd.xlane.f32.xlu0 %v2888
      %v2890 = vpop.xlane.xlu0 %2889
      %v2891 = vmul.f32 %v2890, %v1961
      %v2892 = vsub.f32 %v2885, %v2891
      %v2893 = vmul.f32 %v2892, %v2892
      %v2894 = vsel %vm1203, %v2893, 0.0
      %2895 = vadd.xlane.f32.xlu0 %v2894
      %v2896 = vpop.xlane.xlu0 %2895
      %v2897 = vmul.f32 %v2896, %v1961
      %v2898 = vadd.f32 %v2897, 1e-05
      %v2899 = vrsqrt.pop %v2898
      %v2900 = vmul.f32 %v2899, %v2898
      %v2901 = vmul.f32 %v2900, %v2899
      %v2902 = vmul.f32 0.5, %v2901
      %v2903 = vsub.f32 1.5, %v2902
      %v2904 = vmul.f32 %v2899, %v2903
      %vm2905 = vweird.f32 %v2898
      %vm2906 = vweird.f32 %v2899
      %vm2907 = vmor %vm2905, %vm2906
      %v2908 = vsel %vm2907, %v2899, %v2904
      %v2909 = vmul.f32 %v2892, %v2908
      %v2911 = vperm.slane %v2886, 0
      %v2913 = vmul.f32 %v2909, %v2911
      %v2915 = vperm.slane %v2887, 0
      %v2917 = vadd.f32 %v2913, %v2915
      %2918 = vst.msk [vmem:[#allocation2] sm:$0xff] %vm1203, %v2917
      %p2919 = scmp.eq.s32.totalorder %s43, 1
      // Predicated region
      $region133: #{seq2seq_forward.3} parent=127 // pred_check
        %p2920 = pneg %p2919
      $region134: #{seq2seq_forward.3} parent=127 // pred_check_branch
        %2922 = sbr.rel (%p2920) target = $region136
      $region135: #{seq2seq_forward.3} parent=127 // pred_region
        %v2923 = vld [vmem:[#allocation2] sm:$0xff]
        %v2924 = vld [vmem:[%s23] sm:$0x1]
        %v2925 = vld [vmem:[%s24] sm:$0x1]
        %v2926 = vsel %vm1203, %v2923, 0.0
        %2927 = vadd.xlane.f32.xlu0 %v2926
        %v2928 = vpop.xlane.xlu0 %2927
        %v2929 = vmul.f32 %v2928, %v1961
        %v2930 = vsub.f32 %v2923, %v2929
        %v2931 = vmul.f32 %v2930, %v2930
        %v2932 = vsel %vm1203, %v2931, 0.0
        %2933 = vadd.xlane.f32.xlu0 %v2932
        %v2934 = vpop.xlane.xlu0 %2933
        %v2935 = vmul.f32 %v2934, %v1961
        %v2936 = vadd.f32 %v2935, 1e-05
        %v2937 = vrsqrt.pop %v2936
        %v2938 = vmul.f32 %v2937, %v2936
        %v2939 = vmul.f32 %v2938, %v2937
        %v2940 = vmul.f32 0.5, %v2939
        %v2941 = vsub.f32 1.5, %v2940
        %v2942 = vmul.f32 %v2937, %v2941
        %vm2943 = vweird.f32 %v2936
        %vm2944 = vweird.f32 %v2937
        %vm2945 = vmor %vm2943, %vm2944
        %v2946 = vsel %vm2945, %v2937, %v2942
        %v2947 = vmul.f32 %v2930, %v2946
        %v2949 = vperm.slane %v2924, 0
        %v2951 = vmul.f32 %v2947, %v2949
        %v2953 = vperm.slane %v2925, 0
        %v2955 = vadd.f32 %v2951, %v2953
        %v2956 = vpack.c.bf16 %v2955, %v2955
        %v2957 = vld [vmem:[%s25] sm:$0xf]
        %v2958 = vld [vmem:[%s25 + $0x4] sm:$0xf]
        %v2959 = vld [vmem:[%s25 + $0x8] sm:$0xf]
        %v2960 = vld [vmem:[%s25 + $0xc] sm:$0xf]
        %v2961 = vld [vmem:[%s26] sm:$0x1]
        %v2963 = vperm.slane %v2961, 0
        %v2969 = vunpack.c.l.b16 %v2957
        %v2970 = vunpack.c.l.b16 %v2958
        %v2971 = vunpack.c.l.b16 %v2959
        %v2972 = vunpack.c.l.b16 %v2960
        %v2973 = vpack.c.b16 %v2970, %v2969
        %v2974 = vpack.c.b16 %v2972, %v2971
        %v2978 = vsel %vm1203, %v2956, 0
        %2980 = vmatpush.bf16.msra.mxu0 0
        %2981 = vmatpush.bf16.msra.mxu0 0
        %2982 = vmatpush.bf16.msra.mxu0 0
        %2983 = vmatpush.bf16.msra.mxu0 0
        %2984 = vmatpush.bf16.msra.mxu0 0
        %2985 = vmatpush.bf16.msra.mxu0 0
        %2986 = vmatpush.bf16.msra.mxu0 %v2974
        %2987 = vmatpush.bf16.msra.mxu0 %v2973
        %2988 = vmatmul.bf16.gmra.mxu0 %v2978
        %v2989 = vpop.f32.mrf.mxu0
        %v2990 = vadd.f32 %v2963, %v2989
        %v2991 = vpop.f32.mrf.mxu0
        %2992 = vdwg.mxu0
        %2993 = vst [vmem:[%s1164] sm:$0xff] %v2990
      $region136: #{seq2seq_forward.3} parent=127 // pred_fallthru
        _
      %p2994 = scmp.lt.s32.totalorder %s42, 1
      %s2995 = scalar_select %p2994, %s42, 1
      %s2996 = smul.addr %s2995, 8
      %s2997 = scalar_lea.vmem %s27, %s2996
      // Predicated region
      $region137: #{seq2seq_forward.3} parent=127 // pred_check
        %p2998 = pneg %p745
      $region138: #{seq2seq_forward.3} parent=127 // pred_check_branch
        %3000 = sbr.rel (%p2998) target = $region140
      $region139: #{seq2seq_forward.3} parent=127 // pred_region
        _
      $region140: #{seq2seq_forward.3} parent=127 // pred_fallthru
        _
    $region128: #{seq2seq_forward.3} parent=5 // pred_fallthru
      _
    %p3001 = scmp.le.s32.totalorder 2, %s33
    // Predicated region
    $region141: #{seq2seq_forward.3} parent=5 // pred_check
      %p3002 = pneg %p3001
    $region142: #{seq2seq_forward.3} parent=5 // pred_check_branch
      %3004 = sbr.rel (%p3002) target = $region144
    $region143: #{seq2seq_forward.3} parent=5 // pred_region
      %s3005 = ssub.s32 %s33, 2
      // Predicated region
      $region145: #{seq2seq_forward.3} parent=143 // pred_check
        %p3006 = pneg %p751
      $region146: #{seq2seq_forward.3} parent=143 // pred_check_branch
        %3008 = sbr.rel (%p3006) target = $region148
      $region147: #{seq2seq_forward.3} parent=143 // pred_region
        %p3009 = scmp.lt.s32.totalorder %s44, 1
        %s3010 = scalar_select %p3009, %s44, 1
        %s3011 = smul.addr %s3010, 8
        %s3012 = scalar_lea.vmem %s27, %s3011
      $region148: #{seq2seq_forward.3} parent=143 // pred_fallthru
        _
    $region144: #{seq2seq_forward.3} parent=5 // pred_fallthru
      _
  $region6: #{seq2seq_forward.3} parent=0 // loop_footer
    %s37 = sadd.s32 1, %s33
  $region7: #{seq2seq_forward.3} parent=0 // loop_footer_branch
    %32 = sbr.rel target = $region3
  $region8: #{seq2seq_forward.3} parent=0 // loop_exit
    _

</llo_original>
